<compile_context>
chip_gen: v6e
topology: v6e:2x2x1
jax: 0.10.0
libtpu: 0.0.40
codegen_flags: <defaults>
</compile_context>

<pallas_src>
import functools

import numpy as np

import jax
import jax.numpy as jnp
from jax.experimental import pallas as pl
from jax.experimental.pallas import tpu as pltpu

NEG_SLOPE = 0.3     # LeakyReLU(0.3)
NEG_MASK = -1e9     # "minus infinity" for maxpool padding (safe in f32)


def _leaky(v):
    return jnp.where(v > 0, v, NEG_SLOPE * v)


# ------------------------------ Pallas kernels ------------------------------ #

def _stem_kernel(p_ref, w_ref, b_ref, m_ref, o_ref):
    # p: (326, 27) im2col rows laid out on the padded 18x18 pool grid
    #    (+1 guard row at each end); w: (27, 16); b: (1, 16);
    # m: (326, 1) additive validity mask (0 on real rows, -1e9 elsewhere);
    # o: (288, 16) = stride-1 3x3 maxpool of leaky(conv1) on the (16 x 18) grid.
    y = jnp.dot(p_ref[...], w_ref[...], preferred_element_type=jnp.float32)
    y = _leaky(y + b_ref[...])
    ym = y + m_ref[...]
    out = None
    for oi in (-1, 0, 1):
        for oj in (-1, 0, 1):
            s = 19 + oi * 18 + oj             # row shift on the 18-wide grid
            t = ym[s:s + 288, :]
            out = t if out is None else jnp.maximum(out, t)
    o_ref[...] = out


def _dsc_pool_kernel(f_ref, dww_ref, dwb_ref, p1w_ref, p1b_ref,
                     p2w_ref, p2b_ref, m_ref, o_ref):
    # f: (124, 16) zero-padded 10x10 grid + 12 guard rows at each end.
    # dww: (9, 16); p1w: (16, 32); p2w: (32, 32); m: (102, 1); o: (80, 32).
    f = f_ref[...]
    acc = None
    k = 0
    for oi in (-1, 0, 1):                     # depthwise 3x3, pad 1
        for oj in (-1, 0, 1):
            s = 11 + oi * 10 + oj
            t = f[s:s + 102, :] * dww_ref[k:k + 1, :]
            acc = t if acc is None else acc + t
            k += 1
    acc = acc + dwb_ref[...]
    y = jnp.dot(acc, p1w_ref[...], preferred_element_type=jnp.float32) + p1b_ref[...]
    y = _leaky(y)
    y = jnp.dot(y, p2w_ref[...], preferred_element_type=jnp.float32) + p2b_ref[...]
    y = _leaky(y)
    ym = y + m_ref[...]
    out = None
    for oi in (-1, 0, 1):                     # stride-1 3x3 maxpool, pad 1
        for oj in (-1, 0, 1):
            s = 11 + oi * 10 + oj
            t = ym[s:s + 80, :]
            out = t if out is None else jnp.maximum(out, t)
    o_ref[...] = out


def _mfli_kernel(f_ref, m_ref, c1w_ref, c1b_ref,
                 dw3_ref, db3_ref, pw3_ref, pb3_ref,
                 dw5_ref, db5_ref, pw5_ref, pb5_ref,
                 c4w_ref, c4b_ref, o_ref):
    # f: (68, Cin) zero-padded (p=2) 8x8 grid + 2 guard rows at each end.
    # o: (32, 144) = 4 real rows x 8 padded cols, the four branches concatenated
    # along channels in PyTorch order [16, 48, 48, 32].
    f = f_ref[...]
    L, W, base = 32, 8, 18

    def mm(a, w_ref, b_ref):
        return jnp.dot(a, w_ref[...], preferred_element_type=jnp.float32) + b_ref[...]

    x = f[base:base + L, :]

    # branch 1: 1x1 -> 16
    o_ref[:, 0:16] = _leaky(mm(x, c1w_ref, c1b_ref))

    # branch 2: depthwise 3x3 (pad 1) + 1x1 -> 48
    acc = None
    k = 0
    for oi in (-1, 0, 1):
        for oj in (-1, 0, 1):
            s = base + oi * W + oj
            t = f[s:s + L, :] * dw3_ref[k:k + 1, :]
            acc = t if acc is None else acc + t
            k += 1
    o_ref[:, 16:64] = _leaky(mm(acc + db3_ref[...], pw3_ref, pb3_ref))

    # branch 3: depthwise 5x5 (pad 2) + 1x1 -> 48
    acc = None
    k = 0
    for oi in (-2, -1, 0, 1, 2):
        for oj in (-2, -1, 0, 1, 2):
            s = base + oi * W + oj
            t = f[s:s + L, :] * dw5_ref[k:k + 1, :]
            acc = t if acc is None else acc + t
            k += 1
    o_ref[:, 64:112] = _leaky(mm(acc + db5_ref[...], pw5_ref, pb5_ref))

    # branch 4: 3x3 stride-1 maxpool (pad 1, -inf semantics via mask) + 1x1 -> 32
    fneg = f + m_ref[...]
    mp = None
    for oi in (-1, 0, 1):
        for oj in (-1, 0, 1):
            s = base + oi * W + oj
            t = fneg[s:s + L, :]
            mp = t if mp is None else jnp.maximum(mp, t)
    o_ref[:, 112:144] = _leaky(mm(mp, c4w_ref, c4b_ref))


# spatial index sets of the 3x3 / stride-2 / pad-1 maxpool on a 4x4 grid
_HEAD_WINDOWS = ((0, 1, 4, 5),
                 (1, 2, 3, 5, 6, 7),
                 (4, 5, 8, 9, 12, 13),
                 (5, 6, 7, 9, 10, 11, 13, 14, 15))


def _head_kernel(x_ref, w12_ref, b12_ref, w3_ref, b3_ref, o_ref):
    # x: (B, 16, 144).  maxpool(3,2,1) 4x4 -> 2x2, global avg pool, GLU classifier.
    x = x_ref[...]
    feat = None
    for win in _HEAD_WINDOWS:
        m = x[:, win[0], :]
        for s in win[1:]:
            m = jnp.maximum(m, x[:, s, :])
        feat = m if feat is None else feat + m
    feat = feat * 0.25                                   # (B, 144) pooled features
    z = jnp.dot(feat, w12_ref[...], preferred_element_type=jnp.float32) + b12_ref[...]
    g = z[:, 0:15] * jax.nn.sigmoid(z[:, 15:30])
    out = jnp.dot(g, w3_ref[...], preferred_element_type=jnp.float32) + b3_ref[...]
    o_ref[...] = out


# ------------------------------ glue / wrappers ------------------------------ #

def _row_mask(hp, wp, lo, hi, guard):
    """(hp*wp + 2*guard, 1) additive mask: 0 where (ip, jp) in [lo, hi)^2, else -1e9."""
    m = np.full((hp * wp + 2 * guard, 1), NEG_MASK, np.float32)
    for ip in range(lo, hi):
        for jp in range(lo, hi):
            m[guard + ip * wp + jp, 0] = 0.0
    return jnp.asarray(m)


def _flatten_pad(x, pad, guard):
    """(B,H,W,C) -> (B, (H+2p)*(W+2p) + 2*guard, C), zero padded, h-major flattening."""
    B, H, W, C = x.shape
    xp = jnp.pad(x, ((0, 0), (pad, pad), (pad, pad), (0, 0)))
    xf = xp.reshape(B, (H + 2 * pad) * (W + 2 * pad), C)
    return jnp.pad(xf, ((0, 0), (guard, guard), (0, 0)))


def _parallel_batch():
    return pltpu.CompilerParams(dimension_semantics=("parallel",))


def stem(x, w, b):
    """conv1 3x3 s2 p1 + LeakyReLU + maxpool 3x3 s2 p1.  (B,32,32,3) -> (B,8,8,16)."""
    B, H, _, C = x.shape                       # 2, 32, 32, 3
    Ho = (H + 2 - 3) // 2 + 1                  # 16
    # TODO(synk): the strided stem conv still builds its im2col patch rows in XLA
    # glue (stride-2 window extraction is not expressible as an in-kernel row
    # shift); every other window op in the network is done in-kernel.
    xp = jnp.pad(x, ((0, 0), (1, 1), (1, 1), (0, 0)))
    taps = []
    for di in range(3):
        for dj in range(3):
            taps.append(xp[:, di:di + 2 * Ho - 1:2, dj:dj + 2 * Ho - 1:2, :])
    p = jnp.stack(taps, axis=3).reshape(B, Ho, Ho, 9 * C)            # (B,16,16,27)
    # embed the patch rows into the padded 18x18 pool grid + 1 guard row each end
    pg = jnp.zeros((B, Ho + 2, Ho + 2, 9 * C), p.dtype)
    pg = pg.at[:, 1:Ho + 1, 1:Ho + 1, :].set(p)
    pg = jnp.pad(pg.reshape(B, (Ho + 2) * (Ho + 2), 9 * C), ((0, 0), (1, 1), (0, 0)))

    wm = jnp.transpose(w, (2, 3, 1, 0)).reshape(9 * C, 16)
    bm = b.reshape(1, 16)
    mask = _row_mask(18, 18, 1, 17, guard=1)                         # (326, 1)

    out = pl.pallas_call(
        _stem_kernel,
        out_shape=jax.ShapeDtypeStruct((B, 288, 16), jnp.float32),
        grid=(B,),
        in_specs=[pl.BlockSpec((None, 326, 27), lambda i: (i, 0, 0)),
                  pl.BlockSpec((27, 16), lambda i: (0, 0)),
                  pl.BlockSpec((1, 16), lambda i: (0, 0)),
                  pl.BlockSpec((326, 1), lambda i: (0, 0))],
        out_specs=pl.BlockSpec((None, 288, 16), lambda i: (i, 0, 0)),
        compiler_params=_parallel_batch(),
    )(pg, wm, bm, mask)
    # drop pad columns, subsample the stride-1 pool down to stride 2
    return out.reshape(B, 16, 18, 16)[:, :, 1:17, :][:, ::2, ::2, :]  # (B,8,8,16)


def dsc_block(x, params):
    """DepthwiseSeparableConv(16->32) + LeakyReLU + 1x1(32->32) + LeakyReLU
    + maxpool 3x3 s2 p1.  (B,8,8,16) -> (B,4,4,32)."""
    B = x.shape[0]
    f = _flatten_pad(x, pad=1, guard=12)       # (B, 124, 16)
    mask = _row_mask(10, 10, 1, 9, guard=1)    # (102, 1)
    dww = jnp.transpose(params["dsc_dw_w"], (2, 3, 1, 0)).reshape(9, 16)
    dwb = params["dsc_dw_b"].reshape(1, 16)
    p1w = params["dsc_pw_w"].reshape(32, 16).T
    p1b = params["dsc_pw_b"].reshape(1, 32)
    p2w = params["pw_w"].reshape(32, 32).T
    p2b = params["pw_b"].reshape(1, 32)

    out = pl.pallas_call(
        _dsc_pool_kernel,
        out_shape=jax.ShapeDtypeStruct((B, 80, 32), jnp.float32),
        grid=(B,),
        in_specs=[pl.BlockSpec((None, 124, 16), lambda i: (i, 0, 0)),
                  pl.BlockSpec((9, 16), lambda i: (0, 0)),
                  pl.BlockSpec((1, 16), lambda i: (0, 0)),
                  pl.BlockSpec((16, 32), lambda i: (0, 0)),
                  pl.BlockSpec((1, 32), lambda i: (0, 0)),
                  pl.BlockSpec((32, 32), lambda i: (0, 0)),
                  pl.BlockSpec((1, 32), lambda i: (0, 0)),
                  pl.BlockSpec((102, 1), lambda i: (0, 0))],
        out_specs=pl.BlockSpec((None, 80, 32), lambda i: (i, 0, 0)),
        compiler_params=_parallel_batch(),
    )(f, dww, dwb, p1w, p1b, p2w, p2b, mask)
    return out.reshape(B, 8, 10, 32)[:, :, 1:9, :][:, ::2, ::2, :]    # (B,4,4,32)


def mfli_block(x, p):
    """Fused MFLI block.  (B,4,4,Cin) -> (B,4,4,144)."""
    B, _, _, cin = x.shape
    f = _flatten_pad(x, pad=2, guard=2)        # (B, 68, cin)
    mask = _row_mask(8, 8, 2, 6, guard=2)      # (68, 1)
    c1w = p["c1_w"].reshape(16, cin).T
    c1b = p["c1_b"].reshape(1, 16)
    dw3 = jnp.transpose(p["c2_dw_w"], (2, 3, 1, 0)).reshape(9, cin)
    db3 = p["c2_dw_b"].reshape(1, cin)
    pw3 = p["c2_pw_w"].reshape(48, cin).T
    pb3 = p["c2_pw_b"].reshape(1, 48)
    dw5 = jnp.transpose(p["c3_dw_w"], (2, 3, 1, 0)).reshape(25, cin)
    db5 = p["c3_dw_b"].reshape(1, cin)
    pw5 = p["c3_pw_w"].reshape(48, cin).T
    pb5 = p["c3_pw_b"].reshape(1, 48)
    c4w = p["c4_w"].reshape(32, cin).T
    c4b = p["c4_b"].reshape(1, 32)

    out = pl.pallas_call(
        _mfli_kernel,
        out_shape=jax.ShapeDtypeStruct((B, 32, 144), jnp.float32),
        grid=(B,),
        in_specs=[pl.BlockSpec((None, 68, cin), lambda i: (i, 0, 0)),
                  pl.BlockSpec((68, 1), lambda i: (0, 0)),
                  pl.BlockSpec((cin, 16), lambda i: (0, 0)),
                  pl.BlockSpec((1, 16), lambda i: (0, 0)),
                  pl.BlockSpec((9, cin), lambda i: (0, 0)),
                  pl.BlockSpec((1, cin), lambda i: (0, 0)),
                  pl.BlockSpec((cin, 48), lambda i: (0, 0)),
                  pl.BlockSpec((1, 48), lambda i: (0, 0)),
                  pl.BlockSpec((25, cin), lambda i: (0, 0)),
                  pl.BlockSpec((1, cin), lambda i: (0, 0)),
                  pl.BlockSpec((cin, 48), lambda i: (0, 0)),
                  pl.BlockSpec((1, 48), lambda i: (0, 0)),
                  pl.BlockSpec((cin, 32), lambda i: (0, 0)),
                  pl.BlockSpec((1, 32), lambda i: (0, 0))],
        out_specs=pl.BlockSpec((None, 32, 144), lambda i: (i, 0, 0)),
        compiler_params=_parallel_batch(),
    )(f, mask, c1w, c1b, dw3, db3, pw3, pb3, dw5, db5, pw5, pb5, c4w, c4b)
    return out.reshape(B, 4, 8, 144)[:, :, 2:6, :]                    # (B,4,4,144)


def head(x, g):
    """maxpool 3x3 s2 p1 (4x4->2x2) + global avg pool + GLU classifier.  -> (B,1)."""
    B = x.shape[0]
    xf = x.reshape(B, 16, 144)
    w12 = jnp.concatenate([g["fc1_w"].T, g["fc2_w"].T], axis=1)       # (144, 30)
    b12 = jnp.concatenate([g["fc1_b"], g["fc2_b"]]).reshape(1, 30)
    w3 = g["fc3_w"].T                                                 # (15, 1)
    b3 = g["fc3_b"].reshape(1, 1)
    return pl.pallas_call(
        _head_kernel,
        out_shape=jax.ShapeDtypeStruct((B, 1), jnp.float32),
        grid=(1,),
        in_specs=[pl.BlockSpec((B, 16, 144), lambda i: (0, 0, 0)),
                  pl.BlockSpec((144, 30), lambda i: (0, 0)),
                  pl.BlockSpec((1, 30), lambda i: (0, 0)),
                  pl.BlockSpec((15, 1), lambda i: (0, 0)),
                  pl.BlockSpec((1, 1), lambda i: (0, 0))],
        out_specs=pl.BlockSpec((B, 1), lambda i: (0, 0)),
    )(xf, w12, b12, w3, b3)


def rdlinet_forward(x_nchw, params):
    x = jnp.transpose(x_nchw, (0, 2, 3, 1))                 # NCHW -> NHWC
    x = stem(x, params["conv1_w"], params["conv1_b"])       # (B,8,8,16)
    x = dsc_block(x, params)                                # (B,4,4,32)
    x = mfli_block(x, params["mfli1"])                      # (B,4,4,144)
    x = mfli_block(x, params["mfli2"])                      # (B,4,4,144)
    return head(x, params["glu"])                           # (B,1)


# ------------------------------ parameter init ------------------------------- #

def init_params():
    key = jax.random.PRNGKey(42)
    keys = iter(jax.random.split(key, 64))

    def conv_w(cout, cin, k):
        return jax.random.normal(next(keys), (cout, cin, k, k), jnp.float32) * 0.05

    def vec(n):
        return jax.random.normal(next(keys), (n,), jnp.float32) * 0.05

    def mat(out_f, in_f):
        return jax.random.normal(next(keys), (out_f, in_f), jnp.float32) * 0.05

    def mfli_params(cin):
        return dict(
            c1_w=conv_w(16, cin, 1), c1_b=vec(16),
            c2_dw_w=conv_w(cin, 1, 3), c2_dw_b=vec(cin),
            c2_pw_w=conv_w(48, cin, 1), c2_pw_b=vec(48),
            c3_dw_w=conv_w(cin, 1, 5), c3_dw_b=vec(cin),
            c3_pw_w=conv_w(48, cin, 1), c3_pw_b=vec(48),
            c4_w=conv_w(32, cin, 1), c4_b=vec(32),
        )

    return dict(
        conv1_w=conv_w(16, 3, 3), conv1_b=vec(16),
        dsc_dw_w=conv_w(16, 1, 3), dsc_dw_b=vec(16),
        dsc_pw_w=conv_w(32, 16, 1), dsc_pw_b=vec(32),
        pw_w=conv_w(32, 32, 1), pw_b=vec(32),
        mfli1=mfli_params(32),
        mfli2=mfli_params(144),
        glu=dict(
            fc1_w=mat(15, 144), fc1_b=vec(15),
            fc2_w=mat(15, 144), fc2_b=vec(15),
            fc3_w=mat(1, 15), fc3_b=vec(1),
        ),
    )


if __name__ == "__main__":
    params = init_params()
    x = jax.random.normal(jax.random.PRNGKey(0), (2, 3, 32, 32), jnp.float32)  # NCHW
    fwd = jax.jit(rdlinet_forward)
    out = fwd(x, params)
    jax.block_until_ready(out)
    assert out.shape == (2, 1), out.shape
    assert bool(jnp.all(jnp.isfinite(out)))
    print("KERNEL_OK")
</pallas_src>

<mosaic_0001>
module attributes {stable_mosaic.version = 11 : i64} {
  func.func @_stem_kernel(%arg0: i32, %arg1: memref<1x326x27xf32, #tpu.memory_space<vmem>>, %arg2: memref<27x16xf32, #tpu.memory_space<vmem>>, %arg3: memref<1x16xf32, #tpu.memory_space<vmem>>, %arg4: memref<326x1xf32, #tpu.memory_space<vmem>>, %arg5: memref<1x288x16xf32, #tpu.memory_space<vmem>>) attributes {dimension_semantics = [#tpu.dimension_semantics<parallel>], iteration_bounds = array<i64: 2>, scalar_prefetch = 0 : i64, scratch_operands = 0 : i64, tpu.core_type = #tpu.core_type<tc>, window_params = [{transform_indices = @transform_0, window_bounds = array<i64: 1, 326, 27>}, {pipeline_mode = #tpu.pipeline_mode<synchronous>, transform_indices = @transform_1, window_bounds = array<i64: 27, 16>}, {pipeline_mode = #tpu.pipeline_mode<synchronous>, transform_indices = @transform_2, window_bounds = array<i64: 1, 16>}, {pipeline_mode = #tpu.pipeline_mode<synchronous>, transform_indices = @transform_3, window_bounds = array<i64: 326, 1>}, {transform_indices = @transform_4, window_bounds = array<i64: 1, 288, 16>}]} {
    %c0 = arith.constant 0 : index
    %c0_0 = arith.constant 0 : index
    %c0_1 = arith.constant 0 : index
    %0 = vector.load %arg1[%c0, %c0_0, %c0_1] : memref<1x326x27xf32, #tpu.memory_space<vmem>>, vector<1x326x27xf32>
    %1 = vector.shape_cast %0 : vector<1x326x27xf32> to vector<326x27xf32>
    %c0_2 = arith.constant 0 : index
    %c0_3 = arith.constant 0 : index
    %2 = vector.load %arg2[%c0_2, %c0_3] : memref<27x16xf32, #tpu.memory_space<vmem>>, vector<27x16xf32>
    %cst = arith.constant dense<0.000000e+00> : vector<326x16xf32>
    %3 = tpu.matmul %1, %2, %cst {dimension_numbers = #tpu.dot_dimension_numbers<[1], [0], [0], [1], [0, 0, 1, 1], [], []>} : vector<326x27xf32>, vector<27x16xf32>, vector<326x16xf32> -> vector<326x16xf32>
    %c0_4 = arith.constant 0 : index
    %c0_5 = arith.constant 0 : index
    %4 = vector.load %arg3[%c0_4, %c0_5] : memref<1x16xf32, #tpu.memory_space<vmem>>, vector<1x16xf32>
    %5 = vector.broadcast %4 : vector<1x16xf32> to vector<326x16xf32>
    %6 = arith.addf %3, %5 : vector<326x16xf32>
    %cst_6 = arith.constant 0.000000e+00 : f32
    %7 = vector.broadcast %cst_6 : f32 to vector<326x16xf32>
    %8 = arith.cmpf ogt, %6, %7 : vector<326x16xf32>
    %cst_7 = arith.constant 3.000000e-01 : f32
    %9 = vector.broadcast %cst_7 : f32 to vector<326x16xf32>
    %10 = arith.mulf %9, %6 : vector<326x16xf32>
    %11 = arith.select %8, %6, %10 : vector<326x16xi1>, vector<326x16xf32>
    %c0_8 = arith.constant 0 : index
    %c0_9 = arith.constant 0 : index
    %12 = vector.load %arg4[%c0_8, %c0_9] : memref<326x1xf32, #tpu.memory_space<vmem>>, vector<326x1xf32>
    %13 = vector.broadcast %12 : vector<326x1xf32> to vector<326x16xf32>
    %14 = arith.addf %11, %13 : vector<326x16xf32>
    %15 = vector.extract_strided_slice %14 {offsets = [0, 0], sizes = [288, 16], strides = [1, 1]} : vector<326x16xf32> to vector<288x16xf32>
    %16 = vector.extract_strided_slice %14 {offsets = [1, 0], sizes = [288, 16], strides = [1, 1]} : vector<326x16xf32> to vector<288x16xf32>
    %17 = arith.maximumf %15, %16 : vector<288x16xf32>
    %18 = vector.extract_strided_slice %14 {offsets = [2, 0], sizes = [288, 16], strides = [1, 1]} : vector<326x16xf32> to vector<288x16xf32>
    %19 = arith.maximumf %17, %18 : vector<288x16xf32>
    %20 = vector.extract_strided_slice %14 {offsets = [18, 0], sizes = [288, 16], strides = [1, 1]} : vector<326x16xf32> to vector<288x16xf32>
    %21 = arith.maximumf %19, %20 : vector<288x16xf32>
    %22 = vector.extract_strided_slice %14 {offsets = [19, 0], sizes = [288, 16], strides = [1, 1]} : vector<326x16xf32> to vector<288x16xf32>
    %23 = arith.maximumf %21, %22 : vector<288x16xf32>
    %24 = vector.extract_strided_slice %14 {offsets = [20, 0], sizes = [288, 16], strides = [1, 1]} : vector<326x16xf32> to vector<288x16xf32>
    %25 = arith.maximumf %23, %24 : vector<288x16xf32>
    %26 = vector.extract_strided_slice %14 {offsets = [36, 0], sizes = [288, 16], strides = [1, 1]} : vector<326x16xf32> to vector<288x16xf32>
    %27 = arith.maximumf %25, %26 : vector<288x16xf32>
    %28 = vector.extract_strided_slice %14 {offsets = [37, 0], sizes = [288, 16], strides = [1, 1]} : vector<326x16xf32> to vector<288x16xf32>
    %29 = arith.maximumf %27, %28 : vector<288x16xf32>
    %30 = vector.extract_strided_slice %14 {offsets = [38, 0], sizes = [288, 16], strides = [1, 1]} : vector<326x16xf32> to vector<288x16xf32>
    %31 = arith.maximumf %29, %30 : vector<288x16xf32>
    %c0_10 = arith.constant 0 : index
    %c0_11 = arith.constant 0 : index
    %c0_12 = arith.constant 0 : index
    %32 = vector.load %arg5[%c0_10, %c0_11, %c0_12] : memref<1x288x16xf32, #tpu.memory_space<vmem>>, vector<1x288x16xf32>
    %33 = vector.shape_cast %32 : vector<1x288x16xf32> to vector<288x16xf32>
    %34 = vector.shape_cast %31 : vector<288x16xf32> to vector<1x288x16xf32>
    tpu.vector_store %arg5[%c0_10, %c0_11, %c0_12], %34 {strides = array<i32>} : memref<1x288x16xf32, #tpu.memory_space<vmem>>, vector<1x288x16xf32>,
    return
  }
  func.func @transform_0(%arg0: i32) -> (i32, i32, i32) {
    %c0_i32 = arith.constant 0 : i32
    %c0_i32_0 = arith.constant 0 : i32
    %c0_i32_1 = arith.constant 0 : i32
    return %arg0, %c0_i32, %c0_i32_0 : i32, i32, i32
  }
  func.func @transform_1(%arg0: i32) -> (i32, i32) {
    %c0_i32 = arith.constant 0 : i32
    %c0_i32_0 = arith.constant 0 : i32
    %c0_i32_1 = arith.constant 0 : i32
    return %c0_i32, %c0_i32_0 : i32, i32
  }
  func.func @transform_2(%arg0: i32) -> (i32, i32) {
    %c0_i32 = arith.constant 0 : i32
    %c0_i32_0 = arith.constant 0 : i32
    %c0_i32_1 = arith.constant 0 : i32
    return %c0_i32, %c0_i32_0 : i32, i32
  }
  func.func @transform_3(%arg0: i32) -> (i32, i32) {
    %c0_i32 = arith.constant 0 : i32
    %c0_i32_0 = arith.constant 0 : i32
    %c0_i32_1 = arith.constant 0 : i32
    return %c0_i32, %c0_i32_0 : i32, i32
  }
  func.func @transform_4(%arg0: i32) -> (i32, i32, i32) {
    %c0_i32 = arith.constant 0 : i32
    %c0_i32_0 = arith.constant 0 : i32
    %c0_i32_1 = arith.constant 0 : i32
    return %arg0, %c0_i32, %c0_i32_0 : i32, i32, i32
  }
}

module attributes {stable_mosaic.version = 11 : i64} {
  func.func @_dsc_pool_kernel(%arg0: i32, %arg1: memref<1x124x16xf32, #tpu.memory_space<vmem>>, %arg2: memref<9x16xf32, #tpu.memory_space<vmem>>, %arg3: memref<1x16xf32, #tpu.memory_space<vmem>>, %arg4: memref<16x32xf32, #tpu.memory_space<vmem>>, %arg5: memref<1x32xf32, #tpu.memory_space<vmem>>, %arg6: memref<32x32xf32, #tpu.memory_space<vmem>>, %arg7: memref<1x32xf32, #tpu.memory_space<vmem>>, %arg8: memref<102x1xf32, #tpu.memory_space<vmem>>, %arg9: memref<1x80x32xf32, #tpu.memory_space<vmem>>) attributes {dimension_semantics = [#tpu.dimension_semantics<parallel>], iteration_bounds = array<i64: 2>, scalar_prefetch = 0 : i64, scratch_operands = 0 : i64, tpu.core_type = #tpu.core_type<tc>, window_params = [{transform_indices = @transform_0, window_bounds = array<i64: 1, 124, 16>}, {pipeline_mode = #tpu.pipeline_mode<synchronous>, transform_indices = @transform_1, window_bounds = array<i64: 9, 16>}, {pipeline_mode = #tpu.pipeline_mode<synchronous>, transform_indices = @transform_2, window_bounds = array<i64: 1, 16>}, {pipeline_mode = #tpu.pipeline_mode<synchronous>, transform_indices = @transform_3, window_bounds = array<i64: 16, 32>}, {pipeline_mode = #tpu.pipeline_mode<synchronous>, transform_indices = @transform_4, window_bounds = array<i64: 1, 32>}, {pipeline_mode = #tpu.pipeline_mode<synchronous>, transform_indices = @transform_5, window_bounds = array<i64: 32, 32>}, {pipeline_mode = #tpu.pipeline_mode<synchronous>, transform_indices = @transform_6, window_bounds = array<i64: 1, 32>}, {pipeline_mode = #tpu.pipeline_mode<synchronous>, transform_indices = @transform_7, window_bounds = array<i64: 102, 1>}, {transform_indices = @transform_8, window_bounds = array<i64: 1, 80, 32>}]} {
    %c0 = arith.constant 0 : index
    %c0_0 = arith.constant 0 : index
    %c0_1 = arith.constant 0 : index
    %0 = vector.load %arg1[%c0, %c0_0, %c0_1] : memref<1x124x16xf32, #tpu.memory_space<vmem>>, vector<1x124x16xf32>
    %1 = vector.shape_cast %0 : vector<1x124x16xf32> to vector<124x16xf32>
    %2 = vector.extract_strided_slice %1 {offsets = [0, 0], sizes = [102, 16], strides = [1, 1]} : vector<124x16xf32> to vector<102x16xf32>
    %c0_2 = arith.constant 0 : index
    %c0_3 = arith.constant 0 : index
    %3 = vector.load %arg2[%c0_2, %c0_3] : memref<9x16xf32, #tpu.memory_space<vmem>>, vector<1x16xf32>
    %4 = vector.broadcast %3 : vector<1x16xf32> to vector<102x16xf32>
    %5 = arith.mulf %2, %4 : vector<102x16xf32>
    %6 = vector.extract_strided_slice %1 {offsets = [1, 0], sizes = [102, 16], strides = [1, 1]} : vector<124x16xf32> to vector<102x16xf32>
    %c1 = arith.constant 1 : index
    %c0_4 = arith.constant 0 : index
    %7 = vector.load %arg2[%c1, %c0_4] : memref<9x16xf32, #tpu.memory_space<vmem>>, vector<1x16xf32>
    %8 = vector.broadcast %7 : vector<1x16xf32> to vector<102x16xf32>
    %9 = arith.mulf %6, %8 : vector<102x16xf32>
    %10 = arith.addf %5, %9 : vector<102x16xf32>
    %11 = vector.extract_strided_slice %1 {offsets = [2, 0], sizes = [102, 16], strides = [1, 1]} : vector<124x16xf32> to vector<102x16xf32>
    %c2 = arith.constant 2 : index
    %c0_5 = arith.constant 0 : index
    %12 = vector.load %arg2[%c2, %c0_5] : memref<9x16xf32, #tpu.memory_space<vmem>>, vector<1x16xf32>
    %13 = vector.broadcast %12 : vector<1x16xf32> to vector<102x16xf32>
    %14 = arith.mulf %11, %13 : vector<102x16xf32>
    %15 = arith.addf %10, %14 : vector<102x16xf32>
    %16 = vector.extract_strided_slice %1 {offsets = [10, 0], sizes = [102, 16], strides = [1, 1]} : vector<124x16xf32> to vector<102x16xf32>
    %c3 = arith.constant 3 : index
    %c0_6 = arith.constant 0 : index
    %17 = vector.load %arg2[%c3, %c0_6] : memref<9x16xf32, #tpu.memory_space<vmem>>, vector<1x16xf32>
    %18 = vector.broadcast %17 : vector<1x16xf32> to vector<102x16xf32>
    %19 = arith.mulf %16, %18 : vector<102x16xf32>
    %20 = arith.addf %15, %19 : vector<102x16xf32>
    %21 = vector.extract_strided_slice %1 {offsets = [11, 0], sizes = [102, 16], strides = [1, 1]} : vector<124x16xf32> to vector<102x16xf32>
    %c4 = arith.constant 4 : index
    %c0_7 = arith.constant 0 : index
    %22 = vector.load %arg2[%c4, %c0_7] : memref<9x16xf32, #tpu.memory_space<vmem>>, vector<1x16xf32>
    %23 = vector.broadcast %22 : vector<1x16xf32> to vector<102x16xf32>
    %24 = arith.mulf %21, %23 : vector<102x16xf32>
    %25 = arith.addf %20, %24 : vector<102x16xf32>
    %26 = vector.extract_strided_slice %1 {offsets = [12, 0], sizes = [102, 16], strides = [1, 1]} : vector<124x16xf32> to vector<102x16xf32>
    %c5 = arith.constant 5 : index
    %c0_8 = arith.constant 0 : index
    %27 = vector.load %arg2[%c5, %c0_8] : memref<9x16xf32, #tpu.memory_space<vmem>>, vector<1x16xf32>
    %28 = vector.broadcast %27 : vector<1x16xf32> to vector<102x16xf32>
    %29 = arith.mulf %26, %28 : vector<102x16xf32>
    %30 = arith.addf %25, %29 : vector<102x16xf32>
    %31 = vector.extract_strided_slice %1 {offsets = [20, 0], sizes = [102, 16], strides = [1, 1]} : vector<124x16xf32> to vector<102x16xf32>
    %c6 = arith.constant 6 : index
    %c0_9 = arith.constant 0 : index
    %32 = vector.load %arg2[%c6, %c0_9] : memref<9x16xf32, #tpu.memory_space<vmem>>, vector<1x16xf32>
    %33 = vector.broadcast %32 : vector<1x16xf32> to vector<102x16xf32>
    %34 = arith.mulf %31, %33 : vector<102x16xf32>
    %35 = arith.addf %30, %34 : vector<102x16xf32>
    %36 = vector.extract_strided_slice %1 {offsets = [21, 0], sizes = [102, 16], strides = [1, 1]} : vector<124x16xf32> to vector<102x16xf32>
    %c7 = arith.constant 7 : index
    %c0_10 = arith.constant 0 : index
    %37 = vector.load %arg2[%c7, %c0_10] : memref<9x16xf32, #tpu.memory_space<vmem>>, vector<1x16xf32>
    %38 = vector.broadcast %37 : vector<1x16xf32> to vector<102x16xf32>
    %39 = arith.mulf %36, %38 : vector<102x16xf32>
    %40 = arith.addf %35, %39 : vector<102x16xf32>
    %41 = vector.extract_strided_slice %1 {offsets = [22, 0], sizes = [102, 16], strides = [1, 1]} : vector<124x16xf32> to vector<102x16xf32>
    %c8 = arith.constant 8 : index
    %c0_11 = arith.constant 0 : index
    %42 = vector.load %arg2[%c8, %c0_11] : memref<9x16xf32, #tpu.memory_space<vmem>>, vector<1x16xf32>
    %43 = vector.broadcast %42 : vector<1x16xf32> to vector<102x16xf32>
    %44 = arith.mulf %41, %43 : vector<102x16xf32>
    %45 = arith.addf %40, %44 : vector<102x16xf32>
    %c0_12 = arith.constant 0 : index
    %c0_13 = arith.constant 0 : index
    %46 = vector.load %arg3[%c0_12, %c0_13] : memref<1x16xf32, #tpu.memory_space<vmem>>, vector<1x16xf32>
    %47 = vector.broadcast %46 : vector<1x16xf32> to vector<102x16xf32>
    %48 = arith.addf %45, %47 : vector<102x16xf32>
    %c0_14 = arith.constant 0 : index
    %c0_15 = arith.constant 0 : index
    %49 = vector.load %arg4[%c0_14, %c0_15] : memref<16x32xf32, #tpu.memory_space<vmem>>, vector<16x32xf32>
    %cst = arith.constant dense<0.000000e+00> : vector<102x32xf32>
    %50 = tpu.matmul %48, %49, %cst {dimension_numbers = #tpu.dot_dimension_numbers<[1], [0], [0], [1], [0, 0, 1, 1], [], []>} : vector<102x16xf32>, vector<16x32xf32>, vector<102x32xf32> -> vector<102x32xf32>
    %c0_16 = arith.constant 0 : index
    %c0_17 = arith.constant 0 : index
    %51 = vector.load %arg5[%c0_16, %c0_17] : memref<1x32xf32, #tpu.memory_space<vmem>>, vector<1x32xf32>
    %52 = vector.broadcast %51 : vector<1x32xf32> to vector<102x32xf32>
    %53 = arith.addf %50, %52 : vector<102x32xf32>
    %cst_18 = arith.constant 0.000000e+00 : f32
    %54 = vector.broadcast %cst_18 : f32 to vector<102x32xf32>
    %55 = arith.cmpf ogt, %53, %54 : vector<102x32xf32>
    %cst_19 = arith.constant 3.000000e-01 : f32
    %56 = vector.broadcast %cst_19 : f32 to vector<102x32xf32>
    %57 = arith.mulf %56, %53 : vector<102x32xf32>
    %58 = arith.select %55, %53, %57 : vector<102x32xi1>, vector<102x32xf32>
    %c0_20 = arith.constant 0 : index
    %c0_21 = arith.constant 0 : index
    %59 = vector.load %arg6[%c0_20, %c0_21] : memref<32x32xf32, #tpu.memory_space<vmem>>, vector<32x32xf32>
    %cst_22 = arith.constant dense<0.000000e+00> : vector<102x32xf32>
    %60 = tpu.matmul %58, %59, %cst_22 {dimension_numbers = #tpu.dot_dimension_numbers<[1], [0], [0], [1], [0, 0, 1, 1], [], []>} : vector<102x32xf32>, vector<32x32xf32>, vector<102x32xf32> -> vector<102x32xf32>
    %c0_23 = arith.constant 0 : index
    %c0_24 = arith.constant 0 : index
    %61 = vector.load %arg7[%c0_23, %c0_24] : memref<1x32xf32, #tpu.memory_space<vmem>>, vector<1x32xf32>
    %62 = vector.broadcast %61 : vector<1x32xf32> to vector<102x32xf32>
    %63 = arith.addf %60, %62 : vector<102x32xf32>
    %cst_25 = arith.constant 0.000000e+00 : f32
    %64 = vector.broadcast %cst_25 : f32 to vector<102x32xf32>
    %65 = arith.cmpf ogt, %63, %64 : vector<102x32xf32>
    %cst_26 = arith.constant 3.000000e-01 : f32
    %66 = vector.broadcast %cst_26 : f32 to vector<102x32xf32>
    %67 = arith.mulf %66, %63 : vector<102x32xf32>
    %68 = arith.select %65, %63, %67 : vector<102x32xi1>, vector<102x32xf32>
    %c0_27 = arith.constant 0 : index
    %c0_28 = arith.constant 0 : index
    %69 = vector.load %arg8[%c0_27, %c0_28] : memref<102x1xf32, #tpu.memory_space<vmem>>, vector<102x1xf32>
    %70 = vector.broadcast %69 : vector<102x1xf32> to vector<102x32xf32>
    %71 = arith.addf %68, %70 : vector<102x32xf32>
    %72 = vector.extract_strided_slice %71 {offsets = [0, 0], sizes = [80, 32], strides = [1, 1]} : vector<102x32xf32> to vector<80x32xf32>
    %73 = vector.extract_strided_slice %71 {offsets = [1, 0], sizes = [80, 32], strides = [1, 1]} : vector<102x32xf32> to vector<80x32xf32>
    %74 = arith.maximumf %72, %73 : vector<80x32xf32>
    %75 = vector.extract_strided_slice %71 {offsets = [2, 0], sizes = [80, 32], strides = [1, 1]} : vector<102x32xf32> to vector<80x32xf32>
    %76 = arith.maximumf %74, %75 : vector<80x32xf32>
    %77 = vector.extract_strided_slice %71 {offsets = [10, 0], sizes = [80, 32], strides = [1, 1]} : vector<102x32xf32> to vector<80x32xf32>
    %78 = arith.maximumf %76, %77 : vector<80x32xf32>
    %79 = vector.extract_strided_slice %71 {offsets = [11, 0], sizes = [80, 32], strides = [1, 1]} : vector<102x32xf32> to vector<80x32xf32>
    %80 = arith.maximumf %78, %79 : vector<80x32xf32>
    %81 = vector.extract_strided_slice %71 {offsets = [12, 0], sizes = [80, 32], strides = [1, 1]} : vector<102x32xf32> to vector<80x32xf32>
    %82 = arith.maximumf %80, %81 : vector<80x32xf32>
    %83 = vector.extract_strided_slice %71 {offsets = [20, 0], sizes = [80, 32], strides = [1, 1]} : vector<102x32xf32> to vector<80x32xf32>
    %84 = arith.maximumf %82, %83 : vector<80x32xf32>
    %85 = vector.extract_strided_slice %71 {offsets = [21, 0], sizes = [80, 32], strides = [1, 1]} : vector<102x32xf32> to vector<80x32xf32>
    %86 = arith.maximumf %84, %85 : vector<80x32xf32>
    %87 = vector.extract_strided_slice %71 {offsets = [22, 0], sizes = [80, 32], strides = [1, 1]} : vector<102x32xf32> to vector<80x32xf32>
    %88 = arith.maximumf %86, %87 : vector<80x32xf32>
    %c0_29 = arith.constant 0 : index
    %c0_30 = arith.constant 0 : index
    %c0_31 = arith.constant 0 : index
    %89 = vector.load %arg9[%c0_29, %c0_30, %c0_31] : memref<1x80x32xf32, #tpu.memory_space<vmem>>, vector<1x80x32xf32>
    %90 = vector.shape_cast %89 : vector<1x80x32xf32> to vector<80x32xf32>
    %91 = vector.shape_cast %88 : vector<80x32xf32> to vector<1x80x32xf32>
    tpu.vector_store %arg9[%c0_29, %c0_30, %c0_31], %91 {strides = array<i32>} : memref<1x80x32xf32, #tpu.memory_space<vmem>>, vector<1x80x32xf32>,
    return
  }
  func.func @transform_0(%arg0: i32) -> (i32, i32, i32) {
    %c0_i32 = arith.constant 0 : i32
    %c0_i32_0 = arith.constant 0 : i32
    %c0_i32_1 = arith.constant 0 : i32
    return %arg0, %c0_i32, %c0_i32_0 : i32, i32, i32
  }
  func.func @transform_1(%arg0: i32) -> (i32, i32) {
    %c0_i32 = arith.constant 0 : i32
    %c0_i32_0 = arith.constant 0 : i32
    %c0_i32_1 = arith.constant 0 : i32
    return %c0_i32, %c0_i32_0 : i32, i32
  }
  func.func @transform_2(%arg0: i32) -> (i32, i32) {
    %c0_i32 = arith.constant 0 : i32
    %c0_i32_0 = arith.constant 0 : i32
    %c0_i32_1 = arith.constant 0 : i32
    return %c0_i32, %c0_i32_0 : i32, i32
  }
  func.func @transform_3(%arg0: i32) -> (i32, i32) {
    %c0_i32 = arith.constant 0 : i32
    %c0_i32_0 = arith.constant 0 : i32
    %c0_i32_1 = arith.constant 0 : i32
    return %c0_i32, %c0_i32_0 : i32, i32
  }
  func.func @transform_4(%arg0: i32) -> (i32, i32) {
    %c0_i32 = arith.constant 0 : i32
    %c0_i32_0 = arith.constant 0 : i32
    %c0_i32_1 = arith.constant 0 : i32
    return %c0_i32, %c0_i32_0 : i32, i32
  }
  func.func @transform_5(%arg0: i32) -> (i32, i32) {
    %c0_i32 = arith.constant 0 : i32
    %c0_i32_0 = arith.constant 0 : i32
    %c0_i32_1 = arith.constant 0 : i32
    return %c0_i32, %c0_i32_0 : i32, i32
  }
  func.func @transform_6(%arg0: i32) -> (i32, i32) {
    %c0_i32 = arith.constant 0 : i32
    %c0_i32_0 = arith.constant 0 : i32
    %c0_i32_1 = arith.constant 0 : i32
    return %c0_i32, %c0_i32_0 : i32, i32
  }
  func.func @transform_7(%arg0: i32) -> (i32, i32) {
    %c0_i32 = arith.constant 0 : i32
    %c0_i32_0 = arith.constant 0 : i32
    %c0_i32_1 = arith.constant 0 : i32
    return %c0_i32, %c0_i32_0 : i32, i32
  }
  func.func @transform_8(%arg0: i32) -> (i32, i32, i32) {
    %c0_i32 = arith.constant 0 : i32
    %c0_i32_0 = arith.constant 0 : i32
    %c0_i32_1 = arith.constant 0 : i32
    return %arg0, %c0_i32, %c0_i32_0 : i32, i32, i32
  }
}

module attributes {stable_mosaic.version = 11 : i64} {
  func.func @_mfli_kernel(%arg0: i32, %arg1: memref<1x68x32xf32, #tpu.memory_space<vmem>>, %arg2: memref<68x1xf32, #tpu.memory_space<vmem>>, %arg3: memref<32x16xf32, #tpu.memory_space<vmem>>, %arg4: memref<1x16xf32, #tpu.memory_space<vmem>>, %arg5: memref<9x32xf32, #tpu.memory_space<vmem>>, %arg6: memref<1x32xf32, #tpu.memory_space<vmem>>, %arg7: memref<32x48xf32, #tpu.memory_space<vmem>>, %arg8: memref<1x48xf32, #tpu.memory_space<vmem>>, %arg9: memref<25x32xf32, #tpu.memory_space<vmem>>, %arg10: memref<1x32xf32, #tpu.memory_space<vmem>>, %arg11: memref<32x48xf32, #tpu.memory_space<vmem>>, %arg12: memref<1x48xf32, #tpu.memory_space<vmem>>, %arg13: memref<32x32xf32, #tpu.memory_space<vmem>>, %arg14: memref<1x32xf32, #tpu.memory_space<vmem>>, %arg15: memref<1x32x144xf32, #tpu.memory_space<vmem>>) attributes {dimension_semantics = [#tpu.dimension_semantics<parallel>], iteration_bounds = array<i64: 2>, scalar_prefetch = 0 : i64, scratch_operands = 0 : i64, tpu.core_type = #tpu.core_type<tc>, window_params = [{transform_indices = @transform_0, window_bounds = array<i64: 1, 68, 32>}, {pipeline_mode = #tpu.pipeline_mode<synchronous>, transform_indices = @transform_1, window_bounds = array<i64: 68, 1>}, {pipeline_mode = #tpu.pipeline_mode<synchronous>, transform_indices = @transform_2, window_bounds = array<i64: 32, 16>}, {pipeline_mode = #tpu.pipeline_mode<synchronous>, transform_indices = @transform_3, window_bounds = array<i64: 1, 16>}, {pipeline_mode = #tpu.pipeline_mode<synchronous>, transform_indices = @transform_4, window_bounds = array<i64: 9, 32>}, {pipeline_mode = #tpu.pipeline_mode<synchronous>, transform_indices = @transform_5, window_bounds = array<i64: 1, 32>}, {pipeline_mode = #tpu.pipeline_mode<synchronous>, transform_indices = @transform_6, window_bounds = array<i64: 32, 48>}, {pipeline_mode = #tpu.pipeline_mode<synchronous>, transform_indices = @transform_7, window_bounds = array<i64: 1, 48>}, {pipeline_mode = #tpu.pipeline_mode<synchronous>, transform_indices = @transform_8, window_bounds = array<i64: 25, 32>}, {pipeline_mode = #tpu.pipeline_mode<synchronous>, transform_indices = @transform_9, window_bounds = array<i64: 1, 32>}, {pipeline_mode = #tpu.pipeline_mode<synchronous>, transform_indices = @transform_10, window_bounds = array<i64: 32, 48>}, {pipeline_mode = #tpu.pipeline_mode<synchronous>, transform_indices = @transform_11, window_bounds = array<i64: 1, 48>}, {pipeline_mode = #tpu.pipeline_mode<synchronous>, transform_indices = @transform_12, window_bounds = array<i64: 32, 32>}, {pipeline_mode = #tpu.pipeline_mode<synchronous>, transform_indices = @transform_13, window_bounds = array<i64: 1, 32>}, {transform_indices = @transform_14, window_bounds = array<i64: 1, 32, 144>}]} {
    %c0 = arith.constant 0 : index
    %c0_0 = arith.constant 0 : index
    %c0_1 = arith.constant 0 : index
    %0 = vector.load %arg1[%c0, %c0_0, %c0_1] : memref<1x68x32xf32, #tpu.memory_space<vmem>>, vector<1x68x32xf32>
    %1 = vector.shape_cast %0 : vector<1x68x32xf32> to vector<68x32xf32>
    %2 = vector.extract_strided_slice %1 {offsets = [18, 0], sizes = [32, 32], strides = [1, 1]} : vector<68x32xf32> to vector<32x32xf32>
    %c0_2 = arith.constant 0 : index
    %c0_3 = arith.constant 0 : index
    %3 = vector.load %arg3[%c0_2, %c0_3] : memref<32x16xf32, #tpu.memory_space<vmem>>, vector<32x16xf32>
    %cst = arith.constant dense<0.000000e+00> : vector<32x16xf32>
    %4 = tpu.matmul %2, %3, %cst {dimension_numbers = #tpu.dot_dimension_numbers<[1], [0], [0], [1], [0, 0, 1, 1], [], []>} : vector<32x32xf32>, vector<32x16xf32>, vector<32x16xf32> -> vector<32x16xf32>
    %c0_4 = arith.constant 0 : index
    %c0_5 = arith.constant 0 : index
    %5 = vector.load %arg4[%c0_4, %c0_5] : memref<1x16xf32, #tpu.memory_space<vmem>>, vector<1x16xf32>
    %6 = vector.broadcast %5 : vector<1x16xf32> to vector<32x16xf32>
    %7 = arith.addf %4, %6 : vector<32x16xf32>
    %cst_6 = arith.constant 0.000000e+00 : f32
    %8 = vector.broadcast %cst_6 : f32 to vector<32x16xf32>
    %9 = arith.cmpf ogt, %7, %8 : vector<32x16xf32>
    %cst_7 = arith.constant 3.000000e-01 : f32
    %10 = vector.broadcast %cst_7 : f32 to vector<32x16xf32>
    %11 = arith.mulf %10, %7 : vector<32x16xf32>
    %12 = arith.select %9, %7, %11 : vector<32x16xi1>, vector<32x16xf32>
    %c0_8 = arith.constant 0 : index
    %c0_9 = arith.constant 0 : index
    %c0_10 = arith.constant 0 : index
    %13 = vector.load %arg15[%c0_8, %c0_9, %c0_10] : memref<1x32x144xf32, #tpu.memory_space<vmem>>, vector<1x32x16xf32>
    %14 = vector.shape_cast %13 : vector<1x32x16xf32> to vector<32x16xf32>
    %15 = vector.shape_cast %12 : vector<32x16xf32> to vector<1x32x16xf32>
    tpu.vector_store %arg15[%c0_8, %c0_9, %c0_10], %15 {strides = array<i32>} : memref<1x32x144xf32, #tpu.memory_space<vmem>>, vector<1x32x16xf32>,
    %16 = vector.extract_strided_slice %1 {offsets = [9, 0], sizes = [32, 32], strides = [1, 1]} : vector<68x32xf32> to vector<32x32xf32>
    %c0_11 = arith.constant 0 : index
    %c0_12 = arith.constant 0 : index
    %17 = vector.load %arg5[%c0_11, %c0_12] : memref<9x32xf32, #tpu.memory_space<vmem>>, vector<1x32xf32>
    %18 = vector.broadcast %17 : vector<1x32xf32> to vector<32x32xf32>
    %19 = arith.mulf %16, %18 : vector<32x32xf32>
    %20 = vector.extract_strided_slice %1 {offsets = [10, 0], sizes = [32, 32], strides = [1, 1]} : vector<68x32xf32> to vector<32x32xf32>
    %c1 = arith.constant 1 : index
    %c0_13 = arith.constant 0 : index
    %21 = vector.load %arg5[%c1, %c0_13] : memref<9x32xf32, #tpu.memory_space<vmem>>, vector<1x32xf32>
    %22 = vector.broadcast %21 : vector<1x32xf32> to vector<32x32xf32>
    %23 = arith.mulf %20, %22 : vector<32x32xf32>
    %24 = arith.addf %19, %23 : vector<32x32xf32>
    %25 = vector.extract_strided_slice %1 {offsets = [11, 0], sizes = [32, 32], strides = [1, 1]} : vector<68x32xf32> to vector<32x32xf32>
    %c2 = arith.constant 2 : index
    %c0_14 = arith.constant 0 : index
    %26 = vector.load %arg5[%c2, %c0_14] : memref<9x32xf32, #tpu.memory_space<vmem>>, vector<1x32xf32>
    %27 = vector.broadcast %26 : vector<1x32xf32> to vector<32x32xf32>
    %28 = arith.mulf %25, %27 : vector<32x32xf32>
    %29 = arith.addf %24, %28 : vector<32x32xf32>
    %30 = vector.extract_strided_slice %1 {offsets = [17, 0], sizes = [32, 32], strides = [1, 1]} : vector<68x32xf32> to vector<32x32xf32>
    %c3 = arith.constant 3 : index
    %c0_15 = arith.constant 0 : index
    %31 = vector.load %arg5[%c3, %c0_15] : memref<9x32xf32, #tpu.memory_space<vmem>>, vector<1x32xf32>
    %32 = vector.broadcast %31 : vector<1x32xf32> to vector<32x32xf32>
    %33 = arith.mulf %30, %32 : vector<32x32xf32>
    %34 = arith.addf %29, %33 : vector<32x32xf32>
    %35 = vector.extract_strided_slice %1 {offsets = [18, 0], sizes = [32, 32], strides = [1, 1]} : vector<68x32xf32> to vector<32x32xf32>
    %c4 = arith.constant 4 : index
    %c0_16 = arith.constant 0 : index
    %36 = vector.load %arg5[%c4, %c0_16] : memref<9x32xf32, #tpu.memory_space<vmem>>, vector<1x32xf32>
    %37 = vector.broadcast %36 : vector<1x32xf32> to vector<32x32xf32>
    %38 = arith.mulf %35, %37 : vector<32x32xf32>
    %39 = arith.addf %34, %38 : vector<32x32xf32>
    %40 = vector.extract_strided_slice %1 {offsets = [19, 0], sizes = [32, 32], strides = [1, 1]} : vector<68x32xf32> to vector<32x32xf32>
    %c5 = arith.constant 5 : index
    %c0_17 = arith.constant 0 : index
    %41 = vector.load %arg5[%c5, %c0_17] : memref<9x32xf32, #tpu.memory_space<vmem>>, vector<1x32xf32>
    %42 = vector.broadcast %41 : vector<1x32xf32> to vector<32x32xf32>
    %43 = arith.mulf %40, %42 : vector<32x32xf32>
    %44 = arith.addf %39, %43 : vector<32x32xf32>
    %45 = vector.extract_strided_slice %1 {offsets = [25, 0], sizes = [32, 32], strides = [1, 1]} : vector<68x32xf32> to vector<32x32xf32>
    %c6 = arith.constant 6 : index
    %c0_18 = arith.constant 0 : index
    %46 = vector.load %arg5[%c6, %c0_18] : memref<9x32xf32, #tpu.memory_space<vmem>>, vector<1x32xf32>
    %47 = vector.broadcast %46 : vector<1x32xf32> to vector<32x32xf32>
    %48 = arith.mulf %45, %47 : vector<32x32xf32>
    %49 = arith.addf %44, %48 : vector<32x32xf32>
    %50 = vector.extract_strided_slice %1 {offsets = [26, 0], sizes = [32, 32], strides = [1, 1]} : vector<68x32xf32> to vector<32x32xf32>
    %c7 = arith.constant 7 : index
    %c0_19 = arith.constant 0 : index
    %51 = vector.load %arg5[%c7, %c0_19] : memref<9x32xf32, #tpu.memory_space<vmem>>, vector<1x32xf32>
    %52 = vector.broadcast %51 : vector<1x32xf32> to vector<32x32xf32>
    %53 = arith.mulf %50, %52 : vector<32x32xf32>
    %54 = arith.addf %49, %53 : vector<32x32xf32>
    %55 = vector.extract_strided_slice %1 {offsets = [27, 0], sizes = [32, 32], strides = [1, 1]} : vector<68x32xf32> to vector<32x32xf32>
    %c8 = arith.constant 8 : index
    %c0_20 = arith.constant 0 : index
    %56 = vector.load %arg5[%c8, %c0_20] : memref<9x32xf32, #tpu.memory_space<vmem>>, vector<1x32xf32>
    %57 = vector.broadcast %56 : vector<1x32xf32> to vector<32x32xf32>
    %58 = arith.mulf %55, %57 : vector<32x32xf32>
    %59 = arith.addf %54, %58 : vector<32x32xf32>
    %c0_21 = arith.constant 0 : index
    %c0_22 = arith.constant 0 : index
    %60 = vector.load %arg6[%c0_21, %c0_22] : memref<1x32xf32, #tpu.memory_space<vmem>>, vector<1x32xf32>
    %61 = vector.broadcast %60 : vector<1x32xf32> to vector<32x32xf32>
    %62 = arith.addf %59, %61 : vector<32x32xf32>
    %c0_23 = arith.constant 0 : index
    %c0_24 = arith.constant 0 : index
    %63 = vector.load %arg7[%c0_23, %c0_24] : memref<32x48xf32, #tpu.memory_space<vmem>>, vector<32x48xf32>
    %cst_25 = arith.constant dense<0.000000e+00> : vector<32x48xf32>
    %64 = tpu.matmul %62, %63, %cst_25 {dimension_numbers = #tpu.dot_dimension_numbers<[1], [0], [0], [1], [0, 0, 1, 1], [], []>} : vector<32x32xf32>, vector<32x48xf32>, vector<32x48xf32> -> vector<32x48xf32>
    %c0_26 = arith.constant 0 : index
    %c0_27 = arith.constant 0 : index
    %65 = vector.load %arg8[%c0_26, %c0_27] : memref<1x48xf32, #tpu.memory_space<vmem>>, vector<1x48xf32>
    %66 = vector.broadcast %65 : vector<1x48xf32> to vector<32x48xf32>
    %67 = arith.addf %64, %66 : vector<32x48xf32>
    %cst_28 = arith.constant 0.000000e+00 : f32
    %68 = vector.broadcast %cst_28 : f32 to vector<32x48xf32>
    %69 = arith.cmpf ogt, %67, %68 : vector<32x48xf32>
    %cst_29 = arith.constant 3.000000e-01 : f32
    %70 = vector.broadcast %cst_29 : f32 to vector<32x48xf32>
    %71 = arith.mulf %70, %67 : vector<32x48xf32>
    %72 = arith.select %69, %67, %71 : vector<32x48xi1>, vector<32x48xf32>
    %c0_30 = arith.constant 0 : index
    %c0_31 = arith.constant 0 : index
    %c16 = arith.constant 16 : index
    %73 = vector.load %arg15[%c0_30, %c0_31, %c16] : memref<1x32x144xf32, #tpu.memory_space<vmem>>, vector<1x32x48xf32>
    %74 = vector.shape_cast %73 : vector<1x32x48xf32> to vector<32x48xf32>
    %75 = vector.shape_cast %72 : vector<32x48xf32> to vector<1x32x48xf32>
    tpu.vector_store %arg15[%c0_30, %c0_31, %c16], %75 {strides = array<i32>} : memref<1x32x144xf32, #tpu.memory_space<vmem>>, vector<1x32x48xf32>,
    %76 = vector.extract_strided_slice %1 {offsets = [0, 0], sizes = [32, 32], strides = [1, 1]} : vector<68x32xf32> to vector<32x32xf32>
    %c0_32 = arith.constant 0 : index
    %c0_33 = arith.constant 0 : index
    %77 = vector.load %arg9[%c0_32, %c0_33] : memref<25x32xf32, #tpu.memory_space<vmem>>, vector<1x32xf32>
    %78 = vector.broadcast %77 : vector<1x32xf32> to vector<32x32xf32>
    %79 = arith.mulf %76, %78 : vector<32x32xf32>
    %80 = vector.extract_strided_slice %1 {offsets = [1, 0], sizes = [32, 32], strides = [1, 1]} : vector<68x32xf32> to vector<32x32xf32>
    %c1_34 = arith.constant 1 : index
    %c0_35 = arith.constant 0 : index
    %81 = vector.load %arg9[%c1_34, %c0_35] : memref<25x32xf32, #tpu.memory_space<vmem>>, vector<1x32xf32>
    %82 = vector.broadcast %81 : vector<1x32xf32> to vector<32x32xf32>
    %83 = arith.mulf %80, %82 : vector<32x32xf32>
    %84 = arith.addf %79, %83 : vector<32x32xf32>
    %85 = vector.extract_strided_slice %1 {offsets = [2, 0], sizes = [32, 32], strides = [1, 1]} : vector<68x32xf32> to vector<32x32xf32>
    %c2_36 = arith.constant 2 : index
    %c0_37 = arith.constant 0 : index
    %86 = vector.load %arg9[%c2_36, %c0_37] : memref<25x32xf32, #tpu.memory_space<vmem>>, vector<1x32xf32>
    %87 = vector.broadcast %86 : vector<1x32xf32> to vector<32x32xf32>
    %88 = arith.mulf %85, %87 : vector<32x32xf32>
    %89 = arith.addf %84, %88 : vector<32x32xf32>
    %90 = vector.extract_strided_slice %1 {offsets = [3, 0], sizes = [32, 32], strides = [1, 1]} : vector<68x32xf32> to vector<32x32xf32>
    %c3_38 = arith.constant 3 : index
    %c0_39 = arith.constant 0 : index
    %91 = vector.load %arg9[%c3_38, %c0_39] : memref<25x32xf32, #tpu.memory_space<vmem>>, vector<1x32xf32>
    %92 = vector.broadcast %91 : vector<1x32xf32> to vector<32x32xf32>
    %93 = arith.mulf %90, %92 : vector<32x32xf32>
    %94 = arith.addf %89, %93 : vector<32x32xf32>
    %95 = vector.extract_strided_slice %1 {offsets = [4, 0], sizes = [32, 32], strides = [1, 1]} : vector<68x32xf32> to vector<32x32xf32>
    %c4_40 = arith.constant 4 : index
    %c0_41 = arith.constant 0 : index
    %96 = vector.load %arg9[%c4_40, %c0_41] : memref<25x32xf32, #tpu.memory_space<vmem>>, vector<1x32xf32>
    %97 = vector.broadcast %96 : vector<1x32xf32> to vector<32x32xf32>
    %98 = arith.mulf %95, %97 : vector<32x32xf32>
    %99 = arith.addf %94, %98 : vector<32x32xf32>
    %100 = vector.extract_strided_slice %1 {offsets = [8, 0], sizes = [32, 32], strides = [1, 1]} : vector<68x32xf32> to vector<32x32xf32>
    %c5_42 = arith.constant 5 : index
    %c0_43 = arith.constant 0 : index
    %101 = vector.load %arg9[%c5_42, %c0_43] : memref<25x32xf32, #tpu.memory_space<vmem>>, vector<1x32xf32>
    %102 = vector.broadcast %101 : vector<1x32xf32> to vector<32x32xf32>
    %103 = arith.mulf %100, %102 : vector<32x32xf32>
    %104 = arith.addf %99, %103 : vector<32x32xf32>
    %105 = vector.extract_strided_slice %1 {offsets = [9, 0], sizes = [32, 32], strides = [1, 1]} : vector<68x32xf32> to vector<32x32xf32>
    %c6_44 = arith.constant 6 : index
    %c0_45 = arith.constant 0 : index
    %106 = vector.load %arg9[%c6_44, %c0_45] : memref<25x32xf32, #tpu.memory_space<vmem>>, vector<1x32xf32>
    %107 = vector.broadcast %106 : vector<1x32xf32> to vector<32x32xf32>
    %108 = arith.mulf %105, %107 : vector<32x32xf32>
    %109 = arith.addf %104, %108 : vector<32x32xf32>
    %110 = vector.extract_strided_slice %1 {offsets = [10, 0], sizes = [32, 32], strides = [1, 1]} : vector<68x32xf32> to vector<32x32xf32>
    %c7_46 = arith.constant 7 : index
    %c0_47 = arith.constant 0 : index
    %111 = vector.load %arg9[%c7_46, %c0_47] : memref<25x32xf32, #tpu.memory_space<vmem>>, vector<1x32xf32>
    %112 = vector.broadcast %111 : vector<1x32xf32> to vector<32x32xf32>
    %113 = arith.mulf %110, %112 : vector<32x32xf32>
    %114 = arith.addf %109, %113 : vector<32x32xf32>
    %115 = vector.extract_strided_slice %1 {offsets = [11, 0], sizes = [32, 32], strides = [1, 1]} : vector<68x32xf32> to vector<32x32xf32>
    %c8_48 = arith.constant 8 : index
    %c0_49 = arith.constant 0 : index
    %116 = vector.load %arg9[%c8_48, %c0_49] : memref<25x32xf32, #tpu.memory_space<vmem>>, vector<1x32xf32>
    %117 = vector.broadcast %116 : vector<1x32xf32> to vector<32x32xf32>
    %118 = arith.mulf %115, %117 : vector<32x32xf32>
    %119 = arith.addf %114, %118 : vector<32x32xf32>
    %120 = vector.extract_strided_slice %1 {offsets = [12, 0], sizes = [32, 32], strides = [1, 1]} : vector<68x32xf32> to vector<32x32xf32>
    %c9 = arith.constant 9 : index
    %c0_50 = arith.constant 0 : index
    %121 = vector.load %arg9[%c9, %c0_50] : memref<25x32xf32, #tpu.memory_space<vmem>>, vector<1x32xf32>
    %122 = vector.broadcast %121 : vector<1x32xf32> to vector<32x32xf32>
    %123 = arith.mulf %120, %122 : vector<32x32xf32>
    %124 = arith.addf %119, %123 : vector<32x32xf32>
    %125 = vector.extract_strided_slice %1 {offsets = [16, 0], sizes = [32, 32], strides = [1, 1]} : vector<68x32xf32> to vector<32x32xf32>
    %c10 = arith.constant 10 : index
    %c0_51 = arith.constant 0 : index
    %126 = vector.load %arg9[%c10, %c0_51] : memref<25x32xf32, #tpu.memory_space<vmem>>, vector<1x32xf32>
    %127 = vector.broadcast %126 : vector<1x32xf32> to vector<32x32xf32>
    %128 = arith.mulf %125, %127 : vector<32x32xf32>
    %129 = arith.addf %124, %128 : vector<32x32xf32>
    %130 = vector.extract_strided_slice %1 {offsets = [17, 0], sizes = [32, 32], strides = [1, 1]} : vector<68x32xf32> to vector<32x32xf32>
    %c11 = arith.constant 11 : index
    %c0_52 = arith.constant 0 : index
    %131 = vector.load %arg9[%c11, %c0_52] : memref<25x32xf32, #tpu.memory_space<vmem>>, vector<1x32xf32>
    %132 = vector.broadcast %131 : vector<1x32xf32> to vector<32x32xf32>
    %133 = arith.mulf %130, %132 : vector<32x32xf32>
    %134 = arith.addf %129, %133 : vector<32x32xf32>
    %135 = vector.extract_strided_slice %1 {offsets = [18, 0], sizes = [32, 32], strides = [1, 1]} : vector<68x32xf32> to vector<32x32xf32>
    %c12 = arith.constant 12 : index
    %c0_53 = arith.constant 0 : index
    %136 = vector.load %arg9[%c12, %c0_53] : memref<25x32xf32, #tpu.memory_space<vmem>>, vector<1x32xf32>
    %137 = vector.broadcast %136 : vector<1x32xf32> to vector<32x32xf32>
    %138 = arith.mulf %135, %137 : vector<32x32xf32>
    %139 = arith.addf %134, %138 : vector<32x32xf32>
    %140 = vector.extract_strided_slice %1 {offsets = [19, 0], sizes = [32, 32], strides = [1, 1]} : vector<68x32xf32> to vector<32x32xf32>
    %c13 = arith.constant 13 : index
    %c0_54 = arith.constant 0 : index
    %141 = vector.load %arg9[%c13, %c0_54] : memref<25x32xf32, #tpu.memory_space<vmem>>, vector<1x32xf32>
    %142 = vector.broadcast %141 : vector<1x32xf32> to vector<32x32xf32>
    %143 = arith.mulf %140, %142 : vector<32x32xf32>
    %144 = arith.addf %139, %143 : vector<32x32xf32>
    %145 = vector.extract_strided_slice %1 {offsets = [20, 0], sizes = [32, 32], strides = [1, 1]} : vector<68x32xf32> to vector<32x32xf32>
    %c14 = arith.constant 14 : index
    %c0_55 = arith.constant 0 : index
    %146 = vector.load %arg9[%c14, %c0_55] : memref<25x32xf32, #tpu.memory_space<vmem>>, vector<1x32xf32>
    %147 = vector.broadcast %146 : vector<1x32xf32> to vector<32x32xf32>
    %148 = arith.mulf %145, %147 : vector<32x32xf32>
    %149 = arith.addf %144, %148 : vector<32x32xf32>
    %150 = vector.extract_strided_slice %1 {offsets = [24, 0], sizes = [32, 32], strides = [1, 1]} : vector<68x32xf32> to vector<32x32xf32>
    %c15 = arith.constant 15 : index
    %c0_56 = arith.constant 0 : index
    %151 = vector.load %arg9[%c15, %c0_56] : memref<25x32xf32, #tpu.memory_space<vmem>>, vector<1x32xf32>
    %152 = vector.broadcast %151 : vector<1x32xf32> to vector<32x32xf32>
    %153 = arith.mulf %150, %152 : vector<32x32xf32>
    %154 = arith.addf %149, %153 : vector<32x32xf32>
    %155 = vector.extract_strided_slice %1 {offsets = [25, 0], sizes = [32, 32], strides = [1, 1]} : vector<68x32xf32> to vector<32x32xf32>
    %c16_57 = arith.constant 16 : index
    %c0_58 = arith.constant 0 : index
    %156 = vector.load %arg9[%c16_57, %c0_58] : memref<25x32xf32, #tpu.memory_space<vmem>>, vector<1x32xf32>
    %157 = vector.broadcast %156 : vector<1x32xf32> to vector<32x32xf32>
    %158 = arith.mulf %155, %157 : vector<32x32xf32>
    %159 = arith.addf %154, %158 : vector<32x32xf32>
    %160 = vector.extract_strided_slice %1 {offsets = [26, 0], sizes = [32, 32], strides = [1, 1]} : vector<68x32xf32> to vector<32x32xf32>
    %c17 = arith.constant 17 : index
    %c0_59 = arith.constant 0 : index
    %161 = vector.load %arg9[%c17, %c0_59] : memref<25x32xf32, #tpu.memory_space<vmem>>, vector<1x32xf32>
    %162 = vector.broadcast %161 : vector<1x32xf32> to vector<32x32xf32>
    %163 = arith.mulf %160, %162 : vector<32x32xf32>
    %164 = arith.addf %159, %163 : vector<32x32xf32>
    %165 = vector.extract_strided_slice %1 {offsets = [27, 0], sizes = [32, 32], strides = [1, 1]} : vector<68x32xf32> to vector<32x32xf32>
    %c18 = arith.constant 18 : index
    %c0_60 = arith.constant 0 : index
    %166 = vector.load %arg9[%c18, %c0_60] : memref<25x32xf32, #tpu.memory_space<vmem>>, vector<1x32xf32>
    %167 = vector.broadcast %166 : vector<1x32xf32> to vector<32x32xf32>
    %168 = arith.mulf %165, %167 : vector<32x32xf32>
    %169 = arith.addf %164, %168 : vector<32x32xf32>
    %170 = vector.extract_strided_slice %1 {offsets = [28, 0], sizes = [32, 32], strides = [1, 1]} : vector<68x32xf32> to vector<32x32xf32>
    %c19 = arith.constant 19 : index
    %c0_61 = arith.constant 0 : index
    %171 = vector.load %arg9[%c19, %c0_61] : memref<25x32xf32, #tpu.memory_space<vmem>>, vector<1x32xf32>
    %172 = vector.broadcast %171 : vector<1x32xf32> to vector<32x32xf32>
    %173 = arith.mulf %170, %172 : vector<32x32xf32>
    %174 = arith.addf %169, %173 : vector<32x32xf32>
    %175 = vector.extract_strided_slice %1 {offsets = [32, 0], sizes = [32, 32], strides = [1, 1]} : vector<68x32xf32> to vector<32x32xf32>
    %c20 = arith.constant 20 : index
    %c0_62 = arith.constant 0 : index
    %176 = vector.load %arg9[%c20, %c0_62] : memref<25x32xf32, #tpu.memory_space<vmem>>, vector<1x32xf32>
    %177 = vector.broadcast %176 : vector<1x32xf32> to vector<32x32xf32>
    %178 = arith.mulf %175, %177 : vector<32x32xf32>
    %179 = arith.addf %174, %178 : vector<32x32xf32>
    %180 = vector.extract_strided_slice %1 {offsets = [33, 0], sizes = [32, 32], strides = [1, 1]} : vector<68x32xf32> to vector<32x32xf32>
    %c21 = arith.constant 21 : index
    %c0_63 = arith.constant 0 : index
    %181 = vector.load %arg9[%c21, %c0_63] : memref<25x32xf32, #tpu.memory_space<vmem>>, vector<1x32xf32>
    %182 = vector.broadcast %181 : vector<1x32xf32> to vector<32x32xf32>
    %183 = arith.mulf %180, %182 : vector<32x32xf32>
    %184 = arith.addf %179, %183 : vector<32x32xf32>
    %185 = vector.extract_strided_slice %1 {offsets = [34, 0], sizes = [32, 32], strides = [1, 1]} : vector<68x32xf32> to vector<32x32xf32>
    %c22 = arith.constant 22 : index
    %c0_64 = arith.constant 0 : index
    %186 = vector.load %arg9[%c22, %c0_64] : memref<25x32xf32, #tpu.memory_space<vmem>>, vector<1x32xf32>
    %187 = vector.broadcast %186 : vector<1x32xf32> to vector<32x32xf32>
    %188 = arith.mulf %185, %187 : vector<32x32xf32>
    %189 = arith.addf %184, %188 : vector<32x32xf32>
    %190 = vector.extract_strided_slice %1 {offsets = [35, 0], sizes = [32, 32], strides = [1, 1]} : vector<68x32xf32> to vector<32x32xf32>
    %c23 = arith.constant 23 : index
    %c0_65 = arith.constant 0 : index
    %191 = vector.load %arg9[%c23, %c0_65] : memref<25x32xf32, #tpu.memory_space<vmem>>, vector<1x32xf32>
    %192 = vector.broadcast %191 : vector<1x32xf32> to vector<32x32xf32>
    %193 = arith.mulf %190, %192 : vector<32x32xf32>
    %194 = arith.addf %189, %193 : vector<32x32xf32>
    %195 = vector.extract_strided_slice %1 {offsets = [36, 0], sizes = [32, 32], strides = [1, 1]} : vector<68x32xf32> to vector<32x32xf32>
    %c24 = arith.constant 24 : index
    %c0_66 = arith.constant 0 : index
    %196 = vector.load %arg9[%c24, %c0_66] : memref<25x32xf32, #tpu.memory_space<vmem>>, vector<1x32xf32>
    %197 = vector.broadcast %196 : vector<1x32xf32> to vector<32x32xf32>
    %198 = arith.mulf %195, %197 : vector<32x32xf32>
    %199 = arith.addf %194, %198 : vector<32x32xf32>
    %c0_67 = arith.constant 0 : index
    %c0_68 = arith.constant 0 : index
    %200 = vector.load %arg10[%c0_67, %c0_68] : memref<1x32xf32, #tpu.memory_space<vmem>>, vector<1x32xf32>
    %201 = vector.broadcast %200 : vector<1x32xf32> to vector<32x32xf32>
    %202 = arith.addf %199, %201 : vector<32x32xf32>
    %c0_69 = arith.constant 0 : index
    %c0_70 = arith.constant 0 : index
    %203 = vector.load %arg11[%c0_69, %c0_70] : memref<32x48xf32, #tpu.memory_space<vmem>>, vector<32x48xf32>
    %cst_71 = arith.constant dense<0.000000e+00> : vector<32x48xf32>
    %204 = tpu.matmul %202, %203, %cst_71 {dimension_numbers = #tpu.dot_dimension_numbers<[1], [0], [0], [1], [0, 0, 1, 1], [], []>} : vector<32x32xf32>, vector<32x48xf32>, vector<32x48xf32> -> vector<32x48xf32>
    %c0_72 = arith.constant 0 : index
    %c0_73 = arith.constant 0 : index
    %205 = vector.load %arg12[%c0_72, %c0_73] : memref<1x48xf32, #tpu.memory_space<vmem>>, vector<1x48xf32>
    %206 = vector.broadcast %205 : vector<1x48xf32> to vector<32x48xf32>
    %207 = arith.addf %204, %206 : vector<32x48xf32>
    %cst_74 = arith.constant 0.000000e+00 : f32
    %208 = vector.broadcast %cst_74 : f32 to vector<32x48xf32>
    %209 = arith.cmpf ogt, %207, %208 : vector<32x48xf32>
    %cst_75 = arith.constant 3.000000e-01 : f32
    %210 = vector.broadcast %cst_75 : f32 to vector<32x48xf32>
    %211 = arith.mulf %210, %207 : vector<32x48xf32>
    %212 = arith.select %209, %207, %211 : vector<32x48xi1>, vector<32x48xf32>
    %c0_76 = arith.constant 0 : index
    %c0_77 = arith.constant 0 : index
    %c64 = arith.constant 64 : index
    %213 = vector.load %arg15[%c0_76, %c0_77, %c64] : memref<1x32x144xf32, #tpu.memory_space<vmem>>, vector<1x32x48xf32>
    %214 = vector.shape_cast %213 : vector<1x32x48xf32> to vector<32x48xf32>
    %215 = vector.shape_cast %212 : vector<32x48xf32> to vector<1x32x48xf32>
    tpu.vector_store %arg15[%c0_76, %c0_77, %c64], %215 {strides = array<i32>} : memref<1x32x144xf32, #tpu.memory_space<vmem>>, vector<1x32x48xf32>,
    %c0_78 = arith.constant 0 : index
    %c0_79 = arith.constant 0 : index
    %216 = vector.load %arg2[%c0_78, %c0_79] : memref<68x1xf32, #tpu.memory_space<vmem>>, vector<68x1xf32>
    %217 = vector.broadcast %216 : vector<68x1xf32> to vector<68x32xf32>
    %218 = arith.addf %1, %217 : vector<68x32xf32>
    %219 = vector.extract_strided_slice %218 {offsets = [9, 0], sizes = [32, 32], strides = [1, 1]} : vector<68x32xf32> to vector<32x32xf32>
    %220 = vector.extract_strided_slice %218 {offsets = [10, 0], sizes = [32, 32], strides = [1, 1]} : vector<68x32xf32> to vector<32x32xf32>
    %221 = arith.maximumf %219, %220 : vector<32x32xf32>
    %222 = vector.extract_strided_slice %218 {offsets = [11, 0], sizes = [32, 32], strides = [1, 1]} : vector<68x32xf32> to vector<32x32xf32>
    %223 = arith.maximumf %221, %222 : vector<32x32xf32>
    %224 = vector.extract_strided_slice %218 {offsets = [17, 0], sizes = [32, 32], strides = [1, 1]} : vector<68x32xf32> to vector<32x32xf32>
    %225 = arith.maximumf %223, %224 : vector<32x32xf32>
    %226 = vector.extract_strided_slice %218 {offsets = [18, 0], sizes = [32, 32], strides = [1, 1]} : vector<68x32xf32> to vector<32x32xf32>
    %227 = arith.maximumf %225, %226 : vector<32x32xf32>
    %228 = vector.extract_strided_slice %218 {offsets = [19, 0], sizes = [32, 32], strides = [1, 1]} : vector<68x32xf32> to vector<32x32xf32>
    %229 = arith.maximumf %227, %228 : vector<32x32xf32>
    %230 = vector.extract_strided_slice %218 {offsets = [25, 0], sizes = [32, 32], strides = [1, 1]} : vector<68x32xf32> to vector<32x32xf32>
    %231 = arith.maximumf %229, %230 : vector<32x32xf32>
    %232 = vector.extract_strided_slice %218 {offsets = [26, 0], sizes = [32, 32], strides = [1, 1]} : vector<68x32xf32> to vector<32x32xf32>
    %233 = arith.maximumf %231, %232 : vector<32x32xf32>
    %234 = vector.extract_strided_slice %218 {offsets = [27, 0], sizes = [32, 32], strides = [1, 1]} : vector<68x32xf32> to vector<32x32xf32>
    %235 = arith.maximumf %233, %234 : vector<32x32xf32>
    %c0_80 = arith.constant 0 : index
    %c0_81 = arith.constant 0 : index
    %236 = vector.load %arg13[%c0_80, %c0_81] : memref<32x32xf32, #tpu.memory_space<vmem>>, vector<32x32xf32>
    %cst_82 = arith.constant dense<0.000000e+00> : vector<32x32xf32>
    %237 = tpu.matmul %235, %236, %cst_82 {dimension_numbers = #tpu.dot_dimension_numbers<[1], [0], [0], [1], [0, 0, 1, 1], [], []>} : vector<32x32xf32>, vector<32x32xf32>, vector<32x32xf32> -> vector<32x32xf32>
    %c0_83 = arith.constant 0 : index
    %c0_84 = arith.constant 0 : index
    %238 = vector.load %arg14[%c0_83, %c0_84] : memref<1x32xf32, #tpu.memory_space<vmem>>, vector<1x32xf32>
    %239 = vector.broadcast %238 : vector<1x32xf32> to vector<32x32xf32>
    %240 = arith.addf %237, %239 : vector<32x32xf32>
    %cst_85 = arith.constant 0.000000e+00 : f32
    %241 = vector.broadcast %cst_85 : f32 to vector<32x32xf32>
    %242 = arith.cmpf ogt, %240, %241 : vector<32x32xf32>
    %cst_86 = arith.constant 3.000000e-01 : f32
    %243 = vector.broadcast %cst_86 : f32 to vector<32x32xf32>
    %244 = arith.mulf %243, %240 : vector<32x32xf32>
    %245 = arith.select %242, %240, %244 : vector<32x32xi1>, vector<32x32xf32>
    %c0_87 = arith.constant 0 : index
    %c0_88 = arith.constant 0 : index
    %c112 = arith.constant 112 : index
    %246 = vector.load %arg15[%c0_87, %c0_88, %c112] : memref<1x32x144xf32, #tpu.memory_space<vmem>>, vector<1x32x32xf32>
    %247 = vector.shape_cast %246 : vector<1x32x32xf32> to vector<32x32xf32>
    %248 = vector.shape_cast %245 : vector<32x32xf32> to vector<1x32x32xf32>
    tpu.vector_store %arg15[%c0_87, %c0_88, %c112], %248 {strides = array<i32>} : memref<1x32x144xf32, #tpu.memory_space<vmem>>, vector<1x32x32xf32>,
    return
  }
  func.func @transform_0(%arg0: i32) -> (i32, i32, i32) {
    %c0_i32 = arith.constant 0 : i32
    %c0_i32_0 = arith.constant 0 : i32
    %c0_i32_1 = arith.constant 0 : i32
    return %arg0, %c0_i32, %c0_i32_0 : i32, i32, i32
  }
  func.func @transform_1(%arg0: i32) -> (i32, i32) {
    %c0_i32 = arith.constant 0 : i32
    %c0_i32_0 = arith.constant 0 : i32
    %c0_i32_1 = arith.constant 0 : i32
    return %c0_i32, %c0_i32_0 : i32, i32
  }
  func.func @transform_2(%arg0: i32) -> (i32, i32) {
    %c0_i32 = arith.constant 0 : i32
    %c0_i32_0 = arith.constant 0 : i32
    %c0_i32_1 = arith.constant 0 : i32
    return %c0_i32, %c0_i32_0 : i32, i32
  }
  func.func @transform_3(%arg0: i32) -> (i32, i32) {
    %c0_i32 = arith.constant 0 : i32
    %c0_i32_0 = arith.constant 0 : i32
    %c0_i32_1 = arith.constant 0 : i32
    return %c0_i32, %c0_i32_0 : i32, i32
  }
  func.func @transform_4(%arg0: i32) -> (i32, i32) {
    %c0_i32 = arith.constant 0 : i32
    %c0_i32_0 = arith.constant 0 : i32
    %c0_i32_1 = arith.constant 0 : i32
    return %c0_i32, %c0_i32_0 : i32, i32
  }
  func.func @transform_5(%arg0: i32) -> (i32, i32) {
    %c0_i32 = arith.constant 0 : i32
    %c0_i32_0 = arith.constant 0 : i32
    %c0_i32_1 = arith.constant 0 : i32
    return %c0_i32, %c0_i32_0 : i32, i32
  }
  func.func @transform_6(%arg0: i32) -> (i32, i32) {
    %c0_i32 = arith.constant 0 : i32
    %c0_i32_0 = arith.constant 0 : i32
    %c0_i32_1 = arith.constant 0 : i32
    return %c0_i32, %c0_i32_0 : i32, i32
  }
  func.func @transform_7(%arg0: i32) -> (i32, i32) {
    %c0_i32 = arith.constant 0 : i32
    %c0_i32_0 = arith.constant 0 : i32
    %c0_i32_1 = arith.constant 0 : i32
    return %c0_i32, %c0_i32_0 : i32, i32
  }
  func.func @transform_8(%arg0: i32) -> (i32, i32) {
    %c0_i32 = arith.constant 0 : i32
    %c0_i32_0 = arith.constant 0 : i32
    %c0_i32_1 = arith.constant 0 : i32
    return %c0_i32, %c0_i32_0 : i32, i32
  }
  func.func @transform_9(%arg0: i32) -> (i32, i32) {
    %c0_i32 = arith.constant 0 : i32
    %c0_i32_0 = arith.constant 0 : i32
    %c0_i32_1 = arith.constant 0 : i32
    return %c0_i32, %c0_i32_0 : i32, i32
  }
  func.func @transform_10(%arg0: i32) -> (i32, i32) {
    %c0_i32 = arith.constant 0 : i32
    %c0_i32_0 = arith.constant 0 : i32
    %c0_i32_1 = arith.constant 0 : i32
    return %c0_i32, %c0_i32_0 : i32, i32
  }
  func.func @transform_11(%arg0: i32) -> (i32, i32) {
    %c0_i32 = arith.constant 0 : i32
    %c0_i32_0 = arith.constant 0 : i32
    %c0_i32_1 = arith.constant 0 : i32
    return %c0_i32, %c0_i32_0 : i32, i32
  }
  func.func @transform_12(%arg0: i32) -> (i32, i32) {
    %c0_i32 = arith.constant 0 : i32
    %c0_i32_0 = arith.constant 0 : i32
    %c0_i32_1 = arith.constant 0 : i32
    return %c0_i32, %c0_i32_0 : i32, i32
  }
  func.func @transform_13(%arg0: i32) -> (i32, i32) {
    %c0_i32 = arith.constant 0 : i32
    %c0_i32_0 = arith.constant 0 : i32
    %c0_i32_1 = arith.constant 0 : i32
    return %c0_i32, %c0_i32_0 : i32, i32
  }
  func.func @transform_14(%arg0: i32) -> (i32, i32, i32) {
    %c0_i32 = arith.constant 0 : i32
    %c0_i32_0 = arith.constant 0 : i32
    %c0_i32_1 = arith.constant 0 : i32
    return %arg0, %c0_i32, %c0_i32_0 : i32, i32, i32
  }
}

module attributes {stable_mosaic.version = 11 : i64} {
  func.func @_mfli_kernel(%arg0: i32, %arg1: memref<1x68x144xf32, #tpu.memory_space<vmem>>, %arg2: memref<68x1xf32, #tpu.memory_space<vmem>>, %arg3: memref<144x16xf32, #tpu.memory_space<vmem>>, %arg4: memref<1x16xf32, #tpu.memory_space<vmem>>, %arg5: memref<9x144xf32, #tpu.memory_space<vmem>>, %arg6: memref<1x144xf32, #tpu.memory_space<vmem>>, %arg7: memref<144x48xf32, #tpu.memory_space<vmem>>, %arg8: memref<1x48xf32, #tpu.memory_space<vmem>>, %arg9: memref<25x144xf32, #tpu.memory_space<vmem>>, %arg10: memref<1x144xf32, #tpu.memory_space<vmem>>, %arg11: memref<144x48xf32, #tpu.memory_space<vmem>>, %arg12: memref<1x48xf32, #tpu.memory_space<vmem>>, %arg13: memref<144x32xf32, #tpu.memory_space<vmem>>, %arg14: memref<1x32xf32, #tpu.memory_space<vmem>>, %arg15: memref<1x32x144xf32, #tpu.memory_space<vmem>>) attributes {dimension_semantics = [#tpu.dimension_semantics<parallel>], iteration_bounds = array<i64: 2>, scalar_prefetch = 0 : i64, scratch_operands = 0 : i64, tpu.core_type = #tpu.core_type<tc>, window_params = [{transform_indices = @transform_0, window_bounds = array<i64: 1, 68, 144>}, {pipeline_mode = #tpu.pipeline_mode<synchronous>, transform_indices = @transform_1, window_bounds = array<i64: 68, 1>}, {pipeline_mode = #tpu.pipeline_mode<synchronous>, transform_indices = @transform_2, window_bounds = array<i64: 144, 16>}, {pipeline_mode = #tpu.pipeline_mode<synchronous>, transform_indices = @transform_3, window_bounds = array<i64: 1, 16>}, {pipeline_mode = #tpu.pipeline_mode<synchronous>, transform_indices = @transform_4, window_bounds = array<i64: 9, 144>}, {pipeline_mode = #tpu.pipeline_mode<synchronous>, transform_indices = @transform_5, window_bounds = array<i64: 1, 144>}, {pipeline_mode = #tpu.pipeline_mode<synchronous>, transform_indices = @transform_6, window_bounds = array<i64: 144, 48>}, {pipeline_mode = #tpu.pipeline_mode<synchronous>, transform_indices = @transform_7, window_bounds = array<i64: 1, 48>}, {pipeline_mode = #tpu.pipeline_mode<synchronous>, transform_indices = @transform_8, window_bounds = array<i64: 25, 144>}, {pipeline_mode = #tpu.pipeline_mode<synchronous>, transform_indices = @transform_9, window_bounds = array<i64: 1, 144>}, {pipeline_mode = #tpu.pipeline_mode<synchronous>, transform_indices = @transform_10, window_bounds = array<i64: 144, 48>}, {pipeline_mode = #tpu.pipeline_mode<synchronous>, transform_indices = @transform_11, window_bounds = array<i64: 1, 48>}, {pipeline_mode = #tpu.pipeline_mode<synchronous>, transform_indices = @transform_12, window_bounds = array<i64: 144, 32>}, {pipeline_mode = #tpu.pipeline_mode<synchronous>, transform_indices = @transform_13, window_bounds = array<i64: 1, 32>}, {transform_indices = @transform_14, window_bounds = array<i64: 1, 32, 144>}]} {
    %c0 = arith.constant 0 : index
    %c0_0 = arith.constant 0 : index
    %c0_1 = arith.constant 0 : index
    %0 = vector.load %arg1[%c0, %c0_0, %c0_1] : memref<1x68x144xf32, #tpu.memory_space<vmem>>, vector<1x68x144xf32>
    %1 = vector.shape_cast %0 : vector<1x68x144xf32> to vector<68x144xf32>
    %2 = vector.extract_strided_slice %1 {offsets = [18, 0], sizes = [32, 144], strides = [1, 1]} : vector<68x144xf32> to vector<32x144xf32>
    %c0_2 = arith.constant 0 : index
    %c0_3 = arith.constant 0 : index
    %3 = vector.load %arg3[%c0_2, %c0_3] : memref<144x16xf32, #tpu.memory_space<vmem>>, vector<144x16xf32>
    %cst = arith.constant dense<0.000000e+00> : vector<32x16xf32>
    %4 = tpu.matmul %2, %3, %cst {dimension_numbers = #tpu.dot_dimension_numbers<[1], [0], [0], [1], [0, 0, 1, 1], [], []>} : vector<32x144xf32>, vector<144x16xf32>, vector<32x16xf32> -> vector<32x16xf32>
    %c0_4 = arith.constant 0 : index
    %c0_5 = arith.constant 0 : index
    %5 = vector.load %arg4[%c0_4, %c0_5] : memref<1x16xf32, #tpu.memory_space<vmem>>, vector<1x16xf32>
    %6 = vector.broadcast %5 : vector<1x16xf32> to vector<32x16xf32>
    %7 = arith.addf %4, %6 : vector<32x16xf32>
    %cst_6 = arith.constant 0.000000e+00 : f32
    %8 = vector.broadcast %cst_6 : f32 to vector<32x16xf32>
    %9 = arith.cmpf ogt, %7, %8 : vector<32x16xf32>
    %cst_7 = arith.constant 3.000000e-01 : f32
    %10 = vector.broadcast %cst_7 : f32 to vector<32x16xf32>
    %11 = arith.mulf %10, %7 : vector<32x16xf32>
    %12 = arith.select %9, %7, %11 : vector<32x16xi1>, vector<32x16xf32>
    %c0_8 = arith.constant 0 : index
    %c0_9 = arith.constant 0 : index
    %c0_10 = arith.constant 0 : index
    %13 = vector.load %arg15[%c0_8, %c0_9, %c0_10] : memref<1x32x144xf32, #tpu.memory_space<vmem>>, vector<1x32x16xf32>
    %14 = vector.shape_cast %13 : vector<1x32x16xf32> to vector<32x16xf32>
    %15 = vector.shape_cast %12 : vector<32x16xf32> to vector<1x32x16xf32>
    tpu.vector_store %arg15[%c0_8, %c0_9, %c0_10], %15 {strides = array<i32>} : memref<1x32x144xf32, #tpu.memory_space<vmem>>, vector<1x32x16xf32>,
    %16 = vector.extract_strided_slice %1 {offsets = [9, 0], sizes = [32, 144], strides = [1, 1]} : vector<68x144xf32> to vector<32x144xf32>
    %c0_11 = arith.constant 0 : index
    %c0_12 = arith.constant 0 : index
    %17 = vector.load %arg5[%c0_11, %c0_12] : memref<9x144xf32, #tpu.memory_space<vmem>>, vector<1x144xf32>
    %18 = vector.broadcast %17 : vector<1x144xf32> to vector<32x144xf32>
    %19 = arith.mulf %16, %18 : vector<32x144xf32>
    %20 = vector.extract_strided_slice %1 {offsets = [10, 0], sizes = [32, 144], strides = [1, 1]} : vector<68x144xf32> to vector<32x144xf32>
    %c1 = arith.constant 1 : index
    %c0_13 = arith.constant 0 : index
    %21 = vector.load %arg5[%c1, %c0_13] : memref<9x144xf32, #tpu.memory_space<vmem>>, vector<1x144xf32>
    %22 = vector.broadcast %21 : vector<1x144xf32> to vector<32x144xf32>
    %23 = arith.mulf %20, %22 : vector<32x144xf32>
    %24 = arith.addf %19, %23 : vector<32x144xf32>
    %25 = vector.extract_strided_slice %1 {offsets = [11, 0], sizes = [32, 144], strides = [1, 1]} : vector<68x144xf32> to vector<32x144xf32>
    %c2 = arith.constant 2 : index
    %c0_14 = arith.constant 0 : index
    %26 = vector.load %arg5[%c2, %c0_14] : memref<9x144xf32, #tpu.memory_space<vmem>>, vector<1x144xf32>
    %27 = vector.broadcast %26 : vector<1x144xf32> to vector<32x144xf32>
    %28 = arith.mulf %25, %27 : vector<32x144xf32>
    %29 = arith.addf %24, %28 : vector<32x144xf32>
    %30 = vector.extract_strided_slice %1 {offsets = [17, 0], sizes = [32, 144], strides = [1, 1]} : vector<68x144xf32> to vector<32x144xf32>
    %c3 = arith.constant 3 : index
    %c0_15 = arith.constant 0 : index
    %31 = vector.load %arg5[%c3, %c0_15] : memref<9x144xf32, #tpu.memory_space<vmem>>, vector<1x144xf32>
    %32 = vector.broadcast %31 : vector<1x144xf32> to vector<32x144xf32>
    %33 = arith.mulf %30, %32 : vector<32x144xf32>
    %34 = arith.addf %29, %33 : vector<32x144xf32>
    %35 = vector.extract_strided_slice %1 {offsets = [18, 0], sizes = [32, 144], strides = [1, 1]} : vector<68x144xf32> to vector<32x144xf32>
    %c4 = arith.constant 4 : index
    %c0_16 = arith.constant 0 : index
    %36 = vector.load %arg5[%c4, %c0_16] : memref<9x144xf32, #tpu.memory_space<vmem>>, vector<1x144xf32>
    %37 = vector.broadcast %36 : vector<1x144xf32> to vector<32x144xf32>
    %38 = arith.mulf %35, %37 : vector<32x144xf32>
    %39 = arith.addf %34, %38 : vector<32x144xf32>
    %40 = vector.extract_strided_slice %1 {offsets = [19, 0], sizes = [32, 144], strides = [1, 1]} : vector<68x144xf32> to vector<32x144xf32>
    %c5 = arith.constant 5 : index
    %c0_17 = arith.constant 0 : index
    %41 = vector.load %arg5[%c5, %c0_17] : memref<9x144xf32, #tpu.memory_space<vmem>>, vector<1x144xf32>
    %42 = vector.broadcast %41 : vector<1x144xf32> to vector<32x144xf32>
    %43 = arith.mulf %40, %42 : vector<32x144xf32>
    %44 = arith.addf %39, %43 : vector<32x144xf32>
    %45 = vector.extract_strided_slice %1 {offsets = [25, 0], sizes = [32, 144], strides = [1, 1]} : vector<68x144xf32> to vector<32x144xf32>
    %c6 = arith.constant 6 : index
    %c0_18 = arith.constant 0 : index
    %46 = vector.load %arg5[%c6, %c0_18] : memref<9x144xf32, #tpu.memory_space<vmem>>, vector<1x144xf32>
    %47 = vector.broadcast %46 : vector<1x144xf32> to vector<32x144xf32>
    %48 = arith.mulf %45, %47 : vector<32x144xf32>
    %49 = arith.addf %44, %48 : vector<32x144xf32>
    %50 = vector.extract_strided_slice %1 {offsets = [26, 0], sizes = [32, 144], strides = [1, 1]} : vector<68x144xf32> to vector<32x144xf32>
    %c7 = arith.constant 7 : index
    %c0_19 = arith.constant 0 : index
    %51 = vector.load %arg5[%c7, %c0_19] : memref<9x144xf32, #tpu.memory_space<vmem>>, vector<1x144xf32>
    %52 = vector.broadcast %51 : vector<1x144xf32> to vector<32x144xf32>
    %53 = arith.mulf %50, %52 : vector<32x144xf32>
    %54 = arith.addf %49, %53 : vector<32x144xf32>
    %55 = vector.extract_strided_slice %1 {offsets = [27, 0], sizes = [32, 144], strides = [1, 1]} : vector<68x144xf32> to vector<32x144xf32>
    %c8 = arith.constant 8 : index
    %c0_20 = arith.constant 0 : index
    %56 = vector.load %arg5[%c8, %c0_20] : memref<9x144xf32, #tpu.memory_space<vmem>>, vector<1x144xf32>
    %57 = vector.broadcast %56 : vector<1x144xf32> to vector<32x144xf32>
    %58 = arith.mulf %55, %57 : vector<32x144xf32>
    %59 = arith.addf %54, %58 : vector<32x144xf32>
    %c0_21 = arith.constant 0 : index
    %c0_22 = arith.constant 0 : index
    %60 = vector.load %arg6[%c0_21, %c0_22] : memref<1x144xf32, #tpu.memory_space<vmem>>, vector<1x144xf32>
    %61 = vector.broadcast %60 : vector<1x144xf32> to vector<32x144xf32>
    %62 = arith.addf %59, %61 : vector<32x144xf32>
    %c0_23 = arith.constant 0 : index
    %c0_24 = arith.constant 0 : index
    %63 = vector.load %arg7[%c0_23, %c0_24] : memref<144x48xf32, #tpu.memory_space<vmem>>, vector<144x48xf32>
    %cst_25 = arith.constant dense<0.000000e+00> : vector<32x48xf32>
    %64 = tpu.matmul %62, %63, %cst_25 {dimension_numbers = #tpu.dot_dimension_numbers<[1], [0], [0], [1], [0, 0, 1, 1], [], []>} : vector<32x144xf32>, vector<144x48xf32>, vector<32x48xf32> -> vector<32x48xf32>
    %c0_26 = arith.constant 0 : index
    %c0_27 = arith.constant 0 : index
    %65 = vector.load %arg8[%c0_26, %c0_27] : memref<1x48xf32, #tpu.memory_space<vmem>>, vector<1x48xf32>
    %66 = vector.broadcast %65 : vector<1x48xf32> to vector<32x48xf32>
    %67 = arith.addf %64, %66 : vector<32x48xf32>
    %cst_28 = arith.constant 0.000000e+00 : f32
    %68 = vector.broadcast %cst_28 : f32 to vector<32x48xf32>
    %69 = arith.cmpf ogt, %67, %68 : vector<32x48xf32>
    %cst_29 = arith.constant 3.000000e-01 : f32
    %70 = vector.broadcast %cst_29 : f32 to vector<32x48xf32>
    %71 = arith.mulf %70, %67 : vector<32x48xf32>
    %72 = arith.select %69, %67, %71 : vector<32x48xi1>, vector<32x48xf32>
    %c0_30 = arith.constant 0 : index
    %c0_31 = arith.constant 0 : index
    %c16 = arith.constant 16 : index
    %73 = vector.load %arg15[%c0_30, %c0_31, %c16] : memref<1x32x144xf32, #tpu.memory_space<vmem>>, vector<1x32x48xf32>
    %74 = vector.shape_cast %73 : vector<1x32x48xf32> to vector<32x48xf32>
    %75 = vector.shape_cast %72 : vector<32x48xf32> to vector<1x32x48xf32>
    tpu.vector_store %arg15[%c0_30, %c0_31, %c16], %75 {strides = array<i32>} : memref<1x32x144xf32, #tpu.memory_space<vmem>>, vector<1x32x48xf32>,
    %76 = vector.extract_strided_slice %1 {offsets = [0, 0], sizes = [32, 144], strides = [1, 1]} : vector<68x144xf32> to vector<32x144xf32>
    %c0_32 = arith.constant 0 : index
    %c0_33 = arith.constant 0 : index
    %77 = vector.load %arg9[%c0_32, %c0_33] : memref<25x144xf32, #tpu.memory_space<vmem>>, vector<1x144xf32>
    %78 = vector.broadcast %77 : vector<1x144xf32> to vector<32x144xf32>
    %79 = arith.mulf %76, %78 : vector<32x144xf32>
    %80 = vector.extract_strided_slice %1 {offsets = [1, 0], sizes = [32, 144], strides = [1, 1]} : vector<68x144xf32> to vector<32x144xf32>
    %c1_34 = arith.constant 1 : index
    %c0_35 = arith.constant 0 : index
    %81 = vector.load %arg9[%c1_34, %c0_35] : memref<25x144xf32, #tpu.memory_space<vmem>>, vector<1x144xf32>
    %82 = vector.broadcast %81 : vector<1x144xf32> to vector<32x144xf32>
    %83 = arith.mulf %80, %82 : vector<32x144xf32>
    %84 = arith.addf %79, %83 : vector<32x144xf32>
    %85 = vector.extract_strided_slice %1 {offsets = [2, 0], sizes = [32, 144], strides = [1, 1]} : vector<68x144xf32> to vector<32x144xf32>
    %c2_36 = arith.constant 2 : index
    %c0_37 = arith.constant 0 : index
    %86 = vector.load %arg9[%c2_36, %c0_37] : memref<25x144xf32, #tpu.memory_space<vmem>>, vector<1x144xf32>
    %87 = vector.broadcast %86 : vector<1x144xf32> to vector<32x144xf32>
    %88 = arith.mulf %85, %87 : vector<32x144xf32>
    %89 = arith.addf %84, %88 : vector<32x144xf32>
    %90 = vector.extract_strided_slice %1 {offsets = [3, 0], sizes = [32, 144], strides = [1, 1]} : vector<68x144xf32> to vector<32x144xf32>
    %c3_38 = arith.constant 3 : index
    %c0_39 = arith.constant 0 : index
    %91 = vector.load %arg9[%c3_38, %c0_39] : memref<25x144xf32, #tpu.memory_space<vmem>>, vector<1x144xf32>
    %92 = vector.broadcast %91 : vector<1x144xf32> to vector<32x144xf32>
    %93 = arith.mulf %90, %92 : vector<32x144xf32>
    %94 = arith.addf %89, %93 : vector<32x144xf32>
    %95 = vector.extract_strided_slice %1 {offsets = [4, 0], sizes = [32, 144], strides = [1, 1]} : vector<68x144xf32> to vector<32x144xf32>
    %c4_40 = arith.constant 4 : index
    %c0_41 = arith.constant 0 : index
    %96 = vector.load %arg9[%c4_40, %c0_41] : memref<25x144xf32, #tpu.memory_space<vmem>>, vector<1x144xf32>
    %97 = vector.broadcast %96 : vector<1x144xf32> to vector<32x144xf32>
    %98 = arith.mulf %95, %97 : vector<32x144xf32>
    %99 = arith.addf %94, %98 : vector<32x144xf32>
    %100 = vector.extract_strided_slice %1 {offsets = [8, 0], sizes = [32, 144], strides = [1, 1]} : vector<68x144xf32> to vector<32x144xf32>
    %c5_42 = arith.constant 5 : index
    %c0_43 = arith.constant 0 : index
    %101 = vector.load %arg9[%c5_42, %c0_43] : memref<25x144xf32, #tpu.memory_space<vmem>>, vector<1x144xf32>
    %102 = vector.broadcast %101 : vector<1x144xf32> to vector<32x144xf32>
    %103 = arith.mulf %100, %102 : vector<32x144xf32>
    %104 = arith.addf %99, %103 : vector<32x144xf32>
    %105 = vector.extract_strided_slice %1 {offsets = [9, 0], sizes = [32, 144], strides = [1, 1]} : vector<68x144xf32> to vector<32x144xf32>
    %c6_44 = arith.constant 6 : index
    %c0_45 = arith.constant 0 : index
    %106 = vector.load %arg9[%c6_44, %c0_45] : memref<25x144xf32, #tpu.memory_space<vmem>>, vector<1x144xf32>
    %107 = vector.broadcast %106 : vector<1x144xf32> to vector<32x144xf32>
    %108 = arith.mulf %105, %107 : vector<32x144xf32>
    %109 = arith.addf %104, %108 : vector<32x144xf32>
    %110 = vector.extract_strided_slice %1 {offsets = [10, 0], sizes = [32, 144], strides = [1, 1]} : vector<68x144xf32> to vector<32x144xf32>
    %c7_46 = arith.constant 7 : index
    %c0_47 = arith.constant 0 : index
    %111 = vector.load %arg9[%c7_46, %c0_47] : memref<25x144xf32, #tpu.memory_space<vmem>>, vector<1x144xf32>
    %112 = vector.broadcast %111 : vector<1x144xf32> to vector<32x144xf32>
    %113 = arith.mulf %110, %112 : vector<32x144xf32>
    %114 = arith.addf %109, %113 : vector<32x144xf32>
    %115 = vector.extract_strided_slice %1 {offsets = [11, 0], sizes = [32, 144], strides = [1, 1]} : vector<68x144xf32> to vector<32x144xf32>
    %c8_48 = arith.constant 8 : index
    %c0_49 = arith.constant 0 : index
    %116 = vector.load %arg9[%c8_48, %c0_49] : memref<25x144xf32, #tpu.memory_space<vmem>>, vector<1x144xf32>
    %117 = vector.broadcast %116 : vector<1x144xf32> to vector<32x144xf32>
    %118 = arith.mulf %115, %117 : vector<32x144xf32>
    %119 = arith.addf %114, %118 : vector<32x144xf32>
    %120 = vector.extract_strided_slice %1 {offsets = [12, 0], sizes = [32, 144], strides = [1, 1]} : vector<68x144xf32> to vector<32x144xf32>
    %c9 = arith.constant 9 : index
    %c0_50 = arith.constant 0 : index
    %121 = vector.load %arg9[%c9, %c0_50] : memref<25x144xf32, #tpu.memory_space<vmem>>, vector<1x144xf32>
    %122 = vector.broadcast %121 : vector<1x144xf32> to vector<32x144xf32>
    %123 = arith.mulf %120, %122 : vector<32x144xf32>
    %124 = arith.addf %119, %123 : vector<32x144xf32>
    %125 = vector.extract_strided_slice %1 {offsets = [16, 0], sizes = [32, 144], strides = [1, 1]} : vector<68x144xf32> to vector<32x144xf32>
    %c10 = arith.constant 10 : index
    %c0_51 = arith.constant 0 : index
    %126 = vector.load %arg9[%c10, %c0_51] : memref<25x144xf32, #tpu.memory_space<vmem>>, vector<1x144xf32>
    %127 = vector.broadcast %126 : vector<1x144xf32> to vector<32x144xf32>
    %128 = arith.mulf %125, %127 : vector<32x144xf32>
    %129 = arith.addf %124, %128 : vector<32x144xf32>
    %130 = vector.extract_strided_slice %1 {offsets = [17, 0], sizes = [32, 144], strides = [1, 1]} : vector<68x144xf32> to vector<32x144xf32>
    %c11 = arith.constant 11 : index
    %c0_52 = arith.constant 0 : index
    %131 = vector.load %arg9[%c11, %c0_52] : memref<25x144xf32, #tpu.memory_space<vmem>>, vector<1x144xf32>
    %132 = vector.broadcast %131 : vector<1x144xf32> to vector<32x144xf32>
    %133 = arith.mulf %130, %132 : vector<32x144xf32>
    %134 = arith.addf %129, %133 : vector<32x144xf32>
    %135 = vector.extract_strided_slice %1 {offsets = [18, 0], sizes = [32, 144], strides = [1, 1]} : vector<68x144xf32> to vector<32x144xf32>
    %c12 = arith.constant 12 : index
    %c0_53 = arith.constant 0 : index
    %136 = vector.load %arg9[%c12, %c0_53] : memref<25x144xf32, #tpu.memory_space<vmem>>, vector<1x144xf32>
    %137 = vector.broadcast %136 : vector<1x144xf32> to vector<32x144xf32>
    %138 = arith.mulf %135, %137 : vector<32x144xf32>
    %139 = arith.addf %134, %138 : vector<32x144xf32>
    %140 = vector.extract_strided_slice %1 {offsets = [19, 0], sizes = [32, 144], strides = [1, 1]} : vector<68x144xf32> to vector<32x144xf32>
    %c13 = arith.constant 13 : index
    %c0_54 = arith.constant 0 : index
    %141 = vector.load %arg9[%c13, %c0_54] : memref<25x144xf32, #tpu.memory_space<vmem>>, vector<1x144xf32>
    %142 = vector.broadcast %141 : vector<1x144xf32> to vector<32x144xf32>
    %143 = arith.mulf %140, %142 : vector<32x144xf32>
    %144 = arith.addf %139, %143 : vector<32x144xf32>
    %145 = vector.extract_strided_slice %1 {offsets = [20, 0], sizes = [32, 144], strides = [1, 1]} : vector<68x144xf32> to vector<32x144xf32>
    %c14 = arith.constant 14 : index
    %c0_55 = arith.constant 0 : index
    %146 = vector.load %arg9[%c14, %c0_55] : memref<25x144xf32, #tpu.memory_space<vmem>>, vector<1x144xf32>
    %147 = vector.broadcast %146 : vector<1x144xf32> to vector<32x144xf32>
    %148 = arith.mulf %145, %147 : vector<32x144xf32>
    %149 = arith.addf %144, %148 : vector<32x144xf32>
    %150 = vector.extract_strided_slice %1 {offsets = [24, 0], sizes = [32, 144], strides = [1, 1]} : vector<68x144xf32> to vector<32x144xf32>
    %c15 = arith.constant 15 : index
    %c0_56 = arith.constant 0 : index
    %151 = vector.load %arg9[%c15, %c0_56] : memref<25x144xf32, #tpu.memory_space<vmem>>, vector<1x144xf32>
    %152 = vector.broadcast %151 : vector<1x144xf32> to vector<32x144xf32>
    %153 = arith.mulf %150, %152 : vector<32x144xf32>
    %154 = arith.addf %149, %153 : vector<32x144xf32>
    %155 = vector.extract_strided_slice %1 {offsets = [25, 0], sizes = [32, 144], strides = [1, 1]} : vector<68x144xf32> to vector<32x144xf32>
    %c16_57 = arith.constant 16 : index
    %c0_58 = arith.constant 0 : index
    %156 = vector.load %arg9[%c16_57, %c0_58] : memref<25x144xf32, #tpu.memory_space<vmem>>, vector<1x144xf32>
    %157 = vector.broadcast %156 : vector<1x144xf32> to vector<32x144xf32>
    %158 = arith.mulf %155, %157 : vector<32x144xf32>
    %159 = arith.addf %154, %158 : vector<32x144xf32>
    %160 = vector.extract_strided_slice %1 {offsets = [26, 0], sizes = [32, 144], strides = [1, 1]} : vector<68x144xf32> to vector<32x144xf32>
    %c17 = arith.constant 17 : index
    %c0_59 = arith.constant 0 : index
    %161 = vector.load %arg9[%c17, %c0_59] : memref<25x144xf32, #tpu.memory_space<vmem>>, vector<1x144xf32>
    %162 = vector.broadcast %161 : vector<1x144xf32> to vector<32x144xf32>
    %163 = arith.mulf %160, %162 : vector<32x144xf32>
    %164 = arith.addf %159, %163 : vector<32x144xf32>
    %165 = vector.extract_strided_slice %1 {offsets = [27, 0], sizes = [32, 144], strides = [1, 1]} : vector<68x144xf32> to vector<32x144xf32>
    %c18 = arith.constant 18 : index
    %c0_60 = arith.constant 0 : index
    %166 = vector.load %arg9[%c18, %c0_60] : memref<25x144xf32, #tpu.memory_space<vmem>>, vector<1x144xf32>
    %167 = vector.broadcast %166 : vector<1x144xf32> to vector<32x144xf32>
    %168 = arith.mulf %165, %167 : vector<32x144xf32>
    %169 = arith.addf %164, %168 : vector<32x144xf32>
    %170 = vector.extract_strided_slice %1 {offsets = [28, 0], sizes = [32, 144], strides = [1, 1]} : vector<68x144xf32> to vector<32x144xf32>
    %c19 = arith.constant 19 : index
    %c0_61 = arith.constant 0 : index
    %171 = vector.load %arg9[%c19, %c0_61] : memref<25x144xf32, #tpu.memory_space<vmem>>, vector<1x144xf32>
    %172 = vector.broadcast %171 : vector<1x144xf32> to vector<32x144xf32>
    %173 = arith.mulf %170, %172 : vector<32x144xf32>
    %174 = arith.addf %169, %173 : vector<32x144xf32>
    %175 = vector.extract_strided_slice %1 {offsets = [32, 0], sizes = [32, 144], strides = [1, 1]} : vector<68x144xf32> to vector<32x144xf32>
    %c20 = arith.constant 20 : index
    %c0_62 = arith.constant 0 : index
    %176 = vector.load %arg9[%c20, %c0_62] : memref<25x144xf32, #tpu.memory_space<vmem>>, vector<1x144xf32>
    %177 = vector.broadcast %176 : vector<1x144xf32> to vector<32x144xf32>
    %178 = arith.mulf %175, %177 : vector<32x144xf32>
    %179 = arith.addf %174, %178 : vector<32x144xf32>
    %180 = vector.extract_strided_slice %1 {offsets = [33, 0], sizes = [32, 144], strides = [1, 1]} : vector<68x144xf32> to vector<32x144xf32>
    %c21 = arith.constant 21 : index
    %c0_63 = arith.constant 0 : index
    %181 = vector.load %arg9[%c21, %c0_63] : memref<25x144xf32, #tpu.memory_space<vmem>>, vector<1x144xf32>
    %182 = vector.broadcast %181 : vector<1x144xf32> to vector<32x144xf32>
    %183 = arith.mulf %180, %182 : vector<32x144xf32>
    %184 = arith.addf %179, %183 : vector<32x144xf32>
    %185 = vector.extract_strided_slice %1 {offsets = [34, 0], sizes = [32, 144], strides = [1, 1]} : vector<68x144xf32> to vector<32x144xf32>
    %c22 = arith.constant 22 : index
    %c0_64 = arith.constant 0 : index
    %186 = vector.load %arg9[%c22, %c0_64] : memref<25x144xf32, #tpu.memory_space<vmem>>, vector<1x144xf32>
    %187 = vector.broadcast %186 : vector<1x144xf32> to vector<32x144xf32>
    %188 = arith.mulf %185, %187 : vector<32x144xf32>
    %189 = arith.addf %184, %188 : vector<32x144xf32>
    %190 = vector.extract_strided_slice %1 {offsets = [35, 0], sizes = [32, 144], strides = [1, 1]} : vector<68x144xf32> to vector<32x144xf32>
    %c23 = arith.constant 23 : index
    %c0_65 = arith.constant 0 : index
    %191 = vector.load %arg9[%c23, %c0_65] : memref<25x144xf32, #tpu.memory_space<vmem>>, vector<1x144xf32>
    %192 = vector.broadcast %191 : vector<1x144xf32> to vector<32x144xf32>
    %193 = arith.mulf %190, %192 : vector<32x144xf32>
    %194 = arith.addf %189, %193 : vector<32x144xf32>
    %195 = vector.extract_strided_slice %1 {offsets = [36, 0], sizes = [32, 144], strides = [1, 1]} : vector<68x144xf32> to vector<32x144xf32>
    %c24 = arith.constant 24 : index
    %c0_66 = arith.constant 0 : index
    %196 = vector.load %arg9[%c24, %c0_66] : memref<25x144xf32, #tpu.memory_space<vmem>>, vector<1x144xf32>
    %197 = vector.broadcast %196 : vector<1x144xf32> to vector<32x144xf32>
    %198 = arith.mulf %195, %197 : vector<32x144xf32>
    %199 = arith.addf %194, %198 : vector<32x144xf32>
    %c0_67 = arith.constant 0 : index
    %c0_68 = arith.constant 0 : index
    %200 = vector.load %arg10[%c0_67, %c0_68] : memref<1x144xf32, #tpu.memory_space<vmem>>, vector<1x144xf32>
    %201 = vector.broadcast %200 : vector<1x144xf32> to vector<32x144xf32>
    %202 = arith.addf %199, %201 : vector<32x144xf32>
    %c0_69 = arith.constant 0 : index
    %c0_70 = arith.constant 0 : index
    %203 = vector.load %arg11[%c0_69, %c0_70] : memref<144x48xf32, #tpu.memory_space<vmem>>, vector<144x48xf32>
    %cst_71 = arith.constant dense<0.000000e+00> : vector<32x48xf32>
    %204 = tpu.matmul %202, %203, %cst_71 {dimension_numbers = #tpu.dot_dimension_numbers<[1], [0], [0], [1], [0, 0, 1, 1], [], []>} : vector<32x144xf32>, vector<144x48xf32>, vector<32x48xf32> -> vector<32x48xf32>
    %c0_72 = arith.constant 0 : index
    %c0_73 = arith.constant 0 : index
    %205 = vector.load %arg12[%c0_72, %c0_73] : memref<1x48xf32, #tpu.memory_space<vmem>>, vector<1x48xf32>
    %206 = vector.broadcast %205 : vector<1x48xf32> to vector<32x48xf32>
    %207 = arith.addf %204, %206 : vector<32x48xf32>
    %cst_74 = arith.constant 0.000000e+00 : f32
    %208 = vector.broadcast %cst_74 : f32 to vector<32x48xf32>
    %209 = arith.cmpf ogt, %207, %208 : vector<32x48xf32>
    %cst_75 = arith.constant 3.000000e-01 : f32
    %210 = vector.broadcast %cst_75 : f32 to vector<32x48xf32>
    %211 = arith.mulf %210, %207 : vector<32x48xf32>
    %212 = arith.select %209, %207, %211 : vector<32x48xi1>, vector<32x48xf32>
    %c0_76 = arith.constant 0 : index
    %c0_77 = arith.constant 0 : index
    %c64 = arith.constant 64 : index
    %213 = vector.load %arg15[%c0_76, %c0_77, %c64] : memref<1x32x144xf32, #tpu.memory_space<vmem>>, vector<1x32x48xf32>
    %214 = vector.shape_cast %213 : vector<1x32x48xf32> to vector<32x48xf32>
    %215 = vector.shape_cast %212 : vector<32x48xf32> to vector<1x32x48xf32>
    tpu.vector_store %arg15[%c0_76, %c0_77, %c64], %215 {strides = array<i32>} : memref<1x32x144xf32, #tpu.memory_space<vmem>>, vector<1x32x48xf32>,
    %c0_78 = arith.constant 0 : index
    %c0_79 = arith.constant 0 : index
    %216 = vector.load %arg2[%c0_78, %c0_79] : memref<68x1xf32, #tpu.memory_space<vmem>>, vector<68x1xf32>
    %217 = vector.broadcast %216 : vector<68x1xf32> to vector<68x144xf32>
    %218 = arith.addf %1, %217 : vector<68x144xf32>
    %219 = vector.extract_strided_slice %218 {offsets = [9, 0], sizes = [32, 144], strides = [1, 1]} : vector<68x144xf32> to vector<32x144xf32>
    %220 = vector.extract_strided_slice %218 {offsets = [10, 0], sizes = [32, 144], strides = [1, 1]} : vector<68x144xf32> to vector<32x144xf32>
    %221 = arith.maximumf %219, %220 : vector<32x144xf32>
    %222 = vector.extract_strided_slice %218 {offsets = [11, 0], sizes = [32, 144], strides = [1, 1]} : vector<68x144xf32> to vector<32x144xf32>
    %223 = arith.maximumf %221, %222 : vector<32x144xf32>
    %224 = vector.extract_strided_slice %218 {offsets = [17, 0], sizes = [32, 144], strides = [1, 1]} : vector<68x144xf32> to vector<32x144xf32>
    %225 = arith.maximumf %223, %224 : vector<32x144xf32>
    %226 = vector.extract_strided_slice %218 {offsets = [18, 0], sizes = [32, 144], strides = [1, 1]} : vector<68x144xf32> to vector<32x144xf32>
    %227 = arith.maximumf %225, %226 : vector<32x144xf32>
    %228 = vector.extract_strided_slice %218 {offsets = [19, 0], sizes = [32, 144], strides = [1, 1]} : vector<68x144xf32> to vector<32x144xf32>
    %229 = arith.maximumf %227, %228 : vector<32x144xf32>
    %230 = vector.extract_strided_slice %218 {offsets = [25, 0], sizes = [32, 144], strides = [1, 1]} : vector<68x144xf32> to vector<32x144xf32>
    %231 = arith.maximumf %229, %230 : vector<32x144xf32>
    %232 = vector.extract_strided_slice %218 {offsets = [26, 0], sizes = [32, 144], strides = [1, 1]} : vector<68x144xf32> to vector<32x144xf32>
    %233 = arith.maximumf %231, %232 : vector<32x144xf32>
    %234 = vector.extract_strided_slice %218 {offsets = [27, 0], sizes = [32, 144], strides = [1, 1]} : vector<68x144xf32> to vector<32x144xf32>
    %235 = arith.maximumf %233, %234 : vector<32x144xf32>
    %c0_80 = arith.constant 0 : index
    %c0_81 = arith.constant 0 : index
    %236 = vector.load %arg13[%c0_80, %c0_81] : memref<144x32xf32, #tpu.memory_space<vmem>>, vector<144x32xf32>
    %cst_82 = arith.constant dense<0.000000e+00> : vector<32x32xf32>
    %237 = tpu.matmul %235, %236, %cst_82 {dimension_numbers = #tpu.dot_dimension_numbers<[1], [0], [0], [1], [0, 0, 1, 1], [], []>} : vector<32x144xf32>, vector<144x32xf32>, vector<32x32xf32> -> vector<32x32xf32>
    %c0_83 = arith.constant 0 : index
    %c0_84 = arith.constant 0 : index
    %238 = vector.load %arg14[%c0_83, %c0_84] : memref<1x32xf32, #tpu.memory_space<vmem>>, vector<1x32xf32>
    %239 = vector.broadcast %238 : vector<1x32xf32> to vector<32x32xf32>
    %240 = arith.addf %237, %239 : vector<32x32xf32>
    %cst_85 = arith.constant 0.000000e+00 : f32
    %241 = vector.broadcast %cst_85 : f32 to vector<32x32xf32>
    %242 = arith.cmpf ogt, %240, %241 : vector<32x32xf32>
    %cst_86 = arith.constant 3.000000e-01 : f32
    %243 = vector.broadcast %cst_86 : f32 to vector<32x32xf32>
    %244 = arith.mulf %243, %240 : vector<32x32xf32>
    %245 = arith.select %242, %240, %244 : vector<32x32xi1>, vector<32x32xf32>
    %c0_87 = arith.constant 0 : index
    %c0_88 = arith.constant 0 : index
    %c112 = arith.constant 112 : index
    %246 = vector.load %arg15[%c0_87, %c0_88, %c112] : memref<1x32x144xf32, #tpu.memory_space<vmem>>, vector<1x32x32xf32>
    %247 = vector.shape_cast %246 : vector<1x32x32xf32> to vector<32x32xf32>
    %248 = vector.shape_cast %245 : vector<32x32xf32> to vector<1x32x32xf32>
    tpu.vector_store %arg15[%c0_87, %c0_88, %c112], %248 {strides = array<i32>} : memref<1x32x144xf32, #tpu.memory_space<vmem>>, vector<1x32x32xf32>,
    return
  }
  func.func @transform_0(%arg0: i32) -> (i32, i32, i32) {
    %c0_i32 = arith.constant 0 : i32
    %c0_i32_0 = arith.constant 0 : i32
    %c0_i32_1 = arith.constant 0 : i32
    return %arg0, %c0_i32, %c0_i32_0 : i32, i32, i32
  }
  func.func @transform_1(%arg0: i32) -> (i32, i32) {
    %c0_i32 = arith.constant 0 : i32
    %c0_i32_0 = arith.constant 0 : i32
    %c0_i32_1 = arith.constant 0 : i32
    return %c0_i32, %c0_i32_0 : i32, i32
  }
  func.func @transform_2(%arg0: i32) -> (i32, i32) {
    %c0_i32 = arith.constant 0 : i32
    %c0_i32_0 = arith.constant 0 : i32
    %c0_i32_1 = arith.constant 0 : i32
    return %c0_i32, %c0_i32_0 : i32, i32
  }
  func.func @transform_3(%arg0: i32) -> (i32, i32) {
    %c0_i32 = arith.constant 0 : i32
    %c0_i32_0 = arith.constant 0 : i32
    %c0_i32_1 = arith.constant 0 : i32
    return %c0_i32, %c0_i32_0 : i32, i32
  }
  func.func @transform_4(%arg0: i32) -> (i32, i32) {
    %c0_i32 = arith.constant 0 : i32
    %c0_i32_0 = arith.constant 0 : i32
    %c0_i32_1 = arith.constant 0 : i32
    return %c0_i32, %c0_i32_0 : i32, i32
  }
  func.func @transform_5(%arg0: i32) -> (i32, i32) {
    %c0_i32 = arith.constant 0 : i32
    %c0_i32_0 = arith.constant 0 : i32
    %c0_i32_1 = arith.constant 0 : i32
    return %c0_i32, %c0_i32_0 : i32, i32
  }
  func.func @transform_6(%arg0: i32) -> (i32, i32) {
    %c0_i32 = arith.constant 0 : i32
    %c0_i32_0 = arith.constant 0 : i32
    %c0_i32_1 = arith.constant 0 : i32
    return %c0_i32, %c0_i32_0 : i32, i32
  }
  func.func @transform_7(%arg0: i32) -> (i32, i32) {
    %c0_i32 = arith.constant 0 : i32
    %c0_i32_0 = arith.constant 0 : i32
    %c0_i32_1 = arith.constant 0 : i32
    return %c0_i32, %c0_i32_0 : i32, i32
  }
  func.func @transform_8(%arg0: i32) -> (i32, i32) {
    %c0_i32 = arith.constant 0 : i32
    %c0_i32_0 = arith.constant 0 : i32
    %c0_i32_1 = arith.constant 0 : i32
    return %c0_i32, %c0_i32_0 : i32, i32
  }
  func.func @transform_9(%arg0: i32) -> (i32, i32) {
    %c0_i32 = arith.constant 0 : i32
    %c0_i32_0 = arith.constant 0 : i32
    %c0_i32_1 = arith.constant 0 : i32
    return %c0_i32, %c0_i32_0 : i32, i32
  }
  func.func @transform_10(%arg0: i32) -> (i32, i32) {
    %c0_i32 = arith.constant 0 : i32
    %c0_i32_0 = arith.constant 0 : i32
    %c0_i32_1 = arith.constant 0 : i32
    return %c0_i32, %c0_i32_0 : i32, i32
  }
  func.func @transform_11(%arg0: i32) -> (i32, i32) {
    %c0_i32 = arith.constant 0 : i32
    %c0_i32_0 = arith.constant 0 : i32
    %c0_i32_1 = arith.constant 0 : i32
    return %c0_i32, %c0_i32_0 : i32, i32
  }
  func.func @transform_12(%arg0: i32) -> (i32, i32) {
    %c0_i32 = arith.constant 0 : i32
    %c0_i32_0 = arith.constant 0 : i32
    %c0_i32_1 = arith.constant 0 : i32
    return %c0_i32, %c0_i32_0 : i32, i32
  }
  func.func @transform_13(%arg0: i32) -> (i32, i32) {
    %c0_i32 = arith.constant 0 : i32
    %c0_i32_0 = arith.constant 0 : i32
    %c0_i32_1 = arith.constant 0 : i32
    return %c0_i32, %c0_i32_0 : i32, i32
  }
  func.func @transform_14(%arg0: i32) -> (i32, i32, i32) {
    %c0_i32 = arith.constant 0 : i32
    %c0_i32_0 = arith.constant 0 : i32
    %c0_i32_1 = arith.constant 0 : i32
    return %arg0, %c0_i32, %c0_i32_0 : i32, i32, i32
  }
}

module attributes {stable_mosaic.version = 11 : i64} {
  func.func @_head_kernel(%arg0: i32, %arg1: memref<2x16x144xf32, #tpu.memory_space<vmem>>, %arg2: memref<144x30xf32, #tpu.memory_space<vmem>>, %arg3: memref<1x30xf32, #tpu.memory_space<vmem>>, %arg4: memref<15x1xf32, #tpu.memory_space<vmem>>, %arg5: memref<1x1xf32, #tpu.memory_space<vmem>>, %arg6: memref<2x1xf32, #tpu.memory_space<vmem>>) attributes {dimension_semantics = [#tpu.dimension_semantics<arbitrary>], iteration_bounds = array<i64: 1>, scalar_prefetch = 0 : i64, scratch_operands = 0 : i64, tpu.core_type = #tpu.core_type<tc>, window_params = [{pipeline_mode = #tpu.pipeline_mode<synchronous>, transform_indices = @transform_0, window_bounds = array<i64: 2, 16, 144>}, {pipeline_mode = #tpu.pipeline_mode<synchronous>, transform_indices = @transform_1, window_bounds = array<i64: 144, 30>}, {pipeline_mode = #tpu.pipeline_mode<synchronous>, transform_indices = @transform_2, window_bounds = array<i64: 1, 30>}, {pipeline_mode = #tpu.pipeline_mode<synchronous>, transform_indices = @transform_3, window_bounds = array<i64: 15, 1>}, {pipeline_mode = #tpu.pipeline_mode<synchronous>, transform_indices = @transform_4, window_bounds = array<i64: 1, 1>}, {pipeline_mode = #tpu.pipeline_mode<synchronous>, transform_indices = @transform_5, window_bounds = array<i64: 2, 1>}]} {
    %c0 = arith.constant 0 : index
    %c0_0 = arith.constant 0 : index
    %c0_1 = arith.constant 0 : index
    %0 = vector.load %arg1[%c0, %c0_0, %c0_1] : memref<2x16x144xf32, #tpu.memory_space<vmem>>, vector<2x16x144xf32>
    %1 = vector.extract_strided_slice %0 {offsets = [0, 0, 0], sizes = [2, 1, 144], strides = [1, 1, 1]} : vector<2x16x144xf32> to vector<2x1x144xf32>
    %2 = vector.shape_cast %1 : vector<2x1x144xf32> to vector<2x144xf32>
    %3 = vector.extract_strided_slice %0 {offsets = [0, 1, 0], sizes = [2, 1, 144], strides = [1, 1, 1]} : vector<2x16x144xf32> to vector<2x1x144xf32>
    %4 = vector.shape_cast %3 : vector<2x1x144xf32> to vector<2x144xf32>
    %5 = arith.maximumf %2, %4 : vector<2x144xf32>
    %6 = vector.extract_strided_slice %0 {offsets = [0, 4, 0], sizes = [2, 1, 144], strides = [1, 1, 1]} : vector<2x16x144xf32> to vector<2x1x144xf32>
    %7 = vector.shape_cast %6 : vector<2x1x144xf32> to vector<2x144xf32>
    %8 = arith.maximumf %5, %7 : vector<2x144xf32>
    %9 = vector.extract_strided_slice %0 {offsets = [0, 5, 0], sizes = [2, 1, 144], strides = [1, 1, 1]} : vector<2x16x144xf32> to vector<2x1x144xf32>
    %10 = vector.shape_cast %9 : vector<2x1x144xf32> to vector<2x144xf32>
    %11 = arith.maximumf %8, %10 : vector<2x144xf32>
    %12 = vector.extract_strided_slice %0 {offsets = [0, 1, 0], sizes = [2, 1, 144], strides = [1, 1, 1]} : vector<2x16x144xf32> to vector<2x1x144xf32>
    %13 = vector.shape_cast %12 : vector<2x1x144xf32> to vector<2x144xf32>
    %14 = vector.extract_strided_slice %0 {offsets = [0, 2, 0], sizes = [2, 1, 144], strides = [1, 1, 1]} : vector<2x16x144xf32> to vector<2x1x144xf32>
    %15 = vector.shape_cast %14 : vector<2x1x144xf32> to vector<2x144xf32>
    %16 = arith.maximumf %13, %15 : vector<2x144xf32>
    %17 = vector.extract_strided_slice %0 {offsets = [0, 3, 0], sizes = [2, 1, 144], strides = [1, 1, 1]} : vector<2x16x144xf32> to vector<2x1x144xf32>
    %18 = vector.shape_cast %17 : vector<2x1x144xf32> to vector<2x144xf32>
    %19 = arith.maximumf %16, %18 : vector<2x144xf32>
    %20 = vector.extract_strided_slice %0 {offsets = [0, 5, 0], sizes = [2, 1, 144], strides = [1, 1, 1]} : vector<2x16x144xf32> to vector<2x1x144xf32>
    %21 = vector.shape_cast %20 : vector<2x1x144xf32> to vector<2x144xf32>
    %22 = arith.maximumf %19, %21 : vector<2x144xf32>
    %23 = vector.extract_strided_slice %0 {offsets = [0, 6, 0], sizes = [2, 1, 144], strides = [1, 1, 1]} : vector<2x16x144xf32> to vector<2x1x144xf32>
    %24 = vector.shape_cast %23 : vector<2x1x144xf32> to vector<2x144xf32>
    %25 = arith.maximumf %22, %24 : vector<2x144xf32>
    %26 = vector.extract_strided_slice %0 {offsets = [0, 7, 0], sizes = [2, 1, 144], strides = [1, 1, 1]} : vector<2x16x144xf32> to vector<2x1x144xf32>
    %27 = vector.shape_cast %26 : vector<2x1x144xf32> to vector<2x144xf32>
    %28 = arith.maximumf %25, %27 : vector<2x144xf32>
    %29 = arith.addf %11, %28 : vector<2x144xf32>
    %30 = vector.extract_strided_slice %0 {offsets = [0, 4, 0], sizes = [2, 1, 144], strides = [1, 1, 1]} : vector<2x16x144xf32> to vector<2x1x144xf32>
    %31 = vector.shape_cast %30 : vector<2x1x144xf32> to vector<2x144xf32>
    %32 = vector.extract_strided_slice %0 {offsets = [0, 5, 0], sizes = [2, 1, 144], strides = [1, 1, 1]} : vector<2x16x144xf32> to vector<2x1x144xf32>
    %33 = vector.shape_cast %32 : vector<2x1x144xf32> to vector<2x144xf32>
    %34 = arith.maximumf %31, %33 : vector<2x144xf32>
    %35 = vector.extract_strided_slice %0 {offsets = [0, 8, 0], sizes = [2, 1, 144], strides = [1, 1, 1]} : vector<2x16x144xf32> to vector<2x1x144xf32>
    %36 = vector.shape_cast %35 : vector<2x1x144xf32> to vector<2x144xf32>
    %37 = arith.maximumf %34, %36 : vector<2x144xf32>
    %38 = vector.extract_strided_slice %0 {offsets = [0, 9, 0], sizes = [2, 1, 144], strides = [1, 1, 1]} : vector<2x16x144xf32> to vector<2x1x144xf32>
    %39 = vector.shape_cast %38 : vector<2x1x144xf32> to vector<2x144xf32>
    %40 = arith.maximumf %37, %39 : vector<2x144xf32>
    %41 = vector.extract_strided_slice %0 {offsets = [0, 12, 0], sizes = [2, 1, 144], strides = [1, 1, 1]} : vector<2x16x144xf32> to vector<2x1x144xf32>
    %42 = vector.shape_cast %41 : vector<2x1x144xf32> to vector<2x144xf32>
    %43 = arith.maximumf %40, %42 : vector<2x144xf32>
    %44 = vector.extract_strided_slice %0 {offsets = [0, 13, 0], sizes = [2, 1, 144], strides = [1, 1, 1]} : vector<2x16x144xf32> to vector<2x1x144xf32>
    %45 = vector.shape_cast %44 : vector<2x1x144xf32> to vector<2x144xf32>
    %46 = arith.maximumf %43, %45 : vector<2x144xf32>
    %47 = arith.addf %29, %46 : vector<2x144xf32>
    %48 = vector.extract_strided_slice %0 {offsets = [0, 5, 0], sizes = [2, 1, 144], strides = [1, 1, 1]} : vector<2x16x144xf32> to vector<2x1x144xf32>
    %49 = vector.shape_cast %48 : vector<2x1x144xf32> to vector<2x144xf32>
    %50 = vector.extract_strided_slice %0 {offsets = [0, 6, 0], sizes = [2, 1, 144], strides = [1, 1, 1]} : vector<2x16x144xf32> to vector<2x1x144xf32>
    %51 = vector.shape_cast %50 : vector<2x1x144xf32> to vector<2x144xf32>
    %52 = arith.maximumf %49, %51 : vector<2x144xf32>
    %53 = vector.extract_strided_slice %0 {offsets = [0, 7, 0], sizes = [2, 1, 144], strides = [1, 1, 1]} : vector<2x16x144xf32> to vector<2x1x144xf32>
    %54 = vector.shape_cast %53 : vector<2x1x144xf32> to vector<2x144xf32>
    %55 = arith.maximumf %52, %54 : vector<2x144xf32>
    %56 = vector.extract_strided_slice %0 {offsets = [0, 9, 0], sizes = [2, 1, 144], strides = [1, 1, 1]} : vector<2x16x144xf32> to vector<2x1x144xf32>
    %57 = vector.shape_cast %56 : vector<2x1x144xf32> to vector<2x144xf32>
    %58 = arith.maximumf %55, %57 : vector<2x144xf32>
    %59 = vector.extract_strided_slice %0 {offsets = [0, 10, 0], sizes = [2, 1, 144], strides = [1, 1, 1]} : vector<2x16x144xf32> to vector<2x1x144xf32>
    %60 = vector.shape_cast %59 : vector<2x1x144xf32> to vector<2x144xf32>
    %61 = arith.maximumf %58, %60 : vector<2x144xf32>
    %62 = vector.extract_strided_slice %0 {offsets = [0, 11, 0], sizes = [2, 1, 144], strides = [1, 1, 1]} : vector<2x16x144xf32> to vector<2x1x144xf32>
    %63 = vector.shape_cast %62 : vector<2x1x144xf32> to vector<2x144xf32>
    %64 = arith.maximumf %61, %63 : vector<2x144xf32>
    %65 = vector.extract_strided_slice %0 {offsets = [0, 13, 0], sizes = [2, 1, 144], strides = [1, 1, 1]} : vector<2x16x144xf32> to vector<2x1x144xf32>
    %66 = vector.shape_cast %65 : vector<2x1x144xf32> to vector<2x144xf32>
    %67 = arith.maximumf %64, %66 : vector<2x144xf32>
    %68 = vector.extract_strided_slice %0 {offsets = [0, 14, 0], sizes = [2, 1, 144], strides = [1, 1, 1]} : vector<2x16x144xf32> to vector<2x1x144xf32>
    %69 = vector.shape_cast %68 : vector<2x1x144xf32> to vector<2x144xf32>
    %70 = arith.maximumf %67, %69 : vector<2x144xf32>
    %71 = vector.extract_strided_slice %0 {offsets = [0, 15, 0], sizes = [2, 1, 144], strides = [1, 1, 1]} : vector<2x16x144xf32> to vector<2x1x144xf32>
    %72 = vector.shape_cast %71 : vector<2x1x144xf32> to vector<2x144xf32>
    %73 = arith.maximumf %70, %72 : vector<2x144xf32>
    %74 = arith.addf %47, %73 : vector<2x144xf32>
    %cst = arith.constant 2.500000e-01 : f32
    %75 = vector.broadcast %cst : f32 to vector<2x144xf32>
    %76 = arith.mulf %74, %75 : vector<2x144xf32>
    %c0_2 = arith.constant 0 : index
    %c0_3 = arith.constant 0 : index
    %77 = vector.load %arg2[%c0_2, %c0_3] : memref<144x30xf32, #tpu.memory_space<vmem>>, vector<144x30xf32>
    %cst_4 = arith.constant dense<0.000000e+00> : vector<2x30xf32>
    %78 = tpu.matmul %76, %77, %cst_4 {dimension_numbers = #tpu.dot_dimension_numbers<[1], [0], [0], [1], [0, 0, 1, 1], [], []>} : vector<2x144xf32>, vector<144x30xf32>, vector<2x30xf32> -> vector<2x30xf32>
    %c0_5 = arith.constant 0 : index
    %c0_6 = arith.constant 0 : index
    %79 = vector.load %arg3[%c0_5, %c0_6] : memref<1x30xf32, #tpu.memory_space<vmem>>, vector<1x30xf32>
    %80 = vector.broadcast %79 : vector<1x30xf32> to vector<2x30xf32>
    %81 = arith.addf %78, %80 : vector<2x30xf32>
    %82 = vector.extract_strided_slice %81 {offsets = [0, 0], sizes = [2, 15], strides = [1, 1]} : vector<2x30xf32> to vector<2x15xf32>
    %83 = vector.extract_strided_slice %81 {offsets = [0, 15], sizes = [2, 15], strides = [1, 1]} : vector<2x30xf32> to vector<2x15xf32>
    %84 = arith.negf %83 : vector<2x15xf32>
    %85 = math.exp %84 : vector<2x15xf32>
    %cst_7 = arith.constant 1.000000e+00 : f32
    %86 = vector.broadcast %cst_7 : f32 to vector<2x15xf32>
    %87 = arith.addf %86, %85 : vector<2x15xf32>
    %88 = arith.divf %86, %87 : vector<2x15xf32>
    %89 = arith.mulf %82, %88 : vector<2x15xf32>
    %c0_8 = arith.constant 0 : index
    %c0_9 = arith.constant 0 : index
    %90 = vector.load %arg4[%c0_8, %c0_9] : memref<15x1xf32, #tpu.memory_space<vmem>>, vector<15x1xf32>
    %cst_10 = arith.constant dense<0.000000e+00> : vector<2x1xf32>
    %91 = tpu.matmul %89, %90, %cst_10 {dimension_numbers = #tpu.dot_dimension_numbers<[1], [0], [0], [1], [0, 0, 1, 1], [], []>} : vector<2x15xf32>, vector<15x1xf32>, vector<2x1xf32> -> vector<2x1xf32>
    %c0_11 = arith.constant 0 : index
    %c0_12 = arith.constant 0 : index
    %92 = vector.load %arg5[%c0_11, %c0_12] : memref<1x1xf32, #tpu.memory_space<vmem>>, vector<1x1xf32>
    %93 = vector.broadcast %92 : vector<1x1xf32> to vector<2x1xf32>
    %94 = arith.addf %91, %93 : vector<2x1xf32>
    %c0_13 = arith.constant 0 : index
    %c0_14 = arith.constant 0 : index
    %95 = vector.load %arg6[%c0_13, %c0_14] : memref<2x1xf32, #tpu.memory_space<vmem>>, vector<2x1xf32>
    tpu.vector_store %arg6[%c0_13, %c0_14], %94 {strides = array<i32>} : memref<2x1xf32, #tpu.memory_space<vmem>>, vector<2x1xf32>,
    return
  }
  func.func @transform_0(%arg0: i32) -> (i32, i32, i32) {
    %c0_i32 = arith.constant 0 : i32
    %c0_i32_0 = arith.constant 0 : i32
    %c0_i32_1 = arith.constant 0 : i32
    %c0_i32_2 = arith.constant 0 : i32
    return %c0_i32, %c0_i32_0, %c0_i32_1 : i32, i32, i32
  }
  func.func @transform_1(%arg0: i32) -> (i32, i32) {
    %c0_i32 = arith.constant 0 : i32
    %c0_i32_0 = arith.constant 0 : i32
    %c0_i32_1 = arith.constant 0 : i32
    return %c0_i32, %c0_i32_0 : i32, i32
  }
  func.func @transform_2(%arg0: i32) -> (i32, i32) {
    %c0_i32 = arith.constant 0 : i32
    %c0_i32_0 = arith.constant 0 : i32
    %c0_i32_1 = arith.constant 0 : i32
    return %c0_i32, %c0_i32_0 : i32, i32
  }
  func.func @transform_3(%arg0: i32) -> (i32, i32) {
    %c0_i32 = arith.constant 0 : i32
    %c0_i32_0 = arith.constant 0 : i32
    %c0_i32_1 = arith.constant 0 : i32
    return %c0_i32, %c0_i32_0 : i32, i32
  }
  func.func @transform_4(%arg0: i32) -> (i32, i32) {
    %c0_i32 = arith.constant 0 : i32
    %c0_i32_0 = arith.constant 0 : i32
    %c0_i32_1 = arith.constant 0 : i32
    return %c0_i32, %c0_i32_0 : i32, i32
  }
  func.func @transform_5(%arg0: i32) -> (i32, i32) {
    %c0_i32 = arith.constant 0 : i32
    %c0_i32_0 = arith.constant 0 : i32
    %c0_i32_1 = arith.constant 0 : i32
    return %c0_i32, %c0_i32_0 : i32, i32
  }
}

</mosaic_0001>

<llo_original>
// kernel: rdlinet_forward.5
$region0: #{rdlinet_forward.5}
  #allocation0 [shape = 'u32[]', space=smem, size = 0x4, offset = 0x4, fixed_abs, tag = 'smem constant byte address 0x4 - core index']
  #allocation1 [shape = 'u32[144,128]{1,0:T(1,128)}', space=vmem, size = 0x12000, scoped, tag = 'internal scratch']
  %s0 = inlined_call_operand.vmem [shape: f32[2,326,27], index: 0, kind: input, shape index: {}]
  %s1 = inlined_call_operand.vmem [shape: f32[27,16], index: 1, kind: input, shape index: {}]
  %s2 = inlined_call_operand.vmem [shape: f32[1,16], index: 2, kind: input, shape index: {}]
  %s3 = inlined_call_operand.vmem [shape: f32[326,1], index: 3, kind: input, shape index: {}]
  %s4 = inlined_call_operand.vmem [shape: f32[2,288,16], index: 4, kind: output, shape index: {}]
  %s5 = sld [smem:[#allocation0]]
  $region49: #{rdlinet_forward.5} parent=0
    _
  %s7 = ssub.s32 1, %s5
  %s8 = scalar_select 0, %s7, %s5
  loop: start=0, step=1, limit=4
  $region2: #{rdlinet_forward.5} parent=0 // loop_pre_header
    _
  $region3: #{rdlinet_forward.5} parent=0 // loop_header
    %s10 = sphi 0, %s14
    %p11 = scmp.ge.s32.totalorder %s10, 4
    %s20 = sphi 0, %s22
    %s23 = sphi 0, %s20
    %s24 = sphi 0, %s23
    %s40 = sphi 0, %s24
    %s44 = sphi 0, %s44
    %s46 = sphi 0, %s44
    %s47 = sphi 0, %s46
    %s61 = sphi 0, %s47
    %s65 = sphi 0, %s65
    %s67 = sphi 0, %s65
    %s68 = sphi 0, %s67
    %s82 = sphi 0, %s68
    %s86 = sphi 0, %s86
    %s88 = sphi 0, %s86
    %s89 = sphi 0, %s88
    %s103 = sphi 0, %s89
    %s109 = sphi 0, %s111
    %s112 = sphi 0, %s109
    %s113 = sphi 0, %s112
    %s129 = sphi 0, %s113
  $region4: #{rdlinet_forward.5} parent=0 // loop_header_branch
    %13 = sbr.rel (%p11) target = $region8
  $region5: #{rdlinet_forward.5} parent=0 // loop_body
    %s15 = ssub.s32 %s10, 1
    %s16 = ssub.s32 %s10, 2
    %s17 = sadd.s32 %s10, 1
    %s18 = ssub.s32 %s10, %s17
    %p19 = scmp.eq.s32.totalorder %s18, 0
    %s21 = sadd.s32 %s20, 1
    %s22 = scalar_select %p19, %s20, %s21
    %p25 = pneg %p19
    %p26 = scmp.eq.s32.totalorder %s10, 1
    %p27 = por %p25, %p26
    %p28 = scmp.ne.s32.totalorder %s20, %s23
    %p29 = scmp.eq.s32.totalorder %s10, 0
    %p30 = por %p28, %p29
    %p31 = scmp.ne.s32.totalorder %s20, %s23
    %p32 = scmp.eq.s32.totalorder %s15, 1
    %p33 = por %p31, %p32
    %p34 = scmp.ne.s32.totalorder %s23, %s24
    %p35 = scmp.eq.s32.totalorder %s15, 0
    %p36 = por %p34, %p35
    %p37 = scmp.ne.s32.totalorder %s23, %s24
    %p38 = scmp.eq.s32.totalorder %s16, 1
    %p39 = por %p37, %p38
    %p41 = scmp.ne.s32.totalorder %s24, %s40
    %p42 = scmp.eq.s32.totalorder %s16, 0
    %p43 = por %p41, %p42
    %s45 = sadd.s32 %s44, 1
    %p48 = scmp.eq.s32.totalorder %s10, 1
    %p49 = scmp.ne.s32.totalorder %s44, %s46
    %p50 = scmp.eq.s32.totalorder %s10, 0
    %p51 = por %p49, %p50
    %p52 = scmp.ne.s32.totalorder %s44, %s46
    %p53 = scmp.eq.s32.totalorder %s15, 1
    %p54 = por %p52, %p53
    %p55 = scmp.ne.s32.totalorder %s46, %s47
    %p56 = scmp.eq.s32.totalorder %s15, 0
    %p57 = por %p55, %p56
    %p58 = scmp.ne.s32.totalorder %s46, %s47
    %p59 = scmp.eq.s32.totalorder %s16, 1
    %p60 = por %p58, %p59
    %p62 = scmp.ne.s32.totalorder %s47, %s61
    %p63 = scmp.eq.s32.totalorder %s16, 0
    %p64 = por %p62, %p63
    %s66 = sadd.s32 %s65, 1
    %p69 = scmp.eq.s32.totalorder %s10, 1
    %p70 = scmp.ne.s32.totalorder %s65, %s67
    %p71 = scmp.eq.s32.totalorder %s10, 0
    %p72 = por %p70, %p71
    %p73 = scmp.ne.s32.totalorder %s65, %s67
    %p74 = scmp.eq.s32.totalorder %s15, 1
    %p75 = por %p73, %p74
    %p76 = scmp.ne.s32.totalorder %s67, %s68
    %p77 = scmp.eq.s32.totalorder %s15, 0
    %p78 = por %p76, %p77
    %p79 = scmp.ne.s32.totalorder %s67, %s68
    %p80 = scmp.eq.s32.totalorder %s16, 1
    %p81 = por %p79, %p80
    %p83 = scmp.ne.s32.totalorder %s68, %s82
    %p84 = scmp.eq.s32.totalorder %s16, 0
    %p85 = por %p83, %p84
    %s87 = sadd.s32 %s86, 1
    %p90 = scmp.eq.s32.totalorder %s10, 1
    %p91 = scmp.ne.s32.totalorder %s86, %s88
    %p92 = scmp.eq.s32.totalorder %s10, 0
    %p93 = por %p91, %p92
    %p94 = scmp.ne.s32.totalorder %s86, %s88
    %p95 = scmp.eq.s32.totalorder %s15, 1
    %p96 = por %p94, %p95
    %p97 = scmp.ne.s32.totalorder %s88, %s89
    %p98 = scmp.eq.s32.totalorder %s15, 0
    %p99 = por %p97, %p98
    %p100 = scmp.ne.s32.totalorder %s88, %s89
    %p101 = scmp.eq.s32.totalorder %s16, 1
    %p102 = por %p100, %p101
    %p104 = scmp.ne.s32.totalorder %s89, %s103
    %p105 = scmp.eq.s32.totalorder %s16, 0
    %p106 = por %p104, %p105
    %s107 = ssub.s32 %s10, %s17
    %p108 = scmp.eq.s32.totalorder %s107, 0
    %s110 = sadd.s32 %s109, 1
    %s111 = scalar_select %p108, %s109, %s110
    %p114 = pneg %p108
    %p115 = scmp.eq.s32.totalorder %s10, 1
    %p116 = por %p114, %p115
    %p117 = scmp.ne.s32.totalorder %s109, %s112
    %p118 = scmp.eq.s32.totalorder %s10, 0
    %p119 = por %p117, %p118
    %p120 = scmp.ne.s32.totalorder %s109, %s112
    %p121 = scmp.eq.s32.totalorder %s15, 1
    %p122 = por %p120, %p121
    %p123 = scmp.ne.s32.totalorder %s112, %s113
    %p124 = scmp.eq.s32.totalorder %s15, 0
    %p125 = por %p123, %p124
    %p126 = scmp.ne.s32.totalorder %s112, %s113
    %p127 = scmp.eq.s32.totalorder %s16, 1
    %p128 = por %p126, %p127
    %p130 = scmp.ne.s32.totalorder %s113, %s129
    %p131 = scmp.eq.s32.totalorder %s16, 0
    %p132 = por %p130, %p131
    %p133 = scmp.le.s32.totalorder 1, %s10
    %p134 = scmp.lt.s32.totalorder %s10, 3
    %p135 = pnand %p133, %p134
    %p136 = pneg %p135
    // Predicated region
    $region9: #{rdlinet_forward.5} parent=5 // pred_check
      _
    $region10: #{rdlinet_forward.5} parent=5 // pred_check_branch
      %138 = sbr.rel (%p135) target = $region12
    $region11: #{rdlinet_forward.5} parent=5 // pred_region
      %s139 = ssub.s32 %s10, 1
      // Predicated region
      $region13: #{rdlinet_forward.5} parent=11 // pred_check
        %p140 = pneg %p57
      $region14: #{rdlinet_forward.5} parent=11 // pred_check_branch
        %142 = sbr.rel (%p140) target = $region16
      $region15: #{rdlinet_forward.5} parent=11 // pred_region
        _
      $region16: #{rdlinet_forward.5} parent=11 // pred_fallthru
        _
      // Predicated region
      $region17: #{rdlinet_forward.5} parent=11 // pred_check
        %p143 = pneg %p78
      $region18: #{rdlinet_forward.5} parent=11 // pred_check_branch
        %145 = sbr.rel (%p143) target = $region20
      $region19: #{rdlinet_forward.5} parent=11 // pred_region
        _
      $region20: #{rdlinet_forward.5} parent=11 // pred_fallthru
        _
      // Predicated region
      $region21: #{rdlinet_forward.5} parent=11 // pred_check
        %p146 = pneg %p99
      $region22: #{rdlinet_forward.5} parent=11 // pred_check_branch
        %148 = sbr.rel (%p146) target = $region24
      $region23: #{rdlinet_forward.5} parent=11 // pred_region
        _
      $region24: #{rdlinet_forward.5} parent=11 // pred_fallthru
        _
    $region12: #{rdlinet_forward.5} parent=5 // pred_fallthru
      _
    %p149 = scmp.lt.s32.totalorder %s10, 2
    // Predicated region
    $region25: #{rdlinet_forward.5} parent=5 // pred_check
      %p150 = pneg %p149
    $region26: #{rdlinet_forward.5} parent=5 // pred_check_branch
      %152 = sbr.rel (%p150) target = $region28
    $region27: #{rdlinet_forward.5} parent=5 // pred_region
      // Predicated region
      $region29: #{rdlinet_forward.5} parent=27 // pred_check
        %p153 = pneg %p30
      $region30: #{rdlinet_forward.5} parent=27 // pred_check_branch
        %155 = sbr.rel (%p153) target = $region32
      $region31: #{rdlinet_forward.5} parent=27 // pred_region
        %p156 = scmp.lt.s32.totalorder %s10, 1
        %s157 = scalar_select %p156, %s10, 1
        %s158 = smul.addr %s157, 41
        %s159 = smul.addr %s158, 8
        %s160 = scalar_lea.vmem %s0, %s159
      $region32: #{rdlinet_forward.5} parent=27 // pred_fallthru
        _
    $region28: #{rdlinet_forward.5} parent=5 // pred_fallthru
      _
    %p161 = scmp.le.s32.totalorder 1, %s10
    %p162 = scmp.lt.s32.totalorder %s10, 3
    %p163 = pnand %p161, %p162
    %p164 = pneg %p163
    // Predicated region
    $region33: #{rdlinet_forward.5} parent=5 // pred_check
      _
    $region34: #{rdlinet_forward.5} parent=5 // pred_check_branch
      %166 = sbr.rel (%p163) target = $region36
    $region35: #{rdlinet_forward.5} parent=5 // pred_region
      %s167 = ssub.s32 %s10, 1
      %p168 = scmp.lt.s32.totalorder %s15, 1
      %s169 = scalar_select %p168, %s15, 1
      %s170 = smul.addr %s169, 41
      %s171 = smul.addr %s170, 8
      %s172 = scalar_lea.vmem %s0, %s171
      %p173 = pneg %p36
      %p174 = pneg %p33
      %p175 = pneg %p57
      %p176 = pneg %p54
      %p177 = pneg %p78
      %p178 = pneg %p75
      %p179 = pneg %p99
      %p180 = pneg %p96
      %p181 = pneg %p125
      %p182 = pneg %p122
      %p183 = scmp.lt.s32.totalorder %s15, 1
      %s184 = scalar_select %p183, %s15, 1
      %s185 = smul.addr %s184, 36
      %s186 = smul.addr %s185, 8
      %s187 = scalar_lea.vmem %s4, %s186
      %p188 = scmp.lt.s32.totalorder %s15, 1
      %s189 = scalar_select %p188, %s15, 1
      %s190 = smul.addr %s189, 41
      %s191 = smul.addr %s190, 8
      %s192 = scalar_lea.vmem %s0, %s191
      %p193 = scmp.lt.s32.totalorder %s15, 1
      %s194 = scalar_select %p193, %s15, 1
      %s195 = smul.addr %s194, 36
      %s196 = smul.addr %s195, 8
      %s197 = scalar_lea.vmem %s4, %s196
      %v198 = vld [vmem:[%s192] sm:$0xff]
      %v199 = vld [vmem:[%s192 + $0x8] sm:$0xff]
      %v200 = vld [vmem:[%s192 + $0x10] sm:$0xff]
      %v201 = vld [vmem:[%s192 + $0x18] sm:$0xff]
      %v202 = vld [vmem:[%s192 + $0x20] sm:$0xff]
      %v203 = vld [vmem:[%s192 + $0x28] sm:$0xff]
      %v204 = vld [vmem:[%s192 + $0x30] sm:$0xff]
      %v205 = vld [vmem:[%s192 + $0x38] sm:$0xff]
      %v206 = vld [vmem:[%s192 + $0x40] sm:$0xff]
      %v207 = vld [vmem:[%s192 + $0x48] sm:$0xff]
      %v208 = vld [vmem:[%s192 + $0x50] sm:$0xff]
      %v209 = vld [vmem:[%s192 + $0x58] sm:$0xff]
      %v210 = vld [vmem:[%s192 + $0x60] sm:$0xff]
      %v211 = vld [vmem:[%s192 + $0x68] sm:$0xff]
      %v212 = vld [vmem:[%s192 + $0x70] sm:$0xff]
      %v213 = vld [vmem:[%s192 + $0x78] sm:$0xff]
      %v214 = vld [vmem:[%s192 + $0x80] sm:$0xff]
      %v215 = vld [vmem:[%s192 + $0x88] sm:$0xff]
      %v216 = vld [vmem:[%s192 + $0x90] sm:$0xff]
      %v217 = vld [vmem:[%s192 + $0x98] sm:$0xff]
      %v218 = vld [vmem:[%s192 + $0xa0] sm:$0xff]
      %v219 = vld [vmem:[%s192 + $0xa8] sm:$0xff]
      %v220 = vld [vmem:[%s192 + $0xb0] sm:$0xff]
      %v221 = vld [vmem:[%s192 + $0xb8] sm:$0xff]
      %v222 = vld [vmem:[%s192 + $0xc0] sm:$0xff]
      %v223 = vld [vmem:[%s192 + $0xc8] sm:$0xff]
      %v224 = vld [vmem:[%s192 + $0xd0] sm:$0xff]
      %v225 = vld [vmem:[%s192 + $0xd8] sm:$0xff]
      %v226 = vld [vmem:[%s192 + $0xe0] sm:$0xff]
      %v227 = vld [vmem:[%s192 + $0xe8] sm:$0xff]
      %v228 = vld [vmem:[%s192 + $0xf0] sm:$0xff]
      %v229 = vld [vmem:[%s192 + $0xf8] sm:$0xff]
      %v230 = vld [vmem:[%s192 + $0x100] sm:$0xff]
      %v231 = vld [vmem:[%s192 + $0x108] sm:$0xff]
      %v232 = vld [vmem:[%s192 + $0x110] sm:$0xff]
      %v233 = vld [vmem:[%s192 + $0x118] sm:$0xff]
      %v234 = vld [vmem:[%s192 + $0x120] sm:$0xff]
      %v235 = vld [vmem:[%s192 + $0x128] sm:$0xff]
      %v236 = vld [vmem:[%s192 + $0x130] sm:$0xff]
      %v237 = vld [vmem:[%s192 + $0x138] sm:$0xff]
      %v238 = vld [vmem:[%s192 + $0x140] sm:$0x3f]
      %v239 = vld [vmem:[%s1] sm:$0xff]
      %v240 = vld [vmem:[%s1 + $0x8] sm:$0xff]
      %v241 = vld [vmem:[%s1 + $0x10] sm:$0xff]
      %v242 = vld [vmem:[%s1 + $0x18] sm:$0x7]
      %v243 = vld [vmem:[%s2] sm:$0x1]
      %v245 = vlaneseq
      %v246 = vshrl.u32 %v245, 7
      %v247 = vsub.s32 0, %v246
      %v248 = vrot.slane %v243, %v247
      %vm250 = vcmask 220160
      %v252 = vsel %vm250, %v198, 0
      %v255 = vsel %vm250, %v199, 0
      %v258 = vsel %vm250, %v200, 0
      %v261 = vsel %vm250, %v201, 0
      %v264 = vsel %vm250, %v202, 0
      %v267 = vsel %vm250, %v203, 0
      %v270 = vsel %vm250, %v204, 0
      %v273 = vsel %vm250, %v205, 0
      %v276 = vsel %vm250, %v206, 0
      %v279 = vsel %vm250, %v207, 0
      %v282 = vsel %vm250, %v208, 0
      %v285 = vsel %vm250, %v209, 0
      %v288 = vsel %vm250, %v210, 0
      %v291 = vsel %vm250, %v211, 0
      %v294 = vsel %vm250, %v212, 0
      %v297 = vsel %vm250, %v213, 0
      %v300 = vsel %vm250, %v214, 0
      %v303 = vsel %vm250, %v215, 0
      %v306 = vsel %vm250, %v216, 0
      %v309 = vsel %vm250, %v217, 0
      %v312 = vsel %vm250, %v218, 0
      %v315 = vsel %vm250, %v219, 0
      %v318 = vsel %vm250, %v220, 0
      %v321 = vsel %vm250, %v221, 0
      %v324 = vsel %vm250, %v222, 0
      %v327 = vsel %vm250, %v223, 0
      %v330 = vsel %vm250, %v224, 0
      %v333 = vsel %vm250, %v225, 0
      %v336 = vsel %vm250, %v226, 0
      %v339 = vsel %vm250, %v227, 0
      %v342 = vsel %vm250, %v228, 0
      %v345 = vsel %vm250, %v229, 0
      %v348 = vsel %vm250, %v230, 0
      %v351 = vsel %vm250, %v231, 0
      %v354 = vsel %vm250, %v232, 0
      %v357 = vsel %vm250, %v233, 0
      %v360 = vsel %vm250, %v234, 0
      %v363 = vsel %vm250, %v235, 0
      %v366 = vsel %vm250, %v236, 0
      %v369 = vsel %vm250, %v237, 0
      %v372 = vsel %vm250, %v238, 0
      %vm374 = vcmask 1042432
      %v376 = vsel %vm374, %v242, 0
      %378 = vmatprep.subr.mxu0 0.0
      %379 = vmatpush1.msra.mxu0 0.0
      %380 = vmatprep.subr.mxu0 0.0
      %381 = vmatpush1.msra.mxu0 0.0
      %382 = vmatprep.subr.mxu0 0.0
      %383 = vmatpush1.msra.mxu0 0.0
      %384 = vmatprep.subr.mxu0 0.0
      %385 = vmatpush1.msra.mxu0 0.0
      %386 = vmatprep.subr.mxu0 0.0
      %387 = vmatpush1.msra.mxu0 0.0
      %388 = vmatprep.subr.mxu0 0.0
      %389 = vmatpush1.msra.mxu0 0.0
      %390 = vmatprep.subr.mxu0 0.0
      %391 = vmatpush1.msra.mxu0 0.0
      %392 = vmatprep.subr.mxu0 0.0
      %393 = vmatpush1.msra.mxu0 0.0
      %394 = vmatprep.subr.mxu0 0.0
      %395 = vmatpush1.msra.mxu0 0.0
      %396 = vmatprep.subr.mxu0 0.0
      %397 = vmatpush1.msra.mxu0 0.0
      %398 = vmatprep.subr.mxu0 0.0
      %399 = vmatpush1.msra.mxu0 0.0
      %400 = vmatprep.subr.mxu0 0.0
      %401 = vmatpush1.msra.mxu0 0.0
      %402 = vmatprep.subr.mxu0 0.0
      %403 = vmatpush1.msra.mxu0 %v376
      %404 = vmatprep.subr.mxu0 0.0
      %405 = vmatpush1.msra.mxu0 %v241
      %406 = vmatprep.subr.mxu0 0.0
      %407 = vmatpush1.msra.mxu0 %v240
      %408 = vmatprep.subr.mxu0 0.0
      %409 = vmatpush1.msra.mxu0 %v239
      %410 = vmatprep.subr.mxu0 0.0
      %411 = vmatpush2.msra.mxu0 0.0
      %412 = vmatprep.subr.mxu0 0.0
      %413 = vmatpush2.msra.mxu0 0.0
      %414 = vmatprep.subr.mxu0 0.0
      %415 = vmatpush2.msra.mxu0 0.0
      %416 = vmatprep.subr.mxu0 0.0
      %417 = vmatpush2.msra.mxu0 0.0
      %418 = vmatprep.subr.mxu0 0.0
      %419 = vmatpush2.msra.mxu0 0.0
      %420 = vmatprep.subr.mxu0 0.0
      %421 = vmatpush2.msra.mxu0 0.0
      %422 = vmatprep.subr.mxu0 0.0
      %423 = vmatpush2.msra.mxu0 0.0
      %424 = vmatprep.subr.mxu0 0.0
      %425 = vmatpush2.msra.mxu0 0.0
      %426 = vmatprep.subr.mxu0 0.0
      %427 = vmatpush2.msra.mxu0 0.0
      %428 = vmatprep.subr.mxu0 0.0
      %429 = vmatpush2.msra.mxu0 0.0
      %430 = vmatprep.subr.mxu0 0.0
      %431 = vmatpush2.msra.mxu0 0.0
      %432 = vmatprep.subr.mxu0 0.0
      %433 = vmatpush2.msra.mxu0 0.0
      %434 = vmatprep.subr.mxu0 0.0
      %435 = vmatpush2.msra.mxu0 0.0
      %436 = vmatprep.subr.mxu0 0.0
      %437 = vmatpush2.msra.mxu0 0.0
      %438 = vmatprep.subr.mxu0 0.0
      %439 = vmatpush2.msra.mxu0 0.0
      %440 = vmatprep.subr.mxu0 0.0
      %441 = vmatpush2.msra.mxu0 0.0
      %442 = vmatprep.mubr.f32.mxu0 0.0
      %443 = vmatmul.mubr.f32.gmra.mxu0 %v252
      %v444 = vpop.f32.mrf.mxu0
      %v445 = vadd.f32 %v248, %v444
      %v446 = vpop.f32.mrf.mxu0
      %447 = vmatprep.mubr.f32.mxu0 0.0
      %448 = vmatmul.mubr.f32.gmra.mxu0 %v255
      %v449 = vpop.f32.mrf.mxu0
      %v450 = vadd.f32 %v248, %v449
      %v451 = vpop.f32.mrf.mxu0
      %452 = vmatprep.mubr.f32.mxu0 0.0
      %453 = vmatmul.mubr.f32.gmra.mxu0 %v258
      %v454 = vpop.f32.mrf.mxu0
      %v455 = vadd.f32 %v248, %v454
      %v456 = vpop.f32.mrf.mxu0
      %457 = vmatprep.mubr.f32.mxu0 0.0
      %458 = vmatmul.mubr.f32.gmra.mxu0 %v261
      %v459 = vpop.f32.mrf.mxu0
      %v460 = vadd.f32 %v248, %v459
      %v461 = vpop.f32.mrf.mxu0
      %462 = vmatprep.mubr.f32.mxu0 0.0
      %463 = vmatmul.mubr.f32.gmra.mxu0 %v264
      %v464 = vpop.f32.mrf.mxu0
      %v465 = vadd.f32 %v248, %v464
      %v466 = vpop.f32.mrf.mxu0
      %467 = vmatprep.mubr.f32.mxu0 0.0
      %468 = vmatmul.mubr.f32.gmra.mxu0 %v267
      %v469 = vpop.f32.mrf.mxu0
      %v470 = vadd.f32 %v248, %v469
      %v471 = vpop.f32.mrf.mxu0
      %472 = vmatprep.mubr.f32.mxu0 0.0
      %473 = vmatmul.mubr.f32.gmra.mxu0 %v270
      %v474 = vpop.f32.mrf.mxu0
      %v475 = vadd.f32 %v248, %v474
      %v476 = vpop.f32.mrf.mxu0
      %477 = vmatprep.mubr.f32.mxu0 0.0
      %478 = vmatmul.mubr.f32.gmra.mxu0 %v273
      %v479 = vpop.f32.mrf.mxu0
      %v480 = vadd.f32 %v248, %v479
      %v481 = vpop.f32.mrf.mxu0
      %482 = vmatprep.mubr.f32.mxu0 0.0
      %483 = vmatmul.mubr.f32.gmra.mxu0 %v276
      %v484 = vpop.f32.mrf.mxu0
      %v485 = vadd.f32 %v248, %v484
      %v486 = vpop.f32.mrf.mxu0
      %487 = vmatprep.mubr.f32.mxu0 0.0
      %488 = vmatmul.mubr.f32.gmra.mxu0 %v279
      %v489 = vpop.f32.mrf.mxu0
      %v490 = vadd.f32 %v248, %v489
      %v491 = vpop.f32.mrf.mxu0
      %492 = vmatprep.mubr.f32.mxu0 0.0
      %493 = vmatmul.mubr.f32.gmra.mxu0 %v282
      %v494 = vpop.f32.mrf.mxu0
      %v495 = vadd.f32 %v248, %v494
      %v496 = vpop.f32.mrf.mxu0
      %497 = vmatprep.mubr.f32.mxu0 0.0
      %498 = vmatmul.mubr.f32.gmra.mxu0 %v285
      %v499 = vpop.f32.mrf.mxu0
      %v500 = vadd.f32 %v248, %v499
      %v501 = vpop.f32.mrf.mxu0
      %502 = vmatprep.mubr.f32.mxu0 0.0
      %503 = vmatmul.mubr.f32.gmra.mxu0 %v288
      %v504 = vpop.f32.mrf.mxu0
      %v505 = vadd.f32 %v248, %v504
      %v506 = vpop.f32.mrf.mxu0
      %507 = vmatprep.mubr.f32.mxu0 0.0
      %508 = vmatmul.mubr.f32.gmra.mxu0 %v291
      %v509 = vpop.f32.mrf.mxu0
      %v510 = vadd.f32 %v248, %v509
      %v511 = vpop.f32.mrf.mxu0
      %512 = vmatprep.mubr.f32.mxu0 0.0
      %513 = vmatmul.mubr.f32.gmra.mxu0 %v294
      %v514 = vpop.f32.mrf.mxu0
      %v515 = vadd.f32 %v248, %v514
      %v516 = vpop.f32.mrf.mxu0
      %517 = vmatprep.mubr.f32.mxu0 0.0
      %518 = vmatmul.mubr.f32.gmra.mxu0 %v297
      %v519 = vpop.f32.mrf.mxu0
      %v520 = vadd.f32 %v248, %v519
      %v521 = vpop.f32.mrf.mxu0
      %522 = vmatprep.mubr.f32.mxu0 0.0
      %523 = vmatmul.mubr.f32.gmra.mxu0 %v300
      %v524 = vpop.f32.mrf.mxu0
      %v525 = vadd.f32 %v248, %v524
      %v526 = vpop.f32.mrf.mxu0
      %527 = vmatprep.mubr.f32.mxu0 0.0
      %528 = vmatmul.mubr.f32.gmra.mxu0 %v303
      %v529 = vpop.f32.mrf.mxu0
      %v530 = vadd.f32 %v248, %v529
      %v531 = vpop.f32.mrf.mxu0
      %532 = vmatprep.mubr.f32.mxu0 0.0
      %533 = vmatmul.mubr.f32.gmra.mxu0 %v306
      %v534 = vpop.f32.mrf.mxu0
      %v535 = vadd.f32 %v248, %v534
      %v536 = vpop.f32.mrf.mxu0
      %537 = vmatprep.mubr.f32.mxu0 0.0
      %538 = vmatmul.mubr.f32.gmra.mxu0 %v309
      %v539 = vpop.f32.mrf.mxu0
      %v540 = vadd.f32 %v248, %v539
      %v541 = vpop.f32.mrf.mxu0
      %542 = vmatprep.mubr.f32.mxu0 0.0
      %543 = vmatmul.mubr.f32.gmra.mxu0 %v312
      %v544 = vpop.f32.mrf.mxu0
      %v545 = vadd.f32 %v248, %v544
      %v546 = vpop.f32.mrf.mxu0
      %547 = vmatprep.mubr.f32.mxu0 0.0
      %548 = vmatmul.mubr.f32.gmra.mxu0 %v315
      %v549 = vpop.f32.mrf.mxu0
      %v550 = vadd.f32 %v248, %v549
      %v551 = vpop.f32.mrf.mxu0
      %552 = vmatprep.mubr.f32.mxu0 0.0
      %553 = vmatmul.mubr.f32.gmra.mxu0 %v318
      %v554 = vpop.f32.mrf.mxu0
      %v555 = vadd.f32 %v248, %v554
      %v556 = vpop.f32.mrf.mxu0
      %557 = vmatprep.mubr.f32.mxu0 0.0
      %558 = vmatmul.mubr.f32.gmra.mxu0 %v321
      %v559 = vpop.f32.mrf.mxu0
      %v560 = vadd.f32 %v248, %v559
      %v561 = vpop.f32.mrf.mxu0
      %562 = vmatprep.mubr.f32.mxu0 0.0
      %563 = vmatmul.mubr.f32.gmra.mxu0 %v324
      %v564 = vpop.f32.mrf.mxu0
      %v565 = vadd.f32 %v248, %v564
      %v566 = vpop.f32.mrf.mxu0
      %567 = vmatprep.mubr.f32.mxu0 0.0
      %568 = vmatmul.mubr.f32.gmra.mxu0 %v327
      %v569 = vpop.f32.mrf.mxu0
      %v570 = vadd.f32 %v248, %v569
      %v571 = vpop.f32.mrf.mxu0
      %572 = vmatprep.mubr.f32.mxu0 0.0
      %573 = vmatmul.mubr.f32.gmra.mxu0 %v330
      %v574 = vpop.f32.mrf.mxu0
      %v575 = vadd.f32 %v248, %v574
      %v576 = vpop.f32.mrf.mxu0
      %577 = vmatprep.mubr.f32.mxu0 0.0
      %578 = vmatmul.mubr.f32.gmra.mxu0 %v333
      %v579 = vpop.f32.mrf.mxu0
      %v580 = vadd.f32 %v248, %v579
      %v581 = vpop.f32.mrf.mxu0
      %582 = vmatprep.mubr.f32.mxu0 0.0
      %583 = vmatmul.mubr.f32.gmra.mxu0 %v336
      %v584 = vpop.f32.mrf.mxu0
      %v585 = vadd.f32 %v248, %v584
      %v586 = vpop.f32.mrf.mxu0
      %587 = vmatprep.mubr.f32.mxu0 0.0
      %588 = vmatmul.mubr.f32.gmra.mxu0 %v339
      %v589 = vpop.f32.mrf.mxu0
      %v590 = vadd.f32 %v248, %v589
      %v591 = vpop.f32.mrf.mxu0
      %592 = vmatprep.mubr.f32.mxu0 0.0
      %593 = vmatmul.mubr.f32.gmra.mxu0 %v342
      %v594 = vpop.f32.mrf.mxu0
      %v595 = vadd.f32 %v248, %v594
      %v596 = vpop.f32.mrf.mxu0
      %597 = vmatprep.mubr.f32.mxu0 0.0
      %598 = vmatmul.mubr.f32.gmra.mxu0 %v345
      %v599 = vpop.f32.mrf.mxu0
      %v600 = vadd.f32 %v248, %v599
      %v601 = vpop.f32.mrf.mxu0
      %602 = vmatprep.mubr.f32.mxu0 0.0
      %603 = vmatmul.mubr.f32.gmra.mxu0 %v348
      %v604 = vpop.f32.mrf.mxu0
      %v605 = vadd.f32 %v248, %v604
      %v606 = vpop.f32.mrf.mxu0
      %607 = vmatprep.mubr.f32.mxu0 0.0
      %608 = vmatmul.mubr.f32.gmra.mxu0 %v351
      %v609 = vpop.f32.mrf.mxu0
      %v610 = vadd.f32 %v248, %v609
      %v611 = vpop.f32.mrf.mxu0
      %612 = vmatprep.mubr.f32.mxu0 0.0
      %613 = vmatmul.mubr.f32.gmra.mxu0 %v354
      %v614 = vpop.f32.mrf.mxu0
      %v615 = vadd.f32 %v248, %v614
      %v616 = vpop.f32.mrf.mxu0
      %617 = vmatprep.mubr.f32.mxu0 0.0
      %618 = vmatmul.mubr.f32.gmra.mxu0 %v357
      %v619 = vpop.f32.mrf.mxu0
      %v620 = vadd.f32 %v248, %v619
      %v621 = vpop.f32.mrf.mxu0
      %622 = vmatprep.mubr.f32.mxu0 0.0
      %623 = vmatmul.mubr.f32.gmra.mxu0 %v360
      %v624 = vpop.f32.mrf.mxu0
      %v625 = vadd.f32 %v248, %v624
      %v626 = vpop.f32.mrf.mxu0
      %627 = vmatprep.mubr.f32.mxu0 0.0
      %628 = vmatmul.mubr.f32.gmra.mxu0 %v363
      %v629 = vpop.f32.mrf.mxu0
      %v630 = vadd.f32 %v248, %v629
      %v631 = vpop.f32.mrf.mxu0
      %632 = vmatprep.mubr.f32.mxu0 0.0
      %633 = vmatmul.mubr.f32.gmra.mxu0 %v366
      %v634 = vpop.f32.mrf.mxu0
      %v635 = vadd.f32 %v248, %v634
      %v636 = vpop.f32.mrf.mxu0
      %637 = vmatprep.mubr.f32.mxu0 0.0
      %638 = vmatmul.mubr.f32.gmra.mxu0 %v369
      %v639 = vpop.f32.mrf.mxu0
      %v640 = vadd.f32 %v248, %v639
      %v641 = vpop.f32.mrf.mxu0
      %642 = vmatprep.mubr.f32.mxu0 0.0
      %643 = vmatmul.mubr.f32.gmra.mxu0 %v372
      %v644 = vpop.f32.mrf.mxu0
      %v645 = vadd.f32 %v248, %v644
      %v646 = vpop.f32.mrf.mxu0
      %647 = vdwg.mxu0
      %vm648 = vcmp.gt.f32.partialorder %v445, 0.0
      %vm649 = vcmp.gt.f32.partialorder %v450, 0.0
      %vm650 = vcmp.gt.f32.partialorder %v455, 0.0
      %vm651 = vcmp.gt.f32.partialorder %v460, 0.0
      %vm652 = vcmp.gt.f32.partialorder %v465, 0.0
      %vm653 = vcmp.gt.f32.partialorder %v470, 0.0
      %vm654 = vcmp.gt.f32.partialorder %v475, 0.0
      %vm655 = vcmp.gt.f32.partialorder %v480, 0.0
      %vm656 = vcmp.gt.f32.partialorder %v485, 0.0
      %vm657 = vcmp.gt.f32.partialorder %v490, 0.0
      %vm658 = vcmp.gt.f32.partialorder %v495, 0.0
      %vm659 = vcmp.gt.f32.partialorder %v500, 0.0
      %vm660 = vcmp.gt.f32.partialorder %v505, 0.0
      %vm661 = vcmp.gt.f32.partialorder %v510, 0.0
      %vm662 = vcmp.gt.f32.partialorder %v515, 0.0
      %vm663 = vcmp.gt.f32.partialorder %v520, 0.0
      %vm664 = vcmp.gt.f32.partialorder %v525, 0.0
      %vm665 = vcmp.gt.f32.partialorder %v530, 0.0
      %vm666 = vcmp.gt.f32.partialorder %v535, 0.0
      %vm667 = vcmp.gt.f32.partialorder %v540, 0.0
      %vm668 = vcmp.gt.f32.partialorder %v545, 0.0
      %vm669 = vcmp.gt.f32.partialorder %v550, 0.0
      %vm670 = vcmp.gt.f32.partialorder %v555, 0.0
      %vm671 = vcmp.gt.f32.partialorder %v560, 0.0
      %vm672 = vcmp.gt.f32.partialorder %v565, 0.0
      %vm673 = vcmp.gt.f32.partialorder %v570, 0.0
      %vm674 = vcmp.gt.f32.partialorder %v575, 0.0
      %vm675 = vcmp.gt.f32.partialorder %v580, 0.0
      %vm676 = vcmp.gt.f32.partialorder %v585, 0.0
      %vm677 = vcmp.gt.f32.partialorder %v590, 0.0
      %vm678 = vcmp.gt.f32.partialorder %v595, 0.0
      %vm679 = vcmp.gt.f32.partialorder %v600, 0.0
      %vm680 = vcmp.gt.f32.partialorder %v605, 0.0
      %vm681 = vcmp.gt.f32.partialorder %v610, 0.0
      %vm682 = vcmp.gt.f32.partialorder %v615, 0.0
      %vm683 = vcmp.gt.f32.partialorder %v620, 0.0
      %vm684 = vcmp.gt.f32.partialorder %v625, 0.0
      %vm685 = vcmp.gt.f32.partialorder %v630, 0.0
      %vm686 = vcmp.gt.f32.partialorder %v635, 0.0
      %vm687 = vcmp.gt.f32.partialorder %v640, 0.0
      %vm688 = vcmp.gt.f32.partialorder %v645, 0.0
      %v689 = vmul.f32 %v445, 0.3
      %v690 = vmul.f32 %v450, 0.3
      %v691 = vmul.f32 %v455, 0.3
      %v692 = vmul.f32 %v460, 0.3
      %v693 = vmul.f32 %v465, 0.3
      %v694 = vmul.f32 %v470, 0.3
      %v695 = vmul.f32 %v475, 0.3
      %v696 = vmul.f32 %v480, 0.3
      %v697 = vmul.f32 %v485, 0.3
      %v698 = vmul.f32 %v490, 0.3
      %v699 = vmul.f32 %v495, 0.3
      %v700 = vmul.f32 %v500, 0.3
      %v701 = vmul.f32 %v505, 0.3
      %v702 = vmul.f32 %v510, 0.3
      %v703 = vmul.f32 %v515, 0.3
      %v704 = vmul.f32 %v520, 0.3
      %v705 = vmul.f32 %v525, 0.3
      %v706 = vmul.f32 %v530, 0.3
      %v707 = vmul.f32 %v535, 0.3
      %v708 = vmul.f32 %v540, 0.3
      %v709 = vmul.f32 %v545, 0.3
      %v710 = vmul.f32 %v550, 0.3
      %v711 = vmul.f32 %v555, 0.3
      %v712 = vmul.f32 %v560, 0.3
      %v713 = vmul.f32 %v565, 0.3
      %v714 = vmul.f32 %v570, 0.3
      %v715 = vmul.f32 %v575, 0.3
      %v716 = vmul.f32 %v580, 0.3
      %v717 = vmul.f32 %v585, 0.3
      %v718 = vmul.f32 %v590, 0.3
      %v719 = vmul.f32 %v595, 0.3
      %v720 = vmul.f32 %v600, 0.3
      %v721 = vmul.f32 %v605, 0.3
      %v722 = vmul.f32 %v610, 0.3
      %v723 = vmul.f32 %v615, 0.3
      %v724 = vmul.f32 %v620, 0.3
      %v725 = vmul.f32 %v625, 0.3
      %v726 = vmul.f32 %v630, 0.3
      %v727 = vmul.f32 %v635, 0.3
      %v728 = vmul.f32 %v640, 0.3
      %v729 = vmul.f32 %v645, 0.3
      %v730 = vsel %vm648, %v445, %v689
      %v731 = vsel %vm649, %v450, %v690
      %v732 = vsel %vm650, %v455, %v691
      %v733 = vsel %vm651, %v460, %v692
      %v734 = vsel %vm652, %v465, %v693
      %v735 = vsel %vm653, %v470, %v694
      %v736 = vsel %vm654, %v475, %v695
      %v737 = vsel %vm655, %v480, %v696
      %v738 = vsel %vm656, %v485, %v697
      %v739 = vsel %vm657, %v490, %v698
      %v740 = vsel %vm658, %v495, %v699
      %v741 = vsel %vm659, %v500, %v700
      %v742 = vsel %vm660, %v505, %v701
      %v743 = vsel %vm661, %v510, %v702
      %v744 = vsel %vm662, %v515, %v703
      %v745 = vsel %vm663, %v520, %v704
      %v746 = vsel %vm664, %v525, %v705
      %v747 = vsel %vm665, %v530, %v706
      %v748 = vsel %vm666, %v535, %v707
      %v749 = vsel %vm667, %v540, %v708
      %v750 = vsel %vm668, %v545, %v709
      %v751 = vsel %vm669, %v550, %v710
      %v752 = vsel %vm670, %v555, %v711
      %v753 = vsel %vm671, %v560, %v712
      %v754 = vsel %vm672, %v565, %v713
      %v755 = vsel %vm673, %v570, %v714
      %v756 = vsel %vm674, %v575, %v715
      %v757 = vsel %vm675, %v580, %v716
      %v758 = vsel %vm676, %v585, %v717
      %v759 = vsel %vm677, %v590, %v718
      %v760 = vsel %vm678, %v595, %v719
      %v761 = vsel %vm679, %v600, %v720
      %v762 = vsel %vm680, %v605, %v721
      %v763 = vsel %vm681, %v610, %v722
      %v764 = vsel %vm682, %v615, %v723
      %v765 = vsel %vm683, %v620, %v724
      %v766 = vsel %vm684, %v625, %v725
      %v767 = vsel %vm685, %v630, %v726
      %v768 = vsel %vm686, %v635, %v727
      %v769 = vsel %vm687, %v640, %v728
      %v770 = vsel %vm688, %v645, %v729
      %v771 = vld [vmem:[%s3] sm:$0xff]
      %v772 = vld [vmem:[%s3 + $0x8] sm:$0xff]
      %v773 = vld [vmem:[%s3 + $0x10] sm:$0xff]
      %v774 = vld [vmem:[%s3 + $0x18] sm:$0xff]
      %v775 = vld [vmem:[%s3 + $0x20] sm:$0xff]
      %v776 = vld [vmem:[%s3 + $0x28] sm:$0xff]
      %v777 = vld [vmem:[%s3 + $0x30] sm:$0xff]
      %v778 = vld [vmem:[%s3 + $0x38] sm:$0xff]
      %v779 = vld [vmem:[%s3 + $0x40] sm:$0xff]
      %v780 = vld [vmem:[%s3 + $0x48] sm:$0xff]
      %v781 = vld [vmem:[%s3 + $0x50] sm:$0xff]
      %v782 = vld [vmem:[%s3 + $0x58] sm:$0xff]
      %v783 = vld [vmem:[%s3 + $0x60] sm:$0xff]
      %v784 = vld [vmem:[%s3 + $0x68] sm:$0xff]
      %v785 = vld [vmem:[%s3 + $0x70] sm:$0xff]
      %v786 = vld [vmem:[%s3 + $0x78] sm:$0xff]
      %v787 = vld [vmem:[%s3 + $0x80] sm:$0xff]
      %v788 = vld [vmem:[%s3 + $0x88] sm:$0xff]
      %v789 = vld [vmem:[%s3 + $0x90] sm:$0xff]
      %v790 = vld [vmem:[%s3 + $0x98] sm:$0xff]
      %v791 = vld [vmem:[%s3 + $0xa0] sm:$0xff]
      %v792 = vld [vmem:[%s3 + $0xa8] sm:$0xff]
      %v793 = vld [vmem:[%s3 + $0xb0] sm:$0xff]
      %v794 = vld [vmem:[%s3 + $0xb8] sm:$0xff]
      %v795 = vld [vmem:[%s3 + $0xc0] sm:$0xff]
      %v796 = vld [vmem:[%s3 + $0xc8] sm:$0xff]
      %v797 = vld [vmem:[%s3 + $0xd0] sm:$0xff]
      %v798 = vld [vmem:[%s3 + $0xd8] sm:$0xff]
      %v799 = vld [vmem:[%s3 + $0xe0] sm:$0xff]
      %v800 = vld [vmem:[%s3 + $0xe8] sm:$0xff]
      %v801 = vld [vmem:[%s3 + $0xf0] sm:$0xff]
      %v802 = vld [vmem:[%s3 + $0xf8] sm:$0xff]
      %v803 = vld [vmem:[%s3 + $0x100] sm:$0xff]
      %v804 = vld [vmem:[%s3 + $0x108] sm:$0xff]
      %v805 = vld [vmem:[%s3 + $0x110] sm:$0xff]
      %v806 = vld [vmem:[%s3 + $0x118] sm:$0xff]
      %v807 = vld [vmem:[%s3 + $0x120] sm:$0xff]
      %v808 = vld [vmem:[%s3 + $0x128] sm:$0xff]
      %v809 = vld [vmem:[%s3 + $0x130] sm:$0xff]
      %v810 = vld [vmem:[%s3 + $0x138] sm:$0xff]
      %v811 = vld [vmem:[%s3 + $0x140] sm:$0x3f]
      %813 = vset.pattern.permute.xlu0 0
      %814 = vperm.xlu0 %813, %v771
      %v815 = vpop.permute.xlu0 %814
      %818 = vset.pattern.permute.xlu0 0
      %819 = vperm.xlu0 %818, %v772
      %v820 = vpop.permute.xlu0 %819
      %823 = vset.pattern.permute.xlu0 0
      %824 = vperm.xlu0 %823, %v773
      %v825 = vpop.permute.xlu0 %824
      %828 = vset.pattern.permute.xlu0 0
      %829 = vperm.xlu0 %828, %v774
      %v830 = vpop.permute.xlu0 %829
      %833 = vset.pattern.permute.xlu0 0
      %834 = vperm.xlu0 %833, %v775
      %v835 = vpop.permute.xlu0 %834
      %838 = vset.pattern.permute.xlu0 0
      %839 = vperm.xlu0 %838, %v776
      %v840 = vpop.permute.xlu0 %839
      %843 = vset.pattern.permute.xlu0 0
      %844 = vperm.xlu0 %843, %v777
      %v845 = vpop.permute.xlu0 %844
      %848 = vset.pattern.permute.xlu0 0
      %849 = vperm.xlu0 %848, %v778
      %v850 = vpop.permute.xlu0 %849
      %853 = vset.pattern.permute.xlu0 0
      %854 = vperm.xlu0 %853, %v779
      %v855 = vpop.permute.xlu0 %854
      %858 = vset.pattern.permute.xlu0 0
      %859 = vperm.xlu0 %858, %v780
      %v860 = vpop.permute.xlu0 %859
      %863 = vset.pattern.permute.xlu0 0
      %864 = vperm.xlu0 %863, %v781
      %v865 = vpop.permute.xlu0 %864
      %868 = vset.pattern.permute.xlu0 0
      %869 = vperm.xlu0 %868, %v782
      %v870 = vpop.permute.xlu0 %869
      %873 = vset.pattern.permute.xlu0 0
      %874 = vperm.xlu0 %873, %v783
      %v875 = vpop.permute.xlu0 %874
      %878 = vset.pattern.permute.xlu0 0
      %879 = vperm.xlu0 %878, %v784
      %v880 = vpop.permute.xlu0 %879
      %883 = vset.pattern.permute.xlu0 0
      %884 = vperm.xlu0 %883, %v785
      %v885 = vpop.permute.xlu0 %884
      %888 = vset.pattern.permute.xlu0 0
      %889 = vperm.xlu0 %888, %v786
      %v890 = vpop.permute.xlu0 %889
      %893 = vset.pattern.permute.xlu0 0
      %894 = vperm.xlu0 %893, %v787
      %v895 = vpop.permute.xlu0 %894
      %898 = vset.pattern.permute.xlu0 0
      %899 = vperm.xlu0 %898, %v788
      %v900 = vpop.permute.xlu0 %899
      %903 = vset.pattern.permute.xlu0 0
      %904 = vperm.xlu0 %903, %v789
      %v905 = vpop.permute.xlu0 %904
      %908 = vset.pattern.permute.xlu0 0
      %909 = vperm.xlu0 %908, %v790
      %v910 = vpop.permute.xlu0 %909
      %913 = vset.pattern.permute.xlu0 0
      %914 = vperm.xlu0 %913, %v791
      %v915 = vpop.permute.xlu0 %914
      %918 = vset.pattern.permute.xlu0 0
      %919 = vperm.xlu0 %918, %v792
      %v920 = vpop.permute.xlu0 %919
      %923 = vset.pattern.permute.xlu0 0
      %924 = vperm.xlu0 %923, %v793
      %v925 = vpop.permute.xlu0 %924
      %928 = vset.pattern.permute.xlu0 0
      %929 = vperm.xlu0 %928, %v794
      %v930 = vpop.permute.xlu0 %929
      %933 = vset.pattern.permute.xlu0 0
      %934 = vperm.xlu0 %933, %v795
      %v935 = vpop.permute.xlu0 %934
      %938 = vset.pattern.permute.xlu0 0
      %939 = vperm.xlu0 %938, %v796
      %v940 = vpop.permute.xlu0 %939
      %943 = vset.pattern.permute.xlu0 0
      %944 = vperm.xlu0 %943, %v797
      %v945 = vpop.permute.xlu0 %944
      %948 = vset.pattern.permute.xlu0 0
      %949 = vperm.xlu0 %948, %v798
      %v950 = vpop.permute.xlu0 %949
      %953 = vset.pattern.permute.xlu0 0
      %954 = vperm.xlu0 %953, %v799
      %v955 = vpop.permute.xlu0 %954
      %958 = vset.pattern.permute.xlu0 0
      %959 = vperm.xlu0 %958, %v800
      %v960 = vpop.permute.xlu0 %959
      %963 = vset.pattern.permute.xlu0 0
      %964 = vperm.xlu0 %963, %v801
      %v965 = vpop.permute.xlu0 %964
      %968 = vset.pattern.permute.xlu0 0
      %969 = vperm.xlu0 %968, %v802
      %v970 = vpop.permute.xlu0 %969
      %973 = vset.pattern.permute.xlu0 0
      %974 = vperm.xlu0 %973, %v803
      %v975 = vpop.permute.xlu0 %974
      %978 = vset.pattern.permute.xlu0 0
      %979 = vperm.xlu0 %978, %v804
      %v980 = vpop.permute.xlu0 %979
      %983 = vset.pattern.permute.xlu0 0
      %984 = vperm.xlu0 %983, %v805
      %v985 = vpop.permute.xlu0 %984
      %988 = vset.pattern.permute.xlu0 0
      %989 = vperm.xlu0 %988, %v806
      %v990 = vpop.permute.xlu0 %989
      %993 = vset.pattern.permute.xlu0 0
      %994 = vperm.xlu0 %993, %v807
      %v995 = vpop.permute.xlu0 %994
      %998 = vset.pattern.permute.xlu0 0
      %999 = vperm.xlu0 %998, %v808
      %v1000 = vpop.permute.xlu0 %999
      %1003 = vset.pattern.permute.xlu0 0
      %1004 = vperm.xlu0 %1003, %v809
      %v1005 = vpop.permute.xlu0 %1004
      %1008 = vset.pattern.permute.xlu0 0
      %1009 = vperm.xlu0 %1008, %v810
      %v1010 = vpop.permute.xlu0 %1009
      %1013 = vset.pattern.permute.xlu0 0
      %1014 = vperm.xlu0 %1013, %v811
      %v1015 = vpop.permute.xlu0 %1014
      %v1017 = vadd.f32 %v730, %v815
      %v1018 = vadd.f32 %v731, %v820
      %v1019 = vadd.f32 %v732, %v825
      %v1020 = vadd.f32 %v733, %v830
      %v1021 = vadd.f32 %v734, %v835
      %v1022 = vadd.f32 %v735, %v840
      %v1023 = vadd.f32 %v736, %v845
      %v1024 = vadd.f32 %v737, %v850
      %v1025 = vadd.f32 %v738, %v855
      %v1026 = vadd.f32 %v739, %v860
      %v1027 = vadd.f32 %v740, %v865
      %v1028 = vadd.f32 %v741, %v870
      %v1029 = vadd.f32 %v742, %v875
      %v1030 = vadd.f32 %v743, %v880
      %v1031 = vadd.f32 %v744, %v885
      %v1032 = vadd.f32 %v745, %v890
      %v1033 = vadd.f32 %v746, %v895
      %v1034 = vadd.f32 %v747, %v900
      %v1035 = vadd.f32 %v748, %v905
      %v1036 = vadd.f32 %v749, %v910
      %v1037 = vadd.f32 %v750, %v915
      %v1038 = vadd.f32 %v751, %v920
      %v1039 = vadd.f32 %v752, %v925
      %v1040 = vadd.f32 %v753, %v930
      %v1041 = vadd.f32 %v754, %v935
      %v1042 = vadd.f32 %v755, %v940
      %v1043 = vadd.f32 %v756, %v945
      %v1044 = vadd.f32 %v757, %v950
      %v1045 = vadd.f32 %v758, %v955
      %v1046 = vadd.f32 %v759, %v960
      %v1047 = vadd.f32 %v760, %v965
      %v1048 = vadd.f32 %v761, %v970
      %v1049 = vadd.f32 %v762, %v975
      %v1050 = vadd.f32 %v763, %v980
      %v1051 = vadd.f32 %v764, %v985
      %v1052 = vadd.f32 %v765, %v990
      %v1053 = vadd.f32 %v766, %v995
      %v1054 = vadd.f32 %v767, %v1000
      %v1055 = vadd.f32 %v768, %v1005
      %v1056 = vadd.f32 %v769, %v1010
      %v1057 = vadd.f32 %v770, %v1015
      %vm1095 = vcmask 1046528
      %v1096 = vrot.slane %v1017, 1
      %v1097 = vrot.slane %v1018, 1
      %v1098 = vsel %vm1095, %v1096, %v1097
      %v1099 = vrot.slane %v1019, 1
      %v1100 = vsel %vm1095, %v1097, %v1099
      %v1101 = vrot.slane %v1020, 1
      %v1102 = vsel %vm1095, %v1099, %v1101
      %v1103 = vrot.slane %v1021, 1
      %v1104 = vsel %vm1095, %v1101, %v1103
      %v1105 = vrot.slane %v1022, 1
      %v1106 = vsel %vm1095, %v1103, %v1105
      %v1107 = vrot.slane %v1023, 1
      %v1108 = vsel %vm1095, %v1105, %v1107
      %v1109 = vrot.slane %v1024, 1
      %v1110 = vsel %vm1095, %v1107, %v1109
      %v1111 = vrot.slane %v1025, 1
      %v1112 = vsel %vm1095, %v1109, %v1111
      %v1113 = vrot.slane %v1026, 1
      %v1114 = vsel %vm1095, %v1111, %v1113
      %v1115 = vrot.slane %v1027, 1
      %v1116 = vsel %vm1095, %v1113, %v1115
      %v1117 = vrot.slane %v1028, 1
      %v1118 = vsel %vm1095, %v1115, %v1117
      %v1119 = vrot.slane %v1029, 1
      %v1120 = vsel %vm1095, %v1117, %v1119
      %v1121 = vrot.slane %v1030, 1
      %v1122 = vsel %vm1095, %v1119, %v1121
      %v1123 = vrot.slane %v1031, 1
      %v1124 = vsel %vm1095, %v1121, %v1123
      %v1125 = vrot.slane %v1032, 1
      %v1126 = vsel %vm1095, %v1123, %v1125
      %v1127 = vrot.slane %v1033, 1
      %v1128 = vsel %vm1095, %v1125, %v1127
      %v1129 = vrot.slane %v1034, 1
      %v1130 = vsel %vm1095, %v1127, %v1129
      %v1131 = vrot.slane %v1035, 1
      %v1132 = vsel %vm1095, %v1129, %v1131
      %v1133 = vrot.slane %v1036, 1
      %v1134 = vsel %vm1095, %v1131, %v1133
      %v1135 = vrot.slane %v1037, 1
      %v1136 = vsel %vm1095, %v1133, %v1135
      %v1137 = vrot.slane %v1038, 1
      %v1138 = vsel %vm1095, %v1135, %v1137
      %v1139 = vrot.slane %v1039, 1
      %v1140 = vsel %vm1095, %v1137, %v1139
      %v1141 = vrot.slane %v1040, 1
      %v1142 = vsel %vm1095, %v1139, %v1141
      %v1143 = vrot.slane %v1041, 1
      %v1144 = vsel %vm1095, %v1141, %v1143
      %v1145 = vrot.slane %v1042, 1
      %v1146 = vsel %vm1095, %v1143, %v1145
      %v1147 = vrot.slane %v1043, 1
      %v1148 = vsel %vm1095, %v1145, %v1147
      %v1149 = vrot.slane %v1044, 1
      %v1150 = vsel %vm1095, %v1147, %v1149
      %v1151 = vrot.slane %v1045, 1
      %v1152 = vsel %vm1095, %v1149, %v1151
      %v1153 = vrot.slane %v1046, 1
      %v1154 = vsel %vm1095, %v1151, %v1153
      %v1155 = vrot.slane %v1047, 1
      %v1156 = vsel %vm1095, %v1153, %v1155
      %v1157 = vrot.slane %v1048, 1
      %v1158 = vsel %vm1095, %v1155, %v1157
      %v1159 = vrot.slane %v1049, 1
      %v1160 = vsel %vm1095, %v1157, %v1159
      %v1161 = vrot.slane %v1050, 1
      %v1162 = vsel %vm1095, %v1159, %v1161
      %v1163 = vrot.slane %v1051, 1
      %v1164 = vsel %vm1095, %v1161, %v1163
      %v1165 = vrot.slane %v1052, 1
      %v1166 = vsel %vm1095, %v1163, %v1165
      %v1167 = vrot.slane %v1053, 1
      %v1168 = vsel %vm1095, %v1165, %v1167
      %v1205 = vmax.f32 %v1017, %v1098
      %v1206 = vmax.f32 %v1018, %v1100
      %v1207 = vmax.f32 %v1019, %v1102
      %v1208 = vmax.f32 %v1020, %v1104
      %v1209 = vmax.f32 %v1021, %v1106
      %v1210 = vmax.f32 %v1022, %v1108
      %v1211 = vmax.f32 %v1023, %v1110
      %v1212 = vmax.f32 %v1024, %v1112
      %v1213 = vmax.f32 %v1025, %v1114
      %v1214 = vmax.f32 %v1026, %v1116
      %v1215 = vmax.f32 %v1027, %v1118
      %v1216 = vmax.f32 %v1028, %v1120
      %v1217 = vmax.f32 %v1029, %v1122
      %v1218 = vmax.f32 %v1030, %v1124
      %v1219 = vmax.f32 %v1031, %v1126
      %v1220 = vmax.f32 %v1032, %v1128
      %v1221 = vmax.f32 %v1033, %v1130
      %v1222 = vmax.f32 %v1034, %v1132
      %v1223 = vmax.f32 %v1035, %v1134
      %v1224 = vmax.f32 %v1036, %v1136
      %v1225 = vmax.f32 %v1037, %v1138
      %v1226 = vmax.f32 %v1038, %v1140
      %v1227 = vmax.f32 %v1039, %v1142
      %v1228 = vmax.f32 %v1040, %v1144
      %v1229 = vmax.f32 %v1041, %v1146
      %v1230 = vmax.f32 %v1042, %v1148
      %v1231 = vmax.f32 %v1043, %v1150
      %v1232 = vmax.f32 %v1044, %v1152
      %v1233 = vmax.f32 %v1045, %v1154
      %v1234 = vmax.f32 %v1046, %v1156
      %v1235 = vmax.f32 %v1047, %v1158
      %v1236 = vmax.f32 %v1048, %v1160
      %v1237 = vmax.f32 %v1049, %v1162
      %v1238 = vmax.f32 %v1050, %v1164
      %v1239 = vmax.f32 %v1051, %v1166
      %v1240 = vmax.f32 %v1052, %v1168
      %vm1241 = vcmask 1045504
      %v1242 = vrot.slane %v1017, 2
      %v1243 = vrot.slane %v1018, 2
      %v1244 = vsel %vm1241, %v1242, %v1243
      %v1245 = vrot.slane %v1019, 2
      %v1246 = vsel %vm1241, %v1243, %v1245
      %v1247 = vrot.slane %v1020, 2
      %v1248 = vsel %vm1241, %v1245, %v1247
      %v1249 = vrot.slane %v1021, 2
      %v1250 = vsel %vm1241, %v1247, %v1249
      %v1251 = vrot.slane %v1022, 2
      %v1252 = vsel %vm1241, %v1249, %v1251
      %v1253 = vrot.slane %v1023, 2
      %v1254 = vsel %vm1241, %v1251, %v1253
      %v1255 = vrot.slane %v1024, 2
      %v1256 = vsel %vm1241, %v1253, %v1255
      %v1257 = vrot.slane %v1025, 2
      %v1258 = vsel %vm1241, %v1255, %v1257
      %v1259 = vrot.slane %v1026, 2
      %v1260 = vsel %vm1241, %v1257, %v1259
      %v1261 = vrot.slane %v1027, 2
      %v1262 = vsel %vm1241, %v1259, %v1261
      %v1263 = vrot.slane %v1028, 2
      %v1264 = vsel %vm1241, %v1261, %v1263
      %v1265 = vrot.slane %v1029, 2
      %v1266 = vsel %vm1241, %v1263, %v1265
      %v1267 = vrot.slane %v1030, 2
      %v1268 = vsel %vm1241, %v1265, %v1267
      %v1269 = vrot.slane %v1031, 2
      %v1270 = vsel %vm1241, %v1267, %v1269
      %v1271 = vrot.slane %v1032, 2
      %v1272 = vsel %vm1241, %v1269, %v1271
      %v1273 = vrot.slane %v1033, 2
      %v1274 = vsel %vm1241, %v1271, %v1273
      %v1275 = vrot.slane %v1034, 2
      %v1276 = vsel %vm1241, %v1273, %v1275
      %v1277 = vrot.slane %v1035, 2
      %v1278 = vsel %vm1241, %v1275, %v1277
      %v1279 = vrot.slane %v1036, 2
      %v1280 = vsel %vm1241, %v1277, %v1279
      %v1281 = vrot.slane %v1037, 2
      %v1282 = vsel %vm1241, %v1279, %v1281
      %v1283 = vrot.slane %v1038, 2
      %v1284 = vsel %vm1241, %v1281, %v1283
      %v1285 = vrot.slane %v1039, 2
      %v1286 = vsel %vm1241, %v1283, %v1285
      %v1287 = vrot.slane %v1040, 2
      %v1288 = vsel %vm1241, %v1285, %v1287
      %v1289 = vrot.slane %v1041, 2
      %v1290 = vsel %vm1241, %v1287, %v1289
      %v1291 = vrot.slane %v1042, 2
      %v1292 = vsel %vm1241, %v1289, %v1291
      %v1293 = vrot.slane %v1043, 2
      %v1294 = vsel %vm1241, %v1291, %v1293
      %v1295 = vrot.slane %v1044, 2
      %v1296 = vsel %vm1241, %v1293, %v1295
      %v1297 = vrot.slane %v1045, 2
      %v1298 = vsel %vm1241, %v1295, %v1297
      %v1299 = vrot.slane %v1046, 2
      %v1300 = vsel %vm1241, %v1297, %v1299
      %v1301 = vrot.slane %v1047, 2
      %v1302 = vsel %vm1241, %v1299, %v1301
      %v1303 = vrot.slane %v1048, 2
      %v1304 = vsel %vm1241, %v1301, %v1303
      %v1305 = vrot.slane %v1049, 2
      %v1306 = vsel %vm1241, %v1303, %v1305
      %v1307 = vrot.slane %v1050, 2
      %v1308 = vsel %vm1241, %v1305, %v1307
      %v1309 = vrot.slane %v1051, 2
      %v1310 = vsel %vm1241, %v1307, %v1309
      %v1311 = vrot.slane %v1052, 2
      %v1312 = vsel %vm1241, %v1309, %v1311
      %v1313 = vrot.slane %v1053, 2
      %v1314 = vsel %vm1241, %v1311, %v1313
      %v1351 = vmax.f32 %v1205, %v1244
      %v1352 = vmax.f32 %v1206, %v1246
      %v1353 = vmax.f32 %v1207, %v1248
      %v1354 = vmax.f32 %v1208, %v1250
      %v1355 = vmax.f32 %v1209, %v1252
      %v1356 = vmax.f32 %v1210, %v1254
      %v1357 = vmax.f32 %v1211, %v1256
      %v1358 = vmax.f32 %v1212, %v1258
      %v1359 = vmax.f32 %v1213, %v1260
      %v1360 = vmax.f32 %v1214, %v1262
      %v1361 = vmax.f32 %v1215, %v1264
      %v1362 = vmax.f32 %v1216, %v1266
      %v1363 = vmax.f32 %v1217, %v1268
      %v1364 = vmax.f32 %v1218, %v1270
      %v1365 = vmax.f32 %v1219, %v1272
      %v1366 = vmax.f32 %v1220, %v1274
      %v1367 = vmax.f32 %v1221, %v1276
      %v1368 = vmax.f32 %v1222, %v1278
      %v1369 = vmax.f32 %v1223, %v1280
      %v1370 = vmax.f32 %v1224, %v1282
      %v1371 = vmax.f32 %v1225, %v1284
      %v1372 = vmax.f32 %v1226, %v1286
      %v1373 = vmax.f32 %v1227, %v1288
      %v1374 = vmax.f32 %v1228, %v1290
      %v1375 = vmax.f32 %v1229, %v1292
      %v1376 = vmax.f32 %v1230, %v1294
      %v1377 = vmax.f32 %v1231, %v1296
      %v1378 = vmax.f32 %v1232, %v1298
      %v1379 = vmax.f32 %v1233, %v1300
      %v1380 = vmax.f32 %v1234, %v1302
      %v1381 = vmax.f32 %v1235, %v1304
      %v1382 = vmax.f32 %v1236, %v1306
      %v1383 = vmax.f32 %v1237, %v1308
      %v1384 = vmax.f32 %v1238, %v1310
      %v1385 = vmax.f32 %v1239, %v1312
      %v1386 = vmax.f32 %v1240, %v1314
      %v1389 = vrot.slane %v1054, 2
      %v1390 = vsel %vm1241, %v1313, %v1389
      %v1391 = vrot.slane %v1055, 2
      %v1392 = vsel %vm1241, %v1389, %v1391
      %v1395 = vmax.f32 %v1351, %v1248
      %v1396 = vmax.f32 %v1352, %v1250
      %v1397 = vmax.f32 %v1353, %v1252
      %v1398 = vmax.f32 %v1354, %v1254
      %v1399 = vmax.f32 %v1355, %v1256
      %v1400 = vmax.f32 %v1356, %v1258
      %v1401 = vmax.f32 %v1357, %v1260
      %v1402 = vmax.f32 %v1358, %v1262
      %v1403 = vmax.f32 %v1359, %v1264
      %v1404 = vmax.f32 %v1360, %v1266
      %v1405 = vmax.f32 %v1361, %v1268
      %v1406 = vmax.f32 %v1362, %v1270
      %v1407 = vmax.f32 %v1363, %v1272
      %v1408 = vmax.f32 %v1364, %v1274
      %v1409 = vmax.f32 %v1365, %v1276
      %v1410 = vmax.f32 %v1366, %v1278
      %v1411 = vmax.f32 %v1367, %v1280
      %v1412 = vmax.f32 %v1368, %v1282
      %v1413 = vmax.f32 %v1369, %v1284
      %v1414 = vmax.f32 %v1370, %v1286
      %v1415 = vmax.f32 %v1371, %v1288
      %v1416 = vmax.f32 %v1372, %v1290
      %v1417 = vmax.f32 %v1373, %v1292
      %v1418 = vmax.f32 %v1374, %v1294
      %v1419 = vmax.f32 %v1375, %v1296
      %v1420 = vmax.f32 %v1376, %v1298
      %v1421 = vmax.f32 %v1377, %v1300
      %v1422 = vmax.f32 %v1378, %v1302
      %v1423 = vmax.f32 %v1379, %v1304
      %v1424 = vmax.f32 %v1380, %v1306
      %v1425 = vmax.f32 %v1381, %v1308
      %v1426 = vmax.f32 %v1382, %v1310
      %v1427 = vmax.f32 %v1383, %v1312
      %v1428 = vmax.f32 %v1384, %v1314
      %v1429 = vmax.f32 %v1385, %v1390
      %v1430 = vmax.f32 %v1386, %v1392
      %vm1431 = vcmask 1044480
      %v1432 = vrot.slane %v1019, 3
      %v1433 = vrot.slane %v1020, 3
      %v1434 = vsel %vm1431, %v1432, %v1433
      %v1435 = vrot.slane %v1021, 3
      %v1436 = vsel %vm1431, %v1433, %v1435
      %v1437 = vrot.slane %v1022, 3
      %v1438 = vsel %vm1431, %v1435, %v1437
      %v1439 = vrot.slane %v1023, 3
      %v1440 = vsel %vm1431, %v1437, %v1439
      %v1441 = vrot.slane %v1024, 3
      %v1442 = vsel %vm1431, %v1439, %v1441
      %v1443 = vrot.slane %v1025, 3
      %v1444 = vsel %vm1431, %v1441, %v1443
      %v1445 = vrot.slane %v1026, 3
      %v1446 = vsel %vm1431, %v1443, %v1445
      %v1447 = vrot.slane %v1027, 3
      %v1448 = vsel %vm1431, %v1445, %v1447
      %v1449 = vrot.slane %v1028, 3
      %v1450 = vsel %vm1431, %v1447, %v1449
      %v1451 = vrot.slane %v1029, 3
      %v1452 = vsel %vm1431, %v1449, %v1451
      %v1453 = vrot.slane %v1030, 3
      %v1454 = vsel %vm1431, %v1451, %v1453
      %v1455 = vrot.slane %v1031, 3
      %v1456 = vsel %vm1431, %v1453, %v1455
      %v1457 = vrot.slane %v1032, 3
      %v1458 = vsel %vm1431, %v1455, %v1457
      %v1459 = vrot.slane %v1033, 3
      %v1460 = vsel %vm1431, %v1457, %v1459
      %v1461 = vrot.slane %v1034, 3
      %v1462 = vsel %vm1431, %v1459, %v1461
      %v1463 = vrot.slane %v1035, 3
      %v1464 = vsel %vm1431, %v1461, %v1463
      %v1465 = vrot.slane %v1036, 3
      %v1466 = vsel %vm1431, %v1463, %v1465
      %v1467 = vrot.slane %v1037, 3
      %v1468 = vsel %vm1431, %v1465, %v1467
      %v1469 = vrot.slane %v1038, 3
      %v1470 = vsel %vm1431, %v1467, %v1469
      %v1471 = vrot.slane %v1039, 3
      %v1472 = vsel %vm1431, %v1469, %v1471
      %v1473 = vrot.slane %v1040, 3
      %v1474 = vsel %vm1431, %v1471, %v1473
      %v1475 = vrot.slane %v1041, 3
      %v1476 = vsel %vm1431, %v1473, %v1475
      %v1477 = vrot.slane %v1042, 3
      %v1478 = vsel %vm1431, %v1475, %v1477
      %v1479 = vrot.slane %v1043, 3
      %v1480 = vsel %vm1431, %v1477, %v1479
      %v1481 = vrot.slane %v1044, 3
      %v1482 = vsel %vm1431, %v1479, %v1481
      %v1483 = vrot.slane %v1045, 3
      %v1484 = vsel %vm1431, %v1481, %v1483
      %v1485 = vrot.slane %v1046, 3
      %v1486 = vsel %vm1431, %v1483, %v1485
      %v1487 = vrot.slane %v1047, 3
      %v1488 = vsel %vm1431, %v1485, %v1487
      %v1489 = vrot.slane %v1048, 3
      %v1490 = vsel %vm1431, %v1487, %v1489
      %v1491 = vrot.slane %v1049, 3
      %v1492 = vsel %vm1431, %v1489, %v1491
      %v1493 = vrot.slane %v1050, 3
      %v1494 = vsel %vm1431, %v1491, %v1493
      %v1495 = vrot.slane %v1051, 3
      %v1496 = vsel %vm1431, %v1493, %v1495
      %v1497 = vrot.slane %v1052, 3
      %v1498 = vsel %vm1431, %v1495, %v1497
      %v1499 = vrot.slane %v1053, 3
      %v1500 = vsel %vm1431, %v1497, %v1499
      %v1501 = vrot.slane %v1054, 3
      %v1502 = vsel %vm1431, %v1499, %v1501
      %v1503 = vrot.slane %v1055, 3
      %v1504 = vsel %vm1431, %v1501, %v1503
      %v1541 = vmax.f32 %v1395, %v1434
      %v1542 = vmax.f32 %v1396, %v1436
      %v1543 = vmax.f32 %v1397, %v1438
      %v1544 = vmax.f32 %v1398, %v1440
      %v1545 = vmax.f32 %v1399, %v1442
      %v1546 = vmax.f32 %v1400, %v1444
      %v1547 = vmax.f32 %v1401, %v1446
      %v1548 = vmax.f32 %v1402, %v1448
      %v1549 = vmax.f32 %v1403, %v1450
      %v1550 = vmax.f32 %v1404, %v1452
      %v1551 = vmax.f32 %v1405, %v1454
      %v1552 = vmax.f32 %v1406, %v1456
      %v1553 = vmax.f32 %v1407, %v1458
      %v1554 = vmax.f32 %v1408, %v1460
      %v1555 = vmax.f32 %v1409, %v1462
      %v1556 = vmax.f32 %v1410, %v1464
      %v1557 = vmax.f32 %v1411, %v1466
      %v1558 = vmax.f32 %v1412, %v1468
      %v1559 = vmax.f32 %v1413, %v1470
      %v1560 = vmax.f32 %v1414, %v1472
      %v1561 = vmax.f32 %v1415, %v1474
      %v1562 = vmax.f32 %v1416, %v1476
      %v1563 = vmax.f32 %v1417, %v1478
      %v1564 = vmax.f32 %v1418, %v1480
      %v1565 = vmax.f32 %v1419, %v1482
      %v1566 = vmax.f32 %v1420, %v1484
      %v1567 = vmax.f32 %v1421, %v1486
      %v1568 = vmax.f32 %v1422, %v1488
      %v1569 = vmax.f32 %v1423, %v1490
      %v1570 = vmax.f32 %v1424, %v1492
      %v1571 = vmax.f32 %v1425, %v1494
      %v1572 = vmax.f32 %v1426, %v1496
      %v1573 = vmax.f32 %v1427, %v1498
      %v1574 = vmax.f32 %v1428, %v1500
      %v1575 = vmax.f32 %v1429, %v1502
      %v1576 = vmax.f32 %v1430, %v1504
      %vm1577 = vcmask 1043456
      %v1578 = vrot.slane %v1019, 4
      %v1579 = vrot.slane %v1020, 4
      %v1580 = vsel %vm1577, %v1578, %v1579
      %v1581 = vrot.slane %v1021, 4
      %v1582 = vsel %vm1577, %v1579, %v1581
      %v1583 = vrot.slane %v1022, 4
      %v1584 = vsel %vm1577, %v1581, %v1583
      %v1585 = vrot.slane %v1023, 4
      %v1586 = vsel %vm1577, %v1583, %v1585
      %v1587 = vrot.slane %v1024, 4
      %v1588 = vsel %vm1577, %v1585, %v1587
      %v1589 = vrot.slane %v1025, 4
      %v1590 = vsel %vm1577, %v1587, %v1589
      %v1591 = vrot.slane %v1026, 4
      %v1592 = vsel %vm1577, %v1589, %v1591
      %v1593 = vrot.slane %v1027, 4
      %v1594 = vsel %vm1577, %v1591, %v1593
      %v1595 = vrot.slane %v1028, 4
      %v1596 = vsel %vm1577, %v1593, %v1595
      %v1597 = vrot.slane %v1029, 4
      %v1598 = vsel %vm1577, %v1595, %v1597
      %v1599 = vrot.slane %v1030, 4
      %v1600 = vsel %vm1577, %v1597, %v1599
      %v1601 = vrot.slane %v1031, 4
      %v1602 = vsel %vm1577, %v1599, %v1601
      %v1603 = vrot.slane %v1032, 4
      %v1604 = vsel %vm1577, %v1601, %v1603
      %v1605 = vrot.slane %v1033, 4
      %v1606 = vsel %vm1577, %v1603, %v1605
      %v1607 = vrot.slane %v1034, 4
      %v1608 = vsel %vm1577, %v1605, %v1607
      %v1609 = vrot.slane %v1035, 4
      %v1610 = vsel %vm1577, %v1607, %v1609
      %v1611 = vrot.slane %v1036, 4
      %v1612 = vsel %vm1577, %v1609, %v1611
      %v1613 = vrot.slane %v1037, 4
      %v1614 = vsel %vm1577, %v1611, %v1613
      %v1615 = vrot.slane %v1038, 4
      %v1616 = vsel %vm1577, %v1613, %v1615
      %v1617 = vrot.slane %v1039, 4
      %v1618 = vsel %vm1577, %v1615, %v1617
      %v1619 = vrot.slane %v1040, 4
      %v1620 = vsel %vm1577, %v1617, %v1619
      %v1621 = vrot.slane %v1041, 4
      %v1622 = vsel %vm1577, %v1619, %v1621
      %v1623 = vrot.slane %v1042, 4
      %v1624 = vsel %vm1577, %v1621, %v1623
      %v1625 = vrot.slane %v1043, 4
      %v1626 = vsel %vm1577, %v1623, %v1625
      %v1627 = vrot.slane %v1044, 4
      %v1628 = vsel %vm1577, %v1625, %v1627
      %v1629 = vrot.slane %v1045, 4
      %v1630 = vsel %vm1577, %v1627, %v1629
      %v1631 = vrot.slane %v1046, 4
      %v1632 = vsel %vm1577, %v1629, %v1631
      %v1633 = vrot.slane %v1047, 4
      %v1634 = vsel %vm1577, %v1631, %v1633
      %v1635 = vrot.slane %v1048, 4
      %v1636 = vsel %vm1577, %v1633, %v1635
      %v1637 = vrot.slane %v1049, 4
      %v1638 = vsel %vm1577, %v1635, %v1637
      %v1639 = vrot.slane %v1050, 4
      %v1640 = vsel %vm1577, %v1637, %v1639
      %v1641 = vrot.slane %v1051, 4
      %v1642 = vsel %vm1577, %v1639, %v1641
      %v1643 = vrot.slane %v1052, 4
      %v1644 = vsel %vm1577, %v1641, %v1643
      %v1645 = vrot.slane %v1053, 4
      %v1646 = vsel %vm1577, %v1643, %v1645
      %v1647 = vrot.slane %v1054, 4
      %v1648 = vsel %vm1577, %v1645, %v1647
      %v1649 = vrot.slane %v1055, 4
      %v1650 = vsel %vm1577, %v1647, %v1649
      %v1687 = vmax.f32 %v1541, %v1580
      %v1688 = vmax.f32 %v1542, %v1582
      %v1689 = vmax.f32 %v1543, %v1584
      %v1690 = vmax.f32 %v1544, %v1586
      %v1691 = vmax.f32 %v1545, %v1588
      %v1692 = vmax.f32 %v1546, %v1590
      %v1693 = vmax.f32 %v1547, %v1592
      %v1694 = vmax.f32 %v1548, %v1594
      %v1695 = vmax.f32 %v1549, %v1596
      %v1696 = vmax.f32 %v1550, %v1598
      %v1697 = vmax.f32 %v1551, %v1600
      %v1698 = vmax.f32 %v1552, %v1602
      %v1699 = vmax.f32 %v1553, %v1604
      %v1700 = vmax.f32 %v1554, %v1606
      %v1701 = vmax.f32 %v1555, %v1608
      %v1702 = vmax.f32 %v1556, %v1610
      %v1703 = vmax.f32 %v1557, %v1612
      %v1704 = vmax.f32 %v1558, %v1614
      %v1705 = vmax.f32 %v1559, %v1616
      %v1706 = vmax.f32 %v1560, %v1618
      %v1707 = vmax.f32 %v1561, %v1620
      %v1708 = vmax.f32 %v1562, %v1622
      %v1709 = vmax.f32 %v1563, %v1624
      %v1710 = vmax.f32 %v1564, %v1626
      %v1711 = vmax.f32 %v1565, %v1628
      %v1712 = vmax.f32 %v1566, %v1630
      %v1713 = vmax.f32 %v1567, %v1632
      %v1714 = vmax.f32 %v1568, %v1634
      %v1715 = vmax.f32 %v1569, %v1636
      %v1716 = vmax.f32 %v1570, %v1638
      %v1717 = vmax.f32 %v1571, %v1640
      %v1718 = vmax.f32 %v1572, %v1642
      %v1719 = vmax.f32 %v1573, %v1644
      %v1720 = vmax.f32 %v1574, %v1646
      %v1721 = vmax.f32 %v1575, %v1648
      %v1722 = vmax.f32 %v1576, %v1650
      %v1725 = vrot.slane %v1056, 4
      %v1726 = vsel %vm1577, %v1649, %v1725
      %v1727 = vrot.slane %v1057, 4
      %v1728 = vsel %vm1577, %v1725, %v1727
      %v1731 = vmax.f32 %v1687, %v1584
      %v1732 = vmax.f32 %v1688, %v1586
      %v1733 = vmax.f32 %v1689, %v1588
      %v1734 = vmax.f32 %v1690, %v1590
      %v1735 = vmax.f32 %v1691, %v1592
      %v1736 = vmax.f32 %v1692, %v1594
      %v1737 = vmax.f32 %v1693, %v1596
      %v1738 = vmax.f32 %v1694, %v1598
      %v1739 = vmax.f32 %v1695, %v1600
      %v1740 = vmax.f32 %v1696, %v1602
      %v1741 = vmax.f32 %v1697, %v1604
      %v1742 = vmax.f32 %v1698, %v1606
      %v1743 = vmax.f32 %v1699, %v1608
      %v1744 = vmax.f32 %v1700, %v1610
      %v1745 = vmax.f32 %v1701, %v1612
      %v1746 = vmax.f32 %v1702, %v1614
      %v1747 = vmax.f32 %v1703, %v1616
      %v1748 = vmax.f32 %v1704, %v1618
      %v1749 = vmax.f32 %v1705, %v1620
      %v1750 = vmax.f32 %v1706, %v1622
      %v1751 = vmax.f32 %v1707, %v1624
      %v1752 = vmax.f32 %v1708, %v1626
      %v1753 = vmax.f32 %v1709, %v1628
      %v1754 = vmax.f32 %v1710, %v1630
      %v1755 = vmax.f32 %v1711, %v1632
      %v1756 = vmax.f32 %v1712, %v1634
      %v1757 = vmax.f32 %v1713, %v1636
      %v1758 = vmax.f32 %v1714, %v1638
      %v1759 = vmax.f32 %v1715, %v1640
      %v1760 = vmax.f32 %v1716, %v1642
      %v1761 = vmax.f32 %v1717, %v1644
      %v1762 = vmax.f32 %v1718, %v1646
      %v1763 = vmax.f32 %v1719, %v1648
      %v1764 = vmax.f32 %v1720, %v1650
      %v1765 = vmax.f32 %v1721, %v1726
      %v1766 = vmax.f32 %v1722, %v1728
      %v1767 = vrot.slane %v1021, 5
      %v1768 = vrot.slane %v1022, 5
      %v1769 = vsel %vm374, %v1767, %v1768
      %v1770 = vrot.slane %v1023, 5
      %v1771 = vsel %vm374, %v1768, %v1770
      %v1772 = vrot.slane %v1024, 5
      %v1773 = vsel %vm374, %v1770, %v1772
      %v1774 = vrot.slane %v1025, 5
      %v1775 = vsel %vm374, %v1772, %v1774
      %v1776 = vrot.slane %v1026, 5
      %v1777 = vsel %vm374, %v1774, %v1776
      %v1778 = vrot.slane %v1027, 5
      %v1779 = vsel %vm374, %v1776, %v1778
      %v1780 = vrot.slane %v1028, 5
      %v1781 = vsel %vm374, %v1778, %v1780
      %v1782 = vrot.slane %v1029, 5
      %v1783 = vsel %vm374, %v1780, %v1782
      %v1784 = vrot.slane %v1030, 5
      %v1785 = vsel %vm374, %v1782, %v1784
      %v1786 = vrot.slane %v1031, 5
      %v1787 = vsel %vm374, %v1784, %v1786
      %v1788 = vrot.slane %v1032, 5
      %v1789 = vsel %vm374, %v1786, %v1788
      %v1790 = vrot.slane %v1033, 5
      %v1791 = vsel %vm374, %v1788, %v1790
      %v1792 = vrot.slane %v1034, 5
      %v1793 = vsel %vm374, %v1790, %v1792
      %v1794 = vrot.slane %v1035, 5
      %v1795 = vsel %vm374, %v1792, %v1794
      %v1796 = vrot.slane %v1036, 5
      %v1797 = vsel %vm374, %v1794, %v1796
      %v1798 = vrot.slane %v1037, 5
      %v1799 = vsel %vm374, %v1796, %v1798
      %v1800 = vrot.slane %v1038, 5
      %v1801 = vsel %vm374, %v1798, %v1800
      %v1802 = vrot.slane %v1039, 5
      %v1803 = vsel %vm374, %v1800, %v1802
      %v1804 = vrot.slane %v1040, 5
      %v1805 = vsel %vm374, %v1802, %v1804
      %v1806 = vrot.slane %v1041, 5
      %v1807 = vsel %vm374, %v1804, %v1806
      %v1808 = vrot.slane %v1042, 5
      %v1809 = vsel %vm374, %v1806, %v1808
      %v1810 = vrot.slane %v1043, 5
      %v1811 = vsel %vm374, %v1808, %v1810
      %v1812 = vrot.slane %v1044, 5
      %v1813 = vsel %vm374, %v1810, %v1812
      %v1814 = vrot.slane %v1045, 5
      %v1815 = vsel %vm374, %v1812, %v1814
      %v1816 = vrot.slane %v1046, 5
      %v1817 = vsel %vm374, %v1814, %v1816
      %v1818 = vrot.slane %v1047, 5
      %v1819 = vsel %vm374, %v1816, %v1818
      %v1820 = vrot.slane %v1048, 5
      %v1821 = vsel %vm374, %v1818, %v1820
      %v1822 = vrot.slane %v1049, 5
      %v1823 = vsel %vm374, %v1820, %v1822
      %v1824 = vrot.slane %v1050, 5
      %v1825 = vsel %vm374, %v1822, %v1824
      %v1826 = vrot.slane %v1051, 5
      %v1827 = vsel %vm374, %v1824, %v1826
      %v1828 = vrot.slane %v1052, 5
      %v1829 = vsel %vm374, %v1826, %v1828
      %v1830 = vrot.slane %v1053, 5
      %v1831 = vsel %vm374, %v1828, %v1830
      %v1832 = vrot.slane %v1054, 5
      %v1833 = vsel %vm374, %v1830, %v1832
      %v1834 = vrot.slane %v1055, 5
      %v1835 = vsel %vm374, %v1832, %v1834
      %v1836 = vrot.slane %v1056, 5
      %v1837 = vsel %vm374, %v1834, %v1836
      %v1838 = vrot.slane %v1057, 5
      %v1839 = vsel %vm374, %v1836, %v1838
      %v1876 = vmax.f32 %v1731, %v1769
      %v1877 = vmax.f32 %v1732, %v1771
      %v1878 = vmax.f32 %v1733, %v1773
      %v1879 = vmax.f32 %v1734, %v1775
      %v1880 = vmax.f32 %v1735, %v1777
      %v1881 = vmax.f32 %v1736, %v1779
      %v1882 = vmax.f32 %v1737, %v1781
      %v1883 = vmax.f32 %v1738, %v1783
      %v1884 = vmax.f32 %v1739, %v1785
      %v1885 = vmax.f32 %v1740, %v1787
      %v1886 = vmax.f32 %v1741, %v1789
      %v1887 = vmax.f32 %v1742, %v1791
      %v1888 = vmax.f32 %v1743, %v1793
      %v1889 = vmax.f32 %v1744, %v1795
      %v1890 = vmax.f32 %v1745, %v1797
      %v1891 = vmax.f32 %v1746, %v1799
      %v1892 = vmax.f32 %v1747, %v1801
      %v1893 = vmax.f32 %v1748, %v1803
      %v1894 = vmax.f32 %v1749, %v1805
      %v1895 = vmax.f32 %v1750, %v1807
      %v1896 = vmax.f32 %v1751, %v1809
      %v1897 = vmax.f32 %v1752, %v1811
      %v1898 = vmax.f32 %v1753, %v1813
      %v1899 = vmax.f32 %v1754, %v1815
      %v1900 = vmax.f32 %v1755, %v1817
      %v1901 = vmax.f32 %v1756, %v1819
      %v1902 = vmax.f32 %v1757, %v1821
      %v1903 = vmax.f32 %v1758, %v1823
      %v1904 = vmax.f32 %v1759, %v1825
      %v1905 = vmax.f32 %v1760, %v1827
      %v1906 = vmax.f32 %v1761, %v1829
      %v1907 = vmax.f32 %v1762, %v1831
      %v1908 = vmax.f32 %v1763, %v1833
      %v1909 = vmax.f32 %v1764, %v1835
      %v1910 = vmax.f32 %v1765, %v1837
      %v1911 = vmax.f32 %v1766, %v1839
      %vm1912 = vcmask 1041408
      %v1913 = vrot.slane %v1021, 6
      %v1914 = vrot.slane %v1022, 6
      %v1915 = vsel %vm1912, %v1913, %v1914
      %v1916 = vrot.slane %v1023, 6
      %v1917 = vsel %vm1912, %v1914, %v1916
      %v1918 = vrot.slane %v1024, 6
      %v1919 = vsel %vm1912, %v1916, %v1918
      %v1920 = vrot.slane %v1025, 6
      %v1921 = vsel %vm1912, %v1918, %v1920
      %v1922 = vrot.slane %v1026, 6
      %v1923 = vsel %vm1912, %v1920, %v1922
      %v1924 = vrot.slane %v1027, 6
      %v1925 = vsel %vm1912, %v1922, %v1924
      %v1926 = vrot.slane %v1028, 6
      %v1927 = vsel %vm1912, %v1924, %v1926
      %v1928 = vrot.slane %v1029, 6
      %v1929 = vsel %vm1912, %v1926, %v1928
      %v1930 = vrot.slane %v1030, 6
      %v1931 = vsel %vm1912, %v1928, %v1930
      %v1932 = vrot.slane %v1031, 6
      %v1933 = vsel %vm1912, %v1930, %v1932
      %v1934 = vrot.slane %v1032, 6
      %v1935 = vsel %vm1912, %v1932, %v1934
      %v1936 = vrot.slane %v1033, 6
      %v1937 = vsel %vm1912, %v1934, %v1936
      %v1938 = vrot.slane %v1034, 6
      %v1939 = vsel %vm1912, %v1936, %v1938
      %v1940 = vrot.slane %v1035, 6
      %v1941 = vsel %vm1912, %v1938, %v1940
      %v1942 = vrot.slane %v1036, 6
      %v1943 = vsel %vm1912, %v1940, %v1942
      %v1944 = vrot.slane %v1037, 6
      %v1945 = vsel %vm1912, %v1942, %v1944
      %v1946 = vrot.slane %v1038, 6
      %v1947 = vsel %vm1912, %v1944, %v1946
      %v1948 = vrot.slane %v1039, 6
      %v1949 = vsel %vm1912, %v1946, %v1948
      %v1950 = vrot.slane %v1040, 6
      %v1951 = vsel %vm1912, %v1948, %v1950
      %v1952 = vrot.slane %v1041, 6
      %v1953 = vsel %vm1912, %v1950, %v1952
      %v1954 = vrot.slane %v1042, 6
      %v1955 = vsel %vm1912, %v1952, %v1954
      %v1956 = vrot.slane %v1043, 6
      %v1957 = vsel %vm1912, %v1954, %v1956
      %v1958 = vrot.slane %v1044, 6
      %v1959 = vsel %vm1912, %v1956, %v1958
      %v1960 = vrot.slane %v1045, 6
      %v1961 = vsel %vm1912, %v1958, %v1960
      %v1962 = vrot.slane %v1046, 6
      %v1963 = vsel %vm1912, %v1960, %v1962
      %v1964 = vrot.slane %v1047, 6
      %v1965 = vsel %vm1912, %v1962, %v1964
      %v1966 = vrot.slane %v1048, 6
      %v1967 = vsel %vm1912, %v1964, %v1966
      %v1968 = vrot.slane %v1049, 6
      %v1969 = vsel %vm1912, %v1966, %v1968
      %v1970 = vrot.slane %v1050, 6
      %v1971 = vsel %vm1912, %v1968, %v1970
      %v1972 = vrot.slane %v1051, 6
      %v1973 = vsel %vm1912, %v1970, %v1972
      %v1974 = vrot.slane %v1052, 6
      %v1975 = vsel %vm1912, %v1972, %v1974
      %v1976 = vrot.slane %v1053, 6
      %v1977 = vsel %vm1912, %v1974, %v1976
      %v1978 = vrot.slane %v1054, 6
      %v1979 = vsel %vm1912, %v1976, %v1978
      %v1980 = vrot.slane %v1055, 6
      %v1981 = vsel %vm1912, %v1978, %v1980
      %v1982 = vrot.slane %v1056, 6
      %v1983 = vsel %vm1912, %v1980, %v1982
      %v1984 = vrot.slane %v1057, 6
      %v1985 = vsel %vm1912, %v1982, %v1984
      %v2022 = vmax.f32 %v1876, %v1915
      %v2023 = vmax.f32 %v1877, %v1917
      %v2024 = vmax.f32 %v1878, %v1919
      %v2025 = vmax.f32 %v1879, %v1921
      %v2026 = vmax.f32 %v1880, %v1923
      %v2027 = vmax.f32 %v1881, %v1925
      %v2028 = vmax.f32 %v1882, %v1927
      %v2029 = vmax.f32 %v1883, %v1929
      %v2030 = vmax.f32 %v1884, %v1931
      %v2031 = vmax.f32 %v1885, %v1933
      %v2032 = vmax.f32 %v1886, %v1935
      %v2033 = vmax.f32 %v1887, %v1937
      %v2034 = vmax.f32 %v1888, %v1939
      %v2035 = vmax.f32 %v1889, %v1941
      %v2036 = vmax.f32 %v1890, %v1943
      %v2037 = vmax.f32 %v1891, %v1945
      %v2038 = vmax.f32 %v1892, %v1947
      %v2039 = vmax.f32 %v1893, %v1949
      %v2040 = vmax.f32 %v1894, %v1951
      %v2041 = vmax.f32 %v1895, %v1953
      %v2042 = vmax.f32 %v1896, %v1955
      %v2043 = vmax.f32 %v1897, %v1957
      %v2044 = vmax.f32 %v1898, %v1959
      %v2045 = vmax.f32 %v1899, %v1961
      %v2046 = vmax.f32 %v1900, %v1963
      %v2047 = vmax.f32 %v1901, %v1965
      %v2048 = vmax.f32 %v1902, %v1967
      %v2049 = vmax.f32 %v1903, %v1969
      %v2050 = vmax.f32 %v1904, %v1971
      %v2051 = vmax.f32 %v1905, %v1973
      %v2052 = vmax.f32 %v1906, %v1975
      %v2053 = vmax.f32 %v1907, %v1977
      %v2054 = vmax.f32 %v1908, %v1979
      %v2055 = vmax.f32 %v1909, %v1981
      %v2056 = vmax.f32 %v1910, %v1983
      %v2057 = vmax.f32 %v1911, %v1985
      %vm2058 = vcmask 130048
      %2059 = vst.msk [vmem:[%s197] sm:$0xff] %vm2058, %v2022
      %2060 = vst.msk [vmem:[%s197 + $0x8] sm:$0xff] %vm2058, %v2023
      %2061 = vst.msk [vmem:[%s197 + $0x10] sm:$0xff] %vm2058, %v2024
      %2062 = vst.msk [vmem:[%s197 + $0x18] sm:$0xff] %vm2058, %v2025
      %2063 = vst.msk [vmem:[%s197 + $0x20] sm:$0xff] %vm2058, %v2026
      %2064 = vst.msk [vmem:[%s197 + $0x28] sm:$0xff] %vm2058, %v2027
      %2065 = vst.msk [vmem:[%s197 + $0x30] sm:$0xff] %vm2058, %v2028
      %2066 = vst.msk [vmem:[%s197 + $0x38] sm:$0xff] %vm2058, %v2029
      %2067 = vst.msk [vmem:[%s197 + $0x40] sm:$0xff] %vm2058, %v2030
      %2068 = vst.msk [vmem:[%s197 + $0x48] sm:$0xff] %vm2058, %v2031
      %2069 = vst.msk [vmem:[%s197 + $0x50] sm:$0xff] %vm2058, %v2032
      %2070 = vst.msk [vmem:[%s197 + $0x58] sm:$0xff] %vm2058, %v2033
      %2071 = vst.msk [vmem:[%s197 + $0x60] sm:$0xff] %vm2058, %v2034
      %2072 = vst.msk [vmem:[%s197 + $0x68] sm:$0xff] %vm2058, %v2035
      %2073 = vst.msk [vmem:[%s197 + $0x70] sm:$0xff] %vm2058, %v2036
      %2074 = vst.msk [vmem:[%s197 + $0x78] sm:$0xff] %vm2058, %v2037
      %2075 = vst.msk [vmem:[%s197 + $0x80] sm:$0xff] %vm2058, %v2038
      %2076 = vst.msk [vmem:[%s197 + $0x88] sm:$0xff] %vm2058, %v2039
      %2077 = vst.msk [vmem:[%s197 + $0x90] sm:$0xff] %vm2058, %v2040
      %2078 = vst.msk [vmem:[%s197 + $0x98] sm:$0xff] %vm2058, %v2041
      %2079 = vst.msk [vmem:[%s197 + $0xa0] sm:$0xff] %vm2058, %v2042
      %2080 = vst.msk [vmem:[%s197 + $0xa8] sm:$0xff] %vm2058, %v2043
      %2081 = vst.msk [vmem:[%s197 + $0xb0] sm:$0xff] %vm2058, %v2044
      %2082 = vst.msk [vmem:[%s197 + $0xb8] sm:$0xff] %vm2058, %v2045
      %2083 = vst.msk [vmem:[%s197 + $0xc0] sm:$0xff] %vm2058, %v2046
      %2084 = vst.msk [vmem:[%s197 + $0xc8] sm:$0xff] %vm2058, %v2047
      %2085 = vst.msk [vmem:[%s197 + $0xd0] sm:$0xff] %vm2058, %v2048
      %2086 = vst.msk [vmem:[%s197 + $0xd8] sm:$0xff] %vm2058, %v2049
      %2087 = vst.msk [vmem:[%s197 + $0xe0] sm:$0xff] %vm2058, %v2050
      %2088 = vst.msk [vmem:[%s197 + $0xe8] sm:$0xff] %vm2058, %v2051
      %2089 = vst.msk [vmem:[%s197 + $0xf0] sm:$0xff] %vm2058, %v2052
      %2090 = vst.msk [vmem:[%s197 + $0xf8] sm:$0xff] %vm2058, %v2053
      %2091 = vst.msk [vmem:[%s197 + $0x100] sm:$0xff] %vm2058, %v2054
      %2092 = vst.msk [vmem:[%s197 + $0x108] sm:$0xff] %vm2058, %v2055
      %2093 = vst.msk [vmem:[%s197 + $0x110] sm:$0xff] %vm2058, %v2056
      %2094 = vst.msk [vmem:[%s197 + $0x118] sm:$0xff] %vm2058, %v2057
      %p2095 = scmp.lt.s32.totalorder %s15, 1
      %s2096 = scalar_select %p2095, %s15, 1
      %s2097 = smul.addr %s2096, 36
      %s2098 = smul.addr %s2097, 8
      %s2099 = scalar_lea.vmem %s4, %s2098
      // Predicated region
      $region37: #{rdlinet_forward.5} parent=35 // pred_check
        %p2100 = pneg %p122
      $region38: #{rdlinet_forward.5} parent=35 // pred_check_branch
        %2102 = sbr.rel (%p2100) target = $region40
      $region39: #{rdlinet_forward.5} parent=35 // pred_region
        _
      $region40: #{rdlinet_forward.5} parent=35 // pred_fallthru
        _
    $region36: #{rdlinet_forward.5} parent=5 // pred_fallthru
      _
    %p2103 = scmp.le.s32.totalorder 2, %s10
    // Predicated region
    $region41: #{rdlinet_forward.5} parent=5 // pred_check
      %p2104 = pneg %p2103
    $region42: #{rdlinet_forward.5} parent=5 // pred_check_branch
      %2106 = sbr.rel (%p2104) target = $region44
    $region43: #{rdlinet_forward.5} parent=5 // pred_region
      %s2107 = ssub.s32 %s10, 2
      // Predicated region
      $region45: #{rdlinet_forward.5} parent=43 // pred_check
        %p2108 = pneg %p128
      $region46: #{rdlinet_forward.5} parent=43 // pred_check_branch
        %2110 = sbr.rel (%p2108) target = $region48
      $region47: #{rdlinet_forward.5} parent=43 // pred_region
        %p2111 = scmp.lt.s32.totalorder %s16, 1
        %s2112 = scalar_select %p2111, %s16, 1
        %s2113 = smul.addr %s2112, 36
        %s2114 = smul.addr %s2113, 8
        %s2115 = scalar_lea.vmem %s4, %s2114
      $region48: #{rdlinet_forward.5} parent=43 // pred_fallthru
        _
    $region44: #{rdlinet_forward.5} parent=5 // pred_fallthru
      _
  $region6: #{rdlinet_forward.5} parent=0 // loop_footer
    %s14 = sadd.s32 1, %s10
  $region7: #{rdlinet_forward.5} parent=0 // loop_footer_branch
    %9 = sbr.rel target = $region3
  $region8: #{rdlinet_forward.5} parent=0 // loop_exit
    _

// kernel: rdlinet_forward.6
$region0: #{rdlinet_forward.6}
  #allocation0 [shape = 'u32[]', space=smem, size = 0x4, offset = 0x4, fixed_abs, tag = 'smem constant byte address 0x4 - core index']
  #allocation1 [shape = 'u32[144,128]{1,0:T(1,128)}', space=vmem, size = 0x12000, scoped, tag = 'internal scratch']
  %s0 = inlined_call_operand.vmem [shape: f32[2,124,16], index: 0, kind: input, shape index: {}]
  %s1 = inlined_call_operand.vmem [shape: f32[9,16], index: 1, kind: input, shape index: {}]
  %s2 = inlined_call_operand.vmem [shape: f32[1,16], index: 2, kind: input, shape index: {}]
  %s3 = inlined_call_operand.vmem [shape: f32[16,32], index: 3, kind: input, shape index: {}]
  %s4 = inlined_call_operand.vmem [shape: f32[1,32], index: 4, kind: input, shape index: {}]
  %s5 = inlined_call_operand.vmem [shape: f32[32,32], index: 5, kind: input, shape index: {}]
  %s6 = inlined_call_operand.vmem [shape: f32[1,32], index: 6, kind: input, shape index: {}]
  %s7 = inlined_call_operand.vmem [shape: f32[102,1], index: 7, kind: input, shape index: {}]
  %s8 = inlined_call_operand.vmem [shape: f32[2,80,32], index: 8, kind: output, shape index: {}]
  %s9 = sld [smem:[#allocation0]]
  $region65: #{rdlinet_forward.6} parent=0
    _
  %s11 = ssub.s32 1, %s9
  %s12 = scalar_select 0, %s11, %s9
  loop: start=0, step=1, limit=4
  $region2: #{rdlinet_forward.6} parent=0 // loop_pre_header
    _
  $region3: #{rdlinet_forward.6} parent=0 // loop_header
    %s14 = sphi 0, %s18
    %p15 = scmp.ge.s32.totalorder %s14, 4
    %s24 = sphi 0, %s26
    %s27 = sphi 0, %s24
    %s28 = sphi 0, %s27
    %s44 = sphi 0, %s28
    %s48 = sphi 0, %s48
    %s50 = sphi 0, %s48
    %s51 = sphi 0, %s50
    %s65 = sphi 0, %s51
    %s69 = sphi 0, %s69
    %s71 = sphi 0, %s69
    %s72 = sphi 0, %s71
    %s86 = sphi 0, %s72
    %s90 = sphi 0, %s90
    %s92 = sphi 0, %s90
    %s93 = sphi 0, %s92
    %s107 = sphi 0, %s93
    %s111 = sphi 0, %s111
    %s113 = sphi 0, %s111
    %s114 = sphi 0, %s113
    %s128 = sphi 0, %s114
    %s132 = sphi 0, %s132
    %s134 = sphi 0, %s132
    %s135 = sphi 0, %s134
    %s149 = sphi 0, %s135
    %s153 = sphi 0, %s153
    %s155 = sphi 0, %s153
    %s156 = sphi 0, %s155
    %s170 = sphi 0, %s156
    %s174 = sphi 0, %s174
    %s176 = sphi 0, %s174
    %s177 = sphi 0, %s176
    %s191 = sphi 0, %s177
    %s197 = sphi 0, %s199
    %s200 = sphi 0, %s197
    %s201 = sphi 0, %s200
    %s217 = sphi 0, %s201
  $region4: #{rdlinet_forward.6} parent=0 // loop_header_branch
    %17 = sbr.rel (%p15) target = $region8
  $region5: #{rdlinet_forward.6} parent=0 // loop_body
    %s19 = ssub.s32 %s14, 1
    %s20 = ssub.s32 %s14, 2
    %s21 = sadd.s32 %s14, 1
    %s22 = ssub.s32 %s14, %s21
    %p23 = scmp.eq.s32.totalorder %s22, 0
    %s25 = sadd.s32 %s24, 1
    %s26 = scalar_select %p23, %s24, %s25
    %p29 = pneg %p23
    %p30 = scmp.eq.s32.totalorder %s14, 1
    %p31 = por %p29, %p30
    %p32 = scmp.ne.s32.totalorder %s24, %s27
    %p33 = scmp.eq.s32.totalorder %s14, 0
    %p34 = por %p32, %p33
    %p35 = scmp.ne.s32.totalorder %s24, %s27
    %p36 = scmp.eq.s32.totalorder %s19, 1
    %p37 = por %p35, %p36
    %p38 = scmp.ne.s32.totalorder %s27, %s28
    %p39 = scmp.eq.s32.totalorder %s19, 0
    %p40 = por %p38, %p39
    %p41 = scmp.ne.s32.totalorder %s27, %s28
    %p42 = scmp.eq.s32.totalorder %s20, 1
    %p43 = por %p41, %p42
    %p45 = scmp.ne.s32.totalorder %s28, %s44
    %p46 = scmp.eq.s32.totalorder %s20, 0
    %p47 = por %p45, %p46
    %s49 = sadd.s32 %s48, 1
    %p52 = scmp.eq.s32.totalorder %s14, 1
    %p53 = scmp.ne.s32.totalorder %s48, %s50
    %p54 = scmp.eq.s32.totalorder %s14, 0
    %p55 = por %p53, %p54
    %p56 = scmp.ne.s32.totalorder %s48, %s50
    %p57 = scmp.eq.s32.totalorder %s19, 1
    %p58 = por %p56, %p57
    %p59 = scmp.ne.s32.totalorder %s50, %s51
    %p60 = scmp.eq.s32.totalorder %s19, 0
    %p61 = por %p59, %p60
    %p62 = scmp.ne.s32.totalorder %s50, %s51
    %p63 = scmp.eq.s32.totalorder %s20, 1
    %p64 = por %p62, %p63
    %p66 = scmp.ne.s32.totalorder %s51, %s65
    %p67 = scmp.eq.s32.totalorder %s20, 0
    %p68 = por %p66, %p67
    %s70 = sadd.s32 %s69, 1
    %p73 = scmp.eq.s32.totalorder %s14, 1
    %p74 = scmp.ne.s32.totalorder %s69, %s71
    %p75 = scmp.eq.s32.totalorder %s14, 0
    %p76 = por %p74, %p75
    %p77 = scmp.ne.s32.totalorder %s69, %s71
    %p78 = scmp.eq.s32.totalorder %s19, 1
    %p79 = por %p77, %p78
    %p80 = scmp.ne.s32.totalorder %s71, %s72
    %p81 = scmp.eq.s32.totalorder %s19, 0
    %p82 = por %p80, %p81
    %p83 = scmp.ne.s32.totalorder %s71, %s72
    %p84 = scmp.eq.s32.totalorder %s20, 1
    %p85 = por %p83, %p84
    %p87 = scmp.ne.s32.totalorder %s72, %s86
    %p88 = scmp.eq.s32.totalorder %s20, 0
    %p89 = por %p87, %p88
    %s91 = sadd.s32 %s90, 1
    %p94 = scmp.eq.s32.totalorder %s14, 1
    %p95 = scmp.ne.s32.totalorder %s90, %s92
    %p96 = scmp.eq.s32.totalorder %s14, 0
    %p97 = por %p95, %p96
    %p98 = scmp.ne.s32.totalorder %s90, %s92
    %p99 = scmp.eq.s32.totalorder %s19, 1
    %p100 = por %p98, %p99
    %p101 = scmp.ne.s32.totalorder %s92, %s93
    %p102 = scmp.eq.s32.totalorder %s19, 0
    %p103 = por %p101, %p102
    %p104 = scmp.ne.s32.totalorder %s92, %s93
    %p105 = scmp.eq.s32.totalorder %s20, 1
    %p106 = por %p104, %p105
    %p108 = scmp.ne.s32.totalorder %s93, %s107
    %p109 = scmp.eq.s32.totalorder %s20, 0
    %p110 = por %p108, %p109
    %s112 = sadd.s32 %s111, 1
    %p115 = scmp.eq.s32.totalorder %s14, 1
    %p116 = scmp.ne.s32.totalorder %s111, %s113
    %p117 = scmp.eq.s32.totalorder %s14, 0
    %p118 = por %p116, %p117
    %p119 = scmp.ne.s32.totalorder %s111, %s113
    %p120 = scmp.eq.s32.totalorder %s19, 1
    %p121 = por %p119, %p120
    %p122 = scmp.ne.s32.totalorder %s113, %s114
    %p123 = scmp.eq.s32.totalorder %s19, 0
    %p124 = por %p122, %p123
    %p125 = scmp.ne.s32.totalorder %s113, %s114
    %p126 = scmp.eq.s32.totalorder %s20, 1
    %p127 = por %p125, %p126
    %p129 = scmp.ne.s32.totalorder %s114, %s128
    %p130 = scmp.eq.s32.totalorder %s20, 0
    %p131 = por %p129, %p130
    %s133 = sadd.s32 %s132, 1
    %p136 = scmp.eq.s32.totalorder %s14, 1
    %p137 = scmp.ne.s32.totalorder %s132, %s134
    %p138 = scmp.eq.s32.totalorder %s14, 0
    %p139 = por %p137, %p138
    %p140 = scmp.ne.s32.totalorder %s132, %s134
    %p141 = scmp.eq.s32.totalorder %s19, 1
    %p142 = por %p140, %p141
    %p143 = scmp.ne.s32.totalorder %s134, %s135
    %p144 = scmp.eq.s32.totalorder %s19, 0
    %p145 = por %p143, %p144
    %p146 = scmp.ne.s32.totalorder %s134, %s135
    %p147 = scmp.eq.s32.totalorder %s20, 1
    %p148 = por %p146, %p147
    %p150 = scmp.ne.s32.totalorder %s135, %s149
    %p151 = scmp.eq.s32.totalorder %s20, 0
    %p152 = por %p150, %p151
    %s154 = sadd.s32 %s153, 1
    %p157 = scmp.eq.s32.totalorder %s14, 1
    %p158 = scmp.ne.s32.totalorder %s153, %s155
    %p159 = scmp.eq.s32.totalorder %s14, 0
    %p160 = por %p158, %p159
    %p161 = scmp.ne.s32.totalorder %s153, %s155
    %p162 = scmp.eq.s32.totalorder %s19, 1
    %p163 = por %p161, %p162
    %p164 = scmp.ne.s32.totalorder %s155, %s156
    %p165 = scmp.eq.s32.totalorder %s19, 0
    %p166 = por %p164, %p165
    %p167 = scmp.ne.s32.totalorder %s155, %s156
    %p168 = scmp.eq.s32.totalorder %s20, 1
    %p169 = por %p167, %p168
    %p171 = scmp.ne.s32.totalorder %s156, %s170
    %p172 = scmp.eq.s32.totalorder %s20, 0
    %p173 = por %p171, %p172
    %s175 = sadd.s32 %s174, 1
    %p178 = scmp.eq.s32.totalorder %s14, 1
    %p179 = scmp.ne.s32.totalorder %s174, %s176
    %p180 = scmp.eq.s32.totalorder %s14, 0
    %p181 = por %p179, %p180
    %p182 = scmp.ne.s32.totalorder %s174, %s176
    %p183 = scmp.eq.s32.totalorder %s19, 1
    %p184 = por %p182, %p183
    %p185 = scmp.ne.s32.totalorder %s176, %s177
    %p186 = scmp.eq.s32.totalorder %s19, 0
    %p187 = por %p185, %p186
    %p188 = scmp.ne.s32.totalorder %s176, %s177
    %p189 = scmp.eq.s32.totalorder %s20, 1
    %p190 = por %p188, %p189
    %p192 = scmp.ne.s32.totalorder %s177, %s191
    %p193 = scmp.eq.s32.totalorder %s20, 0
    %p194 = por %p192, %p193
    %s195 = ssub.s32 %s14, %s21
    %p196 = scmp.eq.s32.totalorder %s195, 0
    %s198 = sadd.s32 %s197, 1
    %s199 = scalar_select %p196, %s197, %s198
    %p202 = pneg %p196
    %p203 = scmp.eq.s32.totalorder %s14, 1
    %p204 = por %p202, %p203
    %p205 = scmp.ne.s32.totalorder %s197, %s200
    %p206 = scmp.eq.s32.totalorder %s14, 0
    %p207 = por %p205, %p206
    %p208 = scmp.ne.s32.totalorder %s197, %s200
    %p209 = scmp.eq.s32.totalorder %s19, 1
    %p210 = por %p208, %p209
    %p211 = scmp.ne.s32.totalorder %s200, %s201
    %p212 = scmp.eq.s32.totalorder %s19, 0
    %p213 = por %p211, %p212
    %p214 = scmp.ne.s32.totalorder %s200, %s201
    %p215 = scmp.eq.s32.totalorder %s20, 1
    %p216 = por %p214, %p215
    %p218 = scmp.ne.s32.totalorder %s201, %s217
    %p219 = scmp.eq.s32.totalorder %s20, 0
    %p220 = por %p218, %p219
    %p221 = scmp.le.s32.totalorder 1, %s14
    %p222 = scmp.lt.s32.totalorder %s14, 3
    %p223 = pnand %p221, %p222
    %p224 = pneg %p223
    // Predicated region
    $region9: #{rdlinet_forward.6} parent=5 // pred_check
      _
    $region10: #{rdlinet_forward.6} parent=5 // pred_check_branch
      %226 = sbr.rel (%p223) target = $region12
    $region11: #{rdlinet_forward.6} parent=5 // pred_region
      %s227 = ssub.s32 %s14, 1
      // Predicated region
      $region13: #{rdlinet_forward.6} parent=11 // pred_check
        %p228 = pneg %p61
      $region14: #{rdlinet_forward.6} parent=11 // pred_check_branch
        %230 = sbr.rel (%p228) target = $region16
      $region15: #{rdlinet_forward.6} parent=11 // pred_region
        _
      $region16: #{rdlinet_forward.6} parent=11 // pred_fallthru
        _
      // Predicated region
      $region17: #{rdlinet_forward.6} parent=11 // pred_check
        %p231 = pneg %p82
      $region18: #{rdlinet_forward.6} parent=11 // pred_check_branch
        %233 = sbr.rel (%p231) target = $region20
      $region19: #{rdlinet_forward.6} parent=11 // pred_region
        _
      $region20: #{rdlinet_forward.6} parent=11 // pred_fallthru
        _
      // Predicated region
      $region21: #{rdlinet_forward.6} parent=11 // pred_check
        %p234 = pneg %p103
      $region22: #{rdlinet_forward.6} parent=11 // pred_check_branch
        %236 = sbr.rel (%p234) target = $region24
      $region23: #{rdlinet_forward.6} parent=11 // pred_region
        _
      $region24: #{rdlinet_forward.6} parent=11 // pred_fallthru
        _
      // Predicated region
      $region25: #{rdlinet_forward.6} parent=11 // pred_check
        %p237 = pneg %p124
      $region26: #{rdlinet_forward.6} parent=11 // pred_check_branch
        %239 = sbr.rel (%p237) target = $region28
      $region27: #{rdlinet_forward.6} parent=11 // pred_region
        _
      $region28: #{rdlinet_forward.6} parent=11 // pred_fallthru
        _
      // Predicated region
      $region29: #{rdlinet_forward.6} parent=11 // pred_check
        %p240 = pneg %p145
      $region30: #{rdlinet_forward.6} parent=11 // pred_check_branch
        %242 = sbr.rel (%p240) target = $region32
      $region31: #{rdlinet_forward.6} parent=11 // pred_region
        _
      $region32: #{rdlinet_forward.6} parent=11 // pred_fallthru
        _
      // Predicated region
      $region33: #{rdlinet_forward.6} parent=11 // pred_check
        %p243 = pneg %p166
      $region34: #{rdlinet_forward.6} parent=11 // pred_check_branch
        %245 = sbr.rel (%p243) target = $region36
      $region35: #{rdlinet_forward.6} parent=11 // pred_region
        _
      $region36: #{rdlinet_forward.6} parent=11 // pred_fallthru
        _
      // Predicated region
      $region37: #{rdlinet_forward.6} parent=11 // pred_check
        %p246 = pneg %p187
      $region38: #{rdlinet_forward.6} parent=11 // pred_check_branch
        %248 = sbr.rel (%p246) target = $region40
      $region39: #{rdlinet_forward.6} parent=11 // pred_region
        _
      $region40: #{rdlinet_forward.6} parent=11 // pred_fallthru
        _
    $region12: #{rdlinet_forward.6} parent=5 // pred_fallthru
      _
    %p249 = scmp.lt.s32.totalorder %s14, 2
    // Predicated region
    $region41: #{rdlinet_forward.6} parent=5 // pred_check
      %p250 = pneg %p249
    $region42: #{rdlinet_forward.6} parent=5 // pred_check_branch
      %252 = sbr.rel (%p250) target = $region44
    $region43: #{rdlinet_forward.6} parent=5 // pred_region
      // Predicated region
      $region45: #{rdlinet_forward.6} parent=43 // pred_check
        %p253 = pneg %p34
      $region46: #{rdlinet_forward.6} parent=43 // pred_check_branch
        %255 = sbr.rel (%p253) target = $region48
      $region47: #{rdlinet_forward.6} parent=43 // pred_region
        %p256 = scmp.lt.s32.totalorder %s14, 1
        %s257 = scalar_select %p256, %s14, 1
        %s258 = smul.addr %s257, 16
        %s259 = smul.addr %s258, 8
        %s260 = scalar_lea.vmem %s0, %s259
      $region48: #{rdlinet_forward.6} parent=43 // pred_fallthru
        _
    $region44: #{rdlinet_forward.6} parent=5 // pred_fallthru
      _
    %p261 = scmp.le.s32.totalorder 1, %s14
    %p262 = scmp.lt.s32.totalorder %s14, 3
    %p263 = pnand %p261, %p262
    %p264 = pneg %p263
    // Predicated region
    $region49: #{rdlinet_forward.6} parent=5 // pred_check
      _
    $region50: #{rdlinet_forward.6} parent=5 // pred_check_branch
      %266 = sbr.rel (%p263) target = $region52
    $region51: #{rdlinet_forward.6} parent=5 // pred_region
      %s267 = ssub.s32 %s14, 1
      %p268 = scmp.lt.s32.totalorder %s19, 1
      %s269 = scalar_select %p268, %s19, 1
      %s270 = smul.addr %s269, 16
      %s271 = smul.addr %s270, 8
      %s272 = scalar_lea.vmem %s0, %s271
      %p273 = pneg %p40
      %p274 = pneg %p37
      %p275 = pneg %p61
      %p276 = pneg %p58
      %p277 = pneg %p82
      %p278 = pneg %p79
      %p279 = pneg %p103
      %p280 = pneg %p100
      %p281 = pneg %p124
      %p282 = pneg %p121
      %p283 = pneg %p145
      %p284 = pneg %p142
      %p285 = pneg %p166
      %p286 = pneg %p163
      %p287 = pneg %p187
      %p288 = pneg %p184
      %p289 = pneg %p213
      %p290 = pneg %p210
      %p291 = scmp.lt.s32.totalorder %s19, 1
      %s292 = scalar_select %p291, %s19, 1
      %s293 = smul.addr %s292, 10
      %s294 = smul.addr %s293, 8
      %s295 = scalar_lea.vmem %s8, %s294
      %p296 = scmp.lt.s32.totalorder %s19, 1
      %s297 = scalar_select %p296, %s19, 1
      %s298 = smul.addr %s297, 16
      %s299 = smul.addr %s298, 8
      %s300 = scalar_lea.vmem %s0, %s299
      %p301 = scmp.lt.s32.totalorder %s19, 1
      %s302 = scalar_select %p301, %s19, 1
      %s303 = smul.addr %s302, 10
      %s304 = smul.addr %s303, 8
      %s305 = scalar_lea.vmem %s8, %s304
      %v306 = vld [vmem:[%s300] sm:$0xff]
      %v307 = vld [vmem:[%s300 + $0x8] sm:$0xff]
      %v308 = vld [vmem:[%s300 + $0x10] sm:$0xff]
      %v309 = vld [vmem:[%s300 + $0x18] sm:$0xff]
      %v310 = vld [vmem:[%s300 + $0x20] sm:$0xff]
      %v311 = vld [vmem:[%s300 + $0x28] sm:$0xff]
      %v312 = vld [vmem:[%s300 + $0x30] sm:$0xff]
      %v313 = vld [vmem:[%s300 + $0x38] sm:$0xff]
      %v314 = vld [vmem:[%s300 + $0x40] sm:$0xff]
      %v315 = vld [vmem:[%s300 + $0x48] sm:$0xff]
      %v316 = vld [vmem:[%s300 + $0x50] sm:$0xff]
      %v317 = vld [vmem:[%s300 + $0x58] sm:$0xff]
      %v318 = vld [vmem:[%s300 + $0x60] sm:$0xff]
      %v319 = vld [vmem:[%s300 + $0x68] sm:$0xff]
      %v320 = vld [vmem:[%s300 + $0x70] sm:$0xff]
      %v321 = vld [vmem:[%s300 + $0x78] sm:$0xf]
      %v322 = vld [vmem:[%s1] sm:$0x1]
      %v323 = vlaneseq
      %v324 = vshrl.u32 %v323, 7
      %v325 = vsub.s32 0, %v324
      %v326 = vrot.slane %v322, %v325
      %v327 = vmul.f32 %v306, %v326
      %v328 = vmul.f32 %v307, %v326
      %v329 = vmul.f32 %v308, %v326
      %v330 = vmul.f32 %v309, %v326
      %v331 = vmul.f32 %v310, %v326
      %v332 = vmul.f32 %v311, %v326
      %v333 = vmul.f32 %v312, %v326
      %v334 = vmul.f32 %v313, %v326
      %v335 = vmul.f32 %v314, %v326
      %v336 = vmul.f32 %v315, %v326
      %v337 = vmul.f32 %v316, %v326
      %v338 = vmul.f32 %v317, %v326
      %v339 = vmul.f32 %v318, %v326
      %v340 = vld [vmem:[%s1 + $0x1] sm:$0x1]
      %v341 = vlaneseq
      %v342 = vshrl.u32 %v341, 7
      %v343 = vsub.s32 0, %v342
      %v344 = vrot.slane %v340, %v343
      %v345 = vmul.f32 %v306, %v344
      %v346 = vmul.f32 %v307, %v344
      %v347 = vmul.f32 %v308, %v344
      %v348 = vmul.f32 %v309, %v344
      %v349 = vmul.f32 %v310, %v344
      %v350 = vmul.f32 %v311, %v344
      %v351 = vmul.f32 %v312, %v344
      %v352 = vmul.f32 %v313, %v344
      %v353 = vmul.f32 %v314, %v344
      %v354 = vmul.f32 %v315, %v344
      %v355 = vmul.f32 %v316, %v344
      %v356 = vmul.f32 %v317, %v344
      %v357 = vmul.f32 %v318, %v344
      %vm371 = vcmask 1046528
      %v372 = vrot.slane %v345, 1
      %v373 = vrot.slane %v346, 1
      %v374 = vsel %vm371, %v372, %v373
      %v375 = vrot.slane %v347, 1
      %v376 = vsel %vm371, %v373, %v375
      %v377 = vrot.slane %v348, 1
      %v378 = vsel %vm371, %v375, %v377
      %v379 = vrot.slane %v349, 1
      %v380 = vsel %vm371, %v377, %v379
      %v381 = vrot.slane %v350, 1
      %v382 = vsel %vm371, %v379, %v381
      %v383 = vrot.slane %v351, 1
      %v384 = vsel %vm371, %v381, %v383
      %v385 = vrot.slane %v352, 1
      %v386 = vsel %vm371, %v383, %v385
      %v387 = vrot.slane %v353, 1
      %v388 = vsel %vm371, %v385, %v387
      %v389 = vrot.slane %v354, 1
      %v390 = vsel %vm371, %v387, %v389
      %v391 = vrot.slane %v355, 1
      %v392 = vsel %vm371, %v389, %v391
      %v393 = vrot.slane %v356, 1
      %v394 = vsel %vm371, %v391, %v393
      %v395 = vrot.slane %v357, 1
      %v396 = vsel %vm371, %v393, %v395
      %v410 = vadd.f32 %v327, %v374
      %v411 = vadd.f32 %v328, %v376
      %v412 = vadd.f32 %v329, %v378
      %v413 = vadd.f32 %v330, %v380
      %v414 = vadd.f32 %v331, %v382
      %v415 = vadd.f32 %v332, %v384
      %v416 = vadd.f32 %v333, %v386
      %v417 = vadd.f32 %v334, %v388
      %v418 = vadd.f32 %v335, %v390
      %v419 = vadd.f32 %v336, %v392
      %v420 = vadd.f32 %v337, %v394
      %v421 = vadd.f32 %v338, %v396
      %v422 = vadd.f32 %v339, %v395
      %v423 = vld [vmem:[%s1 + $0x2] sm:$0x1]
      %v424 = vlaneseq
      %v425 = vshrl.u32 %v424, 7
      %v426 = vsub.s32 0, %v425
      %v427 = vrot.slane %v423, %v426
      %v428 = vmul.f32 %v306, %v427
      %v429 = vmul.f32 %v307, %v427
      %v430 = vmul.f32 %v308, %v427
      %v431 = vmul.f32 %v309, %v427
      %v432 = vmul.f32 %v310, %v427
      %v433 = vmul.f32 %v311, %v427
      %v434 = vmul.f32 %v312, %v427
      %v435 = vmul.f32 %v313, %v427
      %v436 = vmul.f32 %v314, %v427
      %v437 = vmul.f32 %v315, %v427
      %v438 = vmul.f32 %v316, %v427
      %v439 = vmul.f32 %v317, %v427
      %v440 = vmul.f32 %v318, %v427
      %vm454 = vcmask 1045504
      %v455 = vrot.slane %v428, 2
      %v456 = vrot.slane %v429, 2
      %v457 = vsel %vm454, %v455, %v456
      %v458 = vrot.slane %v430, 2
      %v459 = vsel %vm454, %v456, %v458
      %v460 = vrot.slane %v431, 2
      %v461 = vsel %vm454, %v458, %v460
      %v462 = vrot.slane %v432, 2
      %v463 = vsel %vm454, %v460, %v462
      %v464 = vrot.slane %v433, 2
      %v465 = vsel %vm454, %v462, %v464
      %v466 = vrot.slane %v434, 2
      %v467 = vsel %vm454, %v464, %v466
      %v468 = vrot.slane %v435, 2
      %v469 = vsel %vm454, %v466, %v468
      %v470 = vrot.slane %v436, 2
      %v471 = vsel %vm454, %v468, %v470
      %v472 = vrot.slane %v437, 2
      %v473 = vsel %vm454, %v470, %v472
      %v474 = vrot.slane %v438, 2
      %v475 = vsel %vm454, %v472, %v474
      %v476 = vrot.slane %v439, 2
      %v477 = vsel %vm454, %v474, %v476
      %v478 = vrot.slane %v440, 2
      %v479 = vsel %vm454, %v476, %v478
      %v493 = vadd.f32 %v410, %v457
      %v494 = vadd.f32 %v411, %v459
      %v495 = vadd.f32 %v412, %v461
      %v496 = vadd.f32 %v413, %v463
      %v497 = vadd.f32 %v414, %v465
      %v498 = vadd.f32 %v415, %v467
      %v499 = vadd.f32 %v416, %v469
      %v500 = vadd.f32 %v417, %v471
      %v501 = vadd.f32 %v418, %v473
      %v502 = vadd.f32 %v419, %v475
      %v503 = vadd.f32 %v420, %v477
      %v504 = vadd.f32 %v421, %v479
      %v505 = vadd.f32 %v422, %v478
      %v506 = vld [vmem:[%s1 + $0x3] sm:$0x1]
      %v507 = vlaneseq
      %v508 = vshrl.u32 %v507, 7
      %v509 = vsub.s32 0, %v508
      %v510 = vrot.slane %v506, %v509
      %v511 = vmul.f32 %v307, %v510
      %v512 = vmul.f32 %v308, %v510
      %v513 = vmul.f32 %v309, %v510
      %v514 = vmul.f32 %v310, %v510
      %v515 = vmul.f32 %v311, %v510
      %v516 = vmul.f32 %v312, %v510
      %v517 = vmul.f32 %v313, %v510
      %v518 = vmul.f32 %v314, %v510
      %v519 = vmul.f32 %v315, %v510
      %v520 = vmul.f32 %v316, %v510
      %v521 = vmul.f32 %v317, %v510
      %v522 = vmul.f32 %v318, %v510
      %v523 = vmul.f32 %v319, %v510
      %v537 = vrot.slane %v511, 2
      %v538 = vrot.slane %v512, 2
      %v539 = vsel %vm454, %v537, %v538
      %v540 = vrot.slane %v513, 2
      %v541 = vsel %vm454, %v538, %v540
      %v542 = vrot.slane %v514, 2
      %v543 = vsel %vm454, %v540, %v542
      %v544 = vrot.slane %v515, 2
      %v545 = vsel %vm454, %v542, %v544
      %v546 = vrot.slane %v516, 2
      %v547 = vsel %vm454, %v544, %v546
      %v548 = vrot.slane %v517, 2
      %v549 = vsel %vm454, %v546, %v548
      %v550 = vrot.slane %v518, 2
      %v551 = vsel %vm454, %v548, %v550
      %v552 = vrot.slane %v519, 2
      %v553 = vsel %vm454, %v550, %v552
      %v554 = vrot.slane %v520, 2
      %v555 = vsel %vm454, %v552, %v554
      %v556 = vrot.slane %v521, 2
      %v557 = vsel %vm454, %v554, %v556
      %v558 = vrot.slane %v522, 2
      %v559 = vsel %vm454, %v556, %v558
      %v560 = vrot.slane %v523, 2
      %v561 = vsel %vm454, %v558, %v560
      %v575 = vadd.f32 %v493, %v539
      %v576 = vadd.f32 %v494, %v541
      %v577 = vadd.f32 %v495, %v543
      %v578 = vadd.f32 %v496, %v545
      %v579 = vadd.f32 %v497, %v547
      %v580 = vadd.f32 %v498, %v549
      %v581 = vadd.f32 %v499, %v551
      %v582 = vadd.f32 %v500, %v553
      %v583 = vadd.f32 %v501, %v555
      %v584 = vadd.f32 %v502, %v557
      %v585 = vadd.f32 %v503, %v559
      %v586 = vadd.f32 %v504, %v561
      %v587 = vadd.f32 %v505, %v560
      %v588 = vld [vmem:[%s1 + $0x4] sm:$0x1]
      %v589 = vlaneseq
      %v590 = vshrl.u32 %v589, 7
      %v591 = vsub.s32 0, %v590
      %v592 = vrot.slane %v588, %v591
      %v593 = vmul.f32 %v307, %v592
      %v594 = vmul.f32 %v308, %v592
      %v595 = vmul.f32 %v309, %v592
      %v596 = vmul.f32 %v310, %v592
      %v597 = vmul.f32 %v311, %v592
      %v598 = vmul.f32 %v312, %v592
      %v599 = vmul.f32 %v313, %v592
      %v600 = vmul.f32 %v314, %v592
      %v601 = vmul.f32 %v315, %v592
      %v602 = vmul.f32 %v316, %v592
      %v603 = vmul.f32 %v317, %v592
      %v604 = vmul.f32 %v318, %v592
      %v605 = vmul.f32 %v319, %v592
      %v606 = vmul.f32 %v320, %v592
      %vm621 = vcmask 1044480
      %v622 = vrot.slane %v593, 3
      %v623 = vrot.slane %v594, 3
      %v624 = vsel %vm621, %v622, %v623
      %v625 = vrot.slane %v595, 3
      %v626 = vsel %vm621, %v623, %v625
      %v627 = vrot.slane %v596, 3
      %v628 = vsel %vm621, %v625, %v627
      %v629 = vrot.slane %v597, 3
      %v630 = vsel %vm621, %v627, %v629
      %v631 = vrot.slane %v598, 3
      %v632 = vsel %vm621, %v629, %v631
      %v633 = vrot.slane %v599, 3
      %v634 = vsel %vm621, %v631, %v633
      %v635 = vrot.slane %v600, 3
      %v636 = vsel %vm621, %v633, %v635
      %v637 = vrot.slane %v601, 3
      %v638 = vsel %vm621, %v635, %v637
      %v639 = vrot.slane %v602, 3
      %v640 = vsel %vm621, %v637, %v639
      %v641 = vrot.slane %v603, 3
      %v642 = vsel %vm621, %v639, %v641
      %v643 = vrot.slane %v604, 3
      %v644 = vsel %vm621, %v641, %v643
      %v645 = vrot.slane %v605, 3
      %v646 = vsel %vm621, %v643, %v645
      %v647 = vrot.slane %v606, 3
      %v648 = vsel %vm621, %v645, %v647
      %v662 = vadd.f32 %v575, %v624
      %v663 = vadd.f32 %v576, %v626
      %v664 = vadd.f32 %v577, %v628
      %v665 = vadd.f32 %v578, %v630
      %v666 = vadd.f32 %v579, %v632
      %v667 = vadd.f32 %v580, %v634
      %v668 = vadd.f32 %v581, %v636
      %v669 = vadd.f32 %v582, %v638
      %v670 = vadd.f32 %v583, %v640
      %v671 = vadd.f32 %v584, %v642
      %v672 = vadd.f32 %v585, %v644
      %v673 = vadd.f32 %v586, %v646
      %v674 = vadd.f32 %v587, %v648
      %v675 = vld [vmem:[%s1 + $0x5] sm:$0x1]
      %v676 = vlaneseq
      %v677 = vshrl.u32 %v676, 7
      %v678 = vsub.s32 0, %v677
      %v679 = vrot.slane %v675, %v678
      %v680 = vmul.f32 %v307, %v679
      %v681 = vmul.f32 %v308, %v679
      %v682 = vmul.f32 %v309, %v679
      %v683 = vmul.f32 %v310, %v679
      %v684 = vmul.f32 %v311, %v679
      %v685 = vmul.f32 %v312, %v679
      %v686 = vmul.f32 %v313, %v679
      %v687 = vmul.f32 %v314, %v679
      %v688 = vmul.f32 %v315, %v679
      %v689 = vmul.f32 %v316, %v679
      %v690 = vmul.f32 %v317, %v679
      %v691 = vmul.f32 %v318, %v679
      %v692 = vmul.f32 %v319, %v679
      %v693 = vmul.f32 %v320, %v679
      %vm708 = vcmask 1043456
      %v709 = vrot.slane %v680, 4
      %v710 = vrot.slane %v681, 4
      %v711 = vsel %vm708, %v709, %v710
      %v712 = vrot.slane %v682, 4
      %v713 = vsel %vm708, %v710, %v712
      %v714 = vrot.slane %v683, 4
      %v715 = vsel %vm708, %v712, %v714
      %v716 = vrot.slane %v684, 4
      %v717 = vsel %vm708, %v714, %v716
      %v718 = vrot.slane %v685, 4
      %v719 = vsel %vm708, %v716, %v718
      %v720 = vrot.slane %v686, 4
      %v721 = vsel %vm708, %v718, %v720
      %v722 = vrot.slane %v687, 4
      %v723 = vsel %vm708, %v720, %v722
      %v724 = vrot.slane %v688, 4
      %v725 = vsel %vm708, %v722, %v724
      %v726 = vrot.slane %v689, 4
      %v727 = vsel %vm708, %v724, %v726
      %v728 = vrot.slane %v690, 4
      %v729 = vsel %vm708, %v726, %v728
      %v730 = vrot.slane %v691, 4
      %v731 = vsel %vm708, %v728, %v730
      %v732 = vrot.slane %v692, 4
      %v733 = vsel %vm708, %v730, %v732
      %v734 = vrot.slane %v693, 4
      %v735 = vsel %vm708, %v732, %v734
      %v749 = vadd.f32 %v662, %v711
      %v750 = vadd.f32 %v663, %v713
      %v751 = vadd.f32 %v664, %v715
      %v752 = vadd.f32 %v665, %v717
      %v753 = vadd.f32 %v666, %v719
      %v754 = vadd.f32 %v667, %v721
      %v755 = vadd.f32 %v668, %v723
      %v756 = vadd.f32 %v669, %v725
      %v757 = vadd.f32 %v670, %v727
      %v758 = vadd.f32 %v671, %v729
      %v759 = vadd.f32 %v672, %v731
      %v760 = vadd.f32 %v673, %v733
      %v761 = vadd.f32 %v674, %v735
      %v762 = vld [vmem:[%s1 + $0x6] sm:$0x1]
      %v763 = vlaneseq
      %v764 = vshrl.u32 %v763, 7
      %v765 = vsub.s32 0, %v764
      %v766 = vrot.slane %v762, %v765
      %v767 = vmul.f32 %v308, %v766
      %v768 = vmul.f32 %v309, %v766
      %v769 = vmul.f32 %v310, %v766
      %v770 = vmul.f32 %v311, %v766
      %v771 = vmul.f32 %v312, %v766
      %v772 = vmul.f32 %v313, %v766
      %v773 = vmul.f32 %v314, %v766
      %v774 = vmul.f32 %v315, %v766
      %v775 = vmul.f32 %v316, %v766
      %v776 = vmul.f32 %v317, %v766
      %v777 = vmul.f32 %v318, %v766
      %v778 = vmul.f32 %v319, %v766
      %v779 = vmul.f32 %v320, %v766
      %v780 = vmul.f32 %v321, %v766
      %v795 = vrot.slane %v767, 4
      %v796 = vrot.slane %v768, 4
      %v797 = vsel %vm708, %v795, %v796
      %v798 = vrot.slane %v769, 4
      %v799 = vsel %vm708, %v796, %v798
      %v800 = vrot.slane %v770, 4
      %v801 = vsel %vm708, %v798, %v800
      %v802 = vrot.slane %v771, 4
      %v803 = vsel %vm708, %v800, %v802
      %v804 = vrot.slane %v772, 4
      %v805 = vsel %vm708, %v802, %v804
      %v806 = vrot.slane %v773, 4
      %v807 = vsel %vm708, %v804, %v806
      %v808 = vrot.slane %v774, 4
      %v809 = vsel %vm708, %v806, %v808
      %v810 = vrot.slane %v775, 4
      %v811 = vsel %vm708, %v808, %v810
      %v812 = vrot.slane %v776, 4
      %v813 = vsel %vm708, %v810, %v812
      %v814 = vrot.slane %v777, 4
      %v815 = vsel %vm708, %v812, %v814
      %v816 = vrot.slane %v778, 4
      %v817 = vsel %vm708, %v814, %v816
      %v818 = vrot.slane %v779, 4
      %v819 = vsel %vm708, %v816, %v818
      %v820 = vrot.slane %v780, 4
      %v821 = vsel %vm708, %v818, %v820
      %v835 = vadd.f32 %v749, %v797
      %v836 = vadd.f32 %v750, %v799
      %v837 = vadd.f32 %v751, %v801
      %v838 = vadd.f32 %v752, %v803
      %v839 = vadd.f32 %v753, %v805
      %v840 = vadd.f32 %v754, %v807
      %v841 = vadd.f32 %v755, %v809
      %v842 = vadd.f32 %v756, %v811
      %v843 = vadd.f32 %v757, %v813
      %v844 = vadd.f32 %v758, %v815
      %v845 = vadd.f32 %v759, %v817
      %v846 = vadd.f32 %v760, %v819
      %v847 = vadd.f32 %v761, %v821
      %v848 = vld [vmem:[%s1 + $0x7] sm:$0x1]
      %v849 = vlaneseq
      %v850 = vshrl.u32 %v849, 7
      %v851 = vsub.s32 0, %v850
      %v852 = vrot.slane %v848, %v851
      %v853 = vmul.f32 %v308, %v852
      %v854 = vmul.f32 %v309, %v852
      %v855 = vmul.f32 %v310, %v852
      %v856 = vmul.f32 %v311, %v852
      %v857 = vmul.f32 %v312, %v852
      %v858 = vmul.f32 %v313, %v852
      %v859 = vmul.f32 %v314, %v852
      %v860 = vmul.f32 %v315, %v852
      %v861 = vmul.f32 %v316, %v852
      %v862 = vmul.f32 %v317, %v852
      %v863 = vmul.f32 %v318, %v852
      %v864 = vmul.f32 %v319, %v852
      %v865 = vmul.f32 %v320, %v852
      %v866 = vmul.f32 %v321, %v852
      %vm881 = vcmask 1042432
      %v882 = vrot.slane %v853, 5
      %v883 = vrot.slane %v854, 5
      %v884 = vsel %vm881, %v882, %v883
      %v885 = vrot.slane %v855, 5
      %v886 = vsel %vm881, %v883, %v885
      %v887 = vrot.slane %v856, 5
      %v888 = vsel %vm881, %v885, %v887
      %v889 = vrot.slane %v857, 5
      %v890 = vsel %vm881, %v887, %v889
      %v891 = vrot.slane %v858, 5
      %v892 = vsel %vm881, %v889, %v891
      %v893 = vrot.slane %v859, 5
      %v894 = vsel %vm881, %v891, %v893
      %v895 = vrot.slane %v860, 5
      %v896 = vsel %vm881, %v893, %v895
      %v897 = vrot.slane %v861, 5
      %v898 = vsel %vm881, %v895, %v897
      %v899 = vrot.slane %v862, 5
      %v900 = vsel %vm881, %v897, %v899
      %v901 = vrot.slane %v863, 5
      %v902 = vsel %vm881, %v899, %v901
      %v903 = vrot.slane %v864, 5
      %v904 = vsel %vm881, %v901, %v903
      %v905 = vrot.slane %v865, 5
      %v906 = vsel %vm881, %v903, %v905
      %v907 = vrot.slane %v866, 5
      %v908 = vsel %vm881, %v905, %v907
      %v922 = vadd.f32 %v835, %v884
      %v923 = vadd.f32 %v836, %v886
      %v924 = vadd.f32 %v837, %v888
      %v925 = vadd.f32 %v838, %v890
      %v926 = vadd.f32 %v839, %v892
      %v927 = vadd.f32 %v840, %v894
      %v928 = vadd.f32 %v841, %v896
      %v929 = vadd.f32 %v842, %v898
      %v930 = vadd.f32 %v843, %v900
      %v931 = vadd.f32 %v844, %v902
      %v932 = vadd.f32 %v845, %v904
      %v933 = vadd.f32 %v846, %v906
      %v934 = vadd.f32 %v847, %v908
      %v935 = vld [vmem:[%s1 + $0x8] sm:$0x1]
      %v936 = vlaneseq
      %v937 = vshrl.u32 %v936, 7
      %v938 = vsub.s32 0, %v937
      %v939 = vrot.slane %v935, %v938
      %v940 = vmul.f32 %v308, %v939
      %v941 = vmul.f32 %v309, %v939
      %v942 = vmul.f32 %v310, %v939
      %v943 = vmul.f32 %v311, %v939
      %v944 = vmul.f32 %v312, %v939
      %v945 = vmul.f32 %v313, %v939
      %v946 = vmul.f32 %v314, %v939
      %v947 = vmul.f32 %v315, %v939
      %v948 = vmul.f32 %v316, %v939
      %v949 = vmul.f32 %v317, %v939
      %v950 = vmul.f32 %v318, %v939
      %v951 = vmul.f32 %v319, %v939
      %v952 = vmul.f32 %v320, %v939
      %v953 = vmul.f32 %v321, %v939
      %vm968 = vcmask 1041408
      %v969 = vrot.slane %v940, 6
      %v970 = vrot.slane %v941, 6
      %v971 = vsel %vm968, %v969, %v970
      %v972 = vrot.slane %v942, 6
      %v973 = vsel %vm968, %v970, %v972
      %v974 = vrot.slane %v943, 6
      %v975 = vsel %vm968, %v972, %v974
      %v976 = vrot.slane %v944, 6
      %v977 = vsel %vm968, %v974, %v976
      %v978 = vrot.slane %v945, 6
      %v979 = vsel %vm968, %v976, %v978
      %v980 = vrot.slane %v946, 6
      %v981 = vsel %vm968, %v978, %v980
      %v982 = vrot.slane %v947, 6
      %v983 = vsel %vm968, %v980, %v982
      %v984 = vrot.slane %v948, 6
      %v985 = vsel %vm968, %v982, %v984
      %v986 = vrot.slane %v949, 6
      %v987 = vsel %vm968, %v984, %v986
      %v988 = vrot.slane %v950, 6
      %v989 = vsel %vm968, %v986, %v988
      %v990 = vrot.slane %v951, 6
      %v991 = vsel %vm968, %v988, %v990
      %v992 = vrot.slane %v952, 6
      %v993 = vsel %vm968, %v990, %v992
      %v994 = vrot.slane %v953, 6
      %v995 = vsel %vm968, %v992, %v994
      %v1009 = vadd.f32 %v922, %v971
      %v1010 = vadd.f32 %v923, %v973
      %v1011 = vadd.f32 %v924, %v975
      %v1012 = vadd.f32 %v925, %v977
      %v1013 = vadd.f32 %v926, %v979
      %v1014 = vadd.f32 %v927, %v981
      %v1015 = vadd.f32 %v928, %v983
      %v1016 = vadd.f32 %v929, %v985
      %v1017 = vadd.f32 %v930, %v987
      %v1018 = vadd.f32 %v931, %v989
      %v1019 = vadd.f32 %v932, %v991
      %v1020 = vadd.f32 %v933, %v993
      %v1021 = vadd.f32 %v934, %v995
      %v1022 = vld [vmem:[%s2] sm:$0x1]
      %v1024 = vlaneseq
      %v1025 = vshrl.u32 %v1024, 7
      %v1026 = vsub.s32 0, %v1025
      %v1027 = vrot.slane %v1022, %v1026
      %v1029 = vadd.f32 %v1009, %v1027
      %v1030 = vadd.f32 %v1010, %v1027
      %v1031 = vadd.f32 %v1011, %v1027
      %v1032 = vadd.f32 %v1012, %v1027
      %v1033 = vadd.f32 %v1013, %v1027
      %v1034 = vadd.f32 %v1014, %v1027
      %v1035 = vadd.f32 %v1015, %v1027
      %v1036 = vadd.f32 %v1016, %v1027
      %v1037 = vadd.f32 %v1017, %v1027
      %v1038 = vadd.f32 %v1018, %v1027
      %v1039 = vadd.f32 %v1019, %v1027
      %v1040 = vadd.f32 %v1020, %v1027
      %v1041 = vadd.f32 %v1021, %v1027
      %v1042 = vld [vmem:[%s3] sm:$0xff]
      %v1043 = vld [vmem:[%s3 + $0x8] sm:$0xff]
      %v1044 = vld [vmem:[%s4] sm:$0x1]
      %v1046 = vlaneseq
      %v1047 = vshrl.u32 %v1046, 7
      %v1048 = vsub.s32 0, %v1047
      %v1049 = vrot.slane %v1044, %v1048
      %vm1051 = vcmask 130048
      %v1053 = vsel %vm1051, %v1029, 0
      %v1056 = vsel %vm1051, %v1030, 0
      %v1059 = vsel %vm1051, %v1031, 0
      %v1062 = vsel %vm1051, %v1032, 0
      %v1065 = vsel %vm1051, %v1033, 0
      %v1068 = vsel %vm1051, %v1034, 0
      %v1071 = vsel %vm1051, %v1035, 0
      %v1074 = vsel %vm1051, %v1036, 0
      %v1077 = vsel %vm1051, %v1037, 0
      %v1080 = vsel %vm1051, %v1038, 0
      %v1083 = vsel %vm1051, %v1039, 0
      %v1086 = vsel %vm1051, %v1040, 0
      %v1089 = vsel %vm1051, %v1041, 0
      %1091 = vmatprep.subr.mxu0 0.0
      %1092 = vmatpush1.msra.mxu0 0.0
      %1093 = vmatprep.subr.mxu0 0.0
      %1094 = vmatpush1.msra.mxu0 0.0
      %1095 = vmatprep.subr.mxu0 0.0
      %1096 = vmatpush1.msra.mxu0 0.0
      %1097 = vmatprep.subr.mxu0 0.0
      %1098 = vmatpush1.msra.mxu0 0.0
      %1099 = vmatprep.subr.mxu0 0.0
      %1100 = vmatpush1.msra.mxu0 0.0
      %1101 = vmatprep.subr.mxu0 0.0
      %1102 = vmatpush1.msra.mxu0 0.0
      %1103 = vmatprep.subr.mxu0 0.0
      %1104 = vmatpush1.msra.mxu0 0.0
      %1105 = vmatprep.subr.mxu0 0.0
      %1106 = vmatpush1.msra.mxu0 0.0
      %1107 = vmatprep.subr.mxu0 0.0
      %1108 = vmatpush1.msra.mxu0 0.0
      %1109 = vmatprep.subr.mxu0 0.0
      %1110 = vmatpush1.msra.mxu0 0.0
      %1111 = vmatprep.subr.mxu0 0.0
      %1112 = vmatpush1.msra.mxu0 0.0
      %1113 = vmatprep.subr.mxu0 0.0
      %1114 = vmatpush1.msra.mxu0 0.0
      %1115 = vmatprep.subr.mxu0 0.0
      %1116 = vmatpush1.msra.mxu0 0.0
      %1117 = vmatprep.subr.mxu0 0.0
      %1118 = vmatpush1.msra.mxu0 0.0
      %1119 = vmatprep.subr.mxu0 0.0
      %1120 = vmatpush1.msra.mxu0 %v1043
      %1121 = vmatprep.subr.mxu0 0.0
      %1122 = vmatpush1.msra.mxu0 %v1042
      %1123 = vmatprep.subr.mxu0 0.0
      %1124 = vmatpush2.msra.mxu0 0.0
      %1125 = vmatprep.subr.mxu0 0.0
      %1126 = vmatpush2.msra.mxu0 0.0
      %1127 = vmatprep.subr.mxu0 0.0
      %1128 = vmatpush2.msra.mxu0 0.0
      %1129 = vmatprep.subr.mxu0 0.0
      %1130 = vmatpush2.msra.mxu0 0.0
      %1131 = vmatprep.subr.mxu0 0.0
      %1132 = vmatpush2.msra.mxu0 0.0
      %1133 = vmatprep.subr.mxu0 0.0
      %1134 = vmatpush2.msra.mxu0 0.0
      %1135 = vmatprep.subr.mxu0 0.0
      %1136 = vmatpush2.msra.mxu0 0.0
      %1137 = vmatprep.subr.mxu0 0.0
      %1138 = vmatpush2.msra.mxu0 0.0
      %1139 = vmatprep.subr.mxu0 0.0
      %1140 = vmatpush2.msra.mxu0 0.0
      %1141 = vmatprep.subr.mxu0 0.0
      %1142 = vmatpush2.msra.mxu0 0.0
      %1143 = vmatprep.subr.mxu0 0.0
      %1144 = vmatpush2.msra.mxu0 0.0
      %1145 = vmatprep.subr.mxu0 0.0
      %1146 = vmatpush2.msra.mxu0 0.0
      %1147 = vmatprep.subr.mxu0 0.0
      %1148 = vmatpush2.msra.mxu0 0.0
      %1149 = vmatprep.subr.mxu0 0.0
      %1150 = vmatpush2.msra.mxu0 0.0
      %1151 = vmatprep.subr.mxu0 0.0
      %1152 = vmatpush2.msra.mxu0 0.0
      %1153 = vmatprep.subr.mxu0 0.0
      %1154 = vmatpush2.msra.mxu0 0.0
      %1155 = vmatprep.mubr.f32.mxu0 0.0
      %1156 = vmatmul.mubr.f32.gmra.mxu0 %v1053
      %v1157 = vpop.f32.mrf.mxu0
      %v1158 = vadd.f32 %v1049, %v1157
      %v1159 = vpop.f32.mrf.mxu0
      %1160 = vmatprep.mubr.f32.mxu0 0.0
      %1161 = vmatmul.mubr.f32.gmra.mxu0 %v1056
      %v1162 = vpop.f32.mrf.mxu0
      %v1163 = vadd.f32 %v1049, %v1162
      %v1164 = vpop.f32.mrf.mxu0
      %1165 = vmatprep.mubr.f32.mxu0 0.0
      %1166 = vmatmul.mubr.f32.gmra.mxu0 %v1059
      %v1167 = vpop.f32.mrf.mxu0
      %v1168 = vadd.f32 %v1049, %v1167
      %v1169 = vpop.f32.mrf.mxu0
      %1170 = vmatprep.mubr.f32.mxu0 0.0
      %1171 = vmatmul.mubr.f32.gmra.mxu0 %v1062
      %v1172 = vpop.f32.mrf.mxu0
      %v1173 = vadd.f32 %v1049, %v1172
      %v1174 = vpop.f32.mrf.mxu0
      %1175 = vmatprep.mubr.f32.mxu0 0.0
      %1176 = vmatmul.mubr.f32.gmra.mxu0 %v1065
      %v1177 = vpop.f32.mrf.mxu0
      %v1178 = vadd.f32 %v1049, %v1177
      %v1179 = vpop.f32.mrf.mxu0
      %1180 = vmatprep.mubr.f32.mxu0 0.0
      %1181 = vmatmul.mubr.f32.gmra.mxu0 %v1068
      %v1182 = vpop.f32.mrf.mxu0
      %v1183 = vadd.f32 %v1049, %v1182
      %v1184 = vpop.f32.mrf.mxu0
      %1185 = vmatprep.mubr.f32.mxu0 0.0
      %1186 = vmatmul.mubr.f32.gmra.mxu0 %v1071
      %v1187 = vpop.f32.mrf.mxu0
      %v1188 = vadd.f32 %v1049, %v1187
      %v1189 = vpop.f32.mrf.mxu0
      %1190 = vmatprep.mubr.f32.mxu0 0.0
      %1191 = vmatmul.mubr.f32.gmra.mxu0 %v1074
      %v1192 = vpop.f32.mrf.mxu0
      %v1193 = vadd.f32 %v1049, %v1192
      %v1194 = vpop.f32.mrf.mxu0
      %1195 = vmatprep.mubr.f32.mxu0 0.0
      %1196 = vmatmul.mubr.f32.gmra.mxu0 %v1077
      %v1197 = vpop.f32.mrf.mxu0
      %v1198 = vadd.f32 %v1049, %v1197
      %v1199 = vpop.f32.mrf.mxu0
      %1200 = vmatprep.mubr.f32.mxu0 0.0
      %1201 = vmatmul.mubr.f32.gmra.mxu0 %v1080
      %v1202 = vpop.f32.mrf.mxu0
      %v1203 = vadd.f32 %v1049, %v1202
      %v1204 = vpop.f32.mrf.mxu0
      %1205 = vmatprep.mubr.f32.mxu0 0.0
      %1206 = vmatmul.mubr.f32.gmra.mxu0 %v1083
      %v1207 = vpop.f32.mrf.mxu0
      %v1208 = vadd.f32 %v1049, %v1207
      %v1209 = vpop.f32.mrf.mxu0
      %1210 = vmatprep.mubr.f32.mxu0 0.0
      %1211 = vmatmul.mubr.f32.gmra.mxu0 %v1086
      %v1212 = vpop.f32.mrf.mxu0
      %v1213 = vadd.f32 %v1049, %v1212
      %v1214 = vpop.f32.mrf.mxu0
      %1215 = vmatprep.mubr.f32.mxu0 0.0
      %1216 = vmatmul.mubr.f32.gmra.mxu0 %v1089
      %v1217 = vpop.f32.mrf.mxu0
      %v1218 = vadd.f32 %v1049, %v1217
      %v1219 = vpop.f32.mrf.mxu0
      %1220 = vdwg.mxu0
      %vm1221 = vcmp.gt.f32.partialorder %v1158, 0.0
      %vm1222 = vcmp.gt.f32.partialorder %v1163, 0.0
      %vm1223 = vcmp.gt.f32.partialorder %v1168, 0.0
      %vm1224 = vcmp.gt.f32.partialorder %v1173, 0.0
      %vm1225 = vcmp.gt.f32.partialorder %v1178, 0.0
      %vm1226 = vcmp.gt.f32.partialorder %v1183, 0.0
      %vm1227 = vcmp.gt.f32.partialorder %v1188, 0.0
      %vm1228 = vcmp.gt.f32.partialorder %v1193, 0.0
      %vm1229 = vcmp.gt.f32.partialorder %v1198, 0.0
      %vm1230 = vcmp.gt.f32.partialorder %v1203, 0.0
      %vm1231 = vcmp.gt.f32.partialorder %v1208, 0.0
      %vm1232 = vcmp.gt.f32.partialorder %v1213, 0.0
      %vm1233 = vcmp.gt.f32.partialorder %v1218, 0.0
      %v1234 = vmul.f32 %v1158, 0.3
      %v1235 = vmul.f32 %v1163, 0.3
      %v1236 = vmul.f32 %v1168, 0.3
      %v1237 = vmul.f32 %v1173, 0.3
      %v1238 = vmul.f32 %v1178, 0.3
      %v1239 = vmul.f32 %v1183, 0.3
      %v1240 = vmul.f32 %v1188, 0.3
      %v1241 = vmul.f32 %v1193, 0.3
      %v1242 = vmul.f32 %v1198, 0.3
      %v1243 = vmul.f32 %v1203, 0.3
      %v1244 = vmul.f32 %v1208, 0.3
      %v1245 = vmul.f32 %v1213, 0.3
      %v1246 = vmul.f32 %v1218, 0.3
      %v1247 = vsel %vm1221, %v1158, %v1234
      %v1248 = vsel %vm1222, %v1163, %v1235
      %v1249 = vsel %vm1223, %v1168, %v1236
      %v1250 = vsel %vm1224, %v1173, %v1237
      %v1251 = vsel %vm1225, %v1178, %v1238
      %v1252 = vsel %vm1226, %v1183, %v1239
      %v1253 = vsel %vm1227, %v1188, %v1240
      %v1254 = vsel %vm1228, %v1193, %v1241
      %v1255 = vsel %vm1229, %v1198, %v1242
      %v1256 = vsel %vm1230, %v1203, %v1243
      %v1257 = vsel %vm1231, %v1208, %v1244
      %v1258 = vsel %vm1232, %v1213, %v1245
      %v1259 = vsel %vm1233, %v1218, %v1246
      %v1260 = vld [vmem:[%s5] sm:$0xff]
      %v1261 = vld [vmem:[%s5 + $0x8] sm:$0xff]
      %v1262 = vld [vmem:[%s5 + $0x10] sm:$0xff]
      %v1263 = vld [vmem:[%s5 + $0x18] sm:$0xff]
      %v1264 = vld [vmem:[%s6] sm:$0x1]
      %v1266 = vlaneseq
      %v1267 = vshrl.u32 %v1266, 7
      %v1268 = vsub.s32 0, %v1267
      %v1269 = vrot.slane %v1264, %v1268
      %vm1271 = vcmask 261120
      %v1273 = vsel %vm1271, %v1247, 0
      %v1276 = vsel %vm1271, %v1248, 0
      %v1279 = vsel %vm1271, %v1249, 0
      %v1282 = vsel %vm1271, %v1250, 0
      %v1285 = vsel %vm1271, %v1251, 0
      %v1288 = vsel %vm1271, %v1252, 0
      %v1291 = vsel %vm1271, %v1253, 0
      %v1294 = vsel %vm1271, %v1254, 0
      %v1297 = vsel %vm1271, %v1255, 0
      %v1300 = vsel %vm1271, %v1256, 0
      %v1303 = vsel %vm1271, %v1257, 0
      %v1306 = vsel %vm1271, %v1258, 0
      %v1309 = vsel %vm1271, %v1259, 0
      %1311 = vmatprep.subr.mxu0 0.0
      %1312 = vmatpush1.msra.mxu0 0.0
      %1313 = vmatprep.subr.mxu0 0.0
      %1314 = vmatpush1.msra.mxu0 0.0
      %1315 = vmatprep.subr.mxu0 0.0
      %1316 = vmatpush1.msra.mxu0 0.0
      %1317 = vmatprep.subr.mxu0 0.0
      %1318 = vmatpush1.msra.mxu0 0.0
      %1319 = vmatprep.subr.mxu0 0.0
      %1320 = vmatpush1.msra.mxu0 0.0
      %1321 = vmatprep.subr.mxu0 0.0
      %1322 = vmatpush1.msra.mxu0 0.0
      %1323 = vmatprep.subr.mxu0 0.0
      %1324 = vmatpush1.msra.mxu0 0.0
      %1325 = vmatprep.subr.mxu0 0.0
      %1326 = vmatpush1.msra.mxu0 0.0
      %1327 = vmatprep.subr.mxu0 0.0
      %1328 = vmatpush1.msra.mxu0 0.0
      %1329 = vmatprep.subr.mxu0 0.0
      %1330 = vmatpush1.msra.mxu0 0.0
      %1331 = vmatprep.subr.mxu0 0.0
      %1332 = vmatpush1.msra.mxu0 0.0
      %1333 = vmatprep.subr.mxu0 0.0
      %1334 = vmatpush1.msra.mxu0 0.0
      %1335 = vmatprep.subr.mxu0 0.0
      %1336 = vmatpush1.msra.mxu0 %v1263
      %1337 = vmatprep.subr.mxu0 0.0
      %1338 = vmatpush1.msra.mxu0 %v1262
      %1339 = vmatprep.subr.mxu0 0.0
      %1340 = vmatpush1.msra.mxu0 %v1261
      %1341 = vmatprep.subr.mxu0 0.0
      %1342 = vmatpush1.msra.mxu0 %v1260
      %1343 = vmatprep.subr.mxu0 0.0
      %1344 = vmatpush2.msra.mxu0 0.0
      %1345 = vmatprep.subr.mxu0 0.0
      %1346 = vmatpush2.msra.mxu0 0.0
      %1347 = vmatprep.subr.mxu0 0.0
      %1348 = vmatpush2.msra.mxu0 0.0
      %1349 = vmatprep.subr.mxu0 0.0
      %1350 = vmatpush2.msra.mxu0 0.0
      %1351 = vmatprep.subr.mxu0 0.0
      %1352 = vmatpush2.msra.mxu0 0.0
      %1353 = vmatprep.subr.mxu0 0.0
      %1354 = vmatpush2.msra.mxu0 0.0
      %1355 = vmatprep.subr.mxu0 0.0
      %1356 = vmatpush2.msra.mxu0 0.0
      %1357 = vmatprep.subr.mxu0 0.0
      %1358 = vmatpush2.msra.mxu0 0.0
      %1359 = vmatprep.subr.mxu0 0.0
      %1360 = vmatpush2.msra.mxu0 0.0
      %1361 = vmatprep.subr.mxu0 0.0
      %1362 = vmatpush2.msra.mxu0 0.0
      %1363 = vmatprep.subr.mxu0 0.0
      %1364 = vmatpush2.msra.mxu0 0.0
      %1365 = vmatprep.subr.mxu0 0.0
      %1366 = vmatpush2.msra.mxu0 0.0
      %1367 = vmatprep.subr.mxu0 0.0
      %1368 = vmatpush2.msra.mxu0 0.0
      %1369 = vmatprep.subr.mxu0 0.0
      %1370 = vmatpush2.msra.mxu0 0.0
      %1371 = vmatprep.subr.mxu0 0.0
      %1372 = vmatpush2.msra.mxu0 0.0
      %1373 = vmatprep.subr.mxu0 0.0
      %1374 = vmatpush2.msra.mxu0 0.0
      %1375 = vmatprep.mubr.f32.mxu0 0.0
      %1376 = vmatmul.mubr.f32.gmra.mxu0 %v1273
      %v1377 = vpop.f32.mrf.mxu0
      %v1378 = vadd.f32 %v1269, %v1377
      %v1379 = vpop.f32.mrf.mxu0
      %1380 = vmatprep.mubr.f32.mxu0 0.0
      %1381 = vmatmul.mubr.f32.gmra.mxu0 %v1276
      %v1382 = vpop.f32.mrf.mxu0
      %v1383 = vadd.f32 %v1269, %v1382
      %v1384 = vpop.f32.mrf.mxu0
      %1385 = vmatprep.mubr.f32.mxu0 0.0
      %1386 = vmatmul.mubr.f32.gmra.mxu0 %v1279
      %v1387 = vpop.f32.mrf.mxu0
      %v1388 = vadd.f32 %v1269, %v1387
      %v1389 = vpop.f32.mrf.mxu0
      %1390 = vmatprep.mubr.f32.mxu0 0.0
      %1391 = vmatmul.mubr.f32.gmra.mxu0 %v1282
      %v1392 = vpop.f32.mrf.mxu0
      %v1393 = vadd.f32 %v1269, %v1392
      %v1394 = vpop.f32.mrf.mxu0
      %1395 = vmatprep.mubr.f32.mxu0 0.0
      %1396 = vmatmul.mubr.f32.gmra.mxu0 %v1285
      %v1397 = vpop.f32.mrf.mxu0
      %v1398 = vadd.f32 %v1269, %v1397
      %v1399 = vpop.f32.mrf.mxu0
      %1400 = vmatprep.mubr.f32.mxu0 0.0
      %1401 = vmatmul.mubr.f32.gmra.mxu0 %v1288
      %v1402 = vpop.f32.mrf.mxu0
      %v1403 = vadd.f32 %v1269, %v1402
      %v1404 = vpop.f32.mrf.mxu0
      %1405 = vmatprep.mubr.f32.mxu0 0.0
      %1406 = vmatmul.mubr.f32.gmra.mxu0 %v1291
      %v1407 = vpop.f32.mrf.mxu0
      %v1408 = vadd.f32 %v1269, %v1407
      %v1409 = vpop.f32.mrf.mxu0
      %1410 = vmatprep.mubr.f32.mxu0 0.0
      %1411 = vmatmul.mubr.f32.gmra.mxu0 %v1294
      %v1412 = vpop.f32.mrf.mxu0
      %v1413 = vadd.f32 %v1269, %v1412
      %v1414 = vpop.f32.mrf.mxu0
      %1415 = vmatprep.mubr.f32.mxu0 0.0
      %1416 = vmatmul.mubr.f32.gmra.mxu0 %v1297
      %v1417 = vpop.f32.mrf.mxu0
      %v1418 = vadd.f32 %v1269, %v1417
      %v1419 = vpop.f32.mrf.mxu0
      %1420 = vmatprep.mubr.f32.mxu0 0.0
      %1421 = vmatmul.mubr.f32.gmra.mxu0 %v1300
      %v1422 = vpop.f32.mrf.mxu0
      %v1423 = vadd.f32 %v1269, %v1422
      %v1424 = vpop.f32.mrf.mxu0
      %1425 = vmatprep.mubr.f32.mxu0 0.0
      %1426 = vmatmul.mubr.f32.gmra.mxu0 %v1303
      %v1427 = vpop.f32.mrf.mxu0
      %v1428 = vadd.f32 %v1269, %v1427
      %v1429 = vpop.f32.mrf.mxu0
      %1430 = vmatprep.mubr.f32.mxu0 0.0
      %1431 = vmatmul.mubr.f32.gmra.mxu0 %v1306
      %v1432 = vpop.f32.mrf.mxu0
      %v1433 = vadd.f32 %v1269, %v1432
      %v1434 = vpop.f32.mrf.mxu0
      %1435 = vmatprep.mubr.f32.mxu0 0.0
      %1436 = vmatmul.mubr.f32.gmra.mxu0 %v1309
      %v1437 = vpop.f32.mrf.mxu0
      %v1438 = vadd.f32 %v1269, %v1437
      %v1439 = vpop.f32.mrf.mxu0
      %1440 = vdwg.mxu0
      %vm1441 = vcmp.gt.f32.partialorder %v1378, 0.0
      %vm1442 = vcmp.gt.f32.partialorder %v1383, 0.0
      %vm1443 = vcmp.gt.f32.partialorder %v1388, 0.0
      %vm1444 = vcmp.gt.f32.partialorder %v1393, 0.0
      %vm1445 = vcmp.gt.f32.partialorder %v1398, 0.0
      %vm1446 = vcmp.gt.f32.partialorder %v1403, 0.0
      %vm1447 = vcmp.gt.f32.partialorder %v1408, 0.0
      %vm1448 = vcmp.gt.f32.partialorder %v1413, 0.0
      %vm1449 = vcmp.gt.f32.partialorder %v1418, 0.0
      %vm1450 = vcmp.gt.f32.partialorder %v1423, 0.0
      %vm1451 = vcmp.gt.f32.partialorder %v1428, 0.0
      %vm1452 = vcmp.gt.f32.partialorder %v1433, 0.0
      %vm1453 = vcmp.gt.f32.partialorder %v1438, 0.0
      %v1454 = vmul.f32 %v1378, 0.3
      %v1455 = vmul.f32 %v1383, 0.3
      %v1456 = vmul.f32 %v1388, 0.3
      %v1457 = vmul.f32 %v1393, 0.3
      %v1458 = vmul.f32 %v1398, 0.3
      %v1459 = vmul.f32 %v1403, 0.3
      %v1460 = vmul.f32 %v1408, 0.3
      %v1461 = vmul.f32 %v1413, 0.3
      %v1462 = vmul.f32 %v1418, 0.3
      %v1463 = vmul.f32 %v1423, 0.3
      %v1464 = vmul.f32 %v1428, 0.3
      %v1465 = vmul.f32 %v1433, 0.3
      %v1466 = vmul.f32 %v1438, 0.3
      %v1467 = vsel %vm1441, %v1378, %v1454
      %v1468 = vsel %vm1442, %v1383, %v1455
      %v1469 = vsel %vm1443, %v1388, %v1456
      %v1470 = vsel %vm1444, %v1393, %v1457
      %v1471 = vsel %vm1445, %v1398, %v1458
      %v1472 = vsel %vm1446, %v1403, %v1459
      %v1473 = vsel %vm1447, %v1408, %v1460
      %v1474 = vsel %vm1448, %v1413, %v1461
      %v1475 = vsel %vm1449, %v1418, %v1462
      %v1476 = vsel %vm1450, %v1423, %v1463
      %v1477 = vsel %vm1451, %v1428, %v1464
      %v1478 = vsel %vm1452, %v1433, %v1465
      %v1479 = vsel %vm1453, %v1438, %v1466
      %v1480 = vld [vmem:[%s7] sm:$0xff]
      %v1481 = vld [vmem:[%s7 + $0x8] sm:$0xff]
      %v1482 = vld [vmem:[%s7 + $0x10] sm:$0xff]
      %v1483 = vld [vmem:[%s7 + $0x18] sm:$0xff]
      %v1484 = vld [vmem:[%s7 + $0x20] sm:$0xff]
      %v1485 = vld [vmem:[%s7 + $0x28] sm:$0xff]
      %v1486 = vld [vmem:[%s7 + $0x30] sm:$0xff]
      %v1487 = vld [vmem:[%s7 + $0x38] sm:$0xff]
      %v1488 = vld [vmem:[%s7 + $0x40] sm:$0xff]
      %v1489 = vld [vmem:[%s7 + $0x48] sm:$0xff]
      %v1490 = vld [vmem:[%s7 + $0x50] sm:$0xff]
      %v1491 = vld [vmem:[%s7 + $0x58] sm:$0xff]
      %v1492 = vld [vmem:[%s7 + $0x60] sm:$0x3f]
      %1494 = vset.pattern.permute.xlu0 0
      %1495 = vperm.xlu0 %1494, %v1480
      %v1496 = vpop.permute.xlu0 %1495
      %1499 = vset.pattern.permute.xlu0 0
      %1500 = vperm.xlu0 %1499, %v1481
      %v1501 = vpop.permute.xlu0 %1500
      %1504 = vset.pattern.permute.xlu0 0
      %1505 = vperm.xlu0 %1504, %v1482
      %v1506 = vpop.permute.xlu0 %1505
      %1509 = vset.pattern.permute.xlu0 0
      %1510 = vperm.xlu0 %1509, %v1483
      %v1511 = vpop.permute.xlu0 %1510
      %1514 = vset.pattern.permute.xlu0 0
      %1515 = vperm.xlu0 %1514, %v1484
      %v1516 = vpop.permute.xlu0 %1515
      %1519 = vset.pattern.permute.xlu0 0
      %1520 = vperm.xlu0 %1519, %v1485
      %v1521 = vpop.permute.xlu0 %1520
      %1524 = vset.pattern.permute.xlu0 0
      %1525 = vperm.xlu0 %1524, %v1486
      %v1526 = vpop.permute.xlu0 %1525
      %1529 = vset.pattern.permute.xlu0 0
      %1530 = vperm.xlu0 %1529, %v1487
      %v1531 = vpop.permute.xlu0 %1530
      %1534 = vset.pattern.permute.xlu0 0
      %1535 = vperm.xlu0 %1534, %v1488
      %v1536 = vpop.permute.xlu0 %1535
      %1539 = vset.pattern.permute.xlu0 0
      %1540 = vperm.xlu0 %1539, %v1489
      %v1541 = vpop.permute.xlu0 %1540
      %1544 = vset.pattern.permute.xlu0 0
      %1545 = vperm.xlu0 %1544, %v1490
      %v1546 = vpop.permute.xlu0 %1545
      %1549 = vset.pattern.permute.xlu0 0
      %1550 = vperm.xlu0 %1549, %v1491
      %v1551 = vpop.permute.xlu0 %1550
      %1554 = vset.pattern.permute.xlu0 0
      %1555 = vperm.xlu0 %1554, %v1492
      %v1556 = vpop.permute.xlu0 %1555
      %v1558 = vadd.f32 %v1467, %v1496
      %v1559 = vadd.f32 %v1468, %v1501
      %v1560 = vadd.f32 %v1469, %v1506
      %v1561 = vadd.f32 %v1470, %v1511
      %v1562 = vadd.f32 %v1471, %v1516
      %v1563 = vadd.f32 %v1472, %v1521
      %v1564 = vadd.f32 %v1473, %v1526
      %v1565 = vadd.f32 %v1474, %v1531
      %v1566 = vadd.f32 %v1475, %v1536
      %v1567 = vadd.f32 %v1476, %v1541
      %v1568 = vadd.f32 %v1477, %v1546
      %v1569 = vadd.f32 %v1478, %v1551
      %v1570 = vadd.f32 %v1479, %v1556
      %v1582 = vrot.slane %v1558, 1
      %v1583 = vrot.slane %v1559, 1
      %v1584 = vsel %vm371, %v1582, %v1583
      %v1585 = vrot.slane %v1560, 1
      %v1586 = vsel %vm371, %v1583, %v1585
      %v1587 = vrot.slane %v1561, 1
      %v1588 = vsel %vm371, %v1585, %v1587
      %v1589 = vrot.slane %v1562, 1
      %v1590 = vsel %vm371, %v1587, %v1589
      %v1591 = vrot.slane %v1563, 1
      %v1592 = vsel %vm371, %v1589, %v1591
      %v1593 = vrot.slane %v1564, 1
      %v1594 = vsel %vm371, %v1591, %v1593
      %v1595 = vrot.slane %v1565, 1
      %v1596 = vsel %vm371, %v1593, %v1595
      %v1597 = vrot.slane %v1566, 1
      %v1598 = vsel %vm371, %v1595, %v1597
      %v1599 = vrot.slane %v1567, 1
      %v1600 = vsel %vm371, %v1597, %v1599
      %v1601 = vrot.slane %v1568, 1
      %v1602 = vsel %vm371, %v1599, %v1601
      %v1613 = vmax.f32 %v1558, %v1584
      %v1614 = vmax.f32 %v1559, %v1586
      %v1615 = vmax.f32 %v1560, %v1588
      %v1616 = vmax.f32 %v1561, %v1590
      %v1617 = vmax.f32 %v1562, %v1592
      %v1618 = vmax.f32 %v1563, %v1594
      %v1619 = vmax.f32 %v1564, %v1596
      %v1620 = vmax.f32 %v1565, %v1598
      %v1621 = vmax.f32 %v1566, %v1600
      %v1622 = vmax.f32 %v1567, %v1602
      %v1623 = vrot.slane %v1558, 2
      %v1624 = vrot.slane %v1559, 2
      %v1625 = vsel %vm454, %v1623, %v1624
      %v1626 = vrot.slane %v1560, 2
      %v1627 = vsel %vm454, %v1624, %v1626
      %v1628 = vrot.slane %v1561, 2
      %v1629 = vsel %vm454, %v1626, %v1628
      %v1630 = vrot.slane %v1562, 2
      %v1631 = vsel %vm454, %v1628, %v1630
      %v1632 = vrot.slane %v1563, 2
      %v1633 = vsel %vm454, %v1630, %v1632
      %v1634 = vrot.slane %v1564, 2
      %v1635 = vsel %vm454, %v1632, %v1634
      %v1636 = vrot.slane %v1565, 2
      %v1637 = vsel %vm454, %v1634, %v1636
      %v1638 = vrot.slane %v1566, 2
      %v1639 = vsel %vm454, %v1636, %v1638
      %v1640 = vrot.slane %v1567, 2
      %v1641 = vsel %vm454, %v1638, %v1640
      %v1642 = vrot.slane %v1568, 2
      %v1643 = vsel %vm454, %v1640, %v1642
      %v1654 = vmax.f32 %v1613, %v1625
      %v1655 = vmax.f32 %v1614, %v1627
      %v1656 = vmax.f32 %v1615, %v1629
      %v1657 = vmax.f32 %v1616, %v1631
      %v1658 = vmax.f32 %v1617, %v1633
      %v1659 = vmax.f32 %v1618, %v1635
      %v1660 = vmax.f32 %v1619, %v1637
      %v1661 = vmax.f32 %v1620, %v1639
      %v1662 = vmax.f32 %v1621, %v1641
      %v1663 = vmax.f32 %v1622, %v1643
      %v1665 = vrot.slane %v1569, 2
      %v1666 = vsel %vm454, %v1642, %v1665
      %v1668 = vmax.f32 %v1654, %v1627
      %v1669 = vmax.f32 %v1655, %v1629
      %v1670 = vmax.f32 %v1656, %v1631
      %v1671 = vmax.f32 %v1657, %v1633
      %v1672 = vmax.f32 %v1658, %v1635
      %v1673 = vmax.f32 %v1659, %v1637
      %v1674 = vmax.f32 %v1660, %v1639
      %v1675 = vmax.f32 %v1661, %v1641
      %v1676 = vmax.f32 %v1662, %v1643
      %v1677 = vmax.f32 %v1663, %v1666
      %v1678 = vrot.slane %v1559, 3
      %v1679 = vrot.slane %v1560, 3
      %v1680 = vsel %vm621, %v1678, %v1679
      %v1681 = vrot.slane %v1561, 3
      %v1682 = vsel %vm621, %v1679, %v1681
      %v1683 = vrot.slane %v1562, 3
      %v1684 = vsel %vm621, %v1681, %v1683
      %v1685 = vrot.slane %v1563, 3
      %v1686 = vsel %vm621, %v1683, %v1685
      %v1687 = vrot.slane %v1564, 3
      %v1688 = vsel %vm621, %v1685, %v1687
      %v1689 = vrot.slane %v1565, 3
      %v1690 = vsel %vm621, %v1687, %v1689
      %v1691 = vrot.slane %v1566, 3
      %v1692 = vsel %vm621, %v1689, %v1691
      %v1693 = vrot.slane %v1567, 3
      %v1694 = vsel %vm621, %v1691, %v1693
      %v1695 = vrot.slane %v1568, 3
      %v1696 = vsel %vm621, %v1693, %v1695
      %v1697 = vrot.slane %v1569, 3
      %v1698 = vsel %vm621, %v1695, %v1697
      %v1709 = vmax.f32 %v1668, %v1680
      %v1710 = vmax.f32 %v1669, %v1682
      %v1711 = vmax.f32 %v1670, %v1684
      %v1712 = vmax.f32 %v1671, %v1686
      %v1713 = vmax.f32 %v1672, %v1688
      %v1714 = vmax.f32 %v1673, %v1690
      %v1715 = vmax.f32 %v1674, %v1692
      %v1716 = vmax.f32 %v1675, %v1694
      %v1717 = vmax.f32 %v1676, %v1696
      %v1718 = vmax.f32 %v1677, %v1698
      %v1719 = vrot.slane %v1559, 4
      %v1720 = vrot.slane %v1560, 4
      %v1721 = vsel %vm708, %v1719, %v1720
      %v1722 = vrot.slane %v1561, 4
      %v1723 = vsel %vm708, %v1720, %v1722
      %v1724 = vrot.slane %v1562, 4
      %v1725 = vsel %vm708, %v1722, %v1724
      %v1726 = vrot.slane %v1563, 4
      %v1727 = vsel %vm708, %v1724, %v1726
      %v1728 = vrot.slane %v1564, 4
      %v1729 = vsel %vm708, %v1726, %v1728
      %v1730 = vrot.slane %v1565, 4
      %v1731 = vsel %vm708, %v1728, %v1730
      %v1732 = vrot.slane %v1566, 4
      %v1733 = vsel %vm708, %v1730, %v1732
      %v1734 = vrot.slane %v1567, 4
      %v1735 = vsel %vm708, %v1732, %v1734
      %v1736 = vrot.slane %v1568, 4
      %v1737 = vsel %vm708, %v1734, %v1736
      %v1738 = vrot.slane %v1569, 4
      %v1739 = vsel %vm708, %v1736, %v1738
      %v1750 = vmax.f32 %v1709, %v1721
      %v1751 = vmax.f32 %v1710, %v1723
      %v1752 = vmax.f32 %v1711, %v1725
      %v1753 = vmax.f32 %v1712, %v1727
      %v1754 = vmax.f32 %v1713, %v1729
      %v1755 = vmax.f32 %v1714, %v1731
      %v1756 = vmax.f32 %v1715, %v1733
      %v1757 = vmax.f32 %v1716, %v1735
      %v1758 = vmax.f32 %v1717, %v1737
      %v1759 = vmax.f32 %v1718, %v1739
      %v1761 = vrot.slane %v1570, 4
      %v1762 = vsel %vm708, %v1738, %v1761
      %v1764 = vmax.f32 %v1750, %v1723
      %v1765 = vmax.f32 %v1751, %v1725
      %v1766 = vmax.f32 %v1752, %v1727
      %v1767 = vmax.f32 %v1753, %v1729
      %v1768 = vmax.f32 %v1754, %v1731
      %v1769 = vmax.f32 %v1755, %v1733
      %v1770 = vmax.f32 %v1756, %v1735
      %v1771 = vmax.f32 %v1757, %v1737
      %v1772 = vmax.f32 %v1758, %v1739
      %v1773 = vmax.f32 %v1759, %v1762
      %v1774 = vrot.slane %v1560, 5
      %v1775 = vrot.slane %v1561, 5
      %v1776 = vsel %vm881, %v1774, %v1775
      %v1777 = vrot.slane %v1562, 5
      %v1778 = vsel %vm881, %v1775, %v1777
      %v1779 = vrot.slane %v1563, 5
      %v1780 = vsel %vm881, %v1777, %v1779
      %v1781 = vrot.slane %v1564, 5
      %v1782 = vsel %vm881, %v1779, %v1781
      %v1783 = vrot.slane %v1565, 5
      %v1784 = vsel %vm881, %v1781, %v1783
      %v1785 = vrot.slane %v1566, 5
      %v1786 = vsel %vm881, %v1783, %v1785
      %v1787 = vrot.slane %v1567, 5
      %v1788 = vsel %vm881, %v1785, %v1787
      %v1789 = vrot.slane %v1568, 5
      %v1790 = vsel %vm881, %v1787, %v1789
      %v1791 = vrot.slane %v1569, 5
      %v1792 = vsel %vm881, %v1789, %v1791
      %v1793 = vrot.slane %v1570, 5
      %v1794 = vsel %vm881, %v1791, %v1793
      %v1805 = vmax.f32 %v1764, %v1776
      %v1806 = vmax.f32 %v1765, %v1778
      %v1807 = vmax.f32 %v1766, %v1780
      %v1808 = vmax.f32 %v1767, %v1782
      %v1809 = vmax.f32 %v1768, %v1784
      %v1810 = vmax.f32 %v1769, %v1786
      %v1811 = vmax.f32 %v1770, %v1788
      %v1812 = vmax.f32 %v1771, %v1790
      %v1813 = vmax.f32 %v1772, %v1792
      %v1814 = vmax.f32 %v1773, %v1794
      %v1815 = vrot.slane %v1560, 6
      %v1816 = vrot.slane %v1561, 6
      %v1817 = vsel %vm968, %v1815, %v1816
      %v1818 = vrot.slane %v1562, 6
      %v1819 = vsel %vm968, %v1816, %v1818
      %v1820 = vrot.slane %v1563, 6
      %v1821 = vsel %vm968, %v1818, %v1820
      %v1822 = vrot.slane %v1564, 6
      %v1823 = vsel %vm968, %v1820, %v1822
      %v1824 = vrot.slane %v1565, 6
      %v1825 = vsel %vm968, %v1822, %v1824
      %v1826 = vrot.slane %v1566, 6
      %v1827 = vsel %vm968, %v1824, %v1826
      %v1828 = vrot.slane %v1567, 6
      %v1829 = vsel %vm968, %v1826, %v1828
      %v1830 = vrot.slane %v1568, 6
      %v1831 = vsel %vm968, %v1828, %v1830
      %v1832 = vrot.slane %v1569, 6
      %v1833 = vsel %vm968, %v1830, %v1832
      %v1834 = vrot.slane %v1570, 6
      %v1835 = vsel %vm968, %v1832, %v1834
      %v1846 = vmax.f32 %v1805, %v1817
      %v1847 = vmax.f32 %v1806, %v1819
      %v1848 = vmax.f32 %v1807, %v1821
      %v1849 = vmax.f32 %v1808, %v1823
      %v1850 = vmax.f32 %v1809, %v1825
      %v1851 = vmax.f32 %v1810, %v1827
      %v1852 = vmax.f32 %v1811, %v1829
      %v1853 = vmax.f32 %v1812, %v1831
      %v1854 = vmax.f32 %v1813, %v1833
      %v1855 = vmax.f32 %v1814, %v1835
      %1856 = vst.msk [vmem:[%s305] sm:$0xff] %vm1271, %v1846
      %1857 = vst.msk [vmem:[%s305 + $0x8] sm:$0xff] %vm1271, %v1847
      %1858 = vst.msk [vmem:[%s305 + $0x10] sm:$0xff] %vm1271, %v1848
      %1859 = vst.msk [vmem:[%s305 + $0x18] sm:$0xff] %vm1271, %v1849
      %1860 = vst.msk [vmem:[%s305 + $0x20] sm:$0xff] %vm1271, %v1850
      %1861 = vst.msk [vmem:[%s305 + $0x28] sm:$0xff] %vm1271, %v1851
      %1862 = vst.msk [vmem:[%s305 + $0x30] sm:$0xff] %vm1271, %v1852
      %1863 = vst.msk [vmem:[%s305 + $0x38] sm:$0xff] %vm1271, %v1853
      %1864 = vst.msk [vmem:[%s305 + $0x40] sm:$0xff] %vm1271, %v1854
      %1865 = vst.msk [vmem:[%s305 + $0x48] sm:$0xff] %vm1271, %v1855
      %p1866 = scmp.lt.s32.totalorder %s19, 1
      %s1867 = scalar_select %p1866, %s19, 1
      %s1868 = smul.addr %s1867, 10
      %s1869 = smul.addr %s1868, 8
      %s1870 = scalar_lea.vmem %s8, %s1869
      // Predicated region
      $region53: #{rdlinet_forward.6} parent=51 // pred_check
        %p1871 = pneg %p210
      $region54: #{rdlinet_forward.6} parent=51 // pred_check_branch
        %1873 = sbr.rel (%p1871) target = $region56
      $region55: #{rdlinet_forward.6} parent=51 // pred_region
        _
      $region56: #{rdlinet_forward.6} parent=51 // pred_fallthru
        _
    $region52: #{rdlinet_forward.6} parent=5 // pred_fallthru
      _
    %p1874 = scmp.le.s32.totalorder 2, %s14
    // Predicated region
    $region57: #{rdlinet_forward.6} parent=5 // pred_check
      %p1875 = pneg %p1874
    $region58: #{rdlinet_forward.6} parent=5 // pred_check_branch
      %1877 = sbr.rel (%p1875) target = $region60
    $region59: #{rdlinet_forward.6} parent=5 // pred_region
      %s1878 = ssub.s32 %s14, 2
      // Predicated region
      $region61: #{rdlinet_forward.6} parent=59 // pred_check
        %p1879 = pneg %p216
      $region62: #{rdlinet_forward.6} parent=59 // pred_check_branch
        %1881 = sbr.rel (%p1879) target = $region64
      $region63: #{rdlinet_forward.6} parent=59 // pred_region
        %p1882 = scmp.lt.s32.totalorder %s20, 1
        %s1883 = scalar_select %p1882, %s20, 1
        %s1884 = smul.addr %s1883, 10
        %s1885 = smul.addr %s1884, 8
        %s1886 = scalar_lea.vmem %s8, %s1885
      $region64: #{rdlinet_forward.6} parent=59 // pred_fallthru
        _
    $region60: #{rdlinet_forward.6} parent=5 // pred_fallthru
      _
  $region6: #{rdlinet_forward.6} parent=0 // loop_footer
    %s18 = sadd.s32 1, %s14
  $region7: #{rdlinet_forward.6} parent=0 // loop_footer_branch
    %13 = sbr.rel target = $region3
  $region8: #{rdlinet_forward.6} parent=0 // loop_exit
    _

// kernel: rdlinet_forward.7
$region0: #{rdlinet_forward.7}
  #allocation0 [shape = 'u32[]', space=smem, size = 0x4, offset = 0x4, fixed_abs, tag = 'smem constant byte address 0x4 - core index']
  #allocation1 [shape = 'u32[144,128]{1,0:T(1,128)}', space=vmem, size = 0x12000, scoped, tag = 'internal scratch']
  %s0 = inlined_call_operand.vmem [shape: f32[2,68,32], index: 0, kind: input, shape index: {}]
  %s1 = inlined_call_operand.vmem [shape: f32[68,1], index: 1, kind: input, shape index: {}]
  %s2 = inlined_call_operand.vmem [shape: f32[32,16], index: 2, kind: input, shape index: {}]
  %s3 = inlined_call_operand.vmem [shape: f32[1,16], index: 3, kind: input, shape index: {}]
  %s4 = inlined_call_operand.vmem [shape: f32[9,32], index: 4, kind: input, shape index: {}]
  %s5 = inlined_call_operand.vmem [shape: f32[1,32], index: 5, kind: input, shape index: {}]
  %s6 = inlined_call_operand.vmem [shape: f32[32,48], index: 6, kind: input, shape index: {}]
  %s7 = inlined_call_operand.vmem [shape: f32[1,48], index: 7, kind: input, shape index: {}]
  %s8 = inlined_call_operand.vmem [shape: f32[25,32], index: 8, kind: input, shape index: {}]
  %s9 = inlined_call_operand.vmem [shape: f32[1,32], index: 9, kind: input, shape index: {}]
  %s10 = inlined_call_operand.vmem [shape: f32[32,48], index: 10, kind: input, shape index: {}]
  %s11 = inlined_call_operand.vmem [shape: f32[1,48], index: 11, kind: input, shape index: {}]
  %s12 = inlined_call_operand.vmem [shape: f32[32,32], index: 12, kind: input, shape index: {}]
  %s13 = inlined_call_operand.vmem [shape: f32[1,32], index: 13, kind: input, shape index: {}]
  %s14 = inlined_call_operand.vmem [shape: f32[2,32,144], index: 14, kind: output, shape index: {}]
  %s15 = sld [smem:[#allocation0]]
  $region89: #{rdlinet_forward.7} parent=0
    _
  %s17 = ssub.s32 1, %s15
  %s18 = scalar_select 0, %s17, %s15
  loop: start=0, step=1, limit=4
  $region2: #{rdlinet_forward.7} parent=0 // loop_pre_header
    _
  $region3: #{rdlinet_forward.7} parent=0 // loop_header
    %s20 = sphi 0, %s24
    %p21 = scmp.ge.s32.totalorder %s20, 4
    %s30 = sphi 0, %s32
    %s33 = sphi 0, %s30
    %s34 = sphi 0, %s33
    %s50 = sphi 0, %s34
    %s54 = sphi 0, %s54
    %s56 = sphi 0, %s54
    %s57 = sphi 0, %s56
    %s71 = sphi 0, %s57
    %s75 = sphi 0, %s75
    %s77 = sphi 0, %s75
    %s78 = sphi 0, %s77
    %s92 = sphi 0, %s78
    %s96 = sphi 0, %s96
    %s98 = sphi 0, %s96
    %s99 = sphi 0, %s98
    %s113 = sphi 0, %s99
    %s117 = sphi 0, %s117
    %s119 = sphi 0, %s117
    %s120 = sphi 0, %s119
    %s134 = sphi 0, %s120
    %s138 = sphi 0, %s138
    %s140 = sphi 0, %s138
    %s141 = sphi 0, %s140
    %s155 = sphi 0, %s141
    %s159 = sphi 0, %s159
    %s161 = sphi 0, %s159
    %s162 = sphi 0, %s161
    %s176 = sphi 0, %s162
    %s180 = sphi 0, %s180
    %s182 = sphi 0, %s180
    %s183 = sphi 0, %s182
    %s197 = sphi 0, %s183
    %s201 = sphi 0, %s201
    %s203 = sphi 0, %s201
    %s204 = sphi 0, %s203
    %s218 = sphi 0, %s204
    %s222 = sphi 0, %s222
    %s224 = sphi 0, %s222
    %s225 = sphi 0, %s224
    %s239 = sphi 0, %s225
    %s243 = sphi 0, %s243
    %s245 = sphi 0, %s243
    %s246 = sphi 0, %s245
    %s260 = sphi 0, %s246
    %s264 = sphi 0, %s264
    %s266 = sphi 0, %s264
    %s267 = sphi 0, %s266
    %s281 = sphi 0, %s267
    %s285 = sphi 0, %s285
    %s287 = sphi 0, %s285
    %s288 = sphi 0, %s287
    %s302 = sphi 0, %s288
    %s306 = sphi 0, %s306
    %s308 = sphi 0, %s306
    %s309 = sphi 0, %s308
    %s323 = sphi 0, %s309
    %s329 = sphi 0, %s331
    %s332 = sphi 0, %s329
    %s333 = sphi 0, %s332
    %s349 = sphi 0, %s333
  $region4: #{rdlinet_forward.7} parent=0 // loop_header_branch
    %23 = sbr.rel (%p21) target = $region8
  $region5: #{rdlinet_forward.7} parent=0 // loop_body
    %s25 = ssub.s32 %s20, 1
    %s26 = ssub.s32 %s20, 2
    %s27 = sadd.s32 %s20, 1
    %s28 = ssub.s32 %s20, %s27
    %p29 = scmp.eq.s32.totalorder %s28, 0
    %s31 = sadd.s32 %s30, 1
    %s32 = scalar_select %p29, %s30, %s31
    %p35 = pneg %p29
    %p36 = scmp.eq.s32.totalorder %s20, 1
    %p37 = por %p35, %p36
    %p38 = scmp.ne.s32.totalorder %s30, %s33
    %p39 = scmp.eq.s32.totalorder %s20, 0
    %p40 = por %p38, %p39
    %p41 = scmp.ne.s32.totalorder %s30, %s33
    %p42 = scmp.eq.s32.totalorder %s25, 1
    %p43 = por %p41, %p42
    %p44 = scmp.ne.s32.totalorder %s33, %s34
    %p45 = scmp.eq.s32.totalorder %s25, 0
    %p46 = por %p44, %p45
    %p47 = scmp.ne.s32.totalorder %s33, %s34
    %p48 = scmp.eq.s32.totalorder %s26, 1
    %p49 = por %p47, %p48
    %p51 = scmp.ne.s32.totalorder %s34, %s50
    %p52 = scmp.eq.s32.totalorder %s26, 0
    %p53 = por %p51, %p52
    %s55 = sadd.s32 %s54, 1
    %p58 = scmp.eq.s32.totalorder %s20, 1
    %p59 = scmp.ne.s32.totalorder %s54, %s56
    %p60 = scmp.eq.s32.totalorder %s20, 0
    %p61 = por %p59, %p60
    %p62 = scmp.ne.s32.totalorder %s54, %s56
    %p63 = scmp.eq.s32.totalorder %s25, 1
    %p64 = por %p62, %p63
    %p65 = scmp.ne.s32.totalorder %s56, %s57
    %p66 = scmp.eq.s32.totalorder %s25, 0
    %p67 = por %p65, %p66
    %p68 = scmp.ne.s32.totalorder %s56, %s57
    %p69 = scmp.eq.s32.totalorder %s26, 1
    %p70 = por %p68, %p69
    %p72 = scmp.ne.s32.totalorder %s57, %s71
    %p73 = scmp.eq.s32.totalorder %s26, 0
    %p74 = por %p72, %p73
    %s76 = sadd.s32 %s75, 1
    %p79 = scmp.eq.s32.totalorder %s20, 1
    %p80 = scmp.ne.s32.totalorder %s75, %s77
    %p81 = scmp.eq.s32.totalorder %s20, 0
    %p82 = por %p80, %p81
    %p83 = scmp.ne.s32.totalorder %s75, %s77
    %p84 = scmp.eq.s32.totalorder %s25, 1
    %p85 = por %p83, %p84
    %p86 = scmp.ne.s32.totalorder %s77, %s78
    %p87 = scmp.eq.s32.totalorder %s25, 0
    %p88 = por %p86, %p87
    %p89 = scmp.ne.s32.totalorder %s77, %s78
    %p90 = scmp.eq.s32.totalorder %s26, 1
    %p91 = por %p89, %p90
    %p93 = scmp.ne.s32.totalorder %s78, %s92
    %p94 = scmp.eq.s32.totalorder %s26, 0
    %p95 = por %p93, %p94
    %s97 = sadd.s32 %s96, 1
    %p100 = scmp.eq.s32.totalorder %s20, 1
    %p101 = scmp.ne.s32.totalorder %s96, %s98
    %p102 = scmp.eq.s32.totalorder %s20, 0
    %p103 = por %p101, %p102
    %p104 = scmp.ne.s32.totalorder %s96, %s98
    %p105 = scmp.eq.s32.totalorder %s25, 1
    %p106 = por %p104, %p105
    %p107 = scmp.ne.s32.totalorder %s98, %s99
    %p108 = scmp.eq.s32.totalorder %s25, 0
    %p109 = por %p107, %p108
    %p110 = scmp.ne.s32.totalorder %s98, %s99
    %p111 = scmp.eq.s32.totalorder %s26, 1
    %p112 = por %p110, %p111
    %p114 = scmp.ne.s32.totalorder %s99, %s113
    %p115 = scmp.eq.s32.totalorder %s26, 0
    %p116 = por %p114, %p115
    %s118 = sadd.s32 %s117, 1
    %p121 = scmp.eq.s32.totalorder %s20, 1
    %p122 = scmp.ne.s32.totalorder %s117, %s119
    %p123 = scmp.eq.s32.totalorder %s20, 0
    %p124 = por %p122, %p123
    %p125 = scmp.ne.s32.totalorder %s117, %s119
    %p126 = scmp.eq.s32.totalorder %s25, 1
    %p127 = por %p125, %p126
    %p128 = scmp.ne.s32.totalorder %s119, %s120
    %p129 = scmp.eq.s32.totalorder %s25, 0
    %p130 = por %p128, %p129
    %p131 = scmp.ne.s32.totalorder %s119, %s120
    %p132 = scmp.eq.s32.totalorder %s26, 1
    %p133 = por %p131, %p132
    %p135 = scmp.ne.s32.totalorder %s120, %s134
    %p136 = scmp.eq.s32.totalorder %s26, 0
    %p137 = por %p135, %p136
    %s139 = sadd.s32 %s138, 1
    %p142 = scmp.eq.s32.totalorder %s20, 1
    %p143 = scmp.ne.s32.totalorder %s138, %s140
    %p144 = scmp.eq.s32.totalorder %s20, 0
    %p145 = por %p143, %p144
    %p146 = scmp.ne.s32.totalorder %s138, %s140
    %p147 = scmp.eq.s32.totalorder %s25, 1
    %p148 = por %p146, %p147
    %p149 = scmp.ne.s32.totalorder %s140, %s141
    %p150 = scmp.eq.s32.totalorder %s25, 0
    %p151 = por %p149, %p150
    %p152 = scmp.ne.s32.totalorder %s140, %s141
    %p153 = scmp.eq.s32.totalorder %s26, 1
    %p154 = por %p152, %p153
    %p156 = scmp.ne.s32.totalorder %s141, %s155
    %p157 = scmp.eq.s32.totalorder %s26, 0
    %p158 = por %p156, %p157
    %s160 = sadd.s32 %s159, 1
    %p163 = scmp.eq.s32.totalorder %s20, 1
    %p164 = scmp.ne.s32.totalorder %s159, %s161
    %p165 = scmp.eq.s32.totalorder %s20, 0
    %p166 = por %p164, %p165
    %p167 = scmp.ne.s32.totalorder %s159, %s161
    %p168 = scmp.eq.s32.totalorder %s25, 1
    %p169 = por %p167, %p168
    %p170 = scmp.ne.s32.totalorder %s161, %s162
    %p171 = scmp.eq.s32.totalorder %s25, 0
    %p172 = por %p170, %p171
    %p173 = scmp.ne.s32.totalorder %s161, %s162
    %p174 = scmp.eq.s32.totalorder %s26, 1
    %p175 = por %p173, %p174
    %p177 = scmp.ne.s32.totalorder %s162, %s176
    %p178 = scmp.eq.s32.totalorder %s26, 0
    %p179 = por %p177, %p178
    %s181 = sadd.s32 %s180, 1
    %p184 = scmp.eq.s32.totalorder %s20, 1
    %p185 = scmp.ne.s32.totalorder %s180, %s182
    %p186 = scmp.eq.s32.totalorder %s20, 0
    %p187 = por %p185, %p186
    %p188 = scmp.ne.s32.totalorder %s180, %s182
    %p189 = scmp.eq.s32.totalorder %s25, 1
    %p190 = por %p188, %p189
    %p191 = scmp.ne.s32.totalorder %s182, %s183
    %p192 = scmp.eq.s32.totalorder %s25, 0
    %p193 = por %p191, %p192
    %p194 = scmp.ne.s32.totalorder %s182, %s183
    %p195 = scmp.eq.s32.totalorder %s26, 1
    %p196 = por %p194, %p195
    %p198 = scmp.ne.s32.totalorder %s183, %s197
    %p199 = scmp.eq.s32.totalorder %s26, 0
    %p200 = por %p198, %p199
    %s202 = sadd.s32 %s201, 1
    %p205 = scmp.eq.s32.totalorder %s20, 1
    %p206 = scmp.ne.s32.totalorder %s201, %s203
    %p207 = scmp.eq.s32.totalorder %s20, 0
    %p208 = por %p206, %p207
    %p209 = scmp.ne.s32.totalorder %s201, %s203
    %p210 = scmp.eq.s32.totalorder %s25, 1
    %p211 = por %p209, %p210
    %p212 = scmp.ne.s32.totalorder %s203, %s204
    %p213 = scmp.eq.s32.totalorder %s25, 0
    %p214 = por %p212, %p213
    %p215 = scmp.ne.s32.totalorder %s203, %s204
    %p216 = scmp.eq.s32.totalorder %s26, 1
    %p217 = por %p215, %p216
    %p219 = scmp.ne.s32.totalorder %s204, %s218
    %p220 = scmp.eq.s32.totalorder %s26, 0
    %p221 = por %p219, %p220
    %s223 = sadd.s32 %s222, 1
    %p226 = scmp.eq.s32.totalorder %s20, 1
    %p227 = scmp.ne.s32.totalorder %s222, %s224
    %p228 = scmp.eq.s32.totalorder %s20, 0
    %p229 = por %p227, %p228
    %p230 = scmp.ne.s32.totalorder %s222, %s224
    %p231 = scmp.eq.s32.totalorder %s25, 1
    %p232 = por %p230, %p231
    %p233 = scmp.ne.s32.totalorder %s224, %s225
    %p234 = scmp.eq.s32.totalorder %s25, 0
    %p235 = por %p233, %p234
    %p236 = scmp.ne.s32.totalorder %s224, %s225
    %p237 = scmp.eq.s32.totalorder %s26, 1
    %p238 = por %p236, %p237
    %p240 = scmp.ne.s32.totalorder %s225, %s239
    %p241 = scmp.eq.s32.totalorder %s26, 0
    %p242 = por %p240, %p241
    %s244 = sadd.s32 %s243, 1
    %p247 = scmp.eq.s32.totalorder %s20, 1
    %p248 = scmp.ne.s32.totalorder %s243, %s245
    %p249 = scmp.eq.s32.totalorder %s20, 0
    %p250 = por %p248, %p249
    %p251 = scmp.ne.s32.totalorder %s243, %s245
    %p252 = scmp.eq.s32.totalorder %s25, 1
    %p253 = por %p251, %p252
    %p254 = scmp.ne.s32.totalorder %s245, %s246
    %p255 = scmp.eq.s32.totalorder %s25, 0
    %p256 = por %p254, %p255
    %p257 = scmp.ne.s32.totalorder %s245, %s246
    %p258 = scmp.eq.s32.totalorder %s26, 1
    %p259 = por %p257, %p258
    %p261 = scmp.ne.s32.totalorder %s246, %s260
    %p262 = scmp.eq.s32.totalorder %s26, 0
    %p263 = por %p261, %p262
    %s265 = sadd.s32 %s264, 1
    %p268 = scmp.eq.s32.totalorder %s20, 1
    %p269 = scmp.ne.s32.totalorder %s264, %s266
    %p270 = scmp.eq.s32.totalorder %s20, 0
    %p271 = por %p269, %p270
    %p272 = scmp.ne.s32.totalorder %s264, %s266
    %p273 = scmp.eq.s32.totalorder %s25, 1
    %p274 = por %p272, %p273
    %p275 = scmp.ne.s32.totalorder %s266, %s267
    %p276 = scmp.eq.s32.totalorder %s25, 0
    %p277 = por %p275, %p276
    %p278 = scmp.ne.s32.totalorder %s266, %s267
    %p279 = scmp.eq.s32.totalorder %s26, 1
    %p280 = por %p278, %p279
    %p282 = scmp.ne.s32.totalorder %s267, %s281
    %p283 = scmp.eq.s32.totalorder %s26, 0
    %p284 = por %p282, %p283
    %s286 = sadd.s32 %s285, 1
    %p289 = scmp.eq.s32.totalorder %s20, 1
    %p290 = scmp.ne.s32.totalorder %s285, %s287
    %p291 = scmp.eq.s32.totalorder %s20, 0
    %p292 = por %p290, %p291
    %p293 = scmp.ne.s32.totalorder %s285, %s287
    %p294 = scmp.eq.s32.totalorder %s25, 1
    %p295 = por %p293, %p294
    %p296 = scmp.ne.s32.totalorder %s287, %s288
    %p297 = scmp.eq.s32.totalorder %s25, 0
    %p298 = por %p296, %p297
    %p299 = scmp.ne.s32.totalorder %s287, %s288
    %p300 = scmp.eq.s32.totalorder %s26, 1
    %p301 = por %p299, %p300
    %p303 = scmp.ne.s32.totalorder %s288, %s302
    %p304 = scmp.eq.s32.totalorder %s26, 0
    %p305 = por %p303, %p304
    %s307 = sadd.s32 %s306, 1
    %p310 = scmp.eq.s32.totalorder %s20, 1
    %p311 = scmp.ne.s32.totalorder %s306, %s308
    %p312 = scmp.eq.s32.totalorder %s20, 0
    %p313 = por %p311, %p312
    %p314 = scmp.ne.s32.totalorder %s306, %s308
    %p315 = scmp.eq.s32.totalorder %s25, 1
    %p316 = por %p314, %p315
    %p317 = scmp.ne.s32.totalorder %s308, %s309
    %p318 = scmp.eq.s32.totalorder %s25, 0
    %p319 = por %p317, %p318
    %p320 = scmp.ne.s32.totalorder %s308, %s309
    %p321 = scmp.eq.s32.totalorder %s26, 1
    %p322 = por %p320, %p321
    %p324 = scmp.ne.s32.totalorder %s309, %s323
    %p325 = scmp.eq.s32.totalorder %s26, 0
    %p326 = por %p324, %p325
    %s327 = ssub.s32 %s20, %s27
    %p328 = scmp.eq.s32.totalorder %s327, 0
    %s330 = sadd.s32 %s329, 1
    %s331 = scalar_select %p328, %s329, %s330
    %p334 = pneg %p328
    %p335 = scmp.eq.s32.totalorder %s20, 1
    %p336 = por %p334, %p335
    %p337 = scmp.ne.s32.totalorder %s329, %s332
    %p338 = scmp.eq.s32.totalorder %s20, 0
    %p339 = por %p337, %p338
    %p340 = scmp.ne.s32.totalorder %s329, %s332
    %p341 = scmp.eq.s32.totalorder %s25, 1
    %p342 = por %p340, %p341
    %p343 = scmp.ne.s32.totalorder %s332, %s333
    %p344 = scmp.eq.s32.totalorder %s25, 0
    %p345 = por %p343, %p344
    %p346 = scmp.ne.s32.totalorder %s332, %s333
    %p347 = scmp.eq.s32.totalorder %s26, 1
    %p348 = por %p346, %p347
    %p350 = scmp.ne.s32.totalorder %s333, %s349
    %p351 = scmp.eq.s32.totalorder %s26, 0
    %p352 = por %p350, %p351
    %p353 = scmp.le.s32.totalorder 1, %s20
    %p354 = scmp.lt.s32.totalorder %s20, 3
    %p355 = pnand %p353, %p354
    %p356 = pneg %p355
    // Predicated region
    $region9: #{rdlinet_forward.7} parent=5 // pred_check
      _
    $region10: #{rdlinet_forward.7} parent=5 // pred_check_branch
      %358 = sbr.rel (%p355) target = $region12
    $region11: #{rdlinet_forward.7} parent=5 // pred_region
      %s359 = ssub.s32 %s20, 1
      // Predicated region
      $region13: #{rdlinet_forward.7} parent=11 // pred_check
        %p360 = pneg %p67
      $region14: #{rdlinet_forward.7} parent=11 // pred_check_branch
        %362 = sbr.rel (%p360) target = $region16
      $region15: #{rdlinet_forward.7} parent=11 // pred_region
        _
      $region16: #{rdlinet_forward.7} parent=11 // pred_fallthru
        _
      // Predicated region
      $region17: #{rdlinet_forward.7} parent=11 // pred_check
        %p363 = pneg %p88
      $region18: #{rdlinet_forward.7} parent=11 // pred_check_branch
        %365 = sbr.rel (%p363) target = $region20
      $region19: #{rdlinet_forward.7} parent=11 // pred_region
        _
      $region20: #{rdlinet_forward.7} parent=11 // pred_fallthru
        _
      // Predicated region
      $region21: #{rdlinet_forward.7} parent=11 // pred_check
        %p366 = pneg %p109
      $region22: #{rdlinet_forward.7} parent=11 // pred_check_branch
        %368 = sbr.rel (%p366) target = $region24
      $region23: #{rdlinet_forward.7} parent=11 // pred_region
        _
      $region24: #{rdlinet_forward.7} parent=11 // pred_fallthru
        _
      // Predicated region
      $region25: #{rdlinet_forward.7} parent=11 // pred_check
        %p369 = pneg %p130
      $region26: #{rdlinet_forward.7} parent=11 // pred_check_branch
        %371 = sbr.rel (%p369) target = $region28
      $region27: #{rdlinet_forward.7} parent=11 // pred_region
        _
      $region28: #{rdlinet_forward.7} parent=11 // pred_fallthru
        _
      // Predicated region
      $region29: #{rdlinet_forward.7} parent=11 // pred_check
        %p372 = pneg %p151
      $region30: #{rdlinet_forward.7} parent=11 // pred_check_branch
        %374 = sbr.rel (%p372) target = $region32
      $region31: #{rdlinet_forward.7} parent=11 // pred_region
        _
      $region32: #{rdlinet_forward.7} parent=11 // pred_fallthru
        _
      // Predicated region
      $region33: #{rdlinet_forward.7} parent=11 // pred_check
        %p375 = pneg %p172
      $region34: #{rdlinet_forward.7} parent=11 // pred_check_branch
        %377 = sbr.rel (%p375) target = $region36
      $region35: #{rdlinet_forward.7} parent=11 // pred_region
        _
      $region36: #{rdlinet_forward.7} parent=11 // pred_fallthru
        _
      // Predicated region
      $region37: #{rdlinet_forward.7} parent=11 // pred_check
        %p378 = pneg %p193
      $region38: #{rdlinet_forward.7} parent=11 // pred_check_branch
        %380 = sbr.rel (%p378) target = $region40
      $region39: #{rdlinet_forward.7} parent=11 // pred_region
        _
      $region40: #{rdlinet_forward.7} parent=11 // pred_fallthru
        _
      // Predicated region
      $region41: #{rdlinet_forward.7} parent=11 // pred_check
        %p381 = pneg %p214
      $region42: #{rdlinet_forward.7} parent=11 // pred_check_branch
        %383 = sbr.rel (%p381) target = $region44
      $region43: #{rdlinet_forward.7} parent=11 // pred_region
        _
      $region44: #{rdlinet_forward.7} parent=11 // pred_fallthru
        _
      // Predicated region
      $region45: #{rdlinet_forward.7} parent=11 // pred_check
        %p384 = pneg %p235
      $region46: #{rdlinet_forward.7} parent=11 // pred_check_branch
        %386 = sbr.rel (%p384) target = $region48
      $region47: #{rdlinet_forward.7} parent=11 // pred_region
        _
      $region48: #{rdlinet_forward.7} parent=11 // pred_fallthru
        _
      // Predicated region
      $region49: #{rdlinet_forward.7} parent=11 // pred_check
        %p387 = pneg %p256
      $region50: #{rdlinet_forward.7} parent=11 // pred_check_branch
        %389 = sbr.rel (%p387) target = $region52
      $region51: #{rdlinet_forward.7} parent=11 // pred_region
        _
      $region52: #{rdlinet_forward.7} parent=11 // pred_fallthru
        _
      // Predicated region
      $region53: #{rdlinet_forward.7} parent=11 // pred_check
        %p390 = pneg %p277
      $region54: #{rdlinet_forward.7} parent=11 // pred_check_branch
        %392 = sbr.rel (%p390) target = $region56
      $region55: #{rdlinet_forward.7} parent=11 // pred_region
        _
      $region56: #{rdlinet_forward.7} parent=11 // pred_fallthru
        _
      // Predicated region
      $region57: #{rdlinet_forward.7} parent=11 // pred_check
        %p393 = pneg %p298
      $region58: #{rdlinet_forward.7} parent=11 // pred_check_branch
        %395 = sbr.rel (%p393) target = $region60
      $region59: #{rdlinet_forward.7} parent=11 // pred_region
        _
      $region60: #{rdlinet_forward.7} parent=11 // pred_fallthru
        _
      // Predicated region
      $region61: #{rdlinet_forward.7} parent=11 // pred_check
        %p396 = pneg %p319
      $region62: #{rdlinet_forward.7} parent=11 // pred_check_branch
        %398 = sbr.rel (%p396) target = $region64
      $region63: #{rdlinet_forward.7} parent=11 // pred_region
        _
      $region64: #{rdlinet_forward.7} parent=11 // pred_fallthru
        _
    $region12: #{rdlinet_forward.7} parent=5 // pred_fallthru
      _
    %p399 = scmp.lt.s32.totalorder %s20, 2
    // Predicated region
    $region65: #{rdlinet_forward.7} parent=5 // pred_check
      %p400 = pneg %p399
    $region66: #{rdlinet_forward.7} parent=5 // pred_check_branch
      %402 = sbr.rel (%p400) target = $region68
    $region67: #{rdlinet_forward.7} parent=5 // pred_region
      // Predicated region
      $region69: #{rdlinet_forward.7} parent=67 // pred_check
        %p403 = pneg %p40
      $region70: #{rdlinet_forward.7} parent=67 // pred_check_branch
        %405 = sbr.rel (%p403) target = $region72
      $region71: #{rdlinet_forward.7} parent=67 // pred_region
        %p406 = scmp.lt.s32.totalorder %s20, 1
        %s407 = scalar_select %p406, %s20, 1
        %s408 = smul.addr %s407, 9
        %s409 = smul.addr %s408, 8
        %s410 = scalar_lea.vmem %s0, %s409
      $region72: #{rdlinet_forward.7} parent=67 // pred_fallthru
        _
    $region68: #{rdlinet_forward.7} parent=5 // pred_fallthru
      _
    %p411 = scmp.le.s32.totalorder 1, %s20
    %p412 = scmp.lt.s32.totalorder %s20, 3
    %p413 = pnand %p411, %p412
    %p414 = pneg %p413
    // Predicated region
    $region73: #{rdlinet_forward.7} parent=5 // pred_check
      _
    $region74: #{rdlinet_forward.7} parent=5 // pred_check_branch
      %416 = sbr.rel (%p413) target = $region76
    $region75: #{rdlinet_forward.7} parent=5 // pred_region
      %s417 = ssub.s32 %s20, 1
      %p418 = scmp.lt.s32.totalorder %s25, 1
      %s419 = scalar_select %p418, %s25, 1
      %s420 = smul.addr %s419, 9
      %s421 = smul.addr %s420, 8
      %s422 = scalar_lea.vmem %s0, %s421
      %p423 = pneg %p46
      %p424 = pneg %p43
      %p425 = pneg %p67
      %p426 = pneg %p64
      %p427 = pneg %p88
      %p428 = pneg %p85
      %p429 = pneg %p109
      %p430 = pneg %p106
      %p431 = pneg %p130
      %p432 = pneg %p127
      %p433 = pneg %p151
      %p434 = pneg %p148
      %p435 = pneg %p172
      %p436 = pneg %p169
      %p437 = pneg %p193
      %p438 = pneg %p190
      %p439 = pneg %p214
      %p440 = pneg %p211
      %p441 = pneg %p235
      %p442 = pneg %p232
      %p443 = pneg %p256
      %p444 = pneg %p253
      %p445 = pneg %p277
      %p446 = pneg %p274
      %p447 = pneg %p298
      %p448 = pneg %p295
      %p449 = pneg %p319
      %p450 = pneg %p316
      %p451 = pneg %p345
      %p452 = pneg %p342
      %p453 = scmp.lt.s32.totalorder %s25, 1
      %s454 = scalar_select %p453, %s25, 1
      %s455 = smul.addr %s454, 8
      %s456 = smul.addr %s455, 8
      %s457 = scalar_lea.vmem %s14, %s456
      %p458 = scmp.lt.s32.totalorder %s25, 1
      %s459 = scalar_select %p458, %s25, 1
      %s460 = smul.addr %s459, 9
      %s461 = smul.addr %s460, 8
      %s462 = scalar_lea.vmem %s0, %s461
      %p463 = scmp.lt.s32.totalorder %s25, 1
      %s464 = scalar_select %p463, %s25, 1
      %s465 = smul.addr %s464, 8
      %s466 = smul.addr %s465, 8
      %s467 = scalar_lea.vmem %s14, %s466
      %v468 = vld [vmem:[%s462] sm:$0xff]
      %v469 = vld [vmem:[%s462 + $0x8] sm:$0xff]
      %v470 = vld [vmem:[%s462 + $0x10] sm:$0xff]
      %v471 = vld [vmem:[%s462 + $0x18] sm:$0xff]
      %v472 = vld [vmem:[%s462 + $0x20] sm:$0xff]
      %v473 = vld [vmem:[%s462 + $0x28] sm:$0xff]
      %v474 = vld [vmem:[%s462 + $0x30] sm:$0xff]
      %v475 = vld [vmem:[%s462 + $0x38] sm:$0xff]
      %v476 = vld [vmem:[%s462 + $0x40] sm:$0xf]
      %v477 = vld [vmem:[%s2] sm:$0xff]
      %v478 = vld [vmem:[%s2 + $0x8] sm:$0xff]
      %v479 = vld [vmem:[%s2 + $0x10] sm:$0xff]
      %v480 = vld [vmem:[%s2 + $0x18] sm:$0xff]
      %v481 = vld [vmem:[%s3] sm:$0x1]
      %v483 = vlaneseq
      %v484 = vshrl.u32 %v483, 7
      %v485 = vsub.s32 0, %v484
      %v486 = vrot.slane %v481, %v485
      %vm493 = vcmask 1045504
      %v494 = vrot.slane %v470, 2
      %v495 = vrot.slane %v471, 2
      %v496 = vsel %vm493, %v494, %v495
      %v497 = vrot.slane %v472, 2
      %v498 = vsel %vm493, %v495, %v497
      %v499 = vrot.slane %v473, 2
      %v500 = vsel %vm493, %v497, %v499
      %v501 = vrot.slane %v474, 2
      %v502 = vsel %vm493, %v499, %v501
      %vm503 = vcmask 261120
      %v504 = vsel %vm503, %v496, 0
      %v506 = vsel %vm503, %v498, 0
      %v508 = vsel %vm503, %v500, 0
      %v510 = vsel %vm503, %v502, 0
      %512 = vmatprep.subr.mxu0 0.0
      %513 = vmatpush1.msra.mxu0 0.0
      %514 = vmatprep.subr.mxu0 0.0
      %515 = vmatpush1.msra.mxu0 0.0
      %516 = vmatprep.subr.mxu0 0.0
      %517 = vmatpush1.msra.mxu0 0.0
      %518 = vmatprep.subr.mxu0 0.0
      %519 = vmatpush1.msra.mxu0 0.0
      %520 = vmatprep.subr.mxu0 0.0
      %521 = vmatpush1.msra.mxu0 0.0
      %522 = vmatprep.subr.mxu0 0.0
      %523 = vmatpush1.msra.mxu0 0.0
      %524 = vmatprep.subr.mxu0 0.0
      %525 = vmatpush1.msra.mxu0 0.0
      %526 = vmatprep.subr.mxu0 0.0
      %527 = vmatpush1.msra.mxu0 0.0
      %528 = vmatprep.subr.mxu0 0.0
      %529 = vmatpush1.msra.mxu0 0.0
      %530 = vmatprep.subr.mxu0 0.0
      %531 = vmatpush1.msra.mxu0 0.0
      %532 = vmatprep.subr.mxu0 0.0
      %533 = vmatpush1.msra.mxu0 0.0
      %534 = vmatprep.subr.mxu0 0.0
      %535 = vmatpush1.msra.mxu0 0.0
      %536 = vmatprep.subr.mxu0 0.0
      %537 = vmatpush1.msra.mxu0 %v480
      %538 = vmatprep.subr.mxu0 0.0
      %539 = vmatpush1.msra.mxu0 %v479
      %540 = vmatprep.subr.mxu0 0.0
      %541 = vmatpush1.msra.mxu0 %v478
      %542 = vmatprep.subr.mxu0 0.0
      %543 = vmatpush1.msra.mxu0 %v477
      %544 = vmatprep.subr.mxu0 0.0
      %545 = vmatpush2.msra.mxu0 0.0
      %546 = vmatprep.subr.mxu0 0.0
      %547 = vmatpush2.msra.mxu0 0.0
      %548 = vmatprep.subr.mxu0 0.0
      %549 = vmatpush2.msra.mxu0 0.0
      %550 = vmatprep.subr.mxu0 0.0
      %551 = vmatpush2.msra.mxu0 0.0
      %552 = vmatprep.subr.mxu0 0.0
      %553 = vmatpush2.msra.mxu0 0.0
      %554 = vmatprep.subr.mxu0 0.0
      %555 = vmatpush2.msra.mxu0 0.0
      %556 = vmatprep.subr.mxu0 0.0
      %557 = vmatpush2.msra.mxu0 0.0
      %558 = vmatprep.subr.mxu0 0.0
      %559 = vmatpush2.msra.mxu0 0.0
      %560 = vmatprep.subr.mxu0 0.0
      %561 = vmatpush2.msra.mxu0 0.0
      %562 = vmatprep.subr.mxu0 0.0
      %563 = vmatpush2.msra.mxu0 0.0
      %564 = vmatprep.subr.mxu0 0.0
      %565 = vmatpush2.msra.mxu0 0.0
      %566 = vmatprep.subr.mxu0 0.0
      %567 = vmatpush2.msra.mxu0 0.0
      %568 = vmatprep.subr.mxu0 0.0
      %569 = vmatpush2.msra.mxu0 0.0
      %570 = vmatprep.subr.mxu0 0.0
      %571 = vmatpush2.msra.mxu0 0.0
      %572 = vmatprep.subr.mxu0 0.0
      %573 = vmatpush2.msra.mxu0 0.0
      %574 = vmatprep.subr.mxu0 0.0
      %575 = vmatpush2.msra.mxu0 0.0
      %576 = vmatprep.mubr.f32.mxu0 0.0
      %577 = vmatmul.mubr.f32.gmra.mxu0 %v504
      %v578 = vpop.f32.mrf.mxu0
      %v579 = vadd.f32 %v486, %v578
      %v580 = vpop.f32.mrf.mxu0
      %581 = vmatprep.mubr.f32.mxu0 0.0
      %582 = vmatmul.mubr.f32.gmra.mxu0 %v506
      %v583 = vpop.f32.mrf.mxu0
      %v584 = vadd.f32 %v486, %v583
      %v585 = vpop.f32.mrf.mxu0
      %586 = vmatprep.mubr.f32.mxu0 0.0
      %587 = vmatmul.mubr.f32.gmra.mxu0 %v508
      %v588 = vpop.f32.mrf.mxu0
      %v589 = vadd.f32 %v486, %v588
      %v590 = vpop.f32.mrf.mxu0
      %591 = vmatprep.mubr.f32.mxu0 0.0
      %592 = vmatmul.mubr.f32.gmra.mxu0 %v510
      %v593 = vpop.f32.mrf.mxu0
      %v594 = vadd.f32 %v486, %v593
      %v595 = vpop.f32.mrf.mxu0
      %596 = vdwg.mxu0
      %vm597 = vcmp.gt.f32.partialorder %v579, 0.0
      %vm598 = vcmp.gt.f32.partialorder %v584, 0.0
      %vm599 = vcmp.gt.f32.partialorder %v589, 0.0
      %vm600 = vcmp.gt.f32.partialorder %v594, 0.0
      %v601 = vmul.f32 %v579, 0.3
      %v602 = vmul.f32 %v584, 0.3
      %v603 = vmul.f32 %v589, 0.3
      %v604 = vmul.f32 %v594, 0.3
      %v605 = vsel %vm597, %v579, %v601
      %v606 = vsel %vm598, %v584, %v602
      %v607 = vsel %vm599, %v589, %v603
      %v608 = vsel %vm600, %v594, %v604
      %vm609 = vcmask 130048
      %610 = vst.msk [vmem:[%s467] sm:$0xff] %vm609, %v605
      %611 = vst.msk [vmem:[%s467 + $0x10] sm:$0xff] %vm609, %v606
      %612 = vst.msk [vmem:[%s467 + $0x20] sm:$0xff] %vm609, %v607
      %613 = vst.msk [vmem:[%s467 + $0x30] sm:$0xff] %vm609, %v608
      %v614 = vld [vmem:[%s4] sm:$0x1]
      %v615 = vlaneseq
      %v616 = vshrl.u32 %v615, 7
      %v617 = vsub.s32 0, %v616
      %v618 = vrot.slane %v614, %v617
      %v619 = vmul.f32 %v469, %v618
      %v620 = vmul.f32 %v470, %v618
      %v621 = vmul.f32 %v471, %v618
      %v622 = vmul.f32 %v472, %v618
      %v623 = vmul.f32 %v473, %v618
      %v624 = vld [vmem:[%s4 + $0x1] sm:$0x1]
      %v625 = vlaneseq
      %v626 = vshrl.u32 %v625, 7
      %v627 = vsub.s32 0, %v626
      %v628 = vrot.slane %v624, %v627
      %v629 = vmul.f32 %v469, %v628
      %v630 = vmul.f32 %v470, %v628
      %v631 = vmul.f32 %v471, %v628
      %v632 = vmul.f32 %v472, %v628
      %v633 = vmul.f32 %v473, %v628
      %vm639 = vcmask 1046528
      %v640 = vrot.slane %v629, 1
      %v641 = vrot.slane %v630, 1
      %v642 = vsel %vm639, %v640, %v641
      %v643 = vrot.slane %v631, 1
      %v644 = vsel %vm639, %v641, %v643
      %v645 = vrot.slane %v632, 1
      %v646 = vsel %vm639, %v643, %v645
      %v647 = vrot.slane %v633, 1
      %v648 = vsel %vm639, %v645, %v647
      %v654 = vadd.f32 %v619, %v642
      %v655 = vadd.f32 %v620, %v644
      %v656 = vadd.f32 %v621, %v646
      %v657 = vadd.f32 %v622, %v648
      %v658 = vadd.f32 %v623, %v647
      %v659 = vld [vmem:[%s4 + $0x2] sm:$0x1]
      %v660 = vlaneseq
      %v661 = vshrl.u32 %v660, 7
      %v662 = vsub.s32 0, %v661
      %v663 = vrot.slane %v659, %v662
      %v664 = vmul.f32 %v469, %v663
      %v665 = vmul.f32 %v470, %v663
      %v666 = vmul.f32 %v471, %v663
      %v667 = vmul.f32 %v472, %v663
      %v668 = vmul.f32 %v473, %v663
      %v674 = vrot.slane %v664, 2
      %v675 = vrot.slane %v665, 2
      %v676 = vsel %vm493, %v674, %v675
      %v677 = vrot.slane %v666, 2
      %v678 = vsel %vm493, %v675, %v677
      %v679 = vrot.slane %v667, 2
      %v680 = vsel %vm493, %v677, %v679
      %v681 = vrot.slane %v668, 2
      %v682 = vsel %vm493, %v679, %v681
      %v688 = vadd.f32 %v654, %v676
      %v689 = vadd.f32 %v655, %v678
      %v690 = vadd.f32 %v656, %v680
      %v691 = vadd.f32 %v657, %v682
      %v692 = vadd.f32 %v658, %v681
      %v693 = vld [vmem:[%s4 + $0x3] sm:$0x1]
      %v694 = vlaneseq
      %v695 = vshrl.u32 %v694, 7
      %v696 = vsub.s32 0, %v695
      %v697 = vrot.slane %v693, %v696
      %v698 = vmul.f32 %v470, %v697
      %v699 = vmul.f32 %v471, %v697
      %v700 = vmul.f32 %v472, %v697
      %v701 = vmul.f32 %v473, %v697
      %v702 = vmul.f32 %v474, %v697
      %v703 = vadd.f32 %v688, %v698
      %v704 = vadd.f32 %v689, %v699
      %v705 = vadd.f32 %v690, %v700
      %v706 = vadd.f32 %v691, %v701
      %v707 = vadd.f32 %v692, %v702
      %v708 = vld [vmem:[%s4 + $0x4] sm:$0x1]
      %v709 = vlaneseq
      %v710 = vshrl.u32 %v709, 7
      %v711 = vsub.s32 0, %v710
      %v712 = vrot.slane %v708, %v711
      %v713 = vmul.f32 %v470, %v712
      %v714 = vmul.f32 %v471, %v712
      %v715 = vmul.f32 %v472, %v712
      %v716 = vmul.f32 %v473, %v712
      %v717 = vmul.f32 %v474, %v712
      %v723 = vrot.slane %v713, 1
      %v724 = vrot.slane %v714, 1
      %v725 = vsel %vm639, %v723, %v724
      %v726 = vrot.slane %v715, 1
      %v727 = vsel %vm639, %v724, %v726
      %v728 = vrot.slane %v716, 1
      %v729 = vsel %vm639, %v726, %v728
      %v730 = vrot.slane %v717, 1
      %v731 = vsel %vm639, %v728, %v730
      %v737 = vadd.f32 %v703, %v725
      %v738 = vadd.f32 %v704, %v727
      %v739 = vadd.f32 %v705, %v729
      %v740 = vadd.f32 %v706, %v731
      %v741 = vadd.f32 %v707, %v730
      %v742 = vld [vmem:[%s4 + $0x5] sm:$0x1]
      %v743 = vlaneseq
      %v744 = vshrl.u32 %v743, 7
      %v745 = vsub.s32 0, %v744
      %v746 = vrot.slane %v742, %v745
      %v747 = vmul.f32 %v470, %v746
      %v748 = vmul.f32 %v471, %v746
      %v749 = vmul.f32 %v472, %v746
      %v750 = vmul.f32 %v473, %v746
      %v751 = vmul.f32 %v474, %v746
      %v757 = vrot.slane %v747, 2
      %v758 = vrot.slane %v748, 2
      %v759 = vsel %vm493, %v757, %v758
      %v760 = vrot.slane %v749, 2
      %v761 = vsel %vm493, %v758, %v760
      %v762 = vrot.slane %v750, 2
      %v763 = vsel %vm493, %v760, %v762
      %v764 = vrot.slane %v751, 2
      %v765 = vsel %vm493, %v762, %v764
      %v771 = vadd.f32 %v737, %v759
      %v772 = vadd.f32 %v738, %v761
      %v773 = vadd.f32 %v739, %v763
      %v774 = vadd.f32 %v740, %v765
      %v775 = vadd.f32 %v741, %v764
      %v776 = vld [vmem:[%s4 + $0x6] sm:$0x1]
      %v777 = vlaneseq
      %v778 = vshrl.u32 %v777, 7
      %v779 = vsub.s32 0, %v778
      %v780 = vrot.slane %v776, %v779
      %v781 = vmul.f32 %v471, %v780
      %v782 = vmul.f32 %v472, %v780
      %v783 = vmul.f32 %v473, %v780
      %v784 = vmul.f32 %v474, %v780
      %v785 = vmul.f32 %v475, %v780
      %v786 = vadd.f32 %v771, %v781
      %v787 = vadd.f32 %v772, %v782
      %v788 = vadd.f32 %v773, %v783
      %v789 = vadd.f32 %v774, %v784
      %v790 = vadd.f32 %v775, %v785
      %v791 = vld [vmem:[%s4 + $0x7] sm:$0x1]
      %v792 = vlaneseq
      %v793 = vshrl.u32 %v792, 7
      %v794 = vsub.s32 0, %v793
      %v795 = vrot.slane %v791, %v794
      %v796 = vmul.f32 %v471, %v795
      %v797 = vmul.f32 %v472, %v795
      %v798 = vmul.f32 %v473, %v795
      %v799 = vmul.f32 %v474, %v795
      %v800 = vmul.f32 %v475, %v795
      %v806 = vrot.slane %v796, 1
      %v807 = vrot.slane %v797, 1
      %v808 = vsel %vm639, %v806, %v807
      %v809 = vrot.slane %v798, 1
      %v810 = vsel %vm639, %v807, %v809
      %v811 = vrot.slane %v799, 1
      %v812 = vsel %vm639, %v809, %v811
      %v813 = vrot.slane %v800, 1
      %v814 = vsel %vm639, %v811, %v813
      %v820 = vadd.f32 %v786, %v808
      %v821 = vadd.f32 %v787, %v810
      %v822 = vadd.f32 %v788, %v812
      %v823 = vadd.f32 %v789, %v814
      %v824 = vadd.f32 %v790, %v813
      %v825 = vld [vmem:[%s4 + $0x8] sm:$0x1]
      %v826 = vlaneseq
      %v827 = vshrl.u32 %v826, 7
      %v828 = vsub.s32 0, %v827
      %v829 = vrot.slane %v825, %v828
      %v830 = vmul.f32 %v471, %v829
      %v831 = vmul.f32 %v472, %v829
      %v832 = vmul.f32 %v473, %v829
      %v833 = vmul.f32 %v474, %v829
      %v834 = vmul.f32 %v475, %v829
      %v840 = vrot.slane %v830, 2
      %v841 = vrot.slane %v831, 2
      %v842 = vsel %vm493, %v840, %v841
      %v843 = vrot.slane %v832, 2
      %v844 = vsel %vm493, %v841, %v843
      %v845 = vrot.slane %v833, 2
      %v846 = vsel %vm493, %v843, %v845
      %v847 = vrot.slane %v834, 2
      %v848 = vsel %vm493, %v845, %v847
      %v854 = vadd.f32 %v820, %v842
      %v855 = vadd.f32 %v821, %v844
      %v856 = vadd.f32 %v822, %v846
      %v857 = vadd.f32 %v823, %v848
      %v858 = vadd.f32 %v824, %v847
      %v859 = vld [vmem:[%s5] sm:$0x1]
      %v861 = vlaneseq
      %v862 = vshrl.u32 %v861, 7
      %v863 = vsub.s32 0, %v862
      %v864 = vrot.slane %v859, %v863
      %v866 = vadd.f32 %v854, %v864
      %v867 = vadd.f32 %v855, %v864
      %v868 = vadd.f32 %v856, %v864
      %v869 = vadd.f32 %v857, %v864
      %v870 = vadd.f32 %v858, %v864
      %v871 = vld [vmem:[%s6] sm:$0xff]
      %v872 = vld [vmem:[%s6 + $0x8] sm:$0xff]
      %v873 = vld [vmem:[%s6 + $0x10] sm:$0xff]
      %v874 = vld [vmem:[%s6 + $0x18] sm:$0xff]
      %v875 = vld [vmem:[%s7] sm:$0x1]
      %v877 = vlaneseq
      %v878 = vshrl.u32 %v877, 7
      %v879 = vsub.s32 0, %v878
      %v880 = vrot.slane %v875, %v879
      %v887 = vrot.slane %v866, 1
      %v888 = vrot.slane %v867, 1
      %v889 = vsel %vm639, %v887, %v888
      %v890 = vrot.slane %v868, 1
      %v891 = vsel %vm639, %v888, %v890
      %v892 = vrot.slane %v869, 1
      %v893 = vsel %vm639, %v890, %v892
      %v894 = vrot.slane %v870, 1
      %v895 = vsel %vm639, %v892, %v894
      %v896 = vsel %vm503, %v889, 0
      %v898 = vsel %vm503, %v891, 0
      %v900 = vsel %vm503, %v893, 0
      %v902 = vsel %vm503, %v895, 0
      %904 = vmatprep.subr.mxu0 0.0
      %905 = vmatpush1.msra.mxu0 0.0
      %906 = vmatprep.subr.mxu0 0.0
      %907 = vmatpush1.msra.mxu0 0.0
      %908 = vmatprep.subr.mxu0 0.0
      %909 = vmatpush1.msra.mxu0 0.0
      %910 = vmatprep.subr.mxu0 0.0
      %911 = vmatpush1.msra.mxu0 0.0
      %912 = vmatprep.subr.mxu0 0.0
      %913 = vmatpush1.msra.mxu0 0.0
      %914 = vmatprep.subr.mxu0 0.0
      %915 = vmatpush1.msra.mxu0 0.0
      %916 = vmatprep.subr.mxu0 0.0
      %917 = vmatpush1.msra.mxu0 0.0
      %918 = vmatprep.subr.mxu0 0.0
      %919 = vmatpush1.msra.mxu0 0.0
      %920 = vmatprep.subr.mxu0 0.0
      %921 = vmatpush1.msra.mxu0 0.0
      %922 = vmatprep.subr.mxu0 0.0
      %923 = vmatpush1.msra.mxu0 0.0
      %924 = vmatprep.subr.mxu0 0.0
      %925 = vmatpush1.msra.mxu0 0.0
      %926 = vmatprep.subr.mxu0 0.0
      %927 = vmatpush1.msra.mxu0 0.0
      %928 = vmatprep.subr.mxu0 0.0
      %929 = vmatpush1.msra.mxu0 %v874
      %930 = vmatprep.subr.mxu0 0.0
      %931 = vmatpush1.msra.mxu0 %v873
      %932 = vmatprep.subr.mxu0 0.0
      %933 = vmatpush1.msra.mxu0 %v872
      %934 = vmatprep.subr.mxu0 0.0
      %935 = vmatpush1.msra.mxu0 %v871
      %936 = vmatprep.subr.mxu0 0.0
      %937 = vmatpush2.msra.mxu0 0.0
      %938 = vmatprep.subr.mxu0 0.0
      %939 = vmatpush2.msra.mxu0 0.0
      %940 = vmatprep.subr.mxu0 0.0
      %941 = vmatpush2.msra.mxu0 0.0
      %942 = vmatprep.subr.mxu0 0.0
      %943 = vmatpush2.msra.mxu0 0.0
      %944 = vmatprep.subr.mxu0 0.0
      %945 = vmatpush2.msra.mxu0 0.0
      %946 = vmatprep.subr.mxu0 0.0
      %947 = vmatpush2.msra.mxu0 0.0
      %948 = vmatprep.subr.mxu0 0.0
      %949 = vmatpush2.msra.mxu0 0.0
      %950 = vmatprep.subr.mxu0 0.0
      %951 = vmatpush2.msra.mxu0 0.0
      %952 = vmatprep.subr.mxu0 0.0
      %953 = vmatpush2.msra.mxu0 0.0
      %954 = vmatprep.subr.mxu0 0.0
      %955 = vmatpush2.msra.mxu0 0.0
      %956 = vmatprep.subr.mxu0 0.0
      %957 = vmatpush2.msra.mxu0 0.0
      %958 = vmatprep.subr.mxu0 0.0
      %959 = vmatpush2.msra.mxu0 0.0
      %960 = vmatprep.subr.mxu0 0.0
      %961 = vmatpush2.msra.mxu0 0.0
      %962 = vmatprep.subr.mxu0 0.0
      %963 = vmatpush2.msra.mxu0 0.0
      %964 = vmatprep.subr.mxu0 0.0
      %965 = vmatpush2.msra.mxu0 0.0
      %966 = vmatprep.subr.mxu0 0.0
      %967 = vmatpush2.msra.mxu0 0.0
      %968 = vmatprep.mubr.f32.mxu0 0.0
      %969 = vmatmul.mubr.f32.gmra.mxu0 %v896
      %v970 = vpop.f32.mrf.mxu0
      %v971 = vadd.f32 %v880, %v970
      %v972 = vpop.f32.mrf.mxu0
      %973 = vmatprep.mubr.f32.mxu0 0.0
      %974 = vmatmul.mubr.f32.gmra.mxu0 %v898
      %v975 = vpop.f32.mrf.mxu0
      %v976 = vadd.f32 %v880, %v975
      %v977 = vpop.f32.mrf.mxu0
      %978 = vmatprep.mubr.f32.mxu0 0.0
      %979 = vmatmul.mubr.f32.gmra.mxu0 %v900
      %v980 = vpop.f32.mrf.mxu0
      %v981 = vadd.f32 %v880, %v980
      %v982 = vpop.f32.mrf.mxu0
      %983 = vmatprep.mubr.f32.mxu0 0.0
      %984 = vmatmul.mubr.f32.gmra.mxu0 %v902
      %v985 = vpop.f32.mrf.mxu0
      %v986 = vadd.f32 %v880, %v985
      %v987 = vpop.f32.mrf.mxu0
      %988 = vdwg.mxu0
      %vm989 = vcmp.gt.f32.partialorder %v971, 0.0
      %vm990 = vcmp.gt.f32.partialorder %v976, 0.0
      %vm991 = vcmp.gt.f32.partialorder %v981, 0.0
      %vm992 = vcmp.gt.f32.partialorder %v986, 0.0
      %v993 = vmul.f32 %v971, 0.3
      %v994 = vmul.f32 %v976, 0.3
      %v995 = vmul.f32 %v981, 0.3
      %v996 = vmul.f32 %v986, 0.3
      %v997 = vsel %vm989, %v971, %v993
      %v998 = vsel %vm990, %v976, %v994
      %v999 = vsel %vm991, %v981, %v995
      %v1000 = vsel %vm992, %v986, %v996
      %1005 = vrot.lane.b32.xlu0 %v997, 16
      %v1006 = vpop.permute.xlu0 %1005
      %1007 = vrot.lane.b32.xlu0 %v998, 16
      %v1008 = vpop.permute.xlu0 %1007
      %1009 = vrot.lane.b32.xlu0 %v999, 16
      %v1010 = vpop.permute.xlu0 %1009
      %1011 = vrot.lane.b32.xlu0 %v1000, 16
      %v1012 = vpop.permute.xlu0 %1011
      %vm1017 = vcmask 523392
      %1018 = vst.msk [vmem:[%s467] sm:$0xff] %vm1017, %v1006
      %1019 = vst.msk [vmem:[%s467 + $0x10] sm:$0xff] %vm1017, %v1008
      %1020 = vst.msk [vmem:[%s467 + $0x20] sm:$0xff] %vm1017, %v1010
      %1021 = vst.msk [vmem:[%s467 + $0x30] sm:$0xff] %vm1017, %v1012
      %v1022 = vld [vmem:[%s8] sm:$0x1]
      %v1023 = vlaneseq
      %v1024 = vshrl.u32 %v1023, 7
      %v1025 = vsub.s32 0, %v1024
      %v1026 = vrot.slane %v1022, %v1025
      %v1027 = vmul.f32 %v468, %v1026
      %v1028 = vmul.f32 %v469, %v1026
      %v1029 = vmul.f32 %v470, %v1026
      %v1030 = vmul.f32 %v471, %v1026
      %v1031 = vld [vmem:[%s8 + $0x1] sm:$0x1]
      %v1032 = vlaneseq
      %v1033 = vshrl.u32 %v1032, 7
      %v1034 = vsub.s32 0, %v1033
      %v1035 = vrot.slane %v1031, %v1034
      %v1036 = vmul.f32 %v468, %v1035
      %v1037 = vmul.f32 %v469, %v1035
      %v1038 = vmul.f32 %v470, %v1035
      %v1039 = vmul.f32 %v471, %v1035
      %v1040 = vmul.f32 %v472, %v1035
      %v1046 = vrot.slane %v1036, 1
      %v1047 = vrot.slane %v1037, 1
      %v1048 = vsel %vm639, %v1046, %v1047
      %v1049 = vrot.slane %v1038, 1
      %v1050 = vsel %vm639, %v1047, %v1049
      %v1051 = vrot.slane %v1039, 1
      %v1052 = vsel %vm639, %v1049, %v1051
      %v1053 = vrot.slane %v1040, 1
      %v1054 = vsel %vm639, %v1051, %v1053
      %v1059 = vadd.f32 %v1027, %v1048
      %v1060 = vadd.f32 %v1028, %v1050
      %v1061 = vadd.f32 %v1029, %v1052
      %v1062 = vadd.f32 %v1030, %v1054
      %v1063 = vld [vmem:[%s8 + $0x2] sm:$0x1]
      %v1064 = vlaneseq
      %v1065 = vshrl.u32 %v1064, 7
      %v1066 = vsub.s32 0, %v1065
      %v1067 = vrot.slane %v1063, %v1066
      %v1068 = vmul.f32 %v468, %v1067
      %v1069 = vmul.f32 %v469, %v1067
      %v1070 = vmul.f32 %v470, %v1067
      %v1071 = vmul.f32 %v471, %v1067
      %v1072 = vmul.f32 %v472, %v1067
      %v1078 = vrot.slane %v1068, 2
      %v1079 = vrot.slane %v1069, 2
      %v1080 = vsel %vm493, %v1078, %v1079
      %v1081 = vrot.slane %v1070, 2
      %v1082 = vsel %vm493, %v1079, %v1081
      %v1083 = vrot.slane %v1071, 2
      %v1084 = vsel %vm493, %v1081, %v1083
      %v1085 = vrot.slane %v1072, 2
      %v1086 = vsel %vm493, %v1083, %v1085
      %v1091 = vadd.f32 %v1059, %v1080
      %v1092 = vadd.f32 %v1060, %v1082
      %v1093 = vadd.f32 %v1061, %v1084
      %v1094 = vadd.f32 %v1062, %v1086
      %v1095 = vld [vmem:[%s8 + $0x3] sm:$0x1]
      %v1096 = vlaneseq
      %v1097 = vshrl.u32 %v1096, 7
      %v1098 = vsub.s32 0, %v1097
      %v1099 = vrot.slane %v1095, %v1098
      %v1100 = vmul.f32 %v468, %v1099
      %v1101 = vmul.f32 %v469, %v1099
      %v1102 = vmul.f32 %v470, %v1099
      %v1103 = vmul.f32 %v471, %v1099
      %v1104 = vmul.f32 %v472, %v1099
      %vm1110 = vcmask 1044480
      %v1111 = vrot.slane %v1100, 3
      %v1112 = vrot.slane %v1101, 3
      %v1113 = vsel %vm1110, %v1111, %v1112
      %v1114 = vrot.slane %v1102, 3
      %v1115 = vsel %vm1110, %v1112, %v1114
      %v1116 = vrot.slane %v1103, 3
      %v1117 = vsel %vm1110, %v1114, %v1116
      %v1118 = vrot.slane %v1104, 3
      %v1119 = vsel %vm1110, %v1116, %v1118
      %v1124 = vadd.f32 %v1091, %v1113
      %v1125 = vadd.f32 %v1092, %v1115
      %v1126 = vadd.f32 %v1093, %v1117
      %v1127 = vadd.f32 %v1094, %v1119
      %v1128 = vld [vmem:[%s8 + $0x4] sm:$0x1]
      %v1129 = vlaneseq
      %v1130 = vshrl.u32 %v1129, 7
      %v1131 = vsub.s32 0, %v1130
      %v1132 = vrot.slane %v1128, %v1131
      %v1133 = vmul.f32 %v468, %v1132
      %v1134 = vmul.f32 %v469, %v1132
      %v1135 = vmul.f32 %v470, %v1132
      %v1136 = vmul.f32 %v471, %v1132
      %v1137 = vmul.f32 %v472, %v1132
      %vm1143 = vcmask 1043456
      %v1144 = vrot.slane %v1133, 4
      %v1145 = vrot.slane %v1134, 4
      %v1146 = vsel %vm1143, %v1144, %v1145
      %v1147 = vrot.slane %v1135, 4
      %v1148 = vsel %vm1143, %v1145, %v1147
      %v1149 = vrot.slane %v1136, 4
      %v1150 = vsel %vm1143, %v1147, %v1149
      %v1151 = vrot.slane %v1137, 4
      %v1152 = vsel %vm1143, %v1149, %v1151
      %v1157 = vadd.f32 %v1124, %v1146
      %v1158 = vadd.f32 %v1125, %v1148
      %v1159 = vadd.f32 %v1126, %v1150
      %v1160 = vadd.f32 %v1127, %v1152
      %v1161 = vld [vmem:[%s8 + $0x5] sm:$0x1]
      %v1162 = vlaneseq
      %v1163 = vshrl.u32 %v1162, 7
      %v1164 = vsub.s32 0, %v1163
      %v1165 = vrot.slane %v1161, %v1164
      %v1166 = vmul.f32 %v469, %v1165
      %v1167 = vmul.f32 %v470, %v1165
      %v1168 = vmul.f32 %v471, %v1165
      %v1169 = vmul.f32 %v472, %v1165
      %v1170 = vadd.f32 %v1157, %v1166
      %v1171 = vadd.f32 %v1158, %v1167
      %v1172 = vadd.f32 %v1159, %v1168
      %v1173 = vadd.f32 %v1160, %v1169
      %v1174 = vld [vmem:[%s8 + $0x6] sm:$0x1]
      %v1175 = vlaneseq
      %v1176 = vshrl.u32 %v1175, 7
      %v1177 = vsub.s32 0, %v1176
      %v1178 = vrot.slane %v1174, %v1177
      %v1179 = vmul.f32 %v469, %v1178
      %v1180 = vmul.f32 %v470, %v1178
      %v1181 = vmul.f32 %v471, %v1178
      %v1182 = vmul.f32 %v472, %v1178
      %v1183 = vmul.f32 %v473, %v1178
      %v1189 = vrot.slane %v1179, 1
      %v1190 = vrot.slane %v1180, 1
      %v1191 = vsel %vm639, %v1189, %v1190
      %v1192 = vrot.slane %v1181, 1
      %v1193 = vsel %vm639, %v1190, %v1192
      %v1194 = vrot.slane %v1182, 1
      %v1195 = vsel %vm639, %v1192, %v1194
      %v1196 = vrot.slane %v1183, 1
      %v1197 = vsel %vm639, %v1194, %v1196
      %v1202 = vadd.f32 %v1170, %v1191
      %v1203 = vadd.f32 %v1171, %v1193
      %v1204 = vadd.f32 %v1172, %v1195
      %v1205 = vadd.f32 %v1173, %v1197
      %v1206 = vld [vmem:[%s8 + $0x7] sm:$0x1]
      %v1207 = vlaneseq
      %v1208 = vshrl.u32 %v1207, 7
      %v1209 = vsub.s32 0, %v1208
      %v1210 = vrot.slane %v1206, %v1209
      %v1211 = vmul.f32 %v469, %v1210
      %v1212 = vmul.f32 %v470, %v1210
      %v1213 = vmul.f32 %v471, %v1210
      %v1214 = vmul.f32 %v472, %v1210
      %v1215 = vmul.f32 %v473, %v1210
      %v1221 = vrot.slane %v1211, 2
      %v1222 = vrot.slane %v1212, 2
      %v1223 = vsel %vm493, %v1221, %v1222
      %v1224 = vrot.slane %v1213, 2
      %v1225 = vsel %vm493, %v1222, %v1224
      %v1226 = vrot.slane %v1214, 2
      %v1227 = vsel %vm493, %v1224, %v1226
      %v1228 = vrot.slane %v1215, 2
      %v1229 = vsel %vm493, %v1226, %v1228
      %v1234 = vadd.f32 %v1202, %v1223
      %v1235 = vadd.f32 %v1203, %v1225
      %v1236 = vadd.f32 %v1204, %v1227
      %v1237 = vadd.f32 %v1205, %v1229
      %v1238 = vld [vmem:[%s8 + $0x8] sm:$0x1]
      %v1239 = vlaneseq
      %v1240 = vshrl.u32 %v1239, 7
      %v1241 = vsub.s32 0, %v1240
      %v1242 = vrot.slane %v1238, %v1241
      %v1243 = vmul.f32 %v469, %v1242
      %v1244 = vmul.f32 %v470, %v1242
      %v1245 = vmul.f32 %v471, %v1242
      %v1246 = vmul.f32 %v472, %v1242
      %v1247 = vmul.f32 %v473, %v1242
      %v1253 = vrot.slane %v1243, 3
      %v1254 = vrot.slane %v1244, 3
      %v1255 = vsel %vm1110, %v1253, %v1254
      %v1256 = vrot.slane %v1245, 3
      %v1257 = vsel %vm1110, %v1254, %v1256
      %v1258 = vrot.slane %v1246, 3
      %v1259 = vsel %vm1110, %v1256, %v1258
      %v1260 = vrot.slane %v1247, 3
      %v1261 = vsel %vm1110, %v1258, %v1260
      %v1266 = vadd.f32 %v1234, %v1255
      %v1267 = vadd.f32 %v1235, %v1257
      %v1268 = vadd.f32 %v1236, %v1259
      %v1269 = vadd.f32 %v1237, %v1261
      %v1270 = vld [vmem:[%s8 + $0x9] sm:$0x1]
      %v1271 = vlaneseq
      %v1272 = vshrl.u32 %v1271, 7
      %v1273 = vsub.s32 0, %v1272
      %v1274 = vrot.slane %v1270, %v1273
      %v1275 = vmul.f32 %v469, %v1274
      %v1276 = vmul.f32 %v470, %v1274
      %v1277 = vmul.f32 %v471, %v1274
      %v1278 = vmul.f32 %v472, %v1274
      %v1279 = vmul.f32 %v473, %v1274
      %v1285 = vrot.slane %v1275, 4
      %v1286 = vrot.slane %v1276, 4
      %v1287 = vsel %vm1143, %v1285, %v1286
      %v1288 = vrot.slane %v1277, 4
      %v1289 = vsel %vm1143, %v1286, %v1288
      %v1290 = vrot.slane %v1278, 4
      %v1291 = vsel %vm1143, %v1288, %v1290
      %v1292 = vrot.slane %v1279, 4
      %v1293 = vsel %vm1143, %v1290, %v1292
      %v1298 = vadd.f32 %v1266, %v1287
      %v1299 = vadd.f32 %v1267, %v1289
      %v1300 = vadd.f32 %v1268, %v1291
      %v1301 = vadd.f32 %v1269, %v1293
      %v1302 = vld [vmem:[%s8 + $0xa] sm:$0x1]
      %v1303 = vlaneseq
      %v1304 = vshrl.u32 %v1303, 7
      %v1305 = vsub.s32 0, %v1304
      %v1306 = vrot.slane %v1302, %v1305
      %v1307 = vmul.f32 %v470, %v1306
      %v1308 = vmul.f32 %v471, %v1306
      %v1309 = vmul.f32 %v472, %v1306
      %v1310 = vmul.f32 %v473, %v1306
      %v1311 = vadd.f32 %v1298, %v1307
      %v1312 = vadd.f32 %v1299, %v1308
      %v1313 = vadd.f32 %v1300, %v1309
      %v1314 = vadd.f32 %v1301, %v1310
      %v1315 = vld [vmem:[%s8 + $0xb] sm:$0x1]
      %v1316 = vlaneseq
      %v1317 = vshrl.u32 %v1316, 7
      %v1318 = vsub.s32 0, %v1317
      %v1319 = vrot.slane %v1315, %v1318
      %v1320 = vmul.f32 %v470, %v1319
      %v1321 = vmul.f32 %v471, %v1319
      %v1322 = vmul.f32 %v472, %v1319
      %v1323 = vmul.f32 %v473, %v1319
      %v1324 = vmul.f32 %v474, %v1319
      %v1330 = vrot.slane %v1320, 1
      %v1331 = vrot.slane %v1321, 1
      %v1332 = vsel %vm639, %v1330, %v1331
      %v1333 = vrot.slane %v1322, 1
      %v1334 = vsel %vm639, %v1331, %v1333
      %v1335 = vrot.slane %v1323, 1
      %v1336 = vsel %vm639, %v1333, %v1335
      %v1337 = vrot.slane %v1324, 1
      %v1338 = vsel %vm639, %v1335, %v1337
      %v1343 = vadd.f32 %v1311, %v1332
      %v1344 = vadd.f32 %v1312, %v1334
      %v1345 = vadd.f32 %v1313, %v1336
      %v1346 = vadd.f32 %v1314, %v1338
      %v1347 = vld [vmem:[%s8 + $0xc] sm:$0x1]
      %v1348 = vlaneseq
      %v1349 = vshrl.u32 %v1348, 7
      %v1350 = vsub.s32 0, %v1349
      %v1351 = vrot.slane %v1347, %v1350
      %v1352 = vmul.f32 %v470, %v1351
      %v1353 = vmul.f32 %v471, %v1351
      %v1354 = vmul.f32 %v472, %v1351
      %v1355 = vmul.f32 %v473, %v1351
      %v1356 = vmul.f32 %v474, %v1351
      %v1362 = vrot.slane %v1352, 2
      %v1363 = vrot.slane %v1353, 2
      %v1364 = vsel %vm493, %v1362, %v1363
      %v1365 = vrot.slane %v1354, 2
      %v1366 = vsel %vm493, %v1363, %v1365
      %v1367 = vrot.slane %v1355, 2
      %v1368 = vsel %vm493, %v1365, %v1367
      %v1369 = vrot.slane %v1356, 2
      %v1370 = vsel %vm493, %v1367, %v1369
      %v1375 = vadd.f32 %v1343, %v1364
      %v1376 = vadd.f32 %v1344, %v1366
      %v1377 = vadd.f32 %v1345, %v1368
      %v1378 = vadd.f32 %v1346, %v1370
      %v1379 = vld [vmem:[%s8 + $0xd] sm:$0x1]
      %v1380 = vlaneseq
      %v1381 = vshrl.u32 %v1380, 7
      %v1382 = vsub.s32 0, %v1381
      %v1383 = vrot.slane %v1379, %v1382
      %v1384 = vmul.f32 %v470, %v1383
      %v1385 = vmul.f32 %v471, %v1383
      %v1386 = vmul.f32 %v472, %v1383
      %v1387 = vmul.f32 %v473, %v1383
      %v1388 = vmul.f32 %v474, %v1383
      %v1394 = vrot.slane %v1384, 3
      %v1395 = vrot.slane %v1385, 3
      %v1396 = vsel %vm1110, %v1394, %v1395
      %v1397 = vrot.slane %v1386, 3
      %v1398 = vsel %vm1110, %v1395, %v1397
      %v1399 = vrot.slane %v1387, 3
      %v1400 = vsel %vm1110, %v1397, %v1399
      %v1401 = vrot.slane %v1388, 3
      %v1402 = vsel %vm1110, %v1399, %v1401
      %v1407 = vadd.f32 %v1375, %v1396
      %v1408 = vadd.f32 %v1376, %v1398
      %v1409 = vadd.f32 %v1377, %v1400
      %v1410 = vadd.f32 %v1378, %v1402
      %v1411 = vld [vmem:[%s8 + $0xe] sm:$0x1]
      %v1412 = vlaneseq
      %v1413 = vshrl.u32 %v1412, 7
      %v1414 = vsub.s32 0, %v1413
      %v1415 = vrot.slane %v1411, %v1414
      %v1416 = vmul.f32 %v470, %v1415
      %v1417 = vmul.f32 %v471, %v1415
      %v1418 = vmul.f32 %v472, %v1415
      %v1419 = vmul.f32 %v473, %v1415
      %v1420 = vmul.f32 %v474, %v1415
      %v1426 = vrot.slane %v1416, 4
      %v1427 = vrot.slane %v1417, 4
      %v1428 = vsel %vm1143, %v1426, %v1427
      %v1429 = vrot.slane %v1418, 4
      %v1430 = vsel %vm1143, %v1427, %v1429
      %v1431 = vrot.slane %v1419, 4
      %v1432 = vsel %vm1143, %v1429, %v1431
      %v1433 = vrot.slane %v1420, 4
      %v1434 = vsel %vm1143, %v1431, %v1433
      %v1439 = vadd.f32 %v1407, %v1428
      %v1440 = vadd.f32 %v1408, %v1430
      %v1441 = vadd.f32 %v1409, %v1432
      %v1442 = vadd.f32 %v1410, %v1434
      %v1443 = vld [vmem:[%s8 + $0xf] sm:$0x1]
      %v1444 = vlaneseq
      %v1445 = vshrl.u32 %v1444, 7
      %v1446 = vsub.s32 0, %v1445
      %v1447 = vrot.slane %v1443, %v1446
      %v1448 = vmul.f32 %v471, %v1447
      %v1449 = vmul.f32 %v472, %v1447
      %v1450 = vmul.f32 %v473, %v1447
      %v1451 = vmul.f32 %v474, %v1447
      %v1452 = vadd.f32 %v1439, %v1448
      %v1453 = vadd.f32 %v1440, %v1449
      %v1454 = vadd.f32 %v1441, %v1450
      %v1455 = vadd.f32 %v1442, %v1451
      %v1456 = vld [vmem:[%s8 + $0x10] sm:$0x1]
      %v1457 = vlaneseq
      %v1458 = vshrl.u32 %v1457, 7
      %v1459 = vsub.s32 0, %v1458
      %v1460 = vrot.slane %v1456, %v1459
      %v1461 = vmul.f32 %v471, %v1460
      %v1462 = vmul.f32 %v472, %v1460
      %v1463 = vmul.f32 %v473, %v1460
      %v1464 = vmul.f32 %v474, %v1460
      %v1465 = vmul.f32 %v475, %v1460
      %v1471 = vrot.slane %v1461, 1
      %v1472 = vrot.slane %v1462, 1
      %v1473 = vsel %vm639, %v1471, %v1472
      %v1474 = vrot.slane %v1463, 1
      %v1475 = vsel %vm639, %v1472, %v1474
      %v1476 = vrot.slane %v1464, 1
      %v1477 = vsel %vm639, %v1474, %v1476
      %v1478 = vrot.slane %v1465, 1
      %v1479 = vsel %vm639, %v1476, %v1478
      %v1484 = vadd.f32 %v1452, %v1473
      %v1485 = vadd.f32 %v1453, %v1475
      %v1486 = vadd.f32 %v1454, %v1477
      %v1487 = vadd.f32 %v1455, %v1479
      %v1488 = vld [vmem:[%s8 + $0x11] sm:$0x1]
      %v1489 = vlaneseq
      %v1490 = vshrl.u32 %v1489, 7
      %v1491 = vsub.s32 0, %v1490
      %v1492 = vrot.slane %v1488, %v1491
      %v1493 = vmul.f32 %v471, %v1492
      %v1494 = vmul.f32 %v472, %v1492
      %v1495 = vmul.f32 %v473, %v1492
      %v1496 = vmul.f32 %v474, %v1492
      %v1497 = vmul.f32 %v475, %v1492
      %v1503 = vrot.slane %v1493, 2
      %v1504 = vrot.slane %v1494, 2
      %v1505 = vsel %vm493, %v1503, %v1504
      %v1506 = vrot.slane %v1495, 2
      %v1507 = vsel %vm493, %v1504, %v1506
      %v1508 = vrot.slane %v1496, 2
      %v1509 = vsel %vm493, %v1506, %v1508
      %v1510 = vrot.slane %v1497, 2
      %v1511 = vsel %vm493, %v1508, %v1510
      %v1516 = vadd.f32 %v1484, %v1505
      %v1517 = vadd.f32 %v1485, %v1507
      %v1518 = vadd.f32 %v1486, %v1509
      %v1519 = vadd.f32 %v1487, %v1511
      %v1520 = vld [vmem:[%s8 + $0x12] sm:$0x1]
      %v1521 = vlaneseq
      %v1522 = vshrl.u32 %v1521, 7
      %v1523 = vsub.s32 0, %v1522
      %v1524 = vrot.slane %v1520, %v1523
      %v1525 = vmul.f32 %v471, %v1524
      %v1526 = vmul.f32 %v472, %v1524
      %v1527 = vmul.f32 %v473, %v1524
      %v1528 = vmul.f32 %v474, %v1524
      %v1529 = vmul.f32 %v475, %v1524
      %v1535 = vrot.slane %v1525, 3
      %v1536 = vrot.slane %v1526, 3
      %v1537 = vsel %vm1110, %v1535, %v1536
      %v1538 = vrot.slane %v1527, 3
      %v1539 = vsel %vm1110, %v1536, %v1538
      %v1540 = vrot.slane %v1528, 3
      %v1541 = vsel %vm1110, %v1538, %v1540
      %v1542 = vrot.slane %v1529, 3
      %v1543 = vsel %vm1110, %v1540, %v1542
      %v1548 = vadd.f32 %v1516, %v1537
      %v1549 = vadd.f32 %v1517, %v1539
      %v1550 = vadd.f32 %v1518, %v1541
      %v1551 = vadd.f32 %v1519, %v1543
      %v1552 = vld [vmem:[%s8 + $0x13] sm:$0x1]
      %v1553 = vlaneseq
      %v1554 = vshrl.u32 %v1553, 7
      %v1555 = vsub.s32 0, %v1554
      %v1556 = vrot.slane %v1552, %v1555
      %v1557 = vmul.f32 %v471, %v1556
      %v1558 = vmul.f32 %v472, %v1556
      %v1559 = vmul.f32 %v473, %v1556
      %v1560 = vmul.f32 %v474, %v1556
      %v1561 = vmul.f32 %v475, %v1556
      %v1567 = vrot.slane %v1557, 4
      %v1568 = vrot.slane %v1558, 4
      %v1569 = vsel %vm1143, %v1567, %v1568
      %v1570 = vrot.slane %v1559, 4
      %v1571 = vsel %vm1143, %v1568, %v1570
      %v1572 = vrot.slane %v1560, 4
      %v1573 = vsel %vm1143, %v1570, %v1572
      %v1574 = vrot.slane %v1561, 4
      %v1575 = vsel %vm1143, %v1572, %v1574
      %v1580 = vadd.f32 %v1548, %v1569
      %v1581 = vadd.f32 %v1549, %v1571
      %v1582 = vadd.f32 %v1550, %v1573
      %v1583 = vadd.f32 %v1551, %v1575
      %v1584 = vld [vmem:[%s8 + $0x14] sm:$0x1]
      %v1585 = vlaneseq
      %v1586 = vshrl.u32 %v1585, 7
      %v1587 = vsub.s32 0, %v1586
      %v1588 = vrot.slane %v1584, %v1587
      %v1589 = vmul.f32 %v472, %v1588
      %v1590 = vmul.f32 %v473, %v1588
      %v1591 = vmul.f32 %v474, %v1588
      %v1592 = vmul.f32 %v475, %v1588
      %v1593 = vadd.f32 %v1580, %v1589
      %v1594 = vadd.f32 %v1581, %v1590
      %v1595 = vadd.f32 %v1582, %v1591
      %v1596 = vadd.f32 %v1583, %v1592
      %v1597 = vld [vmem:[%s8 + $0x15] sm:$0x1]
      %v1598 = vlaneseq
      %v1599 = vshrl.u32 %v1598, 7
      %v1600 = vsub.s32 0, %v1599
      %v1601 = vrot.slane %v1597, %v1600
      %v1602 = vmul.f32 %v472, %v1601
      %v1603 = vmul.f32 %v473, %v1601
      %v1604 = vmul.f32 %v474, %v1601
      %v1605 = vmul.f32 %v475, %v1601
      %v1606 = vmul.f32 %v476, %v1601
      %v1612 = vrot.slane %v1602, 1
      %v1613 = vrot.slane %v1603, 1
      %v1614 = vsel %vm639, %v1612, %v1613
      %v1615 = vrot.slane %v1604, 1
      %v1616 = vsel %vm639, %v1613, %v1615
      %v1617 = vrot.slane %v1605, 1
      %v1618 = vsel %vm639, %v1615, %v1617
      %v1619 = vrot.slane %v1606, 1
      %v1620 = vsel %vm639, %v1617, %v1619
      %v1625 = vadd.f32 %v1593, %v1614
      %v1626 = vadd.f32 %v1594, %v1616
      %v1627 = vadd.f32 %v1595, %v1618
      %v1628 = vadd.f32 %v1596, %v1620
      %v1629 = vld [vmem:[%s8 + $0x16] sm:$0x1]
      %v1630 = vlaneseq
      %v1631 = vshrl.u32 %v1630, 7
      %v1632 = vsub.s32 0, %v1631
      %v1633 = vrot.slane %v1629, %v1632
      %v1634 = vmul.f32 %v472, %v1633
      %v1635 = vmul.f32 %v473, %v1633
      %v1636 = vmul.f32 %v474, %v1633
      %v1637 = vmul.f32 %v475, %v1633
      %v1638 = vmul.f32 %v476, %v1633
      %v1644 = vrot.slane %v1634, 2
      %v1645 = vrot.slane %v1635, 2
      %v1646 = vsel %vm493, %v1644, %v1645
      %v1647 = vrot.slane %v1636, 2
      %v1648 = vsel %vm493, %v1645, %v1647
      %v1649 = vrot.slane %v1637, 2
      %v1650 = vsel %vm493, %v1647, %v1649
      %v1651 = vrot.slane %v1638, 2
      %v1652 = vsel %vm493, %v1649, %v1651
      %v1657 = vadd.f32 %v1625, %v1646
      %v1658 = vadd.f32 %v1626, %v1648
      %v1659 = vadd.f32 %v1627, %v1650
      %v1660 = vadd.f32 %v1628, %v1652
      %v1661 = vld [vmem:[%s8 + $0x17] sm:$0x1]
      %v1662 = vlaneseq
      %v1663 = vshrl.u32 %v1662, 7
      %v1664 = vsub.s32 0, %v1663
      %v1665 = vrot.slane %v1661, %v1664
      %v1666 = vmul.f32 %v472, %v1665
      %v1667 = vmul.f32 %v473, %v1665
      %v1668 = vmul.f32 %v474, %v1665
      %v1669 = vmul.f32 %v475, %v1665
      %v1670 = vmul.f32 %v476, %v1665
      %v1676 = vrot.slane %v1666, 3
      %v1677 = vrot.slane %v1667, 3
      %v1678 = vsel %vm1110, %v1676, %v1677
      %v1679 = vrot.slane %v1668, 3
      %v1680 = vsel %vm1110, %v1677, %v1679
      %v1681 = vrot.slane %v1669, 3
      %v1682 = vsel %vm1110, %v1679, %v1681
      %v1683 = vrot.slane %v1670, 3
      %v1684 = vsel %vm1110, %v1681, %v1683
      %v1689 = vadd.f32 %v1657, %v1678
      %v1690 = vadd.f32 %v1658, %v1680
      %v1691 = vadd.f32 %v1659, %v1682
      %v1692 = vadd.f32 %v1660, %v1684
      %v1693 = vld [vmem:[%s8 + $0x18] sm:$0x1]
      %v1694 = vlaneseq
      %v1695 = vshrl.u32 %v1694, 7
      %v1696 = vsub.s32 0, %v1695
      %v1697 = vrot.slane %v1693, %v1696
      %v1698 = vmul.f32 %v472, %v1697
      %v1699 = vmul.f32 %v473, %v1697
      %v1700 = vmul.f32 %v474, %v1697
      %v1701 = vmul.f32 %v475, %v1697
      %v1702 = vmul.f32 %v476, %v1697
      %v1708 = vrot.slane %v1698, 4
      %v1709 = vrot.slane %v1699, 4
      %v1710 = vsel %vm1143, %v1708, %v1709
      %v1711 = vrot.slane %v1700, 4
      %v1712 = vsel %vm1143, %v1709, %v1711
      %v1713 = vrot.slane %v1701, 4
      %v1714 = vsel %vm1143, %v1711, %v1713
      %v1715 = vrot.slane %v1702, 4
      %v1716 = vsel %vm1143, %v1713, %v1715
      %v1721 = vadd.f32 %v1689, %v1710
      %v1722 = vadd.f32 %v1690, %v1712
      %v1723 = vadd.f32 %v1691, %v1714
      %v1724 = vadd.f32 %v1692, %v1716
      %v1725 = vld [vmem:[%s9] sm:$0x1]
      %v1727 = vlaneseq
      %v1728 = vshrl.u32 %v1727, 7
      %v1729 = vsub.s32 0, %v1728
      %v1730 = vrot.slane %v1725, %v1729
      %v1732 = vadd.f32 %v1721, %v1730
      %v1733 = vadd.f32 %v1722, %v1730
      %v1734 = vadd.f32 %v1723, %v1730
      %v1735 = vadd.f32 %v1724, %v1730
      %v1736 = vld [vmem:[%s10] sm:$0xff]
      %v1737 = vld [vmem:[%s10 + $0x8] sm:$0xff]
      %v1738 = vld [vmem:[%s10 + $0x10] sm:$0xff]
      %v1739 = vld [vmem:[%s10 + $0x18] sm:$0xff]
      %v1740 = vld [vmem:[%s11] sm:$0x1]
      %v1742 = vlaneseq
      %v1743 = vshrl.u32 %v1742, 7
      %v1744 = vsub.s32 0, %v1743
      %v1745 = vrot.slane %v1740, %v1744
      %v1748 = vsel %vm503, %v1732, 0
      %v1751 = vsel %vm503, %v1733, 0
      %v1754 = vsel %vm503, %v1734, 0
      %v1757 = vsel %vm503, %v1735, 0
      %1759 = vmatprep.subr.mxu0 0.0
      %1760 = vmatpush1.msra.mxu0 0.0
      %1761 = vmatprep.subr.mxu0 0.0
      %1762 = vmatpush1.msra.mxu0 0.0
      %1763 = vmatprep.subr.mxu0 0.0
      %1764 = vmatpush1.msra.mxu0 0.0
      %1765 = vmatprep.subr.mxu0 0.0
      %1766 = vmatpush1.msra.mxu0 0.0
      %1767 = vmatprep.subr.mxu0 0.0
      %1768 = vmatpush1.msra.mxu0 0.0
      %1769 = vmatprep.subr.mxu0 0.0
      %1770 = vmatpush1.msra.mxu0 0.0
      %1771 = vmatprep.subr.mxu0 0.0
      %1772 = vmatpush1.msra.mxu0 0.0
      %1773 = vmatprep.subr.mxu0 0.0
      %1774 = vmatpush1.msra.mxu0 0.0
      %1775 = vmatprep.subr.mxu0 0.0
      %1776 = vmatpush1.msra.mxu0 0.0
      %1777 = vmatprep.subr.mxu0 0.0
      %1778 = vmatpush1.msra.mxu0 0.0
      %1779 = vmatprep.subr.mxu0 0.0
      %1780 = vmatpush1.msra.mxu0 0.0
      %1781 = vmatprep.subr.mxu0 0.0
      %1782 = vmatpush1.msra.mxu0 0.0
      %1783 = vmatprep.subr.mxu0 0.0
      %1784 = vmatpush1.msra.mxu0 %v1739
      %1785 = vmatprep.subr.mxu0 0.0
      %1786 = vmatpush1.msra.mxu0 %v1738
      %1787 = vmatprep.subr.mxu0 0.0
      %1788 = vmatpush1.msra.mxu0 %v1737
      %1789 = vmatprep.subr.mxu0 0.0
      %1790 = vmatpush1.msra.mxu0 %v1736
      %1791 = vmatprep.subr.mxu0 0.0
      %1792 = vmatpush2.msra.mxu0 0.0
      %1793 = vmatprep.subr.mxu0 0.0
      %1794 = vmatpush2.msra.mxu0 0.0
      %1795 = vmatprep.subr.mxu0 0.0
      %1796 = vmatpush2.msra.mxu0 0.0
      %1797 = vmatprep.subr.mxu0 0.0
      %1798 = vmatpush2.msra.mxu0 0.0
      %1799 = vmatprep.subr.mxu0 0.0
      %1800 = vmatpush2.msra.mxu0 0.0
      %1801 = vmatprep.subr.mxu0 0.0
      %1802 = vmatpush2.msra.mxu0 0.0
      %1803 = vmatprep.subr.mxu0 0.0
      %1804 = vmatpush2.msra.mxu0 0.0
      %1805 = vmatprep.subr.mxu0 0.0
      %1806 = vmatpush2.msra.mxu0 0.0
      %1807 = vmatprep.subr.mxu0 0.0
      %1808 = vmatpush2.msra.mxu0 0.0
      %1809 = vmatprep.subr.mxu0 0.0
      %1810 = vmatpush2.msra.mxu0 0.0
      %1811 = vmatprep.subr.mxu0 0.0
      %1812 = vmatpush2.msra.mxu0 0.0
      %1813 = vmatprep.subr.mxu0 0.0
      %1814 = vmatpush2.msra.mxu0 0.0
      %1815 = vmatprep.subr.mxu0 0.0
      %1816 = vmatpush2.msra.mxu0 0.0
      %1817 = vmatprep.subr.mxu0 0.0
      %1818 = vmatpush2.msra.mxu0 0.0
      %1819 = vmatprep.subr.mxu0 0.0
      %1820 = vmatpush2.msra.mxu0 0.0
      %1821 = vmatprep.subr.mxu0 0.0
      %1822 = vmatpush2.msra.mxu0 0.0
      %1823 = vmatprep.mubr.f32.mxu0 0.0
      %1824 = vmatmul.mubr.f32.gmra.mxu0 %v1748
      %v1825 = vpop.f32.mrf.mxu0
      %v1826 = vadd.f32 %v1745, %v1825
      %v1827 = vpop.f32.mrf.mxu0
      %1828 = vmatprep.mubr.f32.mxu0 0.0
      %1829 = vmatmul.mubr.f32.gmra.mxu0 %v1751
      %v1830 = vpop.f32.mrf.mxu0
      %v1831 = vadd.f32 %v1745, %v1830
      %v1832 = vpop.f32.mrf.mxu0
      %1833 = vmatprep.mubr.f32.mxu0 0.0
      %1834 = vmatmul.mubr.f32.gmra.mxu0 %v1754
      %v1835 = vpop.f32.mrf.mxu0
      %v1836 = vadd.f32 %v1745, %v1835
      %v1837 = vpop.f32.mrf.mxu0
      %1838 = vmatprep.mubr.f32.mxu0 0.0
      %1839 = vmatmul.mubr.f32.gmra.mxu0 %v1757
      %v1840 = vpop.f32.mrf.mxu0
      %v1841 = vadd.f32 %v1745, %v1840
      %v1842 = vpop.f32.mrf.mxu0
      %1843 = vdwg.mxu0
      %vm1844 = vcmp.gt.f32.partialorder %v1826, 0.0
      %vm1845 = vcmp.gt.f32.partialorder %v1831, 0.0
      %vm1846 = vcmp.gt.f32.partialorder %v1836, 0.0
      %vm1847 = vcmp.gt.f32.partialorder %v1841, 0.0
      %v1848 = vmul.f32 %v1826, 0.3
      %v1849 = vmul.f32 %v1831, 0.3
      %v1850 = vmul.f32 %v1836, 0.3
      %v1851 = vmul.f32 %v1841, 0.3
      %v1852 = vsel %vm1844, %v1826, %v1848
      %v1853 = vsel %vm1845, %v1831, %v1849
      %v1854 = vsel %vm1846, %v1836, %v1850
      %v1855 = vsel %vm1847, %v1841, %v1851
      %1860 = vrot.lane.b32.xlu0 %v1852, 64
      %v1861 = vpop.permute.xlu0 %1860
      %1862 = vrot.lane.b32.xlu0 %v1853, 64
      %v1863 = vpop.permute.xlu0 %1862
      %1864 = vrot.lane.b32.xlu0 %v1854, 64
      %v1865 = vpop.permute.xlu0 %1864
      %1866 = vrot.lane.b32.xlu0 %v1855, 64
      %v1867 = vpop.permute.xlu0 %1866
      %vm1872 = vcmask 916992
      %1873 = vst.msk [vmem:[%s467] sm:$0xff] %vm1872, %v1861
      %1874 = vst.msk [vmem:[%s467 + $0x10] sm:$0xff] %vm1872, %v1863
      %1875 = vst.msk [vmem:[%s467 + $0x20] sm:$0xff] %vm1872, %v1865
      %1876 = vst.msk [vmem:[%s467 + $0x30] sm:$0xff] %vm1872, %v1867
      %v1877 = vld [vmem:[%s1 + $0x8] sm:$0xff]
      %v1878 = vld [vmem:[%s1 + $0x10] sm:$0xff]
      %v1879 = vld [vmem:[%s1 + $0x18] sm:$0xff]
      %v1880 = vld [vmem:[%s1 + $0x20] sm:$0xff]
      %v1881 = vld [vmem:[%s1 + $0x28] sm:$0xff]
      %v1882 = vld [vmem:[%s1 + $0x30] sm:$0xff]
      %v1883 = vld [vmem:[%s1 + $0x38] sm:$0xff]
      %1885 = vset.pattern.permute.xlu0 0
      %1886 = vperm.xlu0 %1885, %v1877
      %v1887 = vpop.permute.xlu0 %1886
      %1890 = vset.pattern.permute.xlu0 0
      %1891 = vperm.xlu0 %1890, %v1878
      %v1892 = vpop.permute.xlu0 %1891
      %1895 = vset.pattern.permute.xlu0 0
      %1896 = vperm.xlu0 %1895, %v1879
      %v1897 = vpop.permute.xlu0 %1896
      %1900 = vset.pattern.permute.xlu0 0
      %1901 = vperm.xlu0 %1900, %v1880
      %v1902 = vpop.permute.xlu0 %1901
      %1905 = vset.pattern.permute.xlu0 0
      %1906 = vperm.xlu0 %1905, %v1881
      %v1907 = vpop.permute.xlu0 %1906
      %1910 = vset.pattern.permute.xlu0 0
      %1911 = vperm.xlu0 %1910, %v1882
      %v1912 = vpop.permute.xlu0 %1911
      %1915 = vset.pattern.permute.xlu0 0
      %1916 = vperm.xlu0 %1915, %v1883
      %v1917 = vpop.permute.xlu0 %1916
      %v1919 = vadd.f32 %v469, %v1887
      %v1920 = vadd.f32 %v470, %v1892
      %v1921 = vadd.f32 %v471, %v1897
      %v1922 = vadd.f32 %v472, %v1902
      %v1923 = vadd.f32 %v473, %v1907
      %v1924 = vadd.f32 %v474, %v1912
      %v1925 = vadd.f32 %v475, %v1917
      %v1931 = vrot.slane %v1919, 1
      %v1932 = vrot.slane %v1920, 1
      %v1933 = vsel %vm639, %v1931, %v1932
      %v1934 = vrot.slane %v1921, 1
      %v1935 = vsel %vm639, %v1932, %v1934
      %v1936 = vrot.slane %v1922, 1
      %v1937 = vsel %vm639, %v1934, %v1936
      %v1938 = vrot.slane %v1923, 1
      %v1939 = vsel %vm639, %v1936, %v1938
      %v1945 = vmax.f32 %v1919, %v1933
      %v1946 = vmax.f32 %v1920, %v1935
      %v1947 = vmax.f32 %v1921, %v1937
      %v1948 = vmax.f32 %v1922, %v1939
      %v1949 = vmax.f32 %v1923, %v1938
      %v1950 = vrot.slane %v1919, 2
      %v1951 = vrot.slane %v1920, 2
      %v1952 = vsel %vm493, %v1950, %v1951
      %v1953 = vrot.slane %v1921, 2
      %v1954 = vsel %vm493, %v1951, %v1953
      %v1955 = vrot.slane %v1922, 2
      %v1956 = vsel %vm493, %v1953, %v1955
      %v1957 = vrot.slane %v1923, 2
      %v1958 = vsel %vm493, %v1955, %v1957
      %v1964 = vmax.f32 %v1945, %v1952
      %v1965 = vmax.f32 %v1946, %v1954
      %v1966 = vmax.f32 %v1947, %v1956
      %v1967 = vmax.f32 %v1948, %v1958
      %v1968 = vmax.f32 %v1949, %v1957
      %v1969 = vmax.f32 %v1964, %v1920
      %v1970 = vmax.f32 %v1965, %v1921
      %v1971 = vmax.f32 %v1966, %v1922
      %v1972 = vmax.f32 %v1967, %v1923
      %v1973 = vmax.f32 %v1968, %v1924
      %v1975 = vrot.slane %v1924, 1
      %v1976 = vsel %vm639, %v1938, %v1975
      %v1979 = vmax.f32 %v1969, %v1935
      %v1980 = vmax.f32 %v1970, %v1937
      %v1981 = vmax.f32 %v1971, %v1939
      %v1982 = vmax.f32 %v1972, %v1976
      %v1983 = vmax.f32 %v1973, %v1975
      %v1984 = vrot.slane %v1924, 2
      %v1985 = vsel %vm493, %v1957, %v1984
      %v1988 = vmax.f32 %v1979, %v1954
      %v1989 = vmax.f32 %v1980, %v1956
      %v1990 = vmax.f32 %v1981, %v1958
      %v1991 = vmax.f32 %v1982, %v1985
      %v1992 = vmax.f32 %v1983, %v1984
      %v1993 = vmax.f32 %v1988, %v1921
      %v1994 = vmax.f32 %v1989, %v1922
      %v1995 = vmax.f32 %v1990, %v1923
      %v1996 = vmax.f32 %v1991, %v1924
      %v1997 = vmax.f32 %v1992, %v1925
      %v1999 = vrot.slane %v1925, 1
      %v2000 = vsel %vm639, %v1975, %v1999
      %v2003 = vmax.f32 %v1993, %v1937
      %v2004 = vmax.f32 %v1994, %v1939
      %v2005 = vmax.f32 %v1995, %v1976
      %v2006 = vmax.f32 %v1996, %v2000
      %v2007 = vmax.f32 %v1997, %v1999
      %v2008 = vrot.slane %v1925, 2
      %v2009 = vsel %vm493, %v1984, %v2008
      %v2012 = vmax.f32 %v2003, %v1956
      %v2013 = vmax.f32 %v2004, %v1958
      %v2014 = vmax.f32 %v2005, %v1985
      %v2015 = vmax.f32 %v2006, %v2009
      %v2016 = vmax.f32 %v2007, %v2008
      %v2017 = vld [vmem:[%s12] sm:$0xff]
      %v2018 = vld [vmem:[%s12 + $0x8] sm:$0xff]
      %v2019 = vld [vmem:[%s12 + $0x10] sm:$0xff]
      %v2020 = vld [vmem:[%s12 + $0x18] sm:$0xff]
      %v2021 = vld [vmem:[%s13] sm:$0x1]
      %v2023 = vlaneseq
      %v2024 = vshrl.u32 %v2023, 7
      %v2025 = vsub.s32 0, %v2024
      %v2026 = vrot.slane %v2021, %v2025
      %v2033 = vrot.slane %v2012, 1
      %v2034 = vrot.slane %v2013, 1
      %v2035 = vsel %vm639, %v2033, %v2034
      %v2036 = vrot.slane %v2014, 1
      %v2037 = vsel %vm639, %v2034, %v2036
      %v2038 = vrot.slane %v2015, 1
      %v2039 = vsel %vm639, %v2036, %v2038
      %v2040 = vrot.slane %v2016, 1
      %v2041 = vsel %vm639, %v2038, %v2040
      %v2042 = vsel %vm503, %v2035, 0
      %v2044 = vsel %vm503, %v2037, 0
      %v2046 = vsel %vm503, %v2039, 0
      %v2048 = vsel %vm503, %v2041, 0
      %2050 = vmatprep.subr.mxu0 0.0
      %2051 = vmatpush1.msra.mxu0 0.0
      %2052 = vmatprep.subr.mxu0 0.0
      %2053 = vmatpush1.msra.mxu0 0.0
      %2054 = vmatprep.subr.mxu0 0.0
      %2055 = vmatpush1.msra.mxu0 0.0
      %2056 = vmatprep.subr.mxu0 0.0
      %2057 = vmatpush1.msra.mxu0 0.0
      %2058 = vmatprep.subr.mxu0 0.0
      %2059 = vmatpush1.msra.mxu0 0.0
      %2060 = vmatprep.subr.mxu0 0.0
      %2061 = vmatpush1.msra.mxu0 0.0
      %2062 = vmatprep.subr.mxu0 0.0
      %2063 = vmatpush1.msra.mxu0 0.0
      %2064 = vmatprep.subr.mxu0 0.0
      %2065 = vmatpush1.msra.mxu0 0.0
      %2066 = vmatprep.subr.mxu0 0.0
      %2067 = vmatpush1.msra.mxu0 0.0
      %2068 = vmatprep.subr.mxu0 0.0
      %2069 = vmatpush1.msra.mxu0 0.0
      %2070 = vmatprep.subr.mxu0 0.0
      %2071 = vmatpush1.msra.mxu0 0.0
      %2072 = vmatprep.subr.mxu0 0.0
      %2073 = vmatpush1.msra.mxu0 0.0
      %2074 = vmatprep.subr.mxu0 0.0
      %2075 = vmatpush1.msra.mxu0 %v2020
      %2076 = vmatprep.subr.mxu0 0.0
      %2077 = vmatpush1.msra.mxu0 %v2019
      %2078 = vmatprep.subr.mxu0 0.0
      %2079 = vmatpush1.msra.mxu0 %v2018
      %2080 = vmatprep.subr.mxu0 0.0
      %2081 = vmatpush1.msra.mxu0 %v2017
      %2082 = vmatprep.subr.mxu0 0.0
      %2083 = vmatpush2.msra.mxu0 0.0
      %2084 = vmatprep.subr.mxu0 0.0
      %2085 = vmatpush2.msra.mxu0 0.0
      %2086 = vmatprep.subr.mxu0 0.0
      %2087 = vmatpush2.msra.mxu0 0.0
      %2088 = vmatprep.subr.mxu0 0.0
      %2089 = vmatpush2.msra.mxu0 0.0
      %2090 = vmatprep.subr.mxu0 0.0
      %2091 = vmatpush2.msra.mxu0 0.0
      %2092 = vmatprep.subr.mxu0 0.0
      %2093 = vmatpush2.msra.mxu0 0.0
      %2094 = vmatprep.subr.mxu0 0.0
      %2095 = vmatpush2.msra.mxu0 0.0
      %2096 = vmatprep.subr.mxu0 0.0
      %2097 = vmatpush2.msra.mxu0 0.0
      %2098 = vmatprep.subr.mxu0 0.0
      %2099 = vmatpush2.msra.mxu0 0.0
      %2100 = vmatprep.subr.mxu0 0.0
      %2101 = vmatpush2.msra.mxu0 0.0
      %2102 = vmatprep.subr.mxu0 0.0
      %2103 = vmatpush2.msra.mxu0 0.0
      %2104 = vmatprep.subr.mxu0 0.0
      %2105 = vmatpush2.msra.mxu0 0.0
      %2106 = vmatprep.subr.mxu0 0.0
      %2107 = vmatpush2.msra.mxu0 0.0
      %2108 = vmatprep.subr.mxu0 0.0
      %2109 = vmatpush2.msra.mxu0 0.0
      %2110 = vmatprep.subr.mxu0 0.0
      %2111 = vmatpush2.msra.mxu0 0.0
      %2112 = vmatprep.subr.mxu0 0.0
      %2113 = vmatpush2.msra.mxu0 0.0
      %2114 = vmatprep.mubr.f32.mxu0 0.0
      %2115 = vmatmul.mubr.f32.gmra.mxu0 %v2042
      %v2116 = vpop.f32.mrf.mxu0
      %v2117 = vadd.f32 %v2026, %v2116
      %v2118 = vpop.f32.mrf.mxu0
      %2119 = vmatprep.mubr.f32.mxu0 0.0
      %2120 = vmatmul.mubr.f32.gmra.mxu0 %v2044
      %v2121 = vpop.f32.mrf.mxu0
      %v2122 = vadd.f32 %v2026, %v2121
      %v2123 = vpop.f32.mrf.mxu0
      %2124 = vmatprep.mubr.f32.mxu0 0.0
      %2125 = vmatmul.mubr.f32.gmra.mxu0 %v2046
      %v2126 = vpop.f32.mrf.mxu0
      %v2127 = vadd.f32 %v2026, %v2126
      %v2128 = vpop.f32.mrf.mxu0
      %2129 = vmatprep.mubr.f32.mxu0 0.0
      %2130 = vmatmul.mubr.f32.gmra.mxu0 %v2048
      %v2131 = vpop.f32.mrf.mxu0
      %v2132 = vadd.f32 %v2026, %v2131
      %v2133 = vpop.f32.mrf.mxu0
      %2134 = vdwg.mxu0
      %vm2135 = vcmp.gt.f32.partialorder %v2117, 0.0
      %vm2136 = vcmp.gt.f32.partialorder %v2122, 0.0
      %vm2137 = vcmp.gt.f32.partialorder %v2127, 0.0
      %vm2138 = vcmp.gt.f32.partialorder %v2132, 0.0
      %v2139 = vmul.f32 %v2117, 0.3
      %v2140 = vmul.f32 %v2122, 0.3
      %v2141 = vmul.f32 %v2127, 0.3
      %v2142 = vmul.f32 %v2132, 0.3
      %v2143 = vsel %vm2135, %v2117, %v2139
      %v2144 = vsel %vm2136, %v2122, %v2140
      %v2145 = vsel %vm2137, %v2127, %v2141
      %v2146 = vsel %vm2138, %v2132, %v2142
      %2151 = vrot.lane.b32.xlu0 %v2143, 112
      %v2152 = vpop.permute.xlu0 %2151
      %2153 = vrot.lane.b32.xlu0 %v2144, 112
      %v2154 = vpop.permute.xlu0 %2153
      %2155 = vrot.lane.b32.xlu0 %v2145, 112
      %v2156 = vpop.permute.xlu0 %2155
      %2157 = vrot.lane.b32.xlu0 %v2146, 112
      %v2158 = vpop.permute.xlu0 %2157
      %vm2163 = vcmask 1048448
      %2164 = vst.msk [vmem:[%s467] sm:$0xff] %vm2163, %v2152
      %2165 = vst.msk [vmem:[%s467 + $0x8] sm:$0xff] %vm609, %v2152
      %2166 = vst.msk [vmem:[%s467 + $0x10] sm:$0xff] %vm2163, %v2154
      %2167 = vst.msk [vmem:[%s467 + $0x18] sm:$0xff] %vm609, %v2154
      %2168 = vst.msk [vmem:[%s467 + $0x20] sm:$0xff] %vm2163, %v2156
      %2169 = vst.msk [vmem:[%s467 + $0x28] sm:$0xff] %vm609, %v2156
      %2170 = vst.msk [vmem:[%s467 + $0x30] sm:$0xff] %vm2163, %v2158
      %2171 = vst.msk [vmem:[%s467 + $0x38] sm:$0xff] %vm609, %v2158
      %p2172 = scmp.lt.s32.totalorder %s25, 1
      %s2173 = scalar_select %p2172, %s25, 1
      %s2174 = smul.addr %s2173, 8
      %s2175 = smul.addr %s2174, 8
      %s2176 = scalar_lea.vmem %s14, %s2175
      // Predicated region
      $region77: #{rdlinet_forward.7} parent=75 // pred_check
        %p2177 = pneg %p342
      $region78: #{rdlinet_forward.7} parent=75 // pred_check_branch
        %2179 = sbr.rel (%p2177) target = $region80
      $region79: #{rdlinet_forward.7} parent=75 // pred_region
        _
      $region80: #{rdlinet_forward.7} parent=75 // pred_fallthru
        _
    $region76: #{rdlinet_forward.7} parent=5 // pred_fallthru
      _
    %p2180 = scmp.le.s32.totalorder 2, %s20
    // Predicated region
    $region81: #{rdlinet_forward.7} parent=5 // pred_check
      %p2181 = pneg %p2180
    $region82: #{rdlinet_forward.7} parent=5 // pred_check_branch
      %2183 = sbr.rel (%p2181) target = $region84
    $region83: #{rdlinet_forward.7} parent=5 // pred_region
      %s2184 = ssub.s32 %s20, 2
      // Predicated region
      $region85: #{rdlinet_forward.7} parent=83 // pred_check
        %p2185 = pneg %p348
      $region86: #{rdlinet_forward.7} parent=83 // pred_check_branch
        %2187 = sbr.rel (%p2185) target = $region88
      $region87: #{rdlinet_forward.7} parent=83 // pred_region
        %p2188 = scmp.lt.s32.totalorder %s26, 1
        %s2189 = scalar_select %p2188, %s26, 1
        %s2190 = smul.addr %s2189, 8
        %s2191 = smul.addr %s2190, 8
        %s2192 = scalar_lea.vmem %s14, %s2191
      $region88: #{rdlinet_forward.7} parent=83 // pred_fallthru
        _
    $region84: #{rdlinet_forward.7} parent=5 // pred_fallthru
      _
  $region6: #{rdlinet_forward.7} parent=0 // loop_footer
    %s24 = sadd.s32 1, %s20
  $region7: #{rdlinet_forward.7} parent=0 // loop_footer_branch
    %19 = sbr.rel target = $region3
  $region8: #{rdlinet_forward.7} parent=0 // loop_exit
    _

// kernel: rdlinet_forward.9
$region0: #{rdlinet_forward.9}
  #allocation0 [shape = 'u32[]', space=smem, size = 0x4, offset = 0x4, fixed_abs, tag = 'smem constant byte address 0x4 - core index']
  #allocation1 [shape = 'u32[144,128]{1,0:T(1,128)}', space=vmem, size = 0x12000, scoped, tag = 'internal scratch']
  #allocation2 [shape = 'f32[1,1]{1,0:T(1,128)S(1)}', space=vmem, size = 0x200, scoped, tag = 'scoped memory for rdlinet_forward.9']
  %s0 = inlined_call_operand.vmem [shape: f32[2,16,144], index: 0, kind: input, shape index: {}]
  %s1 = inlined_call_operand.vmem [shape: f32[144,30], index: 1, kind: input, shape index: {}]
  %s2 = inlined_call_operand.vmem [shape: f32[1,30], index: 2, kind: input, shape index: {}]
  %s3 = inlined_call_operand.vmem [shape: f32[15,1], index: 3, kind: input, shape index: {}]
  %s4 = inlined_call_operand.<no memory space> [shape: f32[1,1], index: 4, kind: input, shape index: {}]
  %s5 = inlined_call_operand.vmem [shape: f32[2,1], index: 5, kind: output, shape index: {}]
  %s6 = sld [smem:[#allocation0]]
  $region30: #{rdlinet_forward.9} parent=0
    _
  %s8 = ssub.s32 1, %s6
  %s9 = scalar_select 0, %s8, %s6
  %v10 = vstv %s4
  %11 = vst [vmem:[#allocation2] sm:$0x1] %v10
  // Predicated region
  $region2: #{rdlinet_forward.9} parent=0 // pred_check
    _
  $region3: #{rdlinet_forward.9} parent=0 // pred_check_branch
    %13 = sbr.rel (0) target = $region5
  $region4: #{rdlinet_forward.9} parent=0 // pred_region
    _
  $region5: #{rdlinet_forward.9} parent=0 // pred_fallthru
    _
  // Predicated region
  $region6: #{rdlinet_forward.9} parent=0 // pred_check
    _
  $region7: #{rdlinet_forward.9} parent=0 // pred_check_branch
    %15 = sbr.rel (0) target = $region9
  $region8: #{rdlinet_forward.9} parent=0 // pred_region
    _
  $region9: #{rdlinet_forward.9} parent=0 // pred_fallthru
    _
  // Predicated region
  $region10: #{rdlinet_forward.9} parent=0 // pred_check
    _
  $region11: #{rdlinet_forward.9} parent=0 // pred_check_branch
    %17 = sbr.rel (0) target = $region13
  $region12: #{rdlinet_forward.9} parent=0 // pred_region
    _
  $region13: #{rdlinet_forward.9} parent=0 // pred_fallthru
    _
  // Predicated region
  $region14: #{rdlinet_forward.9} parent=0 // pred_check
    _
  $region15: #{rdlinet_forward.9} parent=0 // pred_check_branch
    %19 = sbr.rel (0) target = $region17
  $region16: #{rdlinet_forward.9} parent=0 // pred_region
    _
  $region17: #{rdlinet_forward.9} parent=0 // pred_fallthru
    _
  // Predicated region
  $region18: #{rdlinet_forward.9} parent=0 // pred_check
    _
  $region19: #{rdlinet_forward.9} parent=0 // pred_check_branch
    %21 = sbr.rel (0) target = $region21
  $region20: #{rdlinet_forward.9} parent=0 // pred_region
    _
  $region21: #{rdlinet_forward.9} parent=0 // pred_fallthru
    _
  %v22 = vld [vmem:[%s0] sm:$0xff]
  %v23 = vld [vmem:[%s0 + $0x8] sm:$0xff]
  %v24 = vld [vmem:[%s0 + $0x10] sm:$0xff]
  %v25 = vld [vmem:[%s0 + $0x18] sm:$0xff]
  %v26 = vld [vmem:[%s0 + $0x20] sm:$0xff]
  %v27 = vld [vmem:[%s0 + $0x28] sm:$0xff]
  %v28 = vld [vmem:[%s0 + $0x30] sm:$0xff]
  %v29 = vld [vmem:[%s0 + $0x38] sm:$0xff]
  %v34 = vrot.slane %v22, 1
  %v35 = vrot.slane %v23, 1
  %v36 = vrot.slane %v26, 1
  %v37 = vrot.slane %v27, 1
  %v42 = vmax.f32 %v22, %v34
  %v43 = vmax.f32 %v23, %v35
  %v44 = vmax.f32 %v26, %v36
  %v45 = vmax.f32 %v27, %v37
  %v46 = vrot.slane %v22, 4
  %v47 = vrot.slane %v23, 4
  %v48 = vrot.slane %v26, 4
  %v49 = vrot.slane %v27, 4
  %v54 = vmax.f32 %v42, %v46
  %v55 = vmax.f32 %v43, %v47
  %v56 = vmax.f32 %v44, %v48
  %v57 = vmax.f32 %v45, %v49
  %v58 = vrot.slane %v22, 5
  %v59 = vrot.slane %v23, 5
  %v60 = vrot.slane %v26, 5
  %v61 = vrot.slane %v27, 5
  %v66 = vmax.f32 %v54, %v58
  %v67 = vmax.f32 %v55, %v59
  %v68 = vmax.f32 %v56, %v60
  %v69 = vmax.f32 %v57, %v61
  %v70 = vrot.slane %v22, 2
  %v71 = vrot.slane %v23, 2
  %v72 = vrot.slane %v26, 2
  %v73 = vrot.slane %v27, 2
  %v78 = vmax.f32 %v42, %v70
  %v79 = vmax.f32 %v43, %v71
  %v80 = vmax.f32 %v44, %v72
  %v81 = vmax.f32 %v45, %v73
  %v82 = vmax.f32 %v78, %v46
  %v83 = vmax.f32 %v79, %v47
  %v84 = vmax.f32 %v80, %v48
  %v85 = vmax.f32 %v81, %v49
  %v86 = vmax.f32 %v82, %v58
  %v87 = vmax.f32 %v83, %v59
  %v88 = vmax.f32 %v84, %v60
  %v89 = vmax.f32 %v85, %v61
  %v90 = vrot.slane %v22, 6
  %v91 = vrot.slane %v23, 6
  %v92 = vrot.slane %v26, 6
  %v93 = vrot.slane %v27, 6
  %v98 = vmax.f32 %v86, %v90
  %v99 = vmax.f32 %v87, %v91
  %v100 = vmax.f32 %v88, %v92
  %v101 = vmax.f32 %v89, %v93
  %v106 = vrot.slane %v98, 1
  %v107 = vrot.slane %v99, 1
  %v108 = vrot.slane %v100, 1
  %v109 = vrot.slane %v101, 1
  %v114 = vadd.f32 %v66, %v106
  %v115 = vadd.f32 %v67, %v107
  %v116 = vadd.f32 %v68, %v108
  %v117 = vadd.f32 %v69, %v109
  %v122 = vrot.slane %v24, 4
  %v123 = vrot.slane %v25, 4
  %v124 = vrot.slane %v28, 4
  %v125 = vrot.slane %v29, 4
  %v130 = vmax.f32 %v42, %v122
  %v131 = vmax.f32 %v43, %v123
  %v132 = vmax.f32 %v44, %v124
  %v133 = vmax.f32 %v45, %v125
  %v134 = vrot.slane %v24, 5
  %v135 = vrot.slane %v25, 5
  %v136 = vrot.slane %v28, 5
  %v137 = vrot.slane %v29, 5
  %v142 = vmax.f32 %v130, %v134
  %v143 = vmax.f32 %v131, %v135
  %v144 = vmax.f32 %v132, %v136
  %v145 = vmax.f32 %v133, %v137
  %v146 = vmax.f32 %v142, %v24
  %v147 = vmax.f32 %v143, %v25
  %v148 = vmax.f32 %v144, %v28
  %v149 = vmax.f32 %v145, %v29
  %v150 = vrot.slane %v24, 1
  %v151 = vrot.slane %v25, 1
  %v152 = vrot.slane %v28, 1
  %v153 = vrot.slane %v29, 1
  %v158 = vmax.f32 %v146, %v150
  %v159 = vmax.f32 %v147, %v151
  %v160 = vmax.f32 %v148, %v152
  %v161 = vmax.f32 %v149, %v153
  %v166 = vrot.slane %v158, 4
  %v167 = vrot.slane %v159, 4
  %v168 = vrot.slane %v160, 4
  %v169 = vrot.slane %v161, 4
  %v174 = vadd.f32 %v114, %v166
  %v175 = vadd.f32 %v115, %v167
  %v176 = vadd.f32 %v116, %v168
  %v177 = vadd.f32 %v117, %v169
  %v178 = vmax.f32 %v78, %v122
  %v179 = vmax.f32 %v79, %v123
  %v180 = vmax.f32 %v80, %v124
  %v181 = vmax.f32 %v81, %v125
  %v182 = vmax.f32 %v178, %v134
  %v183 = vmax.f32 %v179, %v135
  %v184 = vmax.f32 %v180, %v136
  %v185 = vmax.f32 %v181, %v137
  %v186 = vrot.slane %v24, 6
  %v187 = vrot.slane %v25, 6
  %v188 = vrot.slane %v28, 6
  %v189 = vrot.slane %v29, 6
  %v194 = vmax.f32 %v182, %v186
  %v195 = vmax.f32 %v183, %v187
  %v196 = vmax.f32 %v184, %v188
  %v197 = vmax.f32 %v185, %v189
  %v198 = vmax.f32 %v194, %v24
  %v199 = vmax.f32 %v195, %v25
  %v200 = vmax.f32 %v196, %v28
  %v201 = vmax.f32 %v197, %v29
  %v202 = vmax.f32 %v198, %v150
  %v203 = vmax.f32 %v199, %v151
  %v204 = vmax.f32 %v200, %v152
  %v205 = vmax.f32 %v201, %v153
  %v206 = vrot.slane %v24, 2
  %v207 = vrot.slane %v25, 2
  %v208 = vrot.slane %v28, 2
  %v209 = vrot.slane %v29, 2
  %v214 = vmax.f32 %v202, %v206
  %v215 = vmax.f32 %v203, %v207
  %v216 = vmax.f32 %v204, %v208
  %v217 = vmax.f32 %v205, %v209
  %v222 = vrot.slane %v214, 5
  %v223 = vrot.slane %v215, 5
  %v224 = vrot.slane %v216, 5
  %v225 = vrot.slane %v217, 5
  %v230 = vadd.f32 %v174, %v222
  %v231 = vadd.f32 %v175, %v223
  %v232 = vadd.f32 %v176, %v224
  %v233 = vadd.f32 %v177, %v225
  %v234 = vmul.f32 %v230, 0.25
  %v235 = vmul.f32 %v231, 0.25
  %v236 = vmul.f32 %v232, 0.25
  %v237 = vmul.f32 %v233, 0.25
  %v238 = vld [vmem:[%s1] sm:$0xff]
  %v239 = vld [vmem:[%s1 + $0x8] sm:$0xff]
  %v240 = vld [vmem:[%s1 + $0x10] sm:$0xff]
  %v241 = vld [vmem:[%s1 + $0x18] sm:$0xff]
  %v242 = vld [vmem:[%s1 + $0x20] sm:$0xff]
  %v243 = vld [vmem:[%s1 + $0x28] sm:$0xff]
  %v244 = vld [vmem:[%s1 + $0x30] sm:$0xff]
  %v245 = vld [vmem:[%s1 + $0x38] sm:$0xff]
  %v246 = vld [vmem:[%s1 + $0x40] sm:$0xff]
  %v247 = vld [vmem:[%s1 + $0x48] sm:$0xff]
  %v248 = vld [vmem:[%s1 + $0x50] sm:$0xff]
  %v249 = vld [vmem:[%s1 + $0x58] sm:$0xff]
  %v250 = vld [vmem:[%s1 + $0x60] sm:$0xff]
  %v251 = vld [vmem:[%s1 + $0x68] sm:$0xff]
  %v252 = vld [vmem:[%s1 + $0x70] sm:$0xff]
  %v253 = vld [vmem:[%s1 + $0x78] sm:$0xff]
  %v254 = vld [vmem:[%s1 + $0x80] sm:$0xff]
  %v255 = vld [vmem:[%s1 + $0x88] sm:$0xff]
  %v256 = vld [vmem:[%s2] sm:$0x1]
  %v258 = vlaneseq
  %v259 = vshrl.u32 %v258, 7
  %v260 = vsub.s32 0, %v259
  %v261 = vrot.slane %v256, %v260
  %v267 = vrot.slane %v236, 7
  %vm268 = vcmask 1041409
  %v269 = vsel %vm268, %v267, %v234
  %v270 = vrot.slane %v237, 7
  %v271 = vsel %vm268, %v270, %v235
  %vm273 = vcmask 130048
  %v274 = vsel %vm273, %v271, 0
  %276 = vmatprep.subr.mxu0 0.0
  %277 = vmatpush1.msra.mxu0 %v253
  %278 = vmatprep.subr.mxu0 0.0
  %279 = vmatpush1.msra.mxu0 %v252
  %280 = vmatprep.subr.mxu0 0.0
  %281 = vmatpush1.msra.mxu0 %v251
  %282 = vmatprep.subr.mxu0 0.0
  %283 = vmatpush1.msra.mxu0 %v250
  %284 = vmatprep.subr.mxu0 0.0
  %285 = vmatpush1.msra.mxu0 %v249
  %286 = vmatprep.subr.mxu0 0.0
  %287 = vmatpush1.msra.mxu0 %v248
  %288 = vmatprep.subr.mxu0 0.0
  %289 = vmatpush1.msra.mxu0 %v247
  %290 = vmatprep.subr.mxu0 0.0
  %291 = vmatpush1.msra.mxu0 %v246
  %292 = vmatprep.subr.mxu0 0.0
  %293 = vmatpush1.msra.mxu0 %v245
  %294 = vmatprep.subr.mxu0 0.0
  %295 = vmatpush1.msra.mxu0 %v244
  %296 = vmatprep.subr.mxu0 0.0
  %297 = vmatpush1.msra.mxu0 %v243
  %298 = vmatprep.subr.mxu0 0.0
  %299 = vmatpush1.msra.mxu0 %v242
  %300 = vmatprep.subr.mxu0 0.0
  %301 = vmatpush1.msra.mxu0 %v241
  %302 = vmatprep.subr.mxu0 0.0
  %303 = vmatpush1.msra.mxu0 %v240
  %304 = vmatprep.subr.mxu0 0.0
  %305 = vmatpush1.msra.mxu0 %v239
  %306 = vmatprep.subr.mxu0 0.0
  %307 = vmatpush1.msra.mxu0 %v238
  %308 = vmatprep.subr.mxu0 0.0
  %309 = vmatpush2.msra.mxu0 0.0
  %310 = vmatprep.subr.mxu0 0.0
  %311 = vmatpush2.msra.mxu0 0.0
  %312 = vmatprep.subr.mxu0 0.0
  %313 = vmatpush2.msra.mxu0 0.0
  %314 = vmatprep.subr.mxu0 0.0
  %315 = vmatpush2.msra.mxu0 0.0
  %316 = vmatprep.subr.mxu0 0.0
  %317 = vmatpush2.msra.mxu0 0.0
  %318 = vmatprep.subr.mxu0 0.0
  %319 = vmatpush2.msra.mxu0 0.0
  %320 = vmatprep.subr.mxu0 0.0
  %321 = vmatpush2.msra.mxu0 0.0
  %322 = vmatprep.subr.mxu0 0.0
  %323 = vmatpush2.msra.mxu0 0.0
  %324 = vmatprep.subr.mxu0 0.0
  %325 = vmatpush2.msra.mxu0 0.0
  %326 = vmatprep.subr.mxu0 0.0
  %327 = vmatpush2.msra.mxu0 0.0
  %328 = vmatprep.subr.mxu0 0.0
  %329 = vmatpush2.msra.mxu0 0.0
  %330 = vmatprep.subr.mxu0 0.0
  %331 = vmatpush2.msra.mxu0 0.0
  %332 = vmatprep.subr.mxu0 0.0
  %333 = vmatpush2.msra.mxu0 0.0
  %334 = vmatprep.subr.mxu0 0.0
  %335 = vmatpush2.msra.mxu0 0.0
  %336 = vmatprep.subr.mxu0 0.0
  %337 = vmatpush2.msra.mxu0 %v255
  %338 = vmatprep.subr.mxu0 0.0
  %339 = vmatpush2.msra.mxu0 %v254
  %340 = vmatprep.mubr.f32.mxu0 %v274
  %341 = vmatmul.mubr.f32.gmra.mxu0 %v269
  %v342 = vpop.f32.mrf.mxu0
  %v343 = vadd.f32 %v261, %v342
  %v344 = vpop.f32.mrf.mxu0
  %345 = vdwg.mxu0
  %v346 = vxor.u32 %v343, 2147483648
  %v347 = vmul.f32 %v346, 1.442695
  %v348 = vpow.pop %v347
  %v349 = vadd.f32 %v348, 1.0
  %v350 = vrcp.pop %v349
  %v351 = vmul.f32 1.0, %v350
  %353 = vrot.lane.b32.xlu0 %v351, 113
  %v354 = vpop.permute.xlu0 %353
  %v356 = vmul.f32 %v343, %v354
  %v357 = vld [vmem:[%s3] sm:$0xff]
  %v358 = vld [vmem:[%s3 + $0x8] sm:$0x7f]
  %v359 = vld [vmem:[#allocation2] sm:$0x1]
  %v361 = vlaneseq
  %v362 = vshrl.u32 %v361, 7
  %v363 = vsub.s32 0, %v362
  %v364 = vrot.slane %v359, %v363
  %vm366 = vcmask 121856
  %v368 = vsel %vm366, %v356, 0
  %vm370 = vcmask 1046528
  %v372 = vsel %vm370, %v358, 0
  %374 = vmatprep.subr.mxu0 0.0
  %375 = vmatpush1.msra.mxu0 0.0
  %376 = vmatprep.subr.mxu0 0.0
  %377 = vmatpush1.msra.mxu0 0.0
  %378 = vmatprep.subr.mxu0 0.0
  %379 = vmatpush1.msra.mxu0 0.0
  %380 = vmatprep.subr.mxu0 0.0
  %381 = vmatpush1.msra.mxu0 0.0
  %382 = vmatprep.subr.mxu0 0.0
  %383 = vmatpush1.msra.mxu0 0.0
  %384 = vmatprep.subr.mxu0 0.0
  %385 = vmatpush1.msra.mxu0 0.0
  %386 = vmatprep.subr.mxu0 0.0
  %387 = vmatpush1.msra.mxu0 0.0
  %388 = vmatprep.subr.mxu0 0.0
  %389 = vmatpush1.msra.mxu0 0.0
  %390 = vmatprep.subr.mxu0 0.0
  %391 = vmatpush1.msra.mxu0 0.0
  %392 = vmatprep.subr.mxu0 0.0
  %393 = vmatpush1.msra.mxu0 0.0
  %394 = vmatprep.subr.mxu0 0.0
  %395 = vmatpush1.msra.mxu0 0.0
  %396 = vmatprep.subr.mxu0 0.0
  %397 = vmatpush1.msra.mxu0 0.0
  %398 = vmatprep.subr.mxu0 0.0
  %399 = vmatpush1.msra.mxu0 0.0
  %400 = vmatprep.subr.mxu0 0.0
  %401 = vmatpush1.msra.mxu0 0.0
  %402 = vmatprep.subr.mxu0 0.0
  %403 = vmatpush1.msra.mxu0 %v372
  %404 = vmatprep.subr.mxu0 0.0
  %405 = vmatpush1.msra.mxu0 %v357
  %406 = vmatprep.subr.mxu0 0.0
  %407 = vmatpush2.msra.mxu0 0.0
  %408 = vmatprep.subr.mxu0 0.0
  %409 = vmatpush2.msra.mxu0 0.0
  %410 = vmatprep.subr.mxu0 0.0
  %411 = vmatpush2.msra.mxu0 0.0
  %412 = vmatprep.subr.mxu0 0.0
  %413 = vmatpush2.msra.mxu0 0.0
  %414 = vmatprep.subr.mxu0 0.0
  %415 = vmatpush2.msra.mxu0 0.0
  %416 = vmatprep.subr.mxu0 0.0
  %417 = vmatpush2.msra.mxu0 0.0
  %418 = vmatprep.subr.mxu0 0.0
  %419 = vmatpush2.msra.mxu0 0.0
  %420 = vmatprep.subr.mxu0 0.0
  %421 = vmatpush2.msra.mxu0 0.0
  %422 = vmatprep.subr.mxu0 0.0
  %423 = vmatpush2.msra.mxu0 0.0
  %424 = vmatprep.subr.mxu0 0.0
  %425 = vmatpush2.msra.mxu0 0.0
  %426 = vmatprep.subr.mxu0 0.0
  %427 = vmatpush2.msra.mxu0 0.0
  %428 = vmatprep.subr.mxu0 0.0
  %429 = vmatpush2.msra.mxu0 0.0
  %430 = vmatprep.subr.mxu0 0.0
  %431 = vmatpush2.msra.mxu0 0.0
  %432 = vmatprep.subr.mxu0 0.0
  %433 = vmatpush2.msra.mxu0 0.0
  %434 = vmatprep.subr.mxu0 0.0
  %435 = vmatpush2.msra.mxu0 0.0
  %436 = vmatprep.subr.mxu0 0.0
  %437 = vmatpush2.msra.mxu0 0.0
  %438 = vmatprep.mubr.f32.mxu0 0.0
  %439 = vmatmul.mubr.f32.gmra.mxu0 %v368
  %v440 = vpop.f32.mrf.mxu0
  %v441 = vadd.f32 %v364, %v440
  %v442 = vpop.f32.mrf.mxu0
  %443 = vdwg.mxu0
  %vm444 = vcmask 1024
  %445 = vst.msk [vmem:[%s5] sm:$0x3] %vm444, %v441
  // Predicated region
  $region22: #{rdlinet_forward.9} parent=0 // pred_check
    _
  $region23: #{rdlinet_forward.9} parent=0 // pred_check_branch
    %447 = sbr.rel (0) target = $region25
  $region24: #{rdlinet_forward.9} parent=0 // pred_region
    _
  $region25: #{rdlinet_forward.9} parent=0 // pred_fallthru
    _
  // Predicated region
  $region26: #{rdlinet_forward.9} parent=0 // pred_check
    _
  $region27: #{rdlinet_forward.9} parent=0 // pred_check_branch
    %449 = sbr.rel (0) target = $region29
  $region28: #{rdlinet_forward.9} parent=0 // pred_region
    _
  $region29: #{rdlinet_forward.9} parent=0 // pred_fallthru
    _

// kernel: rdlinet_forward.8
$region0: #{rdlinet_forward.8}
  #allocation0 [shape = 'u32[]', space=smem, size = 0x4, offset = 0x4, fixed_abs, tag = 'smem constant byte address 0x4 - core index']
  #allocation1 [shape = 'u32[144,128]{1,0:T(1,128)}', space=vmem, size = 0x12000, scoped, tag = 'internal scratch']
  %s0 = inlined_call_operand.vmem [shape: f32[2,68,144], index: 0, kind: input, shape index: {}]
  %s1 = inlined_call_operand.vmem [shape: f32[68,1], index: 1, kind: input, shape index: {}]
  %s2 = inlined_call_operand.vmem [shape: f32[144,16], index: 2, kind: input, shape index: {}]
  %s3 = inlined_call_operand.vmem [shape: f32[1,16], index: 3, kind: input, shape index: {}]
  %s4 = inlined_call_operand.vmem [shape: f32[9,144], index: 4, kind: input, shape index: {}]
  %s5 = inlined_call_operand.vmem [shape: f32[1,144], index: 5, kind: input, shape index: {}]
  %s6 = inlined_call_operand.vmem [shape: f32[144,48], index: 6, kind: input, shape index: {}]
  %s7 = inlined_call_operand.vmem [shape: f32[1,48], index: 7, kind: input, shape index: {}]
  %s8 = inlined_call_operand.vmem [shape: f32[25,144], index: 8, kind: input, shape index: {}]
  %s9 = inlined_call_operand.vmem [shape: f32[1,144], index: 9, kind: input, shape index: {}]
  %s10 = inlined_call_operand.vmem [shape: f32[144,48], index: 10, kind: input, shape index: {}]
  %s11 = inlined_call_operand.vmem [shape: f32[1,48], index: 11, kind: input, shape index: {}]
  %s12 = inlined_call_operand.vmem [shape: f32[144,32], index: 12, kind: input, shape index: {}]
  %s13 = inlined_call_operand.vmem [shape: f32[1,32], index: 13, kind: input, shape index: {}]
  %s14 = inlined_call_operand.vmem [shape: f32[2,32,144], index: 14, kind: output, shape index: {}]
  %s15 = sld [smem:[#allocation0]]
  $region89: #{rdlinet_forward.8} parent=0
    _
  %s17 = ssub.s32 1, %s15
  %s18 = scalar_select 0, %s17, %s15
  loop: start=0, step=1, limit=4
  $region2: #{rdlinet_forward.8} parent=0 // loop_pre_header
    _
  $region3: #{rdlinet_forward.8} parent=0 // loop_header
    %s20 = sphi 0, %s24
    %p21 = scmp.ge.s32.totalorder %s20, 4
    %s30 = sphi 0, %s32
    %s33 = sphi 0, %s30
    %s34 = sphi 0, %s33
    %s50 = sphi 0, %s34
    %s54 = sphi 0, %s54
    %s56 = sphi 0, %s54
    %s57 = sphi 0, %s56
    %s71 = sphi 0, %s57
    %s75 = sphi 0, %s75
    %s77 = sphi 0, %s75
    %s78 = sphi 0, %s77
    %s92 = sphi 0, %s78
    %s96 = sphi 0, %s96
    %s98 = sphi 0, %s96
    %s99 = sphi 0, %s98
    %s113 = sphi 0, %s99
    %s117 = sphi 0, %s117
    %s119 = sphi 0, %s117
    %s120 = sphi 0, %s119
    %s134 = sphi 0, %s120
    %s138 = sphi 0, %s138
    %s140 = sphi 0, %s138
    %s141 = sphi 0, %s140
    %s155 = sphi 0, %s141
    %s159 = sphi 0, %s159
    %s161 = sphi 0, %s159
    %s162 = sphi 0, %s161
    %s176 = sphi 0, %s162
    %s180 = sphi 0, %s180
    %s182 = sphi 0, %s180
    %s183 = sphi 0, %s182
    %s197 = sphi 0, %s183
    %s201 = sphi 0, %s201
    %s203 = sphi 0, %s201
    %s204 = sphi 0, %s203
    %s218 = sphi 0, %s204
    %s222 = sphi 0, %s222
    %s224 = sphi 0, %s222
    %s225 = sphi 0, %s224
    %s239 = sphi 0, %s225
    %s243 = sphi 0, %s243
    %s245 = sphi 0, %s243
    %s246 = sphi 0, %s245
    %s260 = sphi 0, %s246
    %s264 = sphi 0, %s264
    %s266 = sphi 0, %s264
    %s267 = sphi 0, %s266
    %s281 = sphi 0, %s267
    %s285 = sphi 0, %s285
    %s287 = sphi 0, %s285
    %s288 = sphi 0, %s287
    %s302 = sphi 0, %s288
    %s306 = sphi 0, %s306
    %s308 = sphi 0, %s306
    %s309 = sphi 0, %s308
    %s323 = sphi 0, %s309
    %s329 = sphi 0, %s331
    %s332 = sphi 0, %s329
    %s333 = sphi 0, %s332
    %s349 = sphi 0, %s333
  $region4: #{rdlinet_forward.8} parent=0 // loop_header_branch
    %23 = sbr.rel (%p21) target = $region8
  $region5: #{rdlinet_forward.8} parent=0 // loop_body
    %s25 = ssub.s32 %s20, 1
    %s26 = ssub.s32 %s20, 2
    %s27 = sadd.s32 %s20, 1
    %s28 = ssub.s32 %s20, %s27
    %p29 = scmp.eq.s32.totalorder %s28, 0
    %s31 = sadd.s32 %s30, 1
    %s32 = scalar_select %p29, %s30, %s31
    %p35 = pneg %p29
    %p36 = scmp.eq.s32.totalorder %s20, 1
    %p37 = por %p35, %p36
    %p38 = scmp.ne.s32.totalorder %s30, %s33
    %p39 = scmp.eq.s32.totalorder %s20, 0
    %p40 = por %p38, %p39
    %p41 = scmp.ne.s32.totalorder %s30, %s33
    %p42 = scmp.eq.s32.totalorder %s25, 1
    %p43 = por %p41, %p42
    %p44 = scmp.ne.s32.totalorder %s33, %s34
    %p45 = scmp.eq.s32.totalorder %s25, 0
    %p46 = por %p44, %p45
    %p47 = scmp.ne.s32.totalorder %s33, %s34
    %p48 = scmp.eq.s32.totalorder %s26, 1
    %p49 = por %p47, %p48
    %p51 = scmp.ne.s32.totalorder %s34, %s50
    %p52 = scmp.eq.s32.totalorder %s26, 0
    %p53 = por %p51, %p52
    %s55 = sadd.s32 %s54, 1
    %p58 = scmp.eq.s32.totalorder %s20, 1
    %p59 = scmp.ne.s32.totalorder %s54, %s56
    %p60 = scmp.eq.s32.totalorder %s20, 0
    %p61 = por %p59, %p60
    %p62 = scmp.ne.s32.totalorder %s54, %s56
    %p63 = scmp.eq.s32.totalorder %s25, 1
    %p64 = por %p62, %p63
    %p65 = scmp.ne.s32.totalorder %s56, %s57
    %p66 = scmp.eq.s32.totalorder %s25, 0
    %p67 = por %p65, %p66
    %p68 = scmp.ne.s32.totalorder %s56, %s57
    %p69 = scmp.eq.s32.totalorder %s26, 1
    %p70 = por %p68, %p69
    %p72 = scmp.ne.s32.totalorder %s57, %s71
    %p73 = scmp.eq.s32.totalorder %s26, 0
    %p74 = por %p72, %p73
    %s76 = sadd.s32 %s75, 1
    %p79 = scmp.eq.s32.totalorder %s20, 1
    %p80 = scmp.ne.s32.totalorder %s75, %s77
    %p81 = scmp.eq.s32.totalorder %s20, 0
    %p82 = por %p80, %p81
    %p83 = scmp.ne.s32.totalorder %s75, %s77
    %p84 = scmp.eq.s32.totalorder %s25, 1
    %p85 = por %p83, %p84
    %p86 = scmp.ne.s32.totalorder %s77, %s78
    %p87 = scmp.eq.s32.totalorder %s25, 0
    %p88 = por %p86, %p87
    %p89 = scmp.ne.s32.totalorder %s77, %s78
    %p90 = scmp.eq.s32.totalorder %s26, 1
    %p91 = por %p89, %p90
    %p93 = scmp.ne.s32.totalorder %s78, %s92
    %p94 = scmp.eq.s32.totalorder %s26, 0
    %p95 = por %p93, %p94
    %s97 = sadd.s32 %s96, 1
    %p100 = scmp.eq.s32.totalorder %s20, 1
    %p101 = scmp.ne.s32.totalorder %s96, %s98
    %p102 = scmp.eq.s32.totalorder %s20, 0
    %p103 = por %p101, %p102
    %p104 = scmp.ne.s32.totalorder %s96, %s98
    %p105 = scmp.eq.s32.totalorder %s25, 1
    %p106 = por %p104, %p105
    %p107 = scmp.ne.s32.totalorder %s98, %s99
    %p108 = scmp.eq.s32.totalorder %s25, 0
    %p109 = por %p107, %p108
    %p110 = scmp.ne.s32.totalorder %s98, %s99
    %p111 = scmp.eq.s32.totalorder %s26, 1
    %p112 = por %p110, %p111
    %p114 = scmp.ne.s32.totalorder %s99, %s113
    %p115 = scmp.eq.s32.totalorder %s26, 0
    %p116 = por %p114, %p115
    %s118 = sadd.s32 %s117, 1
    %p121 = scmp.eq.s32.totalorder %s20, 1
    %p122 = scmp.ne.s32.totalorder %s117, %s119
    %p123 = scmp.eq.s32.totalorder %s20, 0
    %p124 = por %p122, %p123
    %p125 = scmp.ne.s32.totalorder %s117, %s119
    %p126 = scmp.eq.s32.totalorder %s25, 1
    %p127 = por %p125, %p126
    %p128 = scmp.ne.s32.totalorder %s119, %s120
    %p129 = scmp.eq.s32.totalorder %s25, 0
    %p130 = por %p128, %p129
    %p131 = scmp.ne.s32.totalorder %s119, %s120
    %p132 = scmp.eq.s32.totalorder %s26, 1
    %p133 = por %p131, %p132
    %p135 = scmp.ne.s32.totalorder %s120, %s134
    %p136 = scmp.eq.s32.totalorder %s26, 0
    %p137 = por %p135, %p136
    %s139 = sadd.s32 %s138, 1
    %p142 = scmp.eq.s32.totalorder %s20, 1
    %p143 = scmp.ne.s32.totalorder %s138, %s140
    %p144 = scmp.eq.s32.totalorder %s20, 0
    %p145 = por %p143, %p144
    %p146 = scmp.ne.s32.totalorder %s138, %s140
    %p147 = scmp.eq.s32.totalorder %s25, 1
    %p148 = por %p146, %p147
    %p149 = scmp.ne.s32.totalorder %s140, %s141
    %p150 = scmp.eq.s32.totalorder %s25, 0
    %p151 = por %p149, %p150
    %p152 = scmp.ne.s32.totalorder %s140, %s141
    %p153 = scmp.eq.s32.totalorder %s26, 1
    %p154 = por %p152, %p153
    %p156 = scmp.ne.s32.totalorder %s141, %s155
    %p157 = scmp.eq.s32.totalorder %s26, 0
    %p158 = por %p156, %p157
    %s160 = sadd.s32 %s159, 1
    %p163 = scmp.eq.s32.totalorder %s20, 1
    %p164 = scmp.ne.s32.totalorder %s159, %s161
    %p165 = scmp.eq.s32.totalorder %s20, 0
    %p166 = por %p164, %p165
    %p167 = scmp.ne.s32.totalorder %s159, %s161
    %p168 = scmp.eq.s32.totalorder %s25, 1
    %p169 = por %p167, %p168
    %p170 = scmp.ne.s32.totalorder %s161, %s162
    %p171 = scmp.eq.s32.totalorder %s25, 0
    %p172 = por %p170, %p171
    %p173 = scmp.ne.s32.totalorder %s161, %s162
    %p174 = scmp.eq.s32.totalorder %s26, 1
    %p175 = por %p173, %p174
    %p177 = scmp.ne.s32.totalorder %s162, %s176
    %p178 = scmp.eq.s32.totalorder %s26, 0
    %p179 = por %p177, %p178
    %s181 = sadd.s32 %s180, 1
    %p184 = scmp.eq.s32.totalorder %s20, 1
    %p185 = scmp.ne.s32.totalorder %s180, %s182
    %p186 = scmp.eq.s32.totalorder %s20, 0
    %p187 = por %p185, %p186
    %p188 = scmp.ne.s32.totalorder %s180, %s182
    %p189 = scmp.eq.s32.totalorder %s25, 1
    %p190 = por %p188, %p189
    %p191 = scmp.ne.s32.totalorder %s182, %s183
    %p192 = scmp.eq.s32.totalorder %s25, 0
    %p193 = por %p191, %p192
    %p194 = scmp.ne.s32.totalorder %s182, %s183
    %p195 = scmp.eq.s32.totalorder %s26, 1
    %p196 = por %p194, %p195
    %p198 = scmp.ne.s32.totalorder %s183, %s197
    %p199 = scmp.eq.s32.totalorder %s26, 0
    %p200 = por %p198, %p199
    %s202 = sadd.s32 %s201, 1
    %p205 = scmp.eq.s32.totalorder %s20, 1
    %p206 = scmp.ne.s32.totalorder %s201, %s203
    %p207 = scmp.eq.s32.totalorder %s20, 0
    %p208 = por %p206, %p207
    %p209 = scmp.ne.s32.totalorder %s201, %s203
    %p210 = scmp.eq.s32.totalorder %s25, 1
    %p211 = por %p209, %p210
    %p212 = scmp.ne.s32.totalorder %s203, %s204
    %p213 = scmp.eq.s32.totalorder %s25, 0
    %p214 = por %p212, %p213
    %p215 = scmp.ne.s32.totalorder %s203, %s204
    %p216 = scmp.eq.s32.totalorder %s26, 1
    %p217 = por %p215, %p216
    %p219 = scmp.ne.s32.totalorder %s204, %s218
    %p220 = scmp.eq.s32.totalorder %s26, 0
    %p221 = por %p219, %p220
    %s223 = sadd.s32 %s222, 1
    %p226 = scmp.eq.s32.totalorder %s20, 1
    %p227 = scmp.ne.s32.totalorder %s222, %s224
    %p228 = scmp.eq.s32.totalorder %s20, 0
    %p229 = por %p227, %p228
    %p230 = scmp.ne.s32.totalorder %s222, %s224
    %p231 = scmp.eq.s32.totalorder %s25, 1
    %p232 = por %p230, %p231
    %p233 = scmp.ne.s32.totalorder %s224, %s225
    %p234 = scmp.eq.s32.totalorder %s25, 0
    %p235 = por %p233, %p234
    %p236 = scmp.ne.s32.totalorder %s224, %s225
    %p237 = scmp.eq.s32.totalorder %s26, 1
    %p238 = por %p236, %p237
    %p240 = scmp.ne.s32.totalorder %s225, %s239
    %p241 = scmp.eq.s32.totalorder %s26, 0
    %p242 = por %p240, %p241
    %s244 = sadd.s32 %s243, 1
    %p247 = scmp.eq.s32.totalorder %s20, 1
    %p248 = scmp.ne.s32.totalorder %s243, %s245
    %p249 = scmp.eq.s32.totalorder %s20, 0
    %p250 = por %p248, %p249
    %p251 = scmp.ne.s32.totalorder %s243, %s245
    %p252 = scmp.eq.s32.totalorder %s25, 1
    %p253 = por %p251, %p252
    %p254 = scmp.ne.s32.totalorder %s245, %s246
    %p255 = scmp.eq.s32.totalorder %s25, 0
    %p256 = por %p254, %p255
    %p257 = scmp.ne.s32.totalorder %s245, %s246
    %p258 = scmp.eq.s32.totalorder %s26, 1
    %p259 = por %p257, %p258
    %p261 = scmp.ne.s32.totalorder %s246, %s260
    %p262 = scmp.eq.s32.totalorder %s26, 0
    %p263 = por %p261, %p262
    %s265 = sadd.s32 %s264, 1
    %p268 = scmp.eq.s32.totalorder %s20, 1
    %p269 = scmp.ne.s32.totalorder %s264, %s266
    %p270 = scmp.eq.s32.totalorder %s20, 0
    %p271 = por %p269, %p270
    %p272 = scmp.ne.s32.totalorder %s264, %s266
    %p273 = scmp.eq.s32.totalorder %s25, 1
    %p274 = por %p272, %p273
    %p275 = scmp.ne.s32.totalorder %s266, %s267
    %p276 = scmp.eq.s32.totalorder %s25, 0
    %p277 = por %p275, %p276
    %p278 = scmp.ne.s32.totalorder %s266, %s267
    %p279 = scmp.eq.s32.totalorder %s26, 1
    %p280 = por %p278, %p279
    %p282 = scmp.ne.s32.totalorder %s267, %s281
    %p283 = scmp.eq.s32.totalorder %s26, 0
    %p284 = por %p282, %p283
    %s286 = sadd.s32 %s285, 1
    %p289 = scmp.eq.s32.totalorder %s20, 1
    %p290 = scmp.ne.s32.totalorder %s285, %s287
    %p291 = scmp.eq.s32.totalorder %s20, 0
    %p292 = por %p290, %p291
    %p293 = scmp.ne.s32.totalorder %s285, %s287
    %p294 = scmp.eq.s32.totalorder %s25, 1
    %p295 = por %p293, %p294
    %p296 = scmp.ne.s32.totalorder %s287, %s288
    %p297 = scmp.eq.s32.totalorder %s25, 0
    %p298 = por %p296, %p297
    %p299 = scmp.ne.s32.totalorder %s287, %s288
    %p300 = scmp.eq.s32.totalorder %s26, 1
    %p301 = por %p299, %p300
    %p303 = scmp.ne.s32.totalorder %s288, %s302
    %p304 = scmp.eq.s32.totalorder %s26, 0
    %p305 = por %p303, %p304
    %s307 = sadd.s32 %s306, 1
    %p310 = scmp.eq.s32.totalorder %s20, 1
    %p311 = scmp.ne.s32.totalorder %s306, %s308
    %p312 = scmp.eq.s32.totalorder %s20, 0
    %p313 = por %p311, %p312
    %p314 = scmp.ne.s32.totalorder %s306, %s308
    %p315 = scmp.eq.s32.totalorder %s25, 1
    %p316 = por %p314, %p315
    %p317 = scmp.ne.s32.totalorder %s308, %s309
    %p318 = scmp.eq.s32.totalorder %s25, 0
    %p319 = por %p317, %p318
    %p320 = scmp.ne.s32.totalorder %s308, %s309
    %p321 = scmp.eq.s32.totalorder %s26, 1
    %p322 = por %p320, %p321
    %p324 = scmp.ne.s32.totalorder %s309, %s323
    %p325 = scmp.eq.s32.totalorder %s26, 0
    %p326 = por %p324, %p325
    %s327 = ssub.s32 %s20, %s27
    %p328 = scmp.eq.s32.totalorder %s327, 0
    %s330 = sadd.s32 %s329, 1
    %s331 = scalar_select %p328, %s329, %s330
    %p334 = pneg %p328
    %p335 = scmp.eq.s32.totalorder %s20, 1
    %p336 = por %p334, %p335
    %p337 = scmp.ne.s32.totalorder %s329, %s332
    %p338 = scmp.eq.s32.totalorder %s20, 0
    %p339 = por %p337, %p338
    %p340 = scmp.ne.s32.totalorder %s329, %s332
    %p341 = scmp.eq.s32.totalorder %s25, 1
    %p342 = por %p340, %p341
    %p343 = scmp.ne.s32.totalorder %s332, %s333
    %p344 = scmp.eq.s32.totalorder %s25, 0
    %p345 = por %p343, %p344
    %p346 = scmp.ne.s32.totalorder %s332, %s333
    %p347 = scmp.eq.s32.totalorder %s26, 1
    %p348 = por %p346, %p347
    %p350 = scmp.ne.s32.totalorder %s333, %s349
    %p351 = scmp.eq.s32.totalorder %s26, 0
    %p352 = por %p350, %p351
    %p353 = scmp.le.s32.totalorder 1, %s20
    %p354 = scmp.lt.s32.totalorder %s20, 3
    %p355 = pnand %p353, %p354
    %p356 = pneg %p355
    // Predicated region
    $region9: #{rdlinet_forward.8} parent=5 // pred_check
      _
    $region10: #{rdlinet_forward.8} parent=5 // pred_check_branch
      %358 = sbr.rel (%p355) target = $region12
    $region11: #{rdlinet_forward.8} parent=5 // pred_region
      %s359 = ssub.s32 %s20, 1
      // Predicated region
      $region13: #{rdlinet_forward.8} parent=11 // pred_check
        %p360 = pneg %p67
      $region14: #{rdlinet_forward.8} parent=11 // pred_check_branch
        %362 = sbr.rel (%p360) target = $region16
      $region15: #{rdlinet_forward.8} parent=11 // pred_region
        _
      $region16: #{rdlinet_forward.8} parent=11 // pred_fallthru
        _
      // Predicated region
      $region17: #{rdlinet_forward.8} parent=11 // pred_check
        %p363 = pneg %p88
      $region18: #{rdlinet_forward.8} parent=11 // pred_check_branch
        %365 = sbr.rel (%p363) target = $region20
      $region19: #{rdlinet_forward.8} parent=11 // pred_region
        _
      $region20: #{rdlinet_forward.8} parent=11 // pred_fallthru
        _
      // Predicated region
      $region21: #{rdlinet_forward.8} parent=11 // pred_check
        %p366 = pneg %p109
      $region22: #{rdlinet_forward.8} parent=11 // pred_check_branch
        %368 = sbr.rel (%p366) target = $region24
      $region23: #{rdlinet_forward.8} parent=11 // pred_region
        _
      $region24: #{rdlinet_forward.8} parent=11 // pred_fallthru
        _
      // Predicated region
      $region25: #{rdlinet_forward.8} parent=11 // pred_check
        %p369 = pneg %p130
      $region26: #{rdlinet_forward.8} parent=11 // pred_check_branch
        %371 = sbr.rel (%p369) target = $region28
      $region27: #{rdlinet_forward.8} parent=11 // pred_region
        _
      $region28: #{rdlinet_forward.8} parent=11 // pred_fallthru
        _
      // Predicated region
      $region29: #{rdlinet_forward.8} parent=11 // pred_check
        %p372 = pneg %p151
      $region30: #{rdlinet_forward.8} parent=11 // pred_check_branch
        %374 = sbr.rel (%p372) target = $region32
      $region31: #{rdlinet_forward.8} parent=11 // pred_region
        _
      $region32: #{rdlinet_forward.8} parent=11 // pred_fallthru
        _
      // Predicated region
      $region33: #{rdlinet_forward.8} parent=11 // pred_check
        %p375 = pneg %p172
      $region34: #{rdlinet_forward.8} parent=11 // pred_check_branch
        %377 = sbr.rel (%p375) target = $region36
      $region35: #{rdlinet_forward.8} parent=11 // pred_region
        _
      $region36: #{rdlinet_forward.8} parent=11 // pred_fallthru
        _
      // Predicated region
      $region37: #{rdlinet_forward.8} parent=11 // pred_check
        %p378 = pneg %p193
      $region38: #{rdlinet_forward.8} parent=11 // pred_check_branch
        %380 = sbr.rel (%p378) target = $region40
      $region39: #{rdlinet_forward.8} parent=11 // pred_region
        _
      $region40: #{rdlinet_forward.8} parent=11 // pred_fallthru
        _
      // Predicated region
      $region41: #{rdlinet_forward.8} parent=11 // pred_check
        %p381 = pneg %p214
      $region42: #{rdlinet_forward.8} parent=11 // pred_check_branch
        %383 = sbr.rel (%p381) target = $region44
      $region43: #{rdlinet_forward.8} parent=11 // pred_region
        _
      $region44: #{rdlinet_forward.8} parent=11 // pred_fallthru
        _
      // Predicated region
      $region45: #{rdlinet_forward.8} parent=11 // pred_check
        %p384 = pneg %p235
      $region46: #{rdlinet_forward.8} parent=11 // pred_check_branch
        %386 = sbr.rel (%p384) target = $region48
      $region47: #{rdlinet_forward.8} parent=11 // pred_region
        _
      $region48: #{rdlinet_forward.8} parent=11 // pred_fallthru
        _
      // Predicated region
      $region49: #{rdlinet_forward.8} parent=11 // pred_check
        %p387 = pneg %p256
      $region50: #{rdlinet_forward.8} parent=11 // pred_check_branch
        %389 = sbr.rel (%p387) target = $region52
      $region51: #{rdlinet_forward.8} parent=11 // pred_region
        _
      $region52: #{rdlinet_forward.8} parent=11 // pred_fallthru
        _
      // Predicated region
      $region53: #{rdlinet_forward.8} parent=11 // pred_check
        %p390 = pneg %p277
      $region54: #{rdlinet_forward.8} parent=11 // pred_check_branch
        %392 = sbr.rel (%p390) target = $region56
      $region55: #{rdlinet_forward.8} parent=11 // pred_region
        _
      $region56: #{rdlinet_forward.8} parent=11 // pred_fallthru
        _
      // Predicated region
      $region57: #{rdlinet_forward.8} parent=11 // pred_check
        %p393 = pneg %p298
      $region58: #{rdlinet_forward.8} parent=11 // pred_check_branch
        %395 = sbr.rel (%p393) target = $region60
      $region59: #{rdlinet_forward.8} parent=11 // pred_region
        _
      $region60: #{rdlinet_forward.8} parent=11 // pred_fallthru
        _
      // Predicated region
      $region61: #{rdlinet_forward.8} parent=11 // pred_check
        %p396 = pneg %p319
      $region62: #{rdlinet_forward.8} parent=11 // pred_check_branch
        %398 = sbr.rel (%p396) target = $region64
      $region63: #{rdlinet_forward.8} parent=11 // pred_region
        _
      $region64: #{rdlinet_forward.8} parent=11 // pred_fallthru
        _
    $region12: #{rdlinet_forward.8} parent=5 // pred_fallthru
      _
    %p399 = scmp.lt.s32.totalorder %s20, 2
    // Predicated region
    $region65: #{rdlinet_forward.8} parent=5 // pred_check
      %p400 = pneg %p399
    $region66: #{rdlinet_forward.8} parent=5 // pred_check_branch
      %402 = sbr.rel (%p400) target = $region68
    $region67: #{rdlinet_forward.8} parent=5 // pred_region
      // Predicated region
      $region69: #{rdlinet_forward.8} parent=67 // pred_check
        %p403 = pneg %p40
      $region70: #{rdlinet_forward.8} parent=67 // pred_check_branch
        %405 = sbr.rel (%p403) target = $region72
      $region71: #{rdlinet_forward.8} parent=67 // pred_region
        %p406 = scmp.lt.s32.totalorder %s20, 1
        %s407 = scalar_select %p406, %s20, 1
        %s408 = smul.addr %s407, 18
        %s409 = smul.addr %s408, 8
        %s410 = scalar_lea.vmem %s0, %s409
      $region72: #{rdlinet_forward.8} parent=67 // pred_fallthru
        _
    $region68: #{rdlinet_forward.8} parent=5 // pred_fallthru
      _
    %p411 = scmp.le.s32.totalorder 1, %s20
    %p412 = scmp.lt.s32.totalorder %s20, 3
    %p413 = pnand %p411, %p412
    %p414 = pneg %p413
    // Predicated region
    $region73: #{rdlinet_forward.8} parent=5 // pred_check
      _
    $region74: #{rdlinet_forward.8} parent=5 // pred_check_branch
      %416 = sbr.rel (%p413) target = $region76
    $region75: #{rdlinet_forward.8} parent=5 // pred_region
      %s417 = ssub.s32 %s20, 1
      %p418 = scmp.lt.s32.totalorder %s25, 1
      %s419 = scalar_select %p418, %s25, 1
      %s420 = smul.addr %s419, 18
      %s421 = smul.addr %s420, 8
      %s422 = scalar_lea.vmem %s0, %s421
      %p423 = pneg %p46
      %p424 = pneg %p43
      %p425 = pneg %p67
      %p426 = pneg %p64
      %p427 = pneg %p88
      %p428 = pneg %p85
      %p429 = pneg %p109
      %p430 = pneg %p106
      %p431 = pneg %p130
      %p432 = pneg %p127
      %p433 = pneg %p151
      %p434 = pneg %p148
      %p435 = pneg %p172
      %p436 = pneg %p169
      %p437 = pneg %p193
      %p438 = pneg %p190
      %p439 = pneg %p214
      %p440 = pneg %p211
      %p441 = pneg %p235
      %p442 = pneg %p232
      %p443 = pneg %p256
      %p444 = pneg %p253
      %p445 = pneg %p277
      %p446 = pneg %p274
      %p447 = pneg %p298
      %p448 = pneg %p295
      %p449 = pneg %p319
      %p450 = pneg %p316
      %p451 = pneg %p345
      %p452 = pneg %p342
      %p453 = scmp.lt.s32.totalorder %s25, 1
      %s454 = scalar_select %p453, %s25, 1
      %s455 = smul.addr %s454, 8
      %s456 = smul.addr %s455, 8
      %s457 = scalar_lea.vmem %s14, %s456
      %p458 = scmp.lt.s32.totalorder %s25, 1
      %s459 = scalar_select %p458, %s25, 1
      %s460 = smul.addr %s459, 18
      %s461 = smul.addr %s460, 8
      %s462 = scalar_lea.vmem %s0, %s461
      %p463 = scmp.lt.s32.totalorder %s25, 1
      %s464 = scalar_select %p463, %s25, 1
      %s465 = smul.addr %s464, 8
      %s466 = smul.addr %s465, 8
      %s467 = scalar_lea.vmem %s14, %s466
      %v468 = vld [vmem:[%s462] sm:$0xff]
      %v469 = vld [vmem:[%s462 + $0x8] sm:$0xff]
      %v470 = vld [vmem:[%s462 + $0x10] sm:$0xff]
      %v471 = vld [vmem:[%s462 + $0x18] sm:$0xff]
      %v472 = vld [vmem:[%s462 + $0x20] sm:$0xff]
      %v473 = vld [vmem:[%s462 + $0x28] sm:$0xff]
      %v474 = vld [vmem:[%s462 + $0x30] sm:$0xff]
      %v475 = vld [vmem:[%s462 + $0x38] sm:$0xff]
      %v476 = vld [vmem:[%s462 + $0x40] sm:$0xff]
      %v477 = vld [vmem:[%s462 + $0x48] sm:$0xff]
      %v478 = vld [vmem:[%s462 + $0x50] sm:$0xff]
      %v479 = vld [vmem:[%s462 + $0x58] sm:$0xff]
      %v480 = vld [vmem:[%s462 + $0x60] sm:$0xff]
      %v481 = vld [vmem:[%s462 + $0x68] sm:$0xff]
      %v482 = vld [vmem:[%s462 + $0x70] sm:$0xff]
      %v483 = vld [vmem:[%s462 + $0x78] sm:$0xff]
      %v484 = vld [vmem:[%s462 + $0x80] sm:$0xf]
      %v485 = vld [vmem:[%s462 + $0x88] sm:$0xf]
      %v486 = vld [vmem:[%s2] sm:$0xff]
      %v487 = vld [vmem:[%s2 + $0x8] sm:$0xff]
      %v488 = vld [vmem:[%s2 + $0x10] sm:$0xff]
      %v489 = vld [vmem:[%s2 + $0x18] sm:$0xff]
      %v490 = vld [vmem:[%s2 + $0x20] sm:$0xff]
      %v491 = vld [vmem:[%s2 + $0x28] sm:$0xff]
      %v492 = vld [vmem:[%s2 + $0x30] sm:$0xff]
      %v493 = vld [vmem:[%s2 + $0x38] sm:$0xff]
      %v494 = vld [vmem:[%s2 + $0x40] sm:$0xff]
      %v495 = vld [vmem:[%s2 + $0x48] sm:$0xff]
      %v496 = vld [vmem:[%s2 + $0x50] sm:$0xff]
      %v497 = vld [vmem:[%s2 + $0x58] sm:$0xff]
      %v498 = vld [vmem:[%s2 + $0x60] sm:$0xff]
      %v499 = vld [vmem:[%s2 + $0x68] sm:$0xff]
      %v500 = vld [vmem:[%s2 + $0x70] sm:$0xff]
      %v501 = vld [vmem:[%s2 + $0x78] sm:$0xff]
      %v502 = vld [vmem:[%s2 + $0x80] sm:$0xff]
      %v503 = vld [vmem:[%s2 + $0x88] sm:$0xff]
      %v504 = vld [vmem:[%s3] sm:$0x1]
      %v506 = vlaneseq
      %v507 = vshrl.u32 %v506, 7
      %v508 = vsub.s32 0, %v507
      %v509 = vrot.slane %v504, %v508
      %vm521 = vcmask 1045504
      %v522 = vrot.slane %v472, 2
      %v523 = vrot.slane %v474, 2
      %v524 = vsel %vm521, %v522, %v523
      %v525 = vrot.slane %v473, 2
      %v526 = vrot.slane %v475, 2
      %v527 = vsel %vm521, %v525, %v526
      %v528 = vrot.slane %v476, 2
      %v529 = vsel %vm521, %v523, %v528
      %v530 = vrot.slane %v477, 2
      %v531 = vsel %vm521, %v526, %v530
      %v532 = vrot.slane %v478, 2
      %v533 = vsel %vm521, %v528, %v532
      %v534 = vrot.slane %v479, 2
      %v535 = vsel %vm521, %v530, %v534
      %v536 = vrot.slane %v480, 2
      %v537 = vsel %vm521, %v532, %v536
      %v538 = vrot.slane %v481, 2
      %v539 = vsel %vm521, %v534, %v538
      %vm544 = vcmask 130048
      %v545 = vsel %vm544, %v527, 0
      %v547 = vsel %vm544, %v531, 0
      %v549 = vsel %vm544, %v535, 0
      %v551 = vsel %vm544, %v539, 0
      %553 = vmatprep.subr.mxu0 0.0
      %554 = vmatpush1.msra.mxu0 %v501
      %555 = vmatprep.subr.mxu0 0.0
      %556 = vmatpush1.msra.mxu0 %v500
      %557 = vmatprep.subr.mxu0 0.0
      %558 = vmatpush1.msra.mxu0 %v499
      %559 = vmatprep.subr.mxu0 0.0
      %560 = vmatpush1.msra.mxu0 %v498
      %561 = vmatprep.subr.mxu0 0.0
      %562 = vmatpush1.msra.mxu0 %v497
      %563 = vmatprep.subr.mxu0 0.0
      %564 = vmatpush1.msra.mxu0 %v496
      %565 = vmatprep.subr.mxu0 0.0
      %566 = vmatpush1.msra.mxu0 %v495
      %567 = vmatprep.subr.mxu0 0.0
      %568 = vmatpush1.msra.mxu0 %v494
      %569 = vmatprep.subr.mxu0 0.0
      %570 = vmatpush1.msra.mxu0 %v493
      %571 = vmatprep.subr.mxu0 0.0
      %572 = vmatpush1.msra.mxu0 %v492
      %573 = vmatprep.subr.mxu0 0.0
      %574 = vmatpush1.msra.mxu0 %v491
      %575 = vmatprep.subr.mxu0 0.0
      %576 = vmatpush1.msra.mxu0 %v490
      %577 = vmatprep.subr.mxu0 0.0
      %578 = vmatpush1.msra.mxu0 %v489
      %579 = vmatprep.subr.mxu0 0.0
      %580 = vmatpush1.msra.mxu0 %v488
      %581 = vmatprep.subr.mxu0 0.0
      %582 = vmatpush1.msra.mxu0 %v487
      %583 = vmatprep.subr.mxu0 0.0
      %584 = vmatpush1.msra.mxu0 %v486
      %585 = vmatprep.subr.mxu0 0.0
      %586 = vmatpush2.msra.mxu0 0.0
      %587 = vmatprep.subr.mxu0 0.0
      %588 = vmatpush2.msra.mxu0 0.0
      %589 = vmatprep.subr.mxu0 0.0
      %590 = vmatpush2.msra.mxu0 0.0
      %591 = vmatprep.subr.mxu0 0.0
      %592 = vmatpush2.msra.mxu0 0.0
      %593 = vmatprep.subr.mxu0 0.0
      %594 = vmatpush2.msra.mxu0 0.0
      %595 = vmatprep.subr.mxu0 0.0
      %596 = vmatpush2.msra.mxu0 0.0
      %597 = vmatprep.subr.mxu0 0.0
      %598 = vmatpush2.msra.mxu0 0.0
      %599 = vmatprep.subr.mxu0 0.0
      %600 = vmatpush2.msra.mxu0 0.0
      %601 = vmatprep.subr.mxu0 0.0
      %602 = vmatpush2.msra.mxu0 0.0
      %603 = vmatprep.subr.mxu0 0.0
      %604 = vmatpush2.msra.mxu0 0.0
      %605 = vmatprep.subr.mxu0 0.0
      %606 = vmatpush2.msra.mxu0 0.0
      %607 = vmatprep.subr.mxu0 0.0
      %608 = vmatpush2.msra.mxu0 0.0
      %609 = vmatprep.subr.mxu0 0.0
      %610 = vmatpush2.msra.mxu0 0.0
      %611 = vmatprep.subr.mxu0 0.0
      %612 = vmatpush2.msra.mxu0 0.0
      %613 = vmatprep.subr.mxu0 0.0
      %614 = vmatpush2.msra.mxu0 %v503
      %615 = vmatprep.subr.mxu0 0.0
      %616 = vmatpush2.msra.mxu0 %v502
      %617 = vmatprep.mubr.f32.mxu0 %v545
      %618 = vmatmul.mubr.f32.gmra.mxu0 %v524
      %v619 = vpop.f32.mrf.mxu0
      %v620 = vadd.f32 %v509, %v619
      %v621 = vpop.f32.mrf.mxu0
      %622 = vmatprep.mubr.f32.mxu0 %v547
      %623 = vmatmul.mubr.f32.gmra.mxu0 %v529
      %v624 = vpop.f32.mrf.mxu0
      %v625 = vadd.f32 %v509, %v624
      %v626 = vpop.f32.mrf.mxu0
      %627 = vmatprep.mubr.f32.mxu0 %v549
      %628 = vmatmul.mubr.f32.gmra.mxu0 %v533
      %v629 = vpop.f32.mrf.mxu0
      %v630 = vadd.f32 %v509, %v629
      %v631 = vpop.f32.mrf.mxu0
      %632 = vmatprep.mubr.f32.mxu0 %v551
      %633 = vmatmul.mubr.f32.gmra.mxu0 %v537
      %v634 = vpop.f32.mrf.mxu0
      %v635 = vadd.f32 %v509, %v634
      %v636 = vpop.f32.mrf.mxu0
      %637 = vdwg.mxu0
      %vm638 = vcmp.gt.f32.partialorder %v620, 0.0
      %vm639 = vcmp.gt.f32.partialorder %v625, 0.0
      %vm640 = vcmp.gt.f32.partialorder %v630, 0.0
      %vm641 = vcmp.gt.f32.partialorder %v635, 0.0
      %v642 = vmul.f32 %v620, 0.3
      %v643 = vmul.f32 %v625, 0.3
      %v644 = vmul.f32 %v630, 0.3
      %v645 = vmul.f32 %v635, 0.3
      %v646 = vsel %vm638, %v620, %v642
      %v647 = vsel %vm639, %v625, %v643
      %v648 = vsel %vm640, %v630, %v644
      %v649 = vsel %vm641, %v635, %v645
      %650 = vst.msk [vmem:[%s467] sm:$0xff] %vm544, %v646
      %651 = vst.msk [vmem:[%s467 + $0x10] sm:$0xff] %vm544, %v647
      %652 = vst.msk [vmem:[%s467 + $0x20] sm:$0xff] %vm544, %v648
      %653 = vst.msk [vmem:[%s467 + $0x30] sm:$0xff] %vm544, %v649
      %v654 = vld [vmem:[%s4] ss:$8 sm:$0x3]
      %v656 = vlaneseq
      %v657 = vshrl.u32 %v656, 7
      %v658 = vsub.s32 0, %v657
      %v659 = vrot.slane %v654, %v658
      %v660 = vlaneseq
      %v661 = vshrl.u32 %v660, 7
      %v662 = vsub.s32 1, %v661
      %v663 = vrot.slane %v654, %v662
      %v666 = vmul.f32 %v470, %v659
      %v667 = vmul.f32 %v471, %v663
      %v668 = vmul.f32 %v472, %v659
      %v669 = vmul.f32 %v473, %v663
      %v670 = vmul.f32 %v474, %v659
      %v671 = vmul.f32 %v475, %v663
      %v672 = vmul.f32 %v476, %v659
      %v673 = vmul.f32 %v477, %v663
      %v674 = vmul.f32 %v478, %v659
      %v675 = vmul.f32 %v479, %v663
      %s676 = scalar_lea.vmem %s4, 1
      %v677 = vld [vmem:[%s676] ss:$8 sm:$0x3]
      %v679 = vlaneseq
      %v680 = vshrl.u32 %v679, 7
      %v681 = vsub.s32 0, %v680
      %v682 = vrot.slane %v677, %v681
      %v683 = vlaneseq
      %v684 = vshrl.u32 %v683, 7
      %v685 = vsub.s32 1, %v684
      %v686 = vrot.slane %v677, %v685
      %v689 = vmul.f32 %v470, %v682
      %v690 = vmul.f32 %v471, %v686
      %v691 = vmul.f32 %v472, %v682
      %v692 = vmul.f32 %v473, %v686
      %v693 = vmul.f32 %v474, %v682
      %v694 = vmul.f32 %v475, %v686
      %v695 = vmul.f32 %v476, %v682
      %v696 = vmul.f32 %v477, %v686
      %v697 = vmul.f32 %v478, %v682
      %v698 = vmul.f32 %v479, %v686
      %vm709 = vcmask 1046528
      %v710 = vrot.slane %v689, 1
      %v711 = vrot.slane %v691, 1
      %v712 = vsel %vm709, %v710, %v711
      %v713 = vrot.slane %v690, 1
      %v714 = vrot.slane %v692, 1
      %v715 = vsel %vm709, %v713, %v714
      %v716 = vrot.slane %v693, 1
      %v717 = vsel %vm709, %v711, %v716
      %v718 = vrot.slane %v694, 1
      %v719 = vsel %vm709, %v714, %v718
      %v720 = vrot.slane %v695, 1
      %v721 = vsel %vm709, %v716, %v720
      %v722 = vrot.slane %v696, 1
      %v723 = vsel %vm709, %v718, %v722
      %v724 = vrot.slane %v697, 1
      %v725 = vsel %vm709, %v720, %v724
      %v726 = vrot.slane %v698, 1
      %v727 = vsel %vm709, %v722, %v726
      %v738 = vadd.f32 %v666, %v712
      %v739 = vadd.f32 %v667, %v715
      %v740 = vadd.f32 %v668, %v717
      %v741 = vadd.f32 %v669, %v719
      %v742 = vadd.f32 %v670, %v721
      %v743 = vadd.f32 %v671, %v723
      %v744 = vadd.f32 %v672, %v725
      %v745 = vadd.f32 %v673, %v727
      %v746 = vadd.f32 %v674, %v724
      %v747 = vadd.f32 %v675, %v726
      %s748 = scalar_lea.vmem %s4, 2
      %v749 = vld [vmem:[%s748] ss:$8 sm:$0x3]
      %v751 = vlaneseq
      %v752 = vshrl.u32 %v751, 7
      %v753 = vsub.s32 0, %v752
      %v754 = vrot.slane %v749, %v753
      %v755 = vlaneseq
      %v756 = vshrl.u32 %v755, 7
      %v757 = vsub.s32 1, %v756
      %v758 = vrot.slane %v749, %v757
      %v761 = vmul.f32 %v470, %v754
      %v762 = vmul.f32 %v471, %v758
      %v763 = vmul.f32 %v472, %v754
      %v764 = vmul.f32 %v473, %v758
      %v765 = vmul.f32 %v474, %v754
      %v766 = vmul.f32 %v475, %v758
      %v767 = vmul.f32 %v476, %v754
      %v768 = vmul.f32 %v477, %v758
      %v769 = vmul.f32 %v478, %v754
      %v770 = vmul.f32 %v479, %v758
      %v781 = vrot.slane %v761, 2
      %v782 = vrot.slane %v763, 2
      %v783 = vsel %vm521, %v781, %v782
      %v784 = vrot.slane %v762, 2
      %v785 = vrot.slane %v764, 2
      %v786 = vsel %vm521, %v784, %v785
      %v787 = vrot.slane %v765, 2
      %v788 = vsel %vm521, %v782, %v787
      %v789 = vrot.slane %v766, 2
      %v790 = vsel %vm521, %v785, %v789
      %v791 = vrot.slane %v767, 2
      %v792 = vsel %vm521, %v787, %v791
      %v793 = vrot.slane %v768, 2
      %v794 = vsel %vm521, %v789, %v793
      %v795 = vrot.slane %v769, 2
      %v796 = vsel %vm521, %v791, %v795
      %v797 = vrot.slane %v770, 2
      %v798 = vsel %vm521, %v793, %v797
      %v809 = vadd.f32 %v738, %v783
      %v810 = vadd.f32 %v739, %v786
      %v811 = vadd.f32 %v740, %v788
      %v812 = vadd.f32 %v741, %v790
      %v813 = vadd.f32 %v742, %v792
      %v814 = vadd.f32 %v743, %v794
      %v815 = vadd.f32 %v744, %v796
      %v816 = vadd.f32 %v745, %v798
      %v817 = vadd.f32 %v746, %v795
      %v818 = vadd.f32 %v747, %v797
      %s819 = scalar_lea.vmem %s4, 3
      %v820 = vld [vmem:[%s819] ss:$8 sm:$0x3]
      %v822 = vlaneseq
      %v823 = vshrl.u32 %v822, 7
      %v824 = vsub.s32 0, %v823
      %v825 = vrot.slane %v820, %v824
      %v826 = vlaneseq
      %v827 = vshrl.u32 %v826, 7
      %v828 = vsub.s32 1, %v827
      %v829 = vrot.slane %v820, %v828
      %v832 = vmul.f32 %v472, %v825
      %v833 = vmul.f32 %v473, %v829
      %v834 = vmul.f32 %v474, %v825
      %v835 = vmul.f32 %v475, %v829
      %v836 = vmul.f32 %v476, %v825
      %v837 = vmul.f32 %v477, %v829
      %v838 = vmul.f32 %v478, %v825
      %v839 = vmul.f32 %v479, %v829
      %v840 = vmul.f32 %v480, %v825
      %v841 = vmul.f32 %v481, %v829
      %v842 = vadd.f32 %v809, %v832
      %v843 = vadd.f32 %v810, %v833
      %v844 = vadd.f32 %v811, %v834
      %v845 = vadd.f32 %v812, %v835
      %v846 = vadd.f32 %v813, %v836
      %v847 = vadd.f32 %v814, %v837
      %v848 = vadd.f32 %v815, %v838
      %v849 = vadd.f32 %v816, %v839
      %v850 = vadd.f32 %v817, %v840
      %v851 = vadd.f32 %v818, %v841
      %s852 = scalar_lea.vmem %s4, 4
      %v853 = vld [vmem:[%s852] ss:$8 sm:$0x3]
      %v855 = vlaneseq
      %v856 = vshrl.u32 %v855, 7
      %v857 = vsub.s32 0, %v856
      %v858 = vrot.slane %v853, %v857
      %v859 = vlaneseq
      %v860 = vshrl.u32 %v859, 7
      %v861 = vsub.s32 1, %v860
      %v862 = vrot.slane %v853, %v861
      %v865 = vmul.f32 %v472, %v858
      %v866 = vmul.f32 %v473, %v862
      %v867 = vmul.f32 %v474, %v858
      %v868 = vmul.f32 %v475, %v862
      %v869 = vmul.f32 %v476, %v858
      %v870 = vmul.f32 %v477, %v862
      %v871 = vmul.f32 %v478, %v858
      %v872 = vmul.f32 %v479, %v862
      %v873 = vmul.f32 %v480, %v858
      %v874 = vmul.f32 %v481, %v862
      %v885 = vrot.slane %v865, 1
      %v886 = vrot.slane %v867, 1
      %v887 = vsel %vm709, %v885, %v886
      %v888 = vrot.slane %v866, 1
      %v889 = vrot.slane %v868, 1
      %v890 = vsel %vm709, %v888, %v889
      %v891 = vrot.slane %v869, 1
      %v892 = vsel %vm709, %v886, %v891
      %v893 = vrot.slane %v870, 1
      %v894 = vsel %vm709, %v889, %v893
      %v895 = vrot.slane %v871, 1
      %v896 = vsel %vm709, %v891, %v895
      %v897 = vrot.slane %v872, 1
      %v898 = vsel %vm709, %v893, %v897
      %v899 = vrot.slane %v873, 1
      %v900 = vsel %vm709, %v895, %v899
      %v901 = vrot.slane %v874, 1
      %v902 = vsel %vm709, %v897, %v901
      %v913 = vadd.f32 %v842, %v887
      %v914 = vadd.f32 %v843, %v890
      %v915 = vadd.f32 %v844, %v892
      %v916 = vadd.f32 %v845, %v894
      %v917 = vadd.f32 %v846, %v896
      %v918 = vadd.f32 %v847, %v898
      %v919 = vadd.f32 %v848, %v900
      %v920 = vadd.f32 %v849, %v902
      %v921 = vadd.f32 %v850, %v899
      %v922 = vadd.f32 %v851, %v901
      %s923 = scalar_lea.vmem %s4, 5
      %v924 = vld [vmem:[%s923] ss:$8 sm:$0x3]
      %v926 = vlaneseq
      %v927 = vshrl.u32 %v926, 7
      %v928 = vsub.s32 0, %v927
      %v929 = vrot.slane %v924, %v928
      %v930 = vlaneseq
      %v931 = vshrl.u32 %v930, 7
      %v932 = vsub.s32 1, %v931
      %v933 = vrot.slane %v924, %v932
      %v936 = vmul.f32 %v472, %v929
      %v937 = vmul.f32 %v473, %v933
      %v938 = vmul.f32 %v474, %v929
      %v939 = vmul.f32 %v475, %v933
      %v940 = vmul.f32 %v476, %v929
      %v941 = vmul.f32 %v477, %v933
      %v942 = vmul.f32 %v478, %v929
      %v943 = vmul.f32 %v479, %v933
      %v944 = vmul.f32 %v480, %v929
      %v945 = vmul.f32 %v481, %v933
      %v956 = vrot.slane %v936, 2
      %v957 = vrot.slane %v938, 2
      %v958 = vsel %vm521, %v956, %v957
      %v959 = vrot.slane %v937, 2
      %v960 = vrot.slane %v939, 2
      %v961 = vsel %vm521, %v959, %v960
      %v962 = vrot.slane %v940, 2
      %v963 = vsel %vm521, %v957, %v962
      %v964 = vrot.slane %v941, 2
      %v965 = vsel %vm521, %v960, %v964
      %v966 = vrot.slane %v942, 2
      %v967 = vsel %vm521, %v962, %v966
      %v968 = vrot.slane %v943, 2
      %v969 = vsel %vm521, %v964, %v968
      %v970 = vrot.slane %v944, 2
      %v971 = vsel %vm521, %v966, %v970
      %v972 = vrot.slane %v945, 2
      %v973 = vsel %vm521, %v968, %v972
      %v984 = vadd.f32 %v913, %v958
      %v985 = vadd.f32 %v914, %v961
      %v986 = vadd.f32 %v915, %v963
      %v987 = vadd.f32 %v916, %v965
      %v988 = vadd.f32 %v917, %v967
      %v989 = vadd.f32 %v918, %v969
      %v990 = vadd.f32 %v919, %v971
      %v991 = vadd.f32 %v920, %v973
      %v992 = vadd.f32 %v921, %v970
      %v993 = vadd.f32 %v922, %v972
      %s994 = scalar_lea.vmem %s4, 6
      %v995 = vld [vmem:[%s994] ss:$8 sm:$0x3]
      %v997 = vlaneseq
      %v998 = vshrl.u32 %v997, 7
      %v999 = vsub.s32 0, %v998
      %v1000 = vrot.slane %v995, %v999
      %v1001 = vlaneseq
      %v1002 = vshrl.u32 %v1001, 7
      %v1003 = vsub.s32 1, %v1002
      %v1004 = vrot.slane %v995, %v1003
      %v1007 = vmul.f32 %v474, %v1000
      %v1008 = vmul.f32 %v475, %v1004
      %v1009 = vmul.f32 %v476, %v1000
      %v1010 = vmul.f32 %v477, %v1004
      %v1011 = vmul.f32 %v478, %v1000
      %v1012 = vmul.f32 %v479, %v1004
      %v1013 = vmul.f32 %v480, %v1000
      %v1014 = vmul.f32 %v481, %v1004
      %v1015 = vmul.f32 %v482, %v1000
      %v1016 = vmul.f32 %v483, %v1004
      %v1017 = vadd.f32 %v984, %v1007
      %v1018 = vadd.f32 %v985, %v1008
      %v1019 = vadd.f32 %v986, %v1009
      %v1020 = vadd.f32 %v987, %v1010
      %v1021 = vadd.f32 %v988, %v1011
      %v1022 = vadd.f32 %v989, %v1012
      %v1023 = vadd.f32 %v990, %v1013
      %v1024 = vadd.f32 %v991, %v1014
      %v1025 = vadd.f32 %v992, %v1015
      %v1026 = vadd.f32 %v993, %v1016
      %s1027 = scalar_lea.vmem %s4, 7
      %v1028 = vld [vmem:[%s1027] ss:$8 sm:$0x3]
      %v1030 = vlaneseq
      %v1031 = vshrl.u32 %v1030, 7
      %v1032 = vsub.s32 0, %v1031
      %v1033 = vrot.slane %v1028, %v1032
      %v1034 = vlaneseq
      %v1035 = vshrl.u32 %v1034, 7
      %v1036 = vsub.s32 1, %v1035
      %v1037 = vrot.slane %v1028, %v1036
      %v1040 = vmul.f32 %v474, %v1033
      %v1041 = vmul.f32 %v475, %v1037
      %v1042 = vmul.f32 %v476, %v1033
      %v1043 = vmul.f32 %v477, %v1037
      %v1044 = vmul.f32 %v478, %v1033
      %v1045 = vmul.f32 %v479, %v1037
      %v1046 = vmul.f32 %v480, %v1033
      %v1047 = vmul.f32 %v481, %v1037
      %v1048 = vmul.f32 %v482, %v1033
      %v1049 = vmul.f32 %v483, %v1037
      %v1060 = vrot.slane %v1040, 1
      %v1061 = vrot.slane %v1042, 1
      %v1062 = vsel %vm709, %v1060, %v1061
      %v1063 = vrot.slane %v1041, 1
      %v1064 = vrot.slane %v1043, 1
      %v1065 = vsel %vm709, %v1063, %v1064
      %v1066 = vrot.slane %v1044, 1
      %v1067 = vsel %vm709, %v1061, %v1066
      %v1068 = vrot.slane %v1045, 1
      %v1069 = vsel %vm709, %v1064, %v1068
      %v1070 = vrot.slane %v1046, 1
      %v1071 = vsel %vm709, %v1066, %v1070
      %v1072 = vrot.slane %v1047, 1
      %v1073 = vsel %vm709, %v1068, %v1072
      %v1074 = vrot.slane %v1048, 1
      %v1075 = vsel %vm709, %v1070, %v1074
      %v1076 = vrot.slane %v1049, 1
      %v1077 = vsel %vm709, %v1072, %v1076
      %v1088 = vadd.f32 %v1017, %v1062
      %v1089 = vadd.f32 %v1018, %v1065
      %v1090 = vadd.f32 %v1019, %v1067
      %v1091 = vadd.f32 %v1020, %v1069
      %v1092 = vadd.f32 %v1021, %v1071
      %v1093 = vadd.f32 %v1022, %v1073
      %v1094 = vadd.f32 %v1023, %v1075
      %v1095 = vadd.f32 %v1024, %v1077
      %v1096 = vadd.f32 %v1025, %v1074
      %v1097 = vadd.f32 %v1026, %v1076
      %s1098 = scalar_lea.vmem %s4, 16
      %v1099 = vld [vmem:[%s1098] ss:$8 sm:$0x3]
      %v1101 = vlaneseq
      %v1102 = vshrl.u32 %v1101, 7
      %v1103 = vsub.s32 0, %v1102
      %v1104 = vrot.slane %v1099, %v1103
      %v1105 = vlaneseq
      %v1106 = vshrl.u32 %v1105, 7
      %v1107 = vsub.s32 1, %v1106
      %v1108 = vrot.slane %v1099, %v1107
      %v1111 = vmul.f32 %v474, %v1104
      %v1112 = vmul.f32 %v475, %v1108
      %v1113 = vmul.f32 %v476, %v1104
      %v1114 = vmul.f32 %v477, %v1108
      %v1115 = vmul.f32 %v478, %v1104
      %v1116 = vmul.f32 %v479, %v1108
      %v1117 = vmul.f32 %v480, %v1104
      %v1118 = vmul.f32 %v481, %v1108
      %v1119 = vmul.f32 %v482, %v1104
      %v1120 = vmul.f32 %v483, %v1108
      %v1131 = vrot.slane %v1111, 2
      %v1132 = vrot.slane %v1113, 2
      %v1133 = vsel %vm521, %v1131, %v1132
      %v1134 = vrot.slane %v1112, 2
      %v1135 = vrot.slane %v1114, 2
      %v1136 = vsel %vm521, %v1134, %v1135
      %v1137 = vrot.slane %v1115, 2
      %v1138 = vsel %vm521, %v1132, %v1137
      %v1139 = vrot.slane %v1116, 2
      %v1140 = vsel %vm521, %v1135, %v1139
      %v1141 = vrot.slane %v1117, 2
      %v1142 = vsel %vm521, %v1137, %v1141
      %v1143 = vrot.slane %v1118, 2
      %v1144 = vsel %vm521, %v1139, %v1143
      %v1145 = vrot.slane %v1119, 2
      %v1146 = vsel %vm521, %v1141, %v1145
      %v1147 = vrot.slane %v1120, 2
      %v1148 = vsel %vm521, %v1143, %v1147
      %v1159 = vadd.f32 %v1088, %v1133
      %v1160 = vadd.f32 %v1089, %v1136
      %v1161 = vadd.f32 %v1090, %v1138
      %v1162 = vadd.f32 %v1091, %v1140
      %v1163 = vadd.f32 %v1092, %v1142
      %v1164 = vadd.f32 %v1093, %v1144
      %v1165 = vadd.f32 %v1094, %v1146
      %v1166 = vadd.f32 %v1095, %v1148
      %v1167 = vadd.f32 %v1096, %v1145
      %v1168 = vadd.f32 %v1097, %v1147
      %v1169 = vld [vmem:[%s5] sm:$0x3]
      %v1171 = vlaneseq
      %v1172 = vshrl.u32 %v1171, 7
      %v1173 = vsub.s32 0, %v1172
      %v1174 = vrot.slane %v1169, %v1173
      %v1175 = vlaneseq
      %v1176 = vshrl.u32 %v1175, 7
      %v1177 = vsub.s32 1, %v1176
      %v1178 = vrot.slane %v1169, %v1177
      %v1181 = vadd.f32 %v1159, %v1174
      %v1182 = vadd.f32 %v1160, %v1178
      %v1183 = vadd.f32 %v1161, %v1174
      %v1184 = vadd.f32 %v1162, %v1178
      %v1185 = vadd.f32 %v1163, %v1174
      %v1186 = vadd.f32 %v1164, %v1178
      %v1187 = vadd.f32 %v1165, %v1174
      %v1188 = vadd.f32 %v1166, %v1178
      %v1189 = vadd.f32 %v1167, %v1174
      %v1190 = vadd.f32 %v1168, %v1178
      %v1191 = vld [vmem:[%s6] sm:$0xff]
      %v1192 = vld [vmem:[%s6 + $0x8] sm:$0xff]
      %v1193 = vld [vmem:[%s6 + $0x10] sm:$0xff]
      %v1194 = vld [vmem:[%s6 + $0x18] sm:$0xff]
      %v1195 = vld [vmem:[%s6 + $0x20] sm:$0xff]
      %v1196 = vld [vmem:[%s6 + $0x28] sm:$0xff]
      %v1197 = vld [vmem:[%s6 + $0x30] sm:$0xff]
      %v1198 = vld [vmem:[%s6 + $0x38] sm:$0xff]
      %v1199 = vld [vmem:[%s6 + $0x40] sm:$0xff]
      %v1200 = vld [vmem:[%s6 + $0x48] sm:$0xff]
      %v1201 = vld [vmem:[%s6 + $0x50] sm:$0xff]
      %v1202 = vld [vmem:[%s6 + $0x58] sm:$0xff]
      %v1203 = vld [vmem:[%s6 + $0x60] sm:$0xff]
      %v1204 = vld [vmem:[%s6 + $0x68] sm:$0xff]
      %v1205 = vld [vmem:[%s6 + $0x70] sm:$0xff]
      %v1206 = vld [vmem:[%s6 + $0x78] sm:$0xff]
      %v1207 = vld [vmem:[%s6 + $0x80] sm:$0xff]
      %v1208 = vld [vmem:[%s6 + $0x88] sm:$0xff]
      %v1209 = vld [vmem:[%s7] sm:$0x1]
      %v1211 = vlaneseq
      %v1212 = vshrl.u32 %v1211, 7
      %v1213 = vsub.s32 0, %v1212
      %v1214 = vrot.slane %v1209, %v1213
      %v1226 = vrot.slane %v1181, 1
      %v1227 = vrot.slane %v1183, 1
      %v1228 = vsel %vm709, %v1226, %v1227
      %v1229 = vrot.slane %v1182, 1
      %v1230 = vrot.slane %v1184, 1
      %v1231 = vsel %vm709, %v1229, %v1230
      %v1232 = vrot.slane %v1185, 1
      %v1233 = vsel %vm709, %v1227, %v1232
      %v1234 = vrot.slane %v1186, 1
      %v1235 = vsel %vm709, %v1230, %v1234
      %v1236 = vrot.slane %v1187, 1
      %v1237 = vsel %vm709, %v1232, %v1236
      %v1238 = vrot.slane %v1188, 1
      %v1239 = vsel %vm709, %v1234, %v1238
      %v1240 = vrot.slane %v1189, 1
      %v1241 = vsel %vm709, %v1236, %v1240
      %v1242 = vrot.slane %v1190, 1
      %v1243 = vsel %vm709, %v1238, %v1242
      %v1248 = vsel %vm544, %v1231, 0
      %v1250 = vsel %vm544, %v1235, 0
      %v1252 = vsel %vm544, %v1239, 0
      %v1254 = vsel %vm544, %v1243, 0
      %1256 = vmatprep.subr.mxu0 0.0
      %1257 = vmatpush1.msra.mxu0 %v1206
      %1258 = vmatprep.subr.mxu0 0.0
      %1259 = vmatpush1.msra.mxu0 %v1205
      %1260 = vmatprep.subr.mxu0 0.0
      %1261 = vmatpush1.msra.mxu0 %v1204
      %1262 = vmatprep.subr.mxu0 0.0
      %1263 = vmatpush1.msra.mxu0 %v1203
      %1264 = vmatprep.subr.mxu0 0.0
      %1265 = vmatpush1.msra.mxu0 %v1202
      %1266 = vmatprep.subr.mxu0 0.0
      %1267 = vmatpush1.msra.mxu0 %v1201
      %1268 = vmatprep.subr.mxu0 0.0
      %1269 = vmatpush1.msra.mxu0 %v1200
      %1270 = vmatprep.subr.mxu0 0.0
      %1271 = vmatpush1.msra.mxu0 %v1199
      %1272 = vmatprep.subr.mxu0 0.0
      %1273 = vmatpush1.msra.mxu0 %v1198
      %1274 = vmatprep.subr.mxu0 0.0
      %1275 = vmatpush1.msra.mxu0 %v1197
      %1276 = vmatprep.subr.mxu0 0.0
      %1277 = vmatpush1.msra.mxu0 %v1196
      %1278 = vmatprep.subr.mxu0 0.0
      %1279 = vmatpush1.msra.mxu0 %v1195
      %1280 = vmatprep.subr.mxu0 0.0
      %1281 = vmatpush1.msra.mxu0 %v1194
      %1282 = vmatprep.subr.mxu0 0.0
      %1283 = vmatpush1.msra.mxu0 %v1193
      %1284 = vmatprep.subr.mxu0 0.0
      %1285 = vmatpush1.msra.mxu0 %v1192
      %1286 = vmatprep.subr.mxu0 0.0
      %1287 = vmatpush1.msra.mxu0 %v1191
      %1288 = vmatprep.subr.mxu0 0.0
      %1289 = vmatpush2.msra.mxu0 0.0
      %1290 = vmatprep.subr.mxu0 0.0
      %1291 = vmatpush2.msra.mxu0 0.0
      %1292 = vmatprep.subr.mxu0 0.0
      %1293 = vmatpush2.msra.mxu0 0.0
      %1294 = vmatprep.subr.mxu0 0.0
      %1295 = vmatpush2.msra.mxu0 0.0
      %1296 = vmatprep.subr.mxu0 0.0
      %1297 = vmatpush2.msra.mxu0 0.0
      %1298 = vmatprep.subr.mxu0 0.0
      %1299 = vmatpush2.msra.mxu0 0.0
      %1300 = vmatprep.subr.mxu0 0.0
      %1301 = vmatpush2.msra.mxu0 0.0
      %1302 = vmatprep.subr.mxu0 0.0
      %1303 = vmatpush2.msra.mxu0 0.0
      %1304 = vmatprep.subr.mxu0 0.0
      %1305 = vmatpush2.msra.mxu0 0.0
      %1306 = vmatprep.subr.mxu0 0.0
      %1307 = vmatpush2.msra.mxu0 0.0
      %1308 = vmatprep.subr.mxu0 0.0
      %1309 = vmatpush2.msra.mxu0 0.0
      %1310 = vmatprep.subr.mxu0 0.0
      %1311 = vmatpush2.msra.mxu0 0.0
      %1312 = vmatprep.subr.mxu0 0.0
      %1313 = vmatpush2.msra.mxu0 0.0
      %1314 = vmatprep.subr.mxu0 0.0
      %1315 = vmatpush2.msra.mxu0 0.0
      %1316 = vmatprep.subr.mxu0 0.0
      %1317 = vmatpush2.msra.mxu0 %v1208
      %1318 = vmatprep.subr.mxu0 0.0
      %1319 = vmatpush2.msra.mxu0 %v1207
      %1320 = vmatprep.mubr.f32.mxu0 %v1248
      %1321 = vmatmul.mubr.f32.gmra.mxu0 %v1228
      %v1322 = vpop.f32.mrf.mxu0
      %v1323 = vadd.f32 %v1214, %v1322
      %v1324 = vpop.f32.mrf.mxu0
      %1325 = vmatprep.mubr.f32.mxu0 %v1250
      %1326 = vmatmul.mubr.f32.gmra.mxu0 %v1233
      %v1327 = vpop.f32.mrf.mxu0
      %v1328 = vadd.f32 %v1214, %v1327
      %v1329 = vpop.f32.mrf.mxu0
      %1330 = vmatprep.mubr.f32.mxu0 %v1252
      %1331 = vmatmul.mubr.f32.gmra.mxu0 %v1237
      %v1332 = vpop.f32.mrf.mxu0
      %v1333 = vadd.f32 %v1214, %v1332
      %v1334 = vpop.f32.mrf.mxu0
      %1335 = vmatprep.mubr.f32.mxu0 %v1254
      %1336 = vmatmul.mubr.f32.gmra.mxu0 %v1241
      %v1337 = vpop.f32.mrf.mxu0
      %v1338 = vadd.f32 %v1214, %v1337
      %v1339 = vpop.f32.mrf.mxu0
      %1340 = vdwg.mxu0
      %vm1341 = vcmp.gt.f32.partialorder %v1323, 0.0
      %vm1342 = vcmp.gt.f32.partialorder %v1328, 0.0
      %vm1343 = vcmp.gt.f32.partialorder %v1333, 0.0
      %vm1344 = vcmp.gt.f32.partialorder %v1338, 0.0
      %v1345 = vmul.f32 %v1323, 0.3
      %v1346 = vmul.f32 %v1328, 0.3
      %v1347 = vmul.f32 %v1333, 0.3
      %v1348 = vmul.f32 %v1338, 0.3
      %v1349 = vsel %vm1341, %v1323, %v1345
      %v1350 = vsel %vm1342, %v1328, %v1346
      %v1351 = vsel %vm1343, %v1333, %v1347
      %v1352 = vsel %vm1344, %v1338, %v1348
      %1357 = vrot.lane.b32.xlu0 %v1349, 16
      %v1358 = vpop.permute.xlu0 %1357
      %1359 = vrot.lane.b32.xlu0 %v1350, 16
      %v1360 = vpop.permute.xlu0 %1359
      %1361 = vrot.lane.b32.xlu0 %v1351, 16
      %v1362 = vpop.permute.xlu0 %1361
      %1363 = vrot.lane.b32.xlu0 %v1352, 16
      %v1364 = vpop.permute.xlu0 %1363
      %vm1369 = vcmask 523392
      %1370 = vst.msk [vmem:[%s467] sm:$0xff] %vm1369, %v1358
      %1371 = vst.msk [vmem:[%s467 + $0x10] sm:$0xff] %vm1369, %v1360
      %1372 = vst.msk [vmem:[%s467 + $0x20] sm:$0xff] %vm1369, %v1362
      %1373 = vst.msk [vmem:[%s467 + $0x30] sm:$0xff] %vm1369, %v1364
      %v1374 = vld [vmem:[%s8] ss:$8 sm:$0x3]
      %v1376 = vlaneseq
      %v1377 = vshrl.u32 %v1376, 7
      %v1378 = vsub.s32 0, %v1377
      %v1379 = vrot.slane %v1374, %v1378
      %v1380 = vlaneseq
      %v1381 = vshrl.u32 %v1380, 7
      %v1382 = vsub.s32 1, %v1381
      %v1383 = vrot.slane %v1374, %v1382
      %v1386 = vmul.f32 %v468, %v1379
      %v1387 = vmul.f32 %v469, %v1383
      %v1388 = vmul.f32 %v470, %v1379
      %v1389 = vmul.f32 %v471, %v1383
      %v1390 = vmul.f32 %v472, %v1379
      %v1391 = vmul.f32 %v473, %v1383
      %v1392 = vmul.f32 %v474, %v1379
      %v1393 = vmul.f32 %v475, %v1383
      %s1394 = scalar_lea.vmem %s8, 1
      %v1395 = vld [vmem:[%s1394] ss:$8 sm:$0x3]
      %v1397 = vlaneseq
      %v1398 = vshrl.u32 %v1397, 7
      %v1399 = vsub.s32 0, %v1398
      %v1400 = vrot.slane %v1395, %v1399
      %v1401 = vlaneseq
      %v1402 = vshrl.u32 %v1401, 7
      %v1403 = vsub.s32 1, %v1402
      %v1404 = vrot.slane %v1395, %v1403
      %v1407 = vmul.f32 %v468, %v1400
      %v1408 = vmul.f32 %v469, %v1404
      %v1409 = vmul.f32 %v470, %v1400
      %v1410 = vmul.f32 %v471, %v1404
      %v1411 = vmul.f32 %v472, %v1400
      %v1412 = vmul.f32 %v473, %v1404
      %v1413 = vmul.f32 %v474, %v1400
      %v1414 = vmul.f32 %v475, %v1404
      %v1415 = vmul.f32 %v476, %v1400
      %v1416 = vmul.f32 %v477, %v1404
      %v1427 = vrot.slane %v1407, 1
      %v1428 = vrot.slane %v1409, 1
      %v1429 = vsel %vm709, %v1427, %v1428
      %v1430 = vrot.slane %v1408, 1
      %v1431 = vrot.slane %v1410, 1
      %v1432 = vsel %vm709, %v1430, %v1431
      %v1433 = vrot.slane %v1411, 1
      %v1434 = vsel %vm709, %v1428, %v1433
      %v1435 = vrot.slane %v1412, 1
      %v1436 = vsel %vm709, %v1431, %v1435
      %v1437 = vrot.slane %v1413, 1
      %v1438 = vsel %vm709, %v1433, %v1437
      %v1439 = vrot.slane %v1414, 1
      %v1440 = vsel %vm709, %v1435, %v1439
      %v1441 = vrot.slane %v1415, 1
      %v1442 = vsel %vm709, %v1437, %v1441
      %v1443 = vrot.slane %v1416, 1
      %v1444 = vsel %vm709, %v1439, %v1443
      %v1453 = vadd.f32 %v1386, %v1429
      %v1454 = vadd.f32 %v1387, %v1432
      %v1455 = vadd.f32 %v1388, %v1434
      %v1456 = vadd.f32 %v1389, %v1436
      %v1457 = vadd.f32 %v1390, %v1438
      %v1458 = vadd.f32 %v1391, %v1440
      %v1459 = vadd.f32 %v1392, %v1442
      %v1460 = vadd.f32 %v1393, %v1444
      %s1461 = scalar_lea.vmem %s8, 2
      %v1462 = vld [vmem:[%s1461] ss:$8 sm:$0x3]
      %v1464 = vlaneseq
      %v1465 = vshrl.u32 %v1464, 7
      %v1466 = vsub.s32 0, %v1465
      %v1467 = vrot.slane %v1462, %v1466
      %v1468 = vlaneseq
      %v1469 = vshrl.u32 %v1468, 7
      %v1470 = vsub.s32 1, %v1469
      %v1471 = vrot.slane %v1462, %v1470
      %v1474 = vmul.f32 %v468, %v1467
      %v1475 = vmul.f32 %v469, %v1471
      %v1476 = vmul.f32 %v470, %v1467
      %v1477 = vmul.f32 %v471, %v1471
      %v1478 = vmul.f32 %v472, %v1467
      %v1479 = vmul.f32 %v473, %v1471
      %v1480 = vmul.f32 %v474, %v1467
      %v1481 = vmul.f32 %v475, %v1471
      %v1482 = vmul.f32 %v476, %v1467
      %v1483 = vmul.f32 %v477, %v1471
      %v1494 = vrot.slane %v1474, 2
      %v1495 = vrot.slane %v1476, 2
      %v1496 = vsel %vm521, %v1494, %v1495
      %v1497 = vrot.slane %v1475, 2
      %v1498 = vrot.slane %v1477, 2
      %v1499 = vsel %vm521, %v1497, %v1498
      %v1500 = vrot.slane %v1478, 2
      %v1501 = vsel %vm521, %v1495, %v1500
      %v1502 = vrot.slane %v1479, 2
      %v1503 = vsel %vm521, %v1498, %v1502
      %v1504 = vrot.slane %v1480, 2
      %v1505 = vsel %vm521, %v1500, %v1504
      %v1506 = vrot.slane %v1481, 2
      %v1507 = vsel %vm521, %v1502, %v1506
      %v1508 = vrot.slane %v1482, 2
      %v1509 = vsel %vm521, %v1504, %v1508
      %v1510 = vrot.slane %v1483, 2
      %v1511 = vsel %vm521, %v1506, %v1510
      %v1520 = vadd.f32 %v1453, %v1496
      %v1521 = vadd.f32 %v1454, %v1499
      %v1522 = vadd.f32 %v1455, %v1501
      %v1523 = vadd.f32 %v1456, %v1503
      %v1524 = vadd.f32 %v1457, %v1505
      %v1525 = vadd.f32 %v1458, %v1507
      %v1526 = vadd.f32 %v1459, %v1509
      %v1527 = vadd.f32 %v1460, %v1511
      %s1528 = scalar_lea.vmem %s8, 3
      %v1529 = vld [vmem:[%s1528] ss:$8 sm:$0x3]
      %v1531 = vlaneseq
      %v1532 = vshrl.u32 %v1531, 7
      %v1533 = vsub.s32 0, %v1532
      %v1534 = vrot.slane %v1529, %v1533
      %v1535 = vlaneseq
      %v1536 = vshrl.u32 %v1535, 7
      %v1537 = vsub.s32 1, %v1536
      %v1538 = vrot.slane %v1529, %v1537
      %v1541 = vmul.f32 %v468, %v1534
      %v1542 = vmul.f32 %v469, %v1538
      %v1543 = vmul.f32 %v470, %v1534
      %v1544 = vmul.f32 %v471, %v1538
      %v1545 = vmul.f32 %v472, %v1534
      %v1546 = vmul.f32 %v473, %v1538
      %v1547 = vmul.f32 %v474, %v1534
      %v1548 = vmul.f32 %v475, %v1538
      %v1549 = vmul.f32 %v476, %v1534
      %v1550 = vmul.f32 %v477, %v1538
      %vm1561 = vcmask 1044480
      %v1562 = vrot.slane %v1541, 3
      %v1563 = vrot.slane %v1543, 3
      %v1564 = vsel %vm1561, %v1562, %v1563
      %v1565 = vrot.slane %v1542, 3
      %v1566 = vrot.slane %v1544, 3
      %v1567 = vsel %vm1561, %v1565, %v1566
      %v1568 = vrot.slane %v1545, 3
      %v1569 = vsel %vm1561, %v1563, %v1568
      %v1570 = vrot.slane %v1546, 3
      %v1571 = vsel %vm1561, %v1566, %v1570
      %v1572 = vrot.slane %v1547, 3
      %v1573 = vsel %vm1561, %v1568, %v1572
      %v1574 = vrot.slane %v1548, 3
      %v1575 = vsel %vm1561, %v1570, %v1574
      %v1576 = vrot.slane %v1549, 3
      %v1577 = vsel %vm1561, %v1572, %v1576
      %v1578 = vrot.slane %v1550, 3
      %v1579 = vsel %vm1561, %v1574, %v1578
      %v1588 = vadd.f32 %v1520, %v1564
      %v1589 = vadd.f32 %v1521, %v1567
      %v1590 = vadd.f32 %v1522, %v1569
      %v1591 = vadd.f32 %v1523, %v1571
      %v1592 = vadd.f32 %v1524, %v1573
      %v1593 = vadd.f32 %v1525, %v1575
      %v1594 = vadd.f32 %v1526, %v1577
      %v1595 = vadd.f32 %v1527, %v1579
      %s1596 = scalar_lea.vmem %s8, 4
      %v1597 = vld [vmem:[%s1596] ss:$8 sm:$0x3]
      %v1599 = vlaneseq
      %v1600 = vshrl.u32 %v1599, 7
      %v1601 = vsub.s32 0, %v1600
      %v1602 = vrot.slane %v1597, %v1601
      %v1603 = vlaneseq
      %v1604 = vshrl.u32 %v1603, 7
      %v1605 = vsub.s32 1, %v1604
      %v1606 = vrot.slane %v1597, %v1605
      %v1609 = vmul.f32 %v468, %v1602
      %v1610 = vmul.f32 %v469, %v1606
      %v1611 = vmul.f32 %v470, %v1602
      %v1612 = vmul.f32 %v471, %v1606
      %v1613 = vmul.f32 %v472, %v1602
      %v1614 = vmul.f32 %v473, %v1606
      %v1615 = vmul.f32 %v474, %v1602
      %v1616 = vmul.f32 %v475, %v1606
      %v1617 = vmul.f32 %v476, %v1602
      %v1618 = vmul.f32 %v477, %v1606
      %vm1629 = vcmask 1043456
      %v1630 = vrot.slane %v1609, 4
      %v1631 = vrot.slane %v1611, 4
      %v1632 = vsel %vm1629, %v1630, %v1631
      %v1633 = vrot.slane %v1610, 4
      %v1634 = vrot.slane %v1612, 4
      %v1635 = vsel %vm1629, %v1633, %v1634
      %v1636 = vrot.slane %v1613, 4
      %v1637 = vsel %vm1629, %v1631, %v1636
      %v1638 = vrot.slane %v1614, 4
      %v1639 = vsel %vm1629, %v1634, %v1638
      %v1640 = vrot.slane %v1615, 4
      %v1641 = vsel %vm1629, %v1636, %v1640
      %v1642 = vrot.slane %v1616, 4
      %v1643 = vsel %vm1629, %v1638, %v1642
      %v1644 = vrot.slane %v1617, 4
      %v1645 = vsel %vm1629, %v1640, %v1644
      %v1646 = vrot.slane %v1618, 4
      %v1647 = vsel %vm1629, %v1642, %v1646
      %v1656 = vadd.f32 %v1588, %v1632
      %v1657 = vadd.f32 %v1589, %v1635
      %v1658 = vadd.f32 %v1590, %v1637
      %v1659 = vadd.f32 %v1591, %v1639
      %v1660 = vadd.f32 %v1592, %v1641
      %v1661 = vadd.f32 %v1593, %v1643
      %v1662 = vadd.f32 %v1594, %v1645
      %v1663 = vadd.f32 %v1595, %v1647
      %s1664 = scalar_lea.vmem %s8, 5
      %v1665 = vld [vmem:[%s1664] ss:$8 sm:$0x3]
      %v1667 = vlaneseq
      %v1668 = vshrl.u32 %v1667, 7
      %v1669 = vsub.s32 0, %v1668
      %v1670 = vrot.slane %v1665, %v1669
      %v1671 = vlaneseq
      %v1672 = vshrl.u32 %v1671, 7
      %v1673 = vsub.s32 1, %v1672
      %v1674 = vrot.slane %v1665, %v1673
      %v1677 = vmul.f32 %v470, %v1670
      %v1678 = vmul.f32 %v471, %v1674
      %v1679 = vmul.f32 %v472, %v1670
      %v1680 = vmul.f32 %v473, %v1674
      %v1681 = vmul.f32 %v474, %v1670
      %v1682 = vmul.f32 %v475, %v1674
      %v1683 = vmul.f32 %v476, %v1670
      %v1684 = vmul.f32 %v477, %v1674
      %v1685 = vadd.f32 %v1656, %v1677
      %v1686 = vadd.f32 %v1657, %v1678
      %v1687 = vadd.f32 %v1658, %v1679
      %v1688 = vadd.f32 %v1659, %v1680
      %v1689 = vadd.f32 %v1660, %v1681
      %v1690 = vadd.f32 %v1661, %v1682
      %v1691 = vadd.f32 %v1662, %v1683
      %v1692 = vadd.f32 %v1663, %v1684
      %s1693 = scalar_lea.vmem %s8, 6
      %v1694 = vld [vmem:[%s1693] ss:$8 sm:$0x3]
      %v1696 = vlaneseq
      %v1697 = vshrl.u32 %v1696, 7
      %v1698 = vsub.s32 0, %v1697
      %v1699 = vrot.slane %v1694, %v1698
      %v1700 = vlaneseq
      %v1701 = vshrl.u32 %v1700, 7
      %v1702 = vsub.s32 1, %v1701
      %v1703 = vrot.slane %v1694, %v1702
      %v1706 = vmul.f32 %v470, %v1699
      %v1707 = vmul.f32 %v471, %v1703
      %v1708 = vmul.f32 %v472, %v1699
      %v1709 = vmul.f32 %v473, %v1703
      %v1710 = vmul.f32 %v474, %v1699
      %v1711 = vmul.f32 %v475, %v1703
      %v1712 = vmul.f32 %v476, %v1699
      %v1713 = vmul.f32 %v477, %v1703
      %v1714 = vmul.f32 %v478, %v1699
      %v1715 = vmul.f32 %v479, %v1703
      %v1726 = vrot.slane %v1706, 1
      %v1727 = vrot.slane %v1708, 1
      %v1728 = vsel %vm709, %v1726, %v1727
      %v1729 = vrot.slane %v1707, 1
      %v1730 = vrot.slane %v1709, 1
      %v1731 = vsel %vm709, %v1729, %v1730
      %v1732 = vrot.slane %v1710, 1
      %v1733 = vsel %vm709, %v1727, %v1732
      %v1734 = vrot.slane %v1711, 1
      %v1735 = vsel %vm709, %v1730, %v1734
      %v1736 = vrot.slane %v1712, 1
      %v1737 = vsel %vm709, %v1732, %v1736
      %v1738 = vrot.slane %v1713, 1
      %v1739 = vsel %vm709, %v1734, %v1738
      %v1740 = vrot.slane %v1714, 1
      %v1741 = vsel %vm709, %v1736, %v1740
      %v1742 = vrot.slane %v1715, 1
      %v1743 = vsel %vm709, %v1738, %v1742
      %v1752 = vadd.f32 %v1685, %v1728
      %v1753 = vadd.f32 %v1686, %v1731
      %v1754 = vadd.f32 %v1687, %v1733
      %v1755 = vadd.f32 %v1688, %v1735
      %v1756 = vadd.f32 %v1689, %v1737
      %v1757 = vadd.f32 %v1690, %v1739
      %v1758 = vadd.f32 %v1691, %v1741
      %v1759 = vadd.f32 %v1692, %v1743
      %s1760 = scalar_lea.vmem %s8, 7
      %v1761 = vld [vmem:[%s1760] ss:$8 sm:$0x3]
      %v1763 = vlaneseq
      %v1764 = vshrl.u32 %v1763, 7
      %v1765 = vsub.s32 0, %v1764
      %v1766 = vrot.slane %v1761, %v1765
      %v1767 = vlaneseq
      %v1768 = vshrl.u32 %v1767, 7
      %v1769 = vsub.s32 1, %v1768
      %v1770 = vrot.slane %v1761, %v1769
      %v1773 = vmul.f32 %v470, %v1766
      %v1774 = vmul.f32 %v471, %v1770
      %v1775 = vmul.f32 %v472, %v1766
      %v1776 = vmul.f32 %v473, %v1770
      %v1777 = vmul.f32 %v474, %v1766
      %v1778 = vmul.f32 %v475, %v1770
      %v1779 = vmul.f32 %v476, %v1766
      %v1780 = vmul.f32 %v477, %v1770
      %v1781 = vmul.f32 %v478, %v1766
      %v1782 = vmul.f32 %v479, %v1770
      %v1793 = vrot.slane %v1773, 2
      %v1794 = vrot.slane %v1775, 2
      %v1795 = vsel %vm521, %v1793, %v1794
      %v1796 = vrot.slane %v1774, 2
      %v1797 = vrot.slane %v1776, 2
      %v1798 = vsel %vm521, %v1796, %v1797
      %v1799 = vrot.slane %v1777, 2
      %v1800 = vsel %vm521, %v1794, %v1799
      %v1801 = vrot.slane %v1778, 2
      %v1802 = vsel %vm521, %v1797, %v1801
      %v1803 = vrot.slane %v1779, 2
      %v1804 = vsel %vm521, %v1799, %v1803
      %v1805 = vrot.slane %v1780, 2
      %v1806 = vsel %vm521, %v1801, %v1805
      %v1807 = vrot.slane %v1781, 2
      %v1808 = vsel %vm521, %v1803, %v1807
      %v1809 = vrot.slane %v1782, 2
      %v1810 = vsel %vm521, %v1805, %v1809
      %v1819 = vadd.f32 %v1752, %v1795
      %v1820 = vadd.f32 %v1753, %v1798
      %v1821 = vadd.f32 %v1754, %v1800
      %v1822 = vadd.f32 %v1755, %v1802
      %v1823 = vadd.f32 %v1756, %v1804
      %v1824 = vadd.f32 %v1757, %v1806
      %v1825 = vadd.f32 %v1758, %v1808
      %v1826 = vadd.f32 %v1759, %v1810
      %s1827 = scalar_lea.vmem %s8, 16
      %v1828 = vld [vmem:[%s1827] ss:$8 sm:$0x3]
      %v1830 = vlaneseq
      %v1831 = vshrl.u32 %v1830, 7
      %v1832 = vsub.s32 0, %v1831
      %v1833 = vrot.slane %v1828, %v1832
      %v1834 = vlaneseq
      %v1835 = vshrl.u32 %v1834, 7
      %v1836 = vsub.s32 1, %v1835
      %v1837 = vrot.slane %v1828, %v1836
      %v1840 = vmul.f32 %v470, %v1833
      %v1841 = vmul.f32 %v471, %v1837
      %v1842 = vmul.f32 %v472, %v1833
      %v1843 = vmul.f32 %v473, %v1837
      %v1844 = vmul.f32 %v474, %v1833
      %v1845 = vmul.f32 %v475, %v1837
      %v1846 = vmul.f32 %v476, %v1833
      %v1847 = vmul.f32 %v477, %v1837
      %v1848 = vmul.f32 %v478, %v1833
      %v1849 = vmul.f32 %v479, %v1837
      %v1860 = vrot.slane %v1840, 3
      %v1861 = vrot.slane %v1842, 3
      %v1862 = vsel %vm1561, %v1860, %v1861
      %v1863 = vrot.slane %v1841, 3
      %v1864 = vrot.slane %v1843, 3
      %v1865 = vsel %vm1561, %v1863, %v1864
      %v1866 = vrot.slane %v1844, 3
      %v1867 = vsel %vm1561, %v1861, %v1866
      %v1868 = vrot.slane %v1845, 3
      %v1869 = vsel %vm1561, %v1864, %v1868
      %v1870 = vrot.slane %v1846, 3
      %v1871 = vsel %vm1561, %v1866, %v1870
      %v1872 = vrot.slane %v1847, 3
      %v1873 = vsel %vm1561, %v1868, %v1872
      %v1874 = vrot.slane %v1848, 3
      %v1875 = vsel %vm1561, %v1870, %v1874
      %v1876 = vrot.slane %v1849, 3
      %v1877 = vsel %vm1561, %v1872, %v1876
      %v1886 = vadd.f32 %v1819, %v1862
      %v1887 = vadd.f32 %v1820, %v1865
      %v1888 = vadd.f32 %v1821, %v1867
      %v1889 = vadd.f32 %v1822, %v1869
      %v1890 = vadd.f32 %v1823, %v1871
      %v1891 = vadd.f32 %v1824, %v1873
      %v1892 = vadd.f32 %v1825, %v1875
      %v1893 = vadd.f32 %v1826, %v1877
      %s1894 = scalar_lea.vmem %s8, 17
      %v1895 = vld [vmem:[%s1894] ss:$8 sm:$0x3]
      %v1897 = vlaneseq
      %v1898 = vshrl.u32 %v1897, 7
      %v1899 = vsub.s32 0, %v1898
      %v1900 = vrot.slane %v1895, %v1899
      %v1901 = vlaneseq
      %v1902 = vshrl.u32 %v1901, 7
      %v1903 = vsub.s32 1, %v1902
      %v1904 = vrot.slane %v1895, %v1903
      %v1907 = vmul.f32 %v470, %v1900
      %v1908 = vmul.f32 %v471, %v1904
      %v1909 = vmul.f32 %v472, %v1900
      %v1910 = vmul.f32 %v473, %v1904
      %v1911 = vmul.f32 %v474, %v1900
      %v1912 = vmul.f32 %v475, %v1904
      %v1913 = vmul.f32 %v476, %v1900
      %v1914 = vmul.f32 %v477, %v1904
      %v1915 = vmul.f32 %v478, %v1900
      %v1916 = vmul.f32 %v479, %v1904
      %v1927 = vrot.slane %v1907, 4
      %v1928 = vrot.slane %v1909, 4
      %v1929 = vsel %vm1629, %v1927, %v1928
      %v1930 = vrot.slane %v1908, 4
      %v1931 = vrot.slane %v1910, 4
      %v1932 = vsel %vm1629, %v1930, %v1931
      %v1933 = vrot.slane %v1911, 4
      %v1934 = vsel %vm1629, %v1928, %v1933
      %v1935 = vrot.slane %v1912, 4
      %v1936 = vsel %vm1629, %v1931, %v1935
      %v1937 = vrot.slane %v1913, 4
      %v1938 = vsel %vm1629, %v1933, %v1937
      %v1939 = vrot.slane %v1914, 4
      %v1940 = vsel %vm1629, %v1935, %v1939
      %v1941 = vrot.slane %v1915, 4
      %v1942 = vsel %vm1629, %v1937, %v1941
      %v1943 = vrot.slane %v1916, 4
      %v1944 = vsel %vm1629, %v1939, %v1943
      %v1953 = vadd.f32 %v1886, %v1929
      %v1954 = vadd.f32 %v1887, %v1932
      %v1955 = vadd.f32 %v1888, %v1934
      %v1956 = vadd.f32 %v1889, %v1936
      %v1957 = vadd.f32 %v1890, %v1938
      %v1958 = vadd.f32 %v1891, %v1940
      %v1959 = vadd.f32 %v1892, %v1942
      %v1960 = vadd.f32 %v1893, %v1944
      %s1961 = scalar_lea.vmem %s8, 18
      %v1962 = vld [vmem:[%s1961] ss:$8 sm:$0x3]
      %v1964 = vlaneseq
      %v1965 = vshrl.u32 %v1964, 7
      %v1966 = vsub.s32 0, %v1965
      %v1967 = vrot.slane %v1962, %v1966
      %v1968 = vlaneseq
      %v1969 = vshrl.u32 %v1968, 7
      %v1970 = vsub.s32 1, %v1969
      %v1971 = vrot.slane %v1962, %v1970
      %v1974 = vmul.f32 %v472, %v1967
      %v1975 = vmul.f32 %v473, %v1971
      %v1976 = vmul.f32 %v474, %v1967
      %v1977 = vmul.f32 %v475, %v1971
      %v1978 = vmul.f32 %v476, %v1967
      %v1979 = vmul.f32 %v477, %v1971
      %v1980 = vmul.f32 %v478, %v1967
      %v1981 = vmul.f32 %v479, %v1971
      %v1982 = vadd.f32 %v1953, %v1974
      %v1983 = vadd.f32 %v1954, %v1975
      %v1984 = vadd.f32 %v1955, %v1976
      %v1985 = vadd.f32 %v1956, %v1977
      %v1986 = vadd.f32 %v1957, %v1978
      %v1987 = vadd.f32 %v1958, %v1979
      %v1988 = vadd.f32 %v1959, %v1980
      %v1989 = vadd.f32 %v1960, %v1981
      %s1990 = scalar_lea.vmem %s8, 19
      %v1991 = vld [vmem:[%s1990] ss:$8 sm:$0x3]
      %v1993 = vlaneseq
      %v1994 = vshrl.u32 %v1993, 7
      %v1995 = vsub.s32 0, %v1994
      %v1996 = vrot.slane %v1991, %v1995
      %v1997 = vlaneseq
      %v1998 = vshrl.u32 %v1997, 7
      %v1999 = vsub.s32 1, %v1998
      %v2000 = vrot.slane %v1991, %v1999
      %v2003 = vmul.f32 %v472, %v1996
      %v2004 = vmul.f32 %v473, %v2000
      %v2005 = vmul.f32 %v474, %v1996
      %v2006 = vmul.f32 %v475, %v2000
      %v2007 = vmul.f32 %v476, %v1996
      %v2008 = vmul.f32 %v477, %v2000
      %v2009 = vmul.f32 %v478, %v1996
      %v2010 = vmul.f32 %v479, %v2000
      %v2011 = vmul.f32 %v480, %v1996
      %v2012 = vmul.f32 %v481, %v2000
      %v2023 = vrot.slane %v2003, 1
      %v2024 = vrot.slane %v2005, 1
      %v2025 = vsel %vm709, %v2023, %v2024
      %v2026 = vrot.slane %v2004, 1
      %v2027 = vrot.slane %v2006, 1
      %v2028 = vsel %vm709, %v2026, %v2027
      %v2029 = vrot.slane %v2007, 1
      %v2030 = vsel %vm709, %v2024, %v2029
      %v2031 = vrot.slane %v2008, 1
      %v2032 = vsel %vm709, %v2027, %v2031
      %v2033 = vrot.slane %v2009, 1
      %v2034 = vsel %vm709, %v2029, %v2033
      %v2035 = vrot.slane %v2010, 1
      %v2036 = vsel %vm709, %v2031, %v2035
      %v2037 = vrot.slane %v2011, 1
      %v2038 = vsel %vm709, %v2033, %v2037
      %v2039 = vrot.slane %v2012, 1
      %v2040 = vsel %vm709, %v2035, %v2039
      %v2049 = vadd.f32 %v1982, %v2025
      %v2050 = vadd.f32 %v1983, %v2028
      %v2051 = vadd.f32 %v1984, %v2030
      %v2052 = vadd.f32 %v1985, %v2032
      %v2053 = vadd.f32 %v1986, %v2034
      %v2054 = vadd.f32 %v1987, %v2036
      %v2055 = vadd.f32 %v1988, %v2038
      %v2056 = vadd.f32 %v1989, %v2040
      %s2057 = scalar_lea.vmem %s8, 20
      %v2058 = vld [vmem:[%s2057] ss:$8 sm:$0x3]
      %v2060 = vlaneseq
      %v2061 = vshrl.u32 %v2060, 7
      %v2062 = vsub.s32 0, %v2061
      %v2063 = vrot.slane %v2058, %v2062
      %v2064 = vlaneseq
      %v2065 = vshrl.u32 %v2064, 7
      %v2066 = vsub.s32 1, %v2065
      %v2067 = vrot.slane %v2058, %v2066
      %v2070 = vmul.f32 %v472, %v2063
      %v2071 = vmul.f32 %v473, %v2067
      %v2072 = vmul.f32 %v474, %v2063
      %v2073 = vmul.f32 %v475, %v2067
      %v2074 = vmul.f32 %v476, %v2063
      %v2075 = vmul.f32 %v477, %v2067
      %v2076 = vmul.f32 %v478, %v2063
      %v2077 = vmul.f32 %v479, %v2067
      %v2078 = vmul.f32 %v480, %v2063
      %v2079 = vmul.f32 %v481, %v2067
      %v2090 = vrot.slane %v2070, 2
      %v2091 = vrot.slane %v2072, 2
      %v2092 = vsel %vm521, %v2090, %v2091
      %v2093 = vrot.slane %v2071, 2
      %v2094 = vrot.slane %v2073, 2
      %v2095 = vsel %vm521, %v2093, %v2094
      %v2096 = vrot.slane %v2074, 2
      %v2097 = vsel %vm521, %v2091, %v2096
      %v2098 = vrot.slane %v2075, 2
      %v2099 = vsel %vm521, %v2094, %v2098
      %v2100 = vrot.slane %v2076, 2
      %v2101 = vsel %vm521, %v2096, %v2100
      %v2102 = vrot.slane %v2077, 2
      %v2103 = vsel %vm521, %v2098, %v2102
      %v2104 = vrot.slane %v2078, 2
      %v2105 = vsel %vm521, %v2100, %v2104
      %v2106 = vrot.slane %v2079, 2
      %v2107 = vsel %vm521, %v2102, %v2106
      %v2116 = vadd.f32 %v2049, %v2092
      %v2117 = vadd.f32 %v2050, %v2095
      %v2118 = vadd.f32 %v2051, %v2097
      %v2119 = vadd.f32 %v2052, %v2099
      %v2120 = vadd.f32 %v2053, %v2101
      %v2121 = vadd.f32 %v2054, %v2103
      %v2122 = vadd.f32 %v2055, %v2105
      %v2123 = vadd.f32 %v2056, %v2107
      %s2124 = scalar_lea.vmem %s8, 21
      %v2125 = vld [vmem:[%s2124] ss:$8 sm:$0x3]
      %v2127 = vlaneseq
      %v2128 = vshrl.u32 %v2127, 7
      %v2129 = vsub.s32 0, %v2128
      %v2130 = vrot.slane %v2125, %v2129
      %v2131 = vlaneseq
      %v2132 = vshrl.u32 %v2131, 7
      %v2133 = vsub.s32 1, %v2132
      %v2134 = vrot.slane %v2125, %v2133
      %v2137 = vmul.f32 %v472, %v2130
      %v2138 = vmul.f32 %v473, %v2134
      %v2139 = vmul.f32 %v474, %v2130
      %v2140 = vmul.f32 %v475, %v2134
      %v2141 = vmul.f32 %v476, %v2130
      %v2142 = vmul.f32 %v477, %v2134
      %v2143 = vmul.f32 %v478, %v2130
      %v2144 = vmul.f32 %v479, %v2134
      %v2145 = vmul.f32 %v480, %v2130
      %v2146 = vmul.f32 %v481, %v2134
      %v2157 = vrot.slane %v2137, 3
      %v2158 = vrot.slane %v2139, 3
      %v2159 = vsel %vm1561, %v2157, %v2158
      %v2160 = vrot.slane %v2138, 3
      %v2161 = vrot.slane %v2140, 3
      %v2162 = vsel %vm1561, %v2160, %v2161
      %v2163 = vrot.slane %v2141, 3
      %v2164 = vsel %vm1561, %v2158, %v2163
      %v2165 = vrot.slane %v2142, 3
      %v2166 = vsel %vm1561, %v2161, %v2165
      %v2167 = vrot.slane %v2143, 3
      %v2168 = vsel %vm1561, %v2163, %v2167
      %v2169 = vrot.slane %v2144, 3
      %v2170 = vsel %vm1561, %v2165, %v2169
      %v2171 = vrot.slane %v2145, 3
      %v2172 = vsel %vm1561, %v2167, %v2171
      %v2173 = vrot.slane %v2146, 3
      %v2174 = vsel %vm1561, %v2169, %v2173
      %v2183 = vadd.f32 %v2116, %v2159
      %v2184 = vadd.f32 %v2117, %v2162
      %v2185 = vadd.f32 %v2118, %v2164
      %v2186 = vadd.f32 %v2119, %v2166
      %v2187 = vadd.f32 %v2120, %v2168
      %v2188 = vadd.f32 %v2121, %v2170
      %v2189 = vadd.f32 %v2122, %v2172
      %v2190 = vadd.f32 %v2123, %v2174
      %s2191 = scalar_lea.vmem %s8, 22
      %v2192 = vld [vmem:[%s2191] ss:$8 sm:$0x3]
      %v2194 = vlaneseq
      %v2195 = vshrl.u32 %v2194, 7
      %v2196 = vsub.s32 0, %v2195
      %v2197 = vrot.slane %v2192, %v2196
      %v2198 = vlaneseq
      %v2199 = vshrl.u32 %v2198, 7
      %v2200 = vsub.s32 1, %v2199
      %v2201 = vrot.slane %v2192, %v2200
      %v2204 = vmul.f32 %v472, %v2197
      %v2205 = vmul.f32 %v473, %v2201
      %v2206 = vmul.f32 %v474, %v2197
      %v2207 = vmul.f32 %v475, %v2201
      %v2208 = vmul.f32 %v476, %v2197
      %v2209 = vmul.f32 %v477, %v2201
      %v2210 = vmul.f32 %v478, %v2197
      %v2211 = vmul.f32 %v479, %v2201
      %v2212 = vmul.f32 %v480, %v2197
      %v2213 = vmul.f32 %v481, %v2201
      %v2224 = vrot.slane %v2204, 4
      %v2225 = vrot.slane %v2206, 4
      %v2226 = vsel %vm1629, %v2224, %v2225
      %v2227 = vrot.slane %v2205, 4
      %v2228 = vrot.slane %v2207, 4
      %v2229 = vsel %vm1629, %v2227, %v2228
      %v2230 = vrot.slane %v2208, 4
      %v2231 = vsel %vm1629, %v2225, %v2230
      %v2232 = vrot.slane %v2209, 4
      %v2233 = vsel %vm1629, %v2228, %v2232
      %v2234 = vrot.slane %v2210, 4
      %v2235 = vsel %vm1629, %v2230, %v2234
      %v2236 = vrot.slane %v2211, 4
      %v2237 = vsel %vm1629, %v2232, %v2236
      %v2238 = vrot.slane %v2212, 4
      %v2239 = vsel %vm1629, %v2234, %v2238
      %v2240 = vrot.slane %v2213, 4
      %v2241 = vsel %vm1629, %v2236, %v2240
      %v2250 = vadd.f32 %v2183, %v2226
      %v2251 = vadd.f32 %v2184, %v2229
      %v2252 = vadd.f32 %v2185, %v2231
      %v2253 = vadd.f32 %v2186, %v2233
      %v2254 = vadd.f32 %v2187, %v2235
      %v2255 = vadd.f32 %v2188, %v2237
      %v2256 = vadd.f32 %v2189, %v2239
      %v2257 = vadd.f32 %v2190, %v2241
      %s2258 = scalar_lea.vmem %s8, 23
      %v2259 = vld [vmem:[%s2258] ss:$8 sm:$0x3]
      %v2261 = vlaneseq
      %v2262 = vshrl.u32 %v2261, 7
      %v2263 = vsub.s32 0, %v2262
      %v2264 = vrot.slane %v2259, %v2263
      %v2265 = vlaneseq
      %v2266 = vshrl.u32 %v2265, 7
      %v2267 = vsub.s32 1, %v2266
      %v2268 = vrot.slane %v2259, %v2267
      %v2271 = vmul.f32 %v474, %v2264
      %v2272 = vmul.f32 %v475, %v2268
      %v2273 = vmul.f32 %v476, %v2264
      %v2274 = vmul.f32 %v477, %v2268
      %v2275 = vmul.f32 %v478, %v2264
      %v2276 = vmul.f32 %v479, %v2268
      %v2277 = vmul.f32 %v480, %v2264
      %v2278 = vmul.f32 %v481, %v2268
      %v2279 = vadd.f32 %v2250, %v2271
      %v2280 = vadd.f32 %v2251, %v2272
      %v2281 = vadd.f32 %v2252, %v2273
      %v2282 = vadd.f32 %v2253, %v2274
      %v2283 = vadd.f32 %v2254, %v2275
      %v2284 = vadd.f32 %v2255, %v2276
      %v2285 = vadd.f32 %v2256, %v2277
      %v2286 = vadd.f32 %v2257, %v2278
      %s2287 = scalar_lea.vmem %s8, 32
      %v2288 = vld [vmem:[%s2287] ss:$8 sm:$0x3]
      %v2290 = vlaneseq
      %v2291 = vshrl.u32 %v2290, 7
      %v2292 = vsub.s32 0, %v2291
      %v2293 = vrot.slane %v2288, %v2292
      %v2294 = vlaneseq
      %v2295 = vshrl.u32 %v2294, 7
      %v2296 = vsub.s32 1, %v2295
      %v2297 = vrot.slane %v2288, %v2296
      %v2300 = vmul.f32 %v474, %v2293
      %v2301 = vmul.f32 %v475, %v2297
      %v2302 = vmul.f32 %v476, %v2293
      %v2303 = vmul.f32 %v477, %v2297
      %v2304 = vmul.f32 %v478, %v2293
      %v2305 = vmul.f32 %v479, %v2297
      %v2306 = vmul.f32 %v480, %v2293
      %v2307 = vmul.f32 %v481, %v2297
      %v2308 = vmul.f32 %v482, %v2293
      %v2309 = vmul.f32 %v483, %v2297
      %v2320 = vrot.slane %v2300, 1
      %v2321 = vrot.slane %v2302, 1
      %v2322 = vsel %vm709, %v2320, %v2321
      %v2323 = vrot.slane %v2301, 1
      %v2324 = vrot.slane %v2303, 1
      %v2325 = vsel %vm709, %v2323, %v2324
      %v2326 = vrot.slane %v2304, 1
      %v2327 = vsel %vm709, %v2321, %v2326
      %v2328 = vrot.slane %v2305, 1
      %v2329 = vsel %vm709, %v2324, %v2328
      %v2330 = vrot.slane %v2306, 1
      %v2331 = vsel %vm709, %v2326, %v2330
      %v2332 = vrot.slane %v2307, 1
      %v2333 = vsel %vm709, %v2328, %v2332
      %v2334 = vrot.slane %v2308, 1
      %v2335 = vsel %vm709, %v2330, %v2334
      %v2336 = vrot.slane %v2309, 1
      %v2337 = vsel %vm709, %v2332, %v2336
      %v2346 = vadd.f32 %v2279, %v2322
      %v2347 = vadd.f32 %v2280, %v2325
      %v2348 = vadd.f32 %v2281, %v2327
      %v2349 = vadd.f32 %v2282, %v2329
      %v2350 = vadd.f32 %v2283, %v2331
      %v2351 = vadd.f32 %v2284, %v2333
      %v2352 = vadd.f32 %v2285, %v2335
      %v2353 = vadd.f32 %v2286, %v2337
      %s2354 = scalar_lea.vmem %s8, 33
      %v2355 = vld [vmem:[%s2354] ss:$8 sm:$0x3]
      %v2357 = vlaneseq
      %v2358 = vshrl.u32 %v2357, 7
      %v2359 = vsub.s32 0, %v2358
      %v2360 = vrot.slane %v2355, %v2359
      %v2361 = vlaneseq
      %v2362 = vshrl.u32 %v2361, 7
      %v2363 = vsub.s32 1, %v2362
      %v2364 = vrot.slane %v2355, %v2363
      %v2367 = vmul.f32 %v474, %v2360
      %v2368 = vmul.f32 %v475, %v2364
      %v2369 = vmul.f32 %v476, %v2360
      %v2370 = vmul.f32 %v477, %v2364
      %v2371 = vmul.f32 %v478, %v2360
      %v2372 = vmul.f32 %v479, %v2364
      %v2373 = vmul.f32 %v480, %v2360
      %v2374 = vmul.f32 %v481, %v2364
      %v2375 = vmul.f32 %v482, %v2360
      %v2376 = vmul.f32 %v483, %v2364
      %v2387 = vrot.slane %v2367, 2
      %v2388 = vrot.slane %v2369, 2
      %v2389 = vsel %vm521, %v2387, %v2388
      %v2390 = vrot.slane %v2368, 2
      %v2391 = vrot.slane %v2370, 2
      %v2392 = vsel %vm521, %v2390, %v2391
      %v2393 = vrot.slane %v2371, 2
      %v2394 = vsel %vm521, %v2388, %v2393
      %v2395 = vrot.slane %v2372, 2
      %v2396 = vsel %vm521, %v2391, %v2395
      %v2397 = vrot.slane %v2373, 2
      %v2398 = vsel %vm521, %v2393, %v2397
      %v2399 = vrot.slane %v2374, 2
      %v2400 = vsel %vm521, %v2395, %v2399
      %v2401 = vrot.slane %v2375, 2
      %v2402 = vsel %vm521, %v2397, %v2401
      %v2403 = vrot.slane %v2376, 2
      %v2404 = vsel %vm521, %v2399, %v2403
      %v2413 = vadd.f32 %v2346, %v2389
      %v2414 = vadd.f32 %v2347, %v2392
      %v2415 = vadd.f32 %v2348, %v2394
      %v2416 = vadd.f32 %v2349, %v2396
      %v2417 = vadd.f32 %v2350, %v2398
      %v2418 = vadd.f32 %v2351, %v2400
      %v2419 = vadd.f32 %v2352, %v2402
      %v2420 = vadd.f32 %v2353, %v2404
      %s2421 = scalar_lea.vmem %s8, 34
      %v2422 = vld [vmem:[%s2421] ss:$8 sm:$0x3]
      %v2424 = vlaneseq
      %v2425 = vshrl.u32 %v2424, 7
      %v2426 = vsub.s32 0, %v2425
      %v2427 = vrot.slane %v2422, %v2426
      %v2428 = vlaneseq
      %v2429 = vshrl.u32 %v2428, 7
      %v2430 = vsub.s32 1, %v2429
      %v2431 = vrot.slane %v2422, %v2430
      %v2434 = vmul.f32 %v474, %v2427
      %v2435 = vmul.f32 %v475, %v2431
      %v2436 = vmul.f32 %v476, %v2427
      %v2437 = vmul.f32 %v477, %v2431
      %v2438 = vmul.f32 %v478, %v2427
      %v2439 = vmul.f32 %v479, %v2431
      %v2440 = vmul.f32 %v480, %v2427
      %v2441 = vmul.f32 %v481, %v2431
      %v2442 = vmul.f32 %v482, %v2427
      %v2443 = vmul.f32 %v483, %v2431
      %v2454 = vrot.slane %v2434, 3
      %v2455 = vrot.slane %v2436, 3
      %v2456 = vsel %vm1561, %v2454, %v2455
      %v2457 = vrot.slane %v2435, 3
      %v2458 = vrot.slane %v2437, 3
      %v2459 = vsel %vm1561, %v2457, %v2458
      %v2460 = vrot.slane %v2438, 3
      %v2461 = vsel %vm1561, %v2455, %v2460
      %v2462 = vrot.slane %v2439, 3
      %v2463 = vsel %vm1561, %v2458, %v2462
      %v2464 = vrot.slane %v2440, 3
      %v2465 = vsel %vm1561, %v2460, %v2464
      %v2466 = vrot.slane %v2441, 3
      %v2467 = vsel %vm1561, %v2462, %v2466
      %v2468 = vrot.slane %v2442, 3
      %v2469 = vsel %vm1561, %v2464, %v2468
      %v2470 = vrot.slane %v2443, 3
      %v2471 = vsel %vm1561, %v2466, %v2470
      %v2480 = vadd.f32 %v2413, %v2456
      %v2481 = vadd.f32 %v2414, %v2459
      %v2482 = vadd.f32 %v2415, %v2461
      %v2483 = vadd.f32 %v2416, %v2463
      %v2484 = vadd.f32 %v2417, %v2465
      %v2485 = vadd.f32 %v2418, %v2467
      %v2486 = vadd.f32 %v2419, %v2469
      %v2487 = vadd.f32 %v2420, %v2471
      %s2488 = scalar_lea.vmem %s8, 35
      %v2489 = vld [vmem:[%s2488] ss:$8 sm:$0x3]
      %v2491 = vlaneseq
      %v2492 = vshrl.u32 %v2491, 7
      %v2493 = vsub.s32 0, %v2492
      %v2494 = vrot.slane %v2489, %v2493
      %v2495 = vlaneseq
      %v2496 = vshrl.u32 %v2495, 7
      %v2497 = vsub.s32 1, %v2496
      %v2498 = vrot.slane %v2489, %v2497
      %v2501 = vmul.f32 %v474, %v2494
      %v2502 = vmul.f32 %v475, %v2498
      %v2503 = vmul.f32 %v476, %v2494
      %v2504 = vmul.f32 %v477, %v2498
      %v2505 = vmul.f32 %v478, %v2494
      %v2506 = vmul.f32 %v479, %v2498
      %v2507 = vmul.f32 %v480, %v2494
      %v2508 = vmul.f32 %v481, %v2498
      %v2509 = vmul.f32 %v482, %v2494
      %v2510 = vmul.f32 %v483, %v2498
      %v2521 = vrot.slane %v2501, 4
      %v2522 = vrot.slane %v2503, 4
      %v2523 = vsel %vm1629, %v2521, %v2522
      %v2524 = vrot.slane %v2502, 4
      %v2525 = vrot.slane %v2504, 4
      %v2526 = vsel %vm1629, %v2524, %v2525
      %v2527 = vrot.slane %v2505, 4
      %v2528 = vsel %vm1629, %v2522, %v2527
      %v2529 = vrot.slane %v2506, 4
      %v2530 = vsel %vm1629, %v2525, %v2529
      %v2531 = vrot.slane %v2507, 4
      %v2532 = vsel %vm1629, %v2527, %v2531
      %v2533 = vrot.slane %v2508, 4
      %v2534 = vsel %vm1629, %v2529, %v2533
      %v2535 = vrot.slane %v2509, 4
      %v2536 = vsel %vm1629, %v2531, %v2535
      %v2537 = vrot.slane %v2510, 4
      %v2538 = vsel %vm1629, %v2533, %v2537
      %v2547 = vadd.f32 %v2480, %v2523
      %v2548 = vadd.f32 %v2481, %v2526
      %v2549 = vadd.f32 %v2482, %v2528
      %v2550 = vadd.f32 %v2483, %v2530
      %v2551 = vadd.f32 %v2484, %v2532
      %v2552 = vadd.f32 %v2485, %v2534
      %v2553 = vadd.f32 %v2486, %v2536
      %v2554 = vadd.f32 %v2487, %v2538
      %s2555 = scalar_lea.vmem %s8, 36
      %v2556 = vld [vmem:[%s2555] ss:$8 sm:$0x3]
      %v2558 = vlaneseq
      %v2559 = vshrl.u32 %v2558, 7
      %v2560 = vsub.s32 0, %v2559
      %v2561 = vrot.slane %v2556, %v2560
      %v2562 = vlaneseq
      %v2563 = vshrl.u32 %v2562, 7
      %v2564 = vsub.s32 1, %v2563
      %v2565 = vrot.slane %v2556, %v2564
      %v2568 = vmul.f32 %v476, %v2561
      %v2569 = vmul.f32 %v477, %v2565
      %v2570 = vmul.f32 %v478, %v2561
      %v2571 = vmul.f32 %v479, %v2565
      %v2572 = vmul.f32 %v480, %v2561
      %v2573 = vmul.f32 %v481, %v2565
      %v2574 = vmul.f32 %v482, %v2561
      %v2575 = vmul.f32 %v483, %v2565
      %v2576 = vadd.f32 %v2547, %v2568
      %v2577 = vadd.f32 %v2548, %v2569
      %v2578 = vadd.f32 %v2549, %v2570
      %v2579 = vadd.f32 %v2550, %v2571
      %v2580 = vadd.f32 %v2551, %v2572
      %v2581 = vadd.f32 %v2552, %v2573
      %v2582 = vadd.f32 %v2553, %v2574
      %v2583 = vadd.f32 %v2554, %v2575
      %s2584 = scalar_lea.vmem %s8, 37
      %v2585 = vld [vmem:[%s2584] ss:$8 sm:$0x3]
      %v2587 = vlaneseq
      %v2588 = vshrl.u32 %v2587, 7
      %v2589 = vsub.s32 0, %v2588
      %v2590 = vrot.slane %v2585, %v2589
      %v2591 = vlaneseq
      %v2592 = vshrl.u32 %v2591, 7
      %v2593 = vsub.s32 1, %v2592
      %v2594 = vrot.slane %v2585, %v2593
      %v2597 = vmul.f32 %v476, %v2590
      %v2598 = vmul.f32 %v477, %v2594
      %v2599 = vmul.f32 %v478, %v2590
      %v2600 = vmul.f32 %v479, %v2594
      %v2601 = vmul.f32 %v480, %v2590
      %v2602 = vmul.f32 %v481, %v2594
      %v2603 = vmul.f32 %v482, %v2590
      %v2604 = vmul.f32 %v483, %v2594
      %v2605 = vmul.f32 %v484, %v2590
      %v2606 = vmul.f32 %v485, %v2594
      %v2617 = vrot.slane %v2597, 1
      %v2618 = vrot.slane %v2599, 1
      %v2619 = vsel %vm709, %v2617, %v2618
      %v2620 = vrot.slane %v2598, 1
      %v2621 = vrot.slane %v2600, 1
      %v2622 = vsel %vm709, %v2620, %v2621
      %v2623 = vrot.slane %v2601, 1
      %v2624 = vsel %vm709, %v2618, %v2623
      %v2625 = vrot.slane %v2602, 1
      %v2626 = vsel %vm709, %v2621, %v2625
      %v2627 = vrot.slane %v2603, 1
      %v2628 = vsel %vm709, %v2623, %v2627
      %v2629 = vrot.slane %v2604, 1
      %v2630 = vsel %vm709, %v2625, %v2629
      %v2631 = vrot.slane %v2605, 1
      %v2632 = vsel %vm709, %v2627, %v2631
      %v2633 = vrot.slane %v2606, 1
      %v2634 = vsel %vm709, %v2629, %v2633
      %v2643 = vadd.f32 %v2576, %v2619
      %v2644 = vadd.f32 %v2577, %v2622
      %v2645 = vadd.f32 %v2578, %v2624
      %v2646 = vadd.f32 %v2579, %v2626
      %v2647 = vadd.f32 %v2580, %v2628
      %v2648 = vadd.f32 %v2581, %v2630
      %v2649 = vadd.f32 %v2582, %v2632
      %v2650 = vadd.f32 %v2583, %v2634
      %s2651 = scalar_lea.vmem %s8, 38
      %v2652 = vld [vmem:[%s2651] ss:$8 sm:$0x3]
      %v2654 = vlaneseq
      %v2655 = vshrl.u32 %v2654, 7
      %v2656 = vsub.s32 0, %v2655
      %v2657 = vrot.slane %v2652, %v2656
      %v2658 = vlaneseq
      %v2659 = vshrl.u32 %v2658, 7
      %v2660 = vsub.s32 1, %v2659
      %v2661 = vrot.slane %v2652, %v2660
      %v2664 = vmul.f32 %v476, %v2657
      %v2665 = vmul.f32 %v477, %v2661
      %v2666 = vmul.f32 %v478, %v2657
      %v2667 = vmul.f32 %v479, %v2661
      %v2668 = vmul.f32 %v480, %v2657
      %v2669 = vmul.f32 %v481, %v2661
      %v2670 = vmul.f32 %v482, %v2657
      %v2671 = vmul.f32 %v483, %v2661
      %v2672 = vmul.f32 %v484, %v2657
      %v2673 = vmul.f32 %v485, %v2661
      %v2684 = vrot.slane %v2664, 2
      %v2685 = vrot.slane %v2666, 2
      %v2686 = vsel %vm521, %v2684, %v2685
      %v2687 = vrot.slane %v2665, 2
      %v2688 = vrot.slane %v2667, 2
      %v2689 = vsel %vm521, %v2687, %v2688
      %v2690 = vrot.slane %v2668, 2
      %v2691 = vsel %vm521, %v2685, %v2690
      %v2692 = vrot.slane %v2669, 2
      %v2693 = vsel %vm521, %v2688, %v2692
      %v2694 = vrot.slane %v2670, 2
      %v2695 = vsel %vm521, %v2690, %v2694
      %v2696 = vrot.slane %v2671, 2
      %v2697 = vsel %vm521, %v2692, %v2696
      %v2698 = vrot.slane %v2672, 2
      %v2699 = vsel %vm521, %v2694, %v2698
      %v2700 = vrot.slane %v2673, 2
      %v2701 = vsel %vm521, %v2696, %v2700
      %v2710 = vadd.f32 %v2643, %v2686
      %v2711 = vadd.f32 %v2644, %v2689
      %v2712 = vadd.f32 %v2645, %v2691
      %v2713 = vadd.f32 %v2646, %v2693
      %v2714 = vadd.f32 %v2647, %v2695
      %v2715 = vadd.f32 %v2648, %v2697
      %v2716 = vadd.f32 %v2649, %v2699
      %v2717 = vadd.f32 %v2650, %v2701
      %s2718 = scalar_lea.vmem %s8, 39
      %v2719 = vld [vmem:[%s2718] ss:$8 sm:$0x3]
      %v2721 = vlaneseq
      %v2722 = vshrl.u32 %v2721, 7
      %v2723 = vsub.s32 0, %v2722
      %v2724 = vrot.slane %v2719, %v2723
      %v2725 = vlaneseq
      %v2726 = vshrl.u32 %v2725, 7
      %v2727 = vsub.s32 1, %v2726
      %v2728 = vrot.slane %v2719, %v2727
      %v2731 = vmul.f32 %v476, %v2724
      %v2732 = vmul.f32 %v477, %v2728
      %v2733 = vmul.f32 %v478, %v2724
      %v2734 = vmul.f32 %v479, %v2728
      %v2735 = vmul.f32 %v480, %v2724
      %v2736 = vmul.f32 %v481, %v2728
      %v2737 = vmul.f32 %v482, %v2724
      %v2738 = vmul.f32 %v483, %v2728
      %v2739 = vmul.f32 %v484, %v2724
      %v2740 = vmul.f32 %v485, %v2728
      %v2751 = vrot.slane %v2731, 3
      %v2752 = vrot.slane %v2733, 3
      %v2753 = vsel %vm1561, %v2751, %v2752
      %v2754 = vrot.slane %v2732, 3
      %v2755 = vrot.slane %v2734, 3
      %v2756 = vsel %vm1561, %v2754, %v2755
      %v2757 = vrot.slane %v2735, 3
      %v2758 = vsel %vm1561, %v2752, %v2757
      %v2759 = vrot.slane %v2736, 3
      %v2760 = vsel %vm1561, %v2755, %v2759
      %v2761 = vrot.slane %v2737, 3
      %v2762 = vsel %vm1561, %v2757, %v2761
      %v2763 = vrot.slane %v2738, 3
      %v2764 = vsel %vm1561, %v2759, %v2763
      %v2765 = vrot.slane %v2739, 3
      %v2766 = vsel %vm1561, %v2761, %v2765
      %v2767 = vrot.slane %v2740, 3
      %v2768 = vsel %vm1561, %v2763, %v2767
      %v2777 = vadd.f32 %v2710, %v2753
      %v2778 = vadd.f32 %v2711, %v2756
      %v2779 = vadd.f32 %v2712, %v2758
      %v2780 = vadd.f32 %v2713, %v2760
      %v2781 = vadd.f32 %v2714, %v2762
      %v2782 = vadd.f32 %v2715, %v2764
      %v2783 = vadd.f32 %v2716, %v2766
      %v2784 = vadd.f32 %v2717, %v2768
      %s2785 = scalar_lea.vmem %s8, 48
      %v2786 = vld [vmem:[%s2785] ss:$8 sm:$0x3]
      %v2788 = vlaneseq
      %v2789 = vshrl.u32 %v2788, 7
      %v2790 = vsub.s32 0, %v2789
      %v2791 = vrot.slane %v2786, %v2790
      %v2792 = vlaneseq
      %v2793 = vshrl.u32 %v2792, 7
      %v2794 = vsub.s32 1, %v2793
      %v2795 = vrot.slane %v2786, %v2794
      %v2798 = vmul.f32 %v476, %v2791
      %v2799 = vmul.f32 %v477, %v2795
      %v2800 = vmul.f32 %v478, %v2791
      %v2801 = vmul.f32 %v479, %v2795
      %v2802 = vmul.f32 %v480, %v2791
      %v2803 = vmul.f32 %v481, %v2795
      %v2804 = vmul.f32 %v482, %v2791
      %v2805 = vmul.f32 %v483, %v2795
      %v2806 = vmul.f32 %v484, %v2791
      %v2807 = vmul.f32 %v485, %v2795
      %v2818 = vrot.slane %v2798, 4
      %v2819 = vrot.slane %v2800, 4
      %v2820 = vsel %vm1629, %v2818, %v2819
      %v2821 = vrot.slane %v2799, 4
      %v2822 = vrot.slane %v2801, 4
      %v2823 = vsel %vm1629, %v2821, %v2822
      %v2824 = vrot.slane %v2802, 4
      %v2825 = vsel %vm1629, %v2819, %v2824
      %v2826 = vrot.slane %v2803, 4
      %v2827 = vsel %vm1629, %v2822, %v2826
      %v2828 = vrot.slane %v2804, 4
      %v2829 = vsel %vm1629, %v2824, %v2828
      %v2830 = vrot.slane %v2805, 4
      %v2831 = vsel %vm1629, %v2826, %v2830
      %v2832 = vrot.slane %v2806, 4
      %v2833 = vsel %vm1629, %v2828, %v2832
      %v2834 = vrot.slane %v2807, 4
      %v2835 = vsel %vm1629, %v2830, %v2834
      %v2844 = vadd.f32 %v2777, %v2820
      %v2845 = vadd.f32 %v2778, %v2823
      %v2846 = vadd.f32 %v2779, %v2825
      %v2847 = vadd.f32 %v2780, %v2827
      %v2848 = vadd.f32 %v2781, %v2829
      %v2849 = vadd.f32 %v2782, %v2831
      %v2850 = vadd.f32 %v2783, %v2833
      %v2851 = vadd.f32 %v2784, %v2835
      %v2852 = vld [vmem:[%s9] sm:$0x3]
      %v2854 = vlaneseq
      %v2855 = vshrl.u32 %v2854, 7
      %v2856 = vsub.s32 0, %v2855
      %v2857 = vrot.slane %v2852, %v2856
      %v2858 = vlaneseq
      %v2859 = vshrl.u32 %v2858, 7
      %v2860 = vsub.s32 1, %v2859
      %v2861 = vrot.slane %v2852, %v2860
      %v2864 = vadd.f32 %v2844, %v2857
      %v2865 = vadd.f32 %v2845, %v2861
      %v2866 = vadd.f32 %v2846, %v2857
      %v2867 = vadd.f32 %v2847, %v2861
      %v2868 = vadd.f32 %v2848, %v2857
      %v2869 = vadd.f32 %v2849, %v2861
      %v2870 = vadd.f32 %v2850, %v2857
      %v2871 = vadd.f32 %v2851, %v2861
      %v2872 = vld [vmem:[%s10] sm:$0xff]
      %v2873 = vld [vmem:[%s10 + $0x8] sm:$0xff]
      %v2874 = vld [vmem:[%s10 + $0x10] sm:$0xff]
      %v2875 = vld [vmem:[%s10 + $0x18] sm:$0xff]
      %v2876 = vld [vmem:[%s10 + $0x20] sm:$0xff]
      %v2877 = vld [vmem:[%s10 + $0x28] sm:$0xff]
      %v2878 = vld [vmem:[%s10 + $0x30] sm:$0xff]
      %v2879 = vld [vmem:[%s10 + $0x38] sm:$0xff]
      %v2880 = vld [vmem:[%s10 + $0x40] sm:$0xff]
      %v2881 = vld [vmem:[%s10 + $0x48] sm:$0xff]
      %v2882 = vld [vmem:[%s10 + $0x50] sm:$0xff]
      %v2883 = vld [vmem:[%s10 + $0x58] sm:$0xff]
      %v2884 = vld [vmem:[%s10 + $0x60] sm:$0xff]
      %v2885 = vld [vmem:[%s10 + $0x68] sm:$0xff]
      %v2886 = vld [vmem:[%s10 + $0x70] sm:$0xff]
      %v2887 = vld [vmem:[%s10 + $0x78] sm:$0xff]
      %v2888 = vld [vmem:[%s10 + $0x80] sm:$0xff]
      %v2889 = vld [vmem:[%s10 + $0x88] sm:$0xff]
      %v2890 = vld [vmem:[%s11] sm:$0x1]
      %v2892 = vlaneseq
      %v2893 = vshrl.u32 %v2892, 7
      %v2894 = vsub.s32 0, %v2893
      %v2895 = vrot.slane %v2890, %v2894
      %v2898 = vsel %vm544, %v2865, 0
      %v2901 = vsel %vm544, %v2867, 0
      %v2904 = vsel %vm544, %v2869, 0
      %v2907 = vsel %vm544, %v2871, 0
      %2909 = vmatprep.subr.mxu0 0.0
      %2910 = vmatpush1.msra.mxu0 %v2887
      %2911 = vmatprep.subr.mxu0 0.0
      %2912 = vmatpush1.msra.mxu0 %v2886
      %2913 = vmatprep.subr.mxu0 0.0
      %2914 = vmatpush1.msra.mxu0 %v2885
      %2915 = vmatprep.subr.mxu0 0.0
      %2916 = vmatpush1.msra.mxu0 %v2884
      %2917 = vmatprep.subr.mxu0 0.0
      %2918 = vmatpush1.msra.mxu0 %v2883
      %2919 = vmatprep.subr.mxu0 0.0
      %2920 = vmatpush1.msra.mxu0 %v2882
      %2921 = vmatprep.subr.mxu0 0.0
      %2922 = vmatpush1.msra.mxu0 %v2881
      %2923 = vmatprep.subr.mxu0 0.0
      %2924 = vmatpush1.msra.mxu0 %v2880
      %2925 = vmatprep.subr.mxu0 0.0
      %2926 = vmatpush1.msra.mxu0 %v2879
      %2927 = vmatprep.subr.mxu0 0.0
      %2928 = vmatpush1.msra.mxu0 %v2878
      %2929 = vmatprep.subr.mxu0 0.0
      %2930 = vmatpush1.msra.mxu0 %v2877
      %2931 = vmatprep.subr.mxu0 0.0
      %2932 = vmatpush1.msra.mxu0 %v2876
      %2933 = vmatprep.subr.mxu0 0.0
      %2934 = vmatpush1.msra.mxu0 %v2875
      %2935 = vmatprep.subr.mxu0 0.0
      %2936 = vmatpush1.msra.mxu0 %v2874
      %2937 = vmatprep.subr.mxu0 0.0
      %2938 = vmatpush1.msra.mxu0 %v2873
      %2939 = vmatprep.subr.mxu0 0.0
      %2940 = vmatpush1.msra.mxu0 %v2872
      %2941 = vmatprep.subr.mxu0 0.0
      %2942 = vmatpush2.msra.mxu0 0.0
      %2943 = vmatprep.subr.mxu0 0.0
      %2944 = vmatpush2.msra.mxu0 0.0
      %2945 = vmatprep.subr.mxu0 0.0
      %2946 = vmatpush2.msra.mxu0 0.0
      %2947 = vmatprep.subr.mxu0 0.0
      %2948 = vmatpush2.msra.mxu0 0.0
      %2949 = vmatprep.subr.mxu0 0.0
      %2950 = vmatpush2.msra.mxu0 0.0
      %2951 = vmatprep.subr.mxu0 0.0
      %2952 = vmatpush2.msra.mxu0 0.0
      %2953 = vmatprep.subr.mxu0 0.0
      %2954 = vmatpush2.msra.mxu0 0.0
      %2955 = vmatprep.subr.mxu0 0.0
      %2956 = vmatpush2.msra.mxu0 0.0
      %2957 = vmatprep.subr.mxu0 0.0
      %2958 = vmatpush2.msra.mxu0 0.0
      %2959 = vmatprep.subr.mxu0 0.0
      %2960 = vmatpush2.msra.mxu0 0.0
      %2961 = vmatprep.subr.mxu0 0.0
      %2962 = vmatpush2.msra.mxu0 0.0
      %2963 = vmatprep.subr.mxu0 0.0
      %2964 = vmatpush2.msra.mxu0 0.0
      %2965 = vmatprep.subr.mxu0 0.0
      %2966 = vmatpush2.msra.mxu0 0.0
      %2967 = vmatprep.subr.mxu0 0.0
      %2968 = vmatpush2.msra.mxu0 0.0
      %2969 = vmatprep.subr.mxu0 0.0
      %2970 = vmatpush2.msra.mxu0 %v2889
      %2971 = vmatprep.subr.mxu0 0.0
      %2972 = vmatpush2.msra.mxu0 %v2888
      %2973 = vmatprep.mubr.f32.mxu0 %v2898
      %2974 = vmatmul.mubr.f32.gmra.mxu0 %v2864
      %v2975 = vpop.f32.mrf.mxu0
      %v2976 = vadd.f32 %v2895, %v2975
      %v2977 = vpop.f32.mrf.mxu0
      %2978 = vmatprep.mubr.f32.mxu0 %v2901
      %2979 = vmatmul.mubr.f32.gmra.mxu0 %v2866
      %v2980 = vpop.f32.mrf.mxu0
      %v2981 = vadd.f32 %v2895, %v2980
      %v2982 = vpop.f32.mrf.mxu0
      %2983 = vmatprep.mubr.f32.mxu0 %v2904
      %2984 = vmatmul.mubr.f32.gmra.mxu0 %v2868
      %v2985 = vpop.f32.mrf.mxu0
      %v2986 = vadd.f32 %v2895, %v2985
      %v2987 = vpop.f32.mrf.mxu0
      %2988 = vmatprep.mubr.f32.mxu0 %v2907
      %2989 = vmatmul.mubr.f32.gmra.mxu0 %v2870
      %v2990 = vpop.f32.mrf.mxu0
      %v2991 = vadd.f32 %v2895, %v2990
      %v2992 = vpop.f32.mrf.mxu0
      %2993 = vdwg.mxu0
      %vm2994 = vcmp.gt.f32.partialorder %v2976, 0.0
      %vm2995 = vcmp.gt.f32.partialorder %v2981, 0.0
      %vm2996 = vcmp.gt.f32.partialorder %v2986, 0.0
      %vm2997 = vcmp.gt.f32.partialorder %v2991, 0.0
      %v2998 = vmul.f32 %v2976, 0.3
      %v2999 = vmul.f32 %v2981, 0.3
      %v3000 = vmul.f32 %v2986, 0.3
      %v3001 = vmul.f32 %v2991, 0.3
      %v3002 = vsel %vm2994, %v2976, %v2998
      %v3003 = vsel %vm2995, %v2981, %v2999
      %v3004 = vsel %vm2996, %v2986, %v3000
      %v3005 = vsel %vm2997, %v2991, %v3001
      %3010 = vrot.lane.b32.xlu0 %v3002, 64
      %v3011 = vpop.permute.xlu0 %3010
      %3012 = vrot.lane.b32.xlu0 %v3003, 64
      %v3013 = vpop.permute.xlu0 %3012
      %3014 = vrot.lane.b32.xlu0 %v3004, 64
      %v3015 = vpop.permute.xlu0 %3014
      %3016 = vrot.lane.b32.xlu0 %v3005, 64
      %v3017 = vpop.permute.xlu0 %3016
      %vm3022 = vcmask 916992
      %3023 = vst.msk [vmem:[%s467] sm:$0xff] %vm3022, %v3011
      %3024 = vst.msk [vmem:[%s467 + $0x10] sm:$0xff] %vm3022, %v3013
      %3025 = vst.msk [vmem:[%s467 + $0x20] sm:$0xff] %vm3022, %v3015
      %3026 = vst.msk [vmem:[%s467 + $0x30] sm:$0xff] %vm3022, %v3017
      %v3027 = vld [vmem:[%s1 + $0x8] sm:$0xff]
      %v3028 = vld [vmem:[%s1 + $0x10] sm:$0xff]
      %v3029 = vld [vmem:[%s1 + $0x18] sm:$0xff]
      %v3030 = vld [vmem:[%s1 + $0x20] sm:$0xff]
      %v3031 = vld [vmem:[%s1 + $0x28] sm:$0xff]
      %v3032 = vld [vmem:[%s1 + $0x30] sm:$0xff]
      %v3033 = vld [vmem:[%s1 + $0x38] sm:$0xff]
      %3035 = vset.pattern.permute.xlu0 0
      %3036 = vperm.xlu0 %3035, %v3027
      %v3037 = vpop.permute.xlu0 %3036
      %3040 = vset.pattern.permute.xlu0 0
      %3041 = vperm.xlu0 %3040, %v3028
      %v3042 = vpop.permute.xlu0 %3041
      %3045 = vset.pattern.permute.xlu0 0
      %3046 = vperm.xlu0 %3045, %v3029
      %v3047 = vpop.permute.xlu0 %3046
      %3050 = vset.pattern.permute.xlu0 0
      %3051 = vperm.xlu0 %3050, %v3030
      %v3052 = vpop.permute.xlu0 %3051
      %3055 = vset.pattern.permute.xlu0 0
      %3056 = vperm.xlu0 %3055, %v3031
      %v3057 = vpop.permute.xlu0 %3056
      %3060 = vset.pattern.permute.xlu0 0
      %3061 = vperm.xlu0 %3060, %v3032
      %v3062 = vpop.permute.xlu0 %3061
      %3065 = vset.pattern.permute.xlu0 0
      %3066 = vperm.xlu0 %3065, %v3033
      %v3067 = vpop.permute.xlu0 %3066
      %v3069 = vadd.f32 %v470, %v3037
      %v3070 = vadd.f32 %v471, %v3037
      %v3071 = vadd.f32 %v472, %v3042
      %v3072 = vadd.f32 %v473, %v3042
      %v3073 = vadd.f32 %v474, %v3047
      %v3074 = vadd.f32 %v475, %v3047
      %v3075 = vadd.f32 %v476, %v3052
      %v3076 = vadd.f32 %v477, %v3052
      %v3077 = vadd.f32 %v478, %v3057
      %v3078 = vadd.f32 %v479, %v3057
      %v3079 = vadd.f32 %v480, %v3062
      %v3080 = vadd.f32 %v481, %v3062
      %v3081 = vadd.f32 %v482, %v3067
      %v3082 = vadd.f32 %v483, %v3067
      %v3093 = vrot.slane %v3069, 1
      %v3094 = vrot.slane %v3071, 1
      %v3095 = vsel %vm709, %v3093, %v3094
      %v3096 = vrot.slane %v3070, 1
      %v3097 = vrot.slane %v3072, 1
      %v3098 = vsel %vm709, %v3096, %v3097
      %v3099 = vrot.slane %v3073, 1
      %v3100 = vsel %vm709, %v3094, %v3099
      %v3101 = vrot.slane %v3074, 1
      %v3102 = vsel %vm709, %v3097, %v3101
      %v3103 = vrot.slane %v3075, 1
      %v3104 = vsel %vm709, %v3099, %v3103
      %v3105 = vrot.slane %v3076, 1
      %v3106 = vsel %vm709, %v3101, %v3105
      %v3107 = vrot.slane %v3077, 1
      %v3108 = vsel %vm709, %v3103, %v3107
      %v3109 = vrot.slane %v3078, 1
      %v3110 = vsel %vm709, %v3105, %v3109
      %v3121 = vmax.f32 %v3069, %v3095
      %v3122 = vmax.f32 %v3070, %v3098
      %v3123 = vmax.f32 %v3071, %v3100
      %v3124 = vmax.f32 %v3072, %v3102
      %v3125 = vmax.f32 %v3073, %v3104
      %v3126 = vmax.f32 %v3074, %v3106
      %v3127 = vmax.f32 %v3075, %v3108
      %v3128 = vmax.f32 %v3076, %v3110
      %v3129 = vmax.f32 %v3077, %v3107
      %v3130 = vmax.f32 %v3078, %v3109
      %v3131 = vrot.slane %v3069, 2
      %v3132 = vrot.slane %v3071, 2
      %v3133 = vsel %vm521, %v3131, %v3132
      %v3134 = vrot.slane %v3070, 2
      %v3135 = vrot.slane %v3072, 2
      %v3136 = vsel %vm521, %v3134, %v3135
      %v3137 = vrot.slane %v3073, 2
      %v3138 = vsel %vm521, %v3132, %v3137
      %v3139 = vrot.slane %v3074, 2
      %v3140 = vsel %vm521, %v3135, %v3139
      %v3141 = vrot.slane %v3075, 2
      %v3142 = vsel %vm521, %v3137, %v3141
      %v3143 = vrot.slane %v3076, 2
      %v3144 = vsel %vm521, %v3139, %v3143
      %v3145 = vrot.slane %v3077, 2
      %v3146 = vsel %vm521, %v3141, %v3145
      %v3147 = vrot.slane %v3078, 2
      %v3148 = vsel %vm521, %v3143, %v3147
      %v3159 = vmax.f32 %v3121, %v3133
      %v3160 = vmax.f32 %v3122, %v3136
      %v3161 = vmax.f32 %v3123, %v3138
      %v3162 = vmax.f32 %v3124, %v3140
      %v3163 = vmax.f32 %v3125, %v3142
      %v3164 = vmax.f32 %v3126, %v3144
      %v3165 = vmax.f32 %v3127, %v3146
      %v3166 = vmax.f32 %v3128, %v3148
      %v3167 = vmax.f32 %v3129, %v3145
      %v3168 = vmax.f32 %v3130, %v3147
      %v3169 = vmax.f32 %v3159, %v3071
      %v3170 = vmax.f32 %v3160, %v3072
      %v3171 = vmax.f32 %v3161, %v3073
      %v3172 = vmax.f32 %v3162, %v3074
      %v3173 = vmax.f32 %v3163, %v3075
      %v3174 = vmax.f32 %v3164, %v3076
      %v3175 = vmax.f32 %v3165, %v3077
      %v3176 = vmax.f32 %v3166, %v3078
      %v3177 = vmax.f32 %v3167, %v3079
      %v3178 = vmax.f32 %v3168, %v3080
      %v3181 = vrot.slane %v3079, 1
      %v3182 = vsel %vm709, %v3107, %v3181
      %v3183 = vrot.slane %v3080, 1
      %v3184 = vsel %vm709, %v3109, %v3183
      %v3189 = vmax.f32 %v3169, %v3100
      %v3190 = vmax.f32 %v3170, %v3102
      %v3191 = vmax.f32 %v3171, %v3104
      %v3192 = vmax.f32 %v3172, %v3106
      %v3193 = vmax.f32 %v3173, %v3108
      %v3194 = vmax.f32 %v3174, %v3110
      %v3195 = vmax.f32 %v3175, %v3182
      %v3196 = vmax.f32 %v3176, %v3184
      %v3197 = vmax.f32 %v3177, %v3181
      %v3198 = vmax.f32 %v3178, %v3183
      %v3199 = vrot.slane %v3079, 2
      %v3200 = vsel %vm521, %v3145, %v3199
      %v3201 = vrot.slane %v3080, 2
      %v3202 = vsel %vm521, %v3147, %v3201
      %v3207 = vmax.f32 %v3189, %v3138
      %v3208 = vmax.f32 %v3190, %v3140
      %v3209 = vmax.f32 %v3191, %v3142
      %v3210 = vmax.f32 %v3192, %v3144
      %v3211 = vmax.f32 %v3193, %v3146
      %v3212 = vmax.f32 %v3194, %v3148
      %v3213 = vmax.f32 %v3195, %v3200
      %v3214 = vmax.f32 %v3196, %v3202
      %v3215 = vmax.f32 %v3197, %v3199
      %v3216 = vmax.f32 %v3198, %v3201
      %v3217 = vmax.f32 %v3207, %v3073
      %v3218 = vmax.f32 %v3208, %v3074
      %v3219 = vmax.f32 %v3209, %v3075
      %v3220 = vmax.f32 %v3210, %v3076
      %v3221 = vmax.f32 %v3211, %v3077
      %v3222 = vmax.f32 %v3212, %v3078
      %v3223 = vmax.f32 %v3213, %v3079
      %v3224 = vmax.f32 %v3214, %v3080
      %v3225 = vmax.f32 %v3215, %v3081
      %v3226 = vmax.f32 %v3216, %v3082
      %v3229 = vrot.slane %v3081, 1
      %v3230 = vsel %vm709, %v3181, %v3229
      %v3231 = vrot.slane %v3082, 1
      %v3232 = vsel %vm709, %v3183, %v3231
      %v3237 = vmax.f32 %v3217, %v3104
      %v3238 = vmax.f32 %v3218, %v3106
      %v3239 = vmax.f32 %v3219, %v3108
      %v3240 = vmax.f32 %v3220, %v3110
      %v3241 = vmax.f32 %v3221, %v3182
      %v3242 = vmax.f32 %v3222, %v3184
      %v3243 = vmax.f32 %v3223, %v3230
      %v3244 = vmax.f32 %v3224, %v3232
      %v3245 = vmax.f32 %v3225, %v3229
      %v3246 = vmax.f32 %v3226, %v3231
      %v3247 = vrot.slane %v3081, 2
      %v3248 = vsel %vm521, %v3199, %v3247
      %v3249 = vrot.slane %v3082, 2
      %v3250 = vsel %vm521, %v3201, %v3249
      %v3255 = vmax.f32 %v3237, %v3142
      %v3256 = vmax.f32 %v3238, %v3144
      %v3257 = vmax.f32 %v3239, %v3146
      %v3258 = vmax.f32 %v3240, %v3148
      %v3259 = vmax.f32 %v3241, %v3200
      %v3260 = vmax.f32 %v3242, %v3202
      %v3261 = vmax.f32 %v3243, %v3248
      %v3262 = vmax.f32 %v3244, %v3250
      %v3263 = vmax.f32 %v3245, %v3247
      %v3264 = vmax.f32 %v3246, %v3249
      %v3265 = vld [vmem:[%s12] sm:$0xff]
      %v3266 = vld [vmem:[%s12 + $0x8] sm:$0xff]
      %v3267 = vld [vmem:[%s12 + $0x10] sm:$0xff]
      %v3268 = vld [vmem:[%s12 + $0x18] sm:$0xff]
      %v3269 = vld [vmem:[%s12 + $0x20] sm:$0xff]
      %v3270 = vld [vmem:[%s12 + $0x28] sm:$0xff]
      %v3271 = vld [vmem:[%s12 + $0x30] sm:$0xff]
      %v3272 = vld [vmem:[%s12 + $0x38] sm:$0xff]
      %v3273 = vld [vmem:[%s12 + $0x40] sm:$0xff]
      %v3274 = vld [vmem:[%s12 + $0x48] sm:$0xff]
      %v3275 = vld [vmem:[%s12 + $0x50] sm:$0xff]
      %v3276 = vld [vmem:[%s12 + $0x58] sm:$0xff]
      %v3277 = vld [vmem:[%s12 + $0x60] sm:$0xff]
      %v3278 = vld [vmem:[%s12 + $0x68] sm:$0xff]
      %v3279 = vld [vmem:[%s12 + $0x70] sm:$0xff]
      %v3280 = vld [vmem:[%s12 + $0x78] sm:$0xff]
      %v3281 = vld [vmem:[%s12 + $0x80] sm:$0xff]
      %v3282 = vld [vmem:[%s12 + $0x88] sm:$0xff]
      %v3283 = vld [vmem:[%s13] sm:$0x1]
      %v3285 = vlaneseq
      %v3286 = vshrl.u32 %v3285, 7
      %v3287 = vsub.s32 0, %v3286
      %v3288 = vrot.slane %v3283, %v3287
      %v3300 = vrot.slane %v3255, 1
      %v3301 = vrot.slane %v3257, 1
      %v3302 = vsel %vm709, %v3300, %v3301
      %v3303 = vrot.slane %v3256, 1
      %v3304 = vrot.slane %v3258, 1
      %v3305 = vsel %vm709, %v3303, %v3304
      %v3306 = vrot.slane %v3259, 1
      %v3307 = vsel %vm709, %v3301, %v3306
      %v3308 = vrot.slane %v3260, 1
      %v3309 = vsel %vm709, %v3304, %v3308
      %v3310 = vrot.slane %v3261, 1
      %v3311 = vsel %vm709, %v3306, %v3310
      %v3312 = vrot.slane %v3262, 1
      %v3313 = vsel %vm709, %v3308, %v3312
      %v3314 = vrot.slane %v3263, 1
      %v3315 = vsel %vm709, %v3310, %v3314
      %v3316 = vrot.slane %v3264, 1
      %v3317 = vsel %vm709, %v3312, %v3316
      %v3322 = vsel %vm544, %v3305, 0
      %v3324 = vsel %vm544, %v3309, 0
      %v3326 = vsel %vm544, %v3313, 0
      %v3328 = vsel %vm544, %v3317, 0
      %3330 = vmatprep.subr.mxu0 0.0
      %3331 = vmatpush1.msra.mxu0 %v3280
      %3332 = vmatprep.subr.mxu0 0.0
      %3333 = vmatpush1.msra.mxu0 %v3279
      %3334 = vmatprep.subr.mxu0 0.0
      %3335 = vmatpush1.msra.mxu0 %v3278
      %3336 = vmatprep.subr.mxu0 0.0
      %3337 = vmatpush1.msra.mxu0 %v3277
      %3338 = vmatprep.subr.mxu0 0.0
      %3339 = vmatpush1.msra.mxu0 %v3276
      %3340 = vmatprep.subr.mxu0 0.0
      %3341 = vmatpush1.msra.mxu0 %v3275
      %3342 = vmatprep.subr.mxu0 0.0
      %3343 = vmatpush1.msra.mxu0 %v3274
      %3344 = vmatprep.subr.mxu0 0.0
      %3345 = vmatpush1.msra.mxu0 %v3273
      %3346 = vmatprep.subr.mxu0 0.0
      %3347 = vmatpush1.msra.mxu0 %v3272
      %3348 = vmatprep.subr.mxu0 0.0
      %3349 = vmatpush1.msra.mxu0 %v3271
      %3350 = vmatprep.subr.mxu0 0.0
      %3351 = vmatpush1.msra.mxu0 %v3270
      %3352 = vmatprep.subr.mxu0 0.0
      %3353 = vmatpush1.msra.mxu0 %v3269
      %3354 = vmatprep.subr.mxu0 0.0
      %3355 = vmatpush1.msra.mxu0 %v3268
      %3356 = vmatprep.subr.mxu0 0.0
      %3357 = vmatpush1.msra.mxu0 %v3267
      %3358 = vmatprep.subr.mxu0 0.0
      %3359 = vmatpush1.msra.mxu0 %v3266
      %3360 = vmatprep.subr.mxu0 0.0
      %3361 = vmatpush1.msra.mxu0 %v3265
      %3362 = vmatprep.subr.mxu0 0.0
      %3363 = vmatpush2.msra.mxu0 0.0
      %3364 = vmatprep.subr.mxu0 0.0
      %3365 = vmatpush2.msra.mxu0 0.0
      %3366 = vmatprep.subr.mxu0 0.0
      %3367 = vmatpush2.msra.mxu0 0.0
      %3368 = vmatprep.subr.mxu0 0.0
      %3369 = vmatpush2.msra.mxu0 0.0
      %3370 = vmatprep.subr.mxu0 0.0
      %3371 = vmatpush2.msra.mxu0 0.0
      %3372 = vmatprep.subr.mxu0 0.0
      %3373 = vmatpush2.msra.mxu0 0.0
      %3374 = vmatprep.subr.mxu0 0.0
      %3375 = vmatpush2.msra.mxu0 0.0
      %3376 = vmatprep.subr.mxu0 0.0
      %3377 = vmatpush2.msra.mxu0 0.0
      %3378 = vmatprep.subr.mxu0 0.0
      %3379 = vmatpush2.msra.mxu0 0.0
      %3380 = vmatprep.subr.mxu0 0.0
      %3381 = vmatpush2.msra.mxu0 0.0
      %3382 = vmatprep.subr.mxu0 0.0
      %3383 = vmatpush2.msra.mxu0 0.0
      %3384 = vmatprep.subr.mxu0 0.0
      %3385 = vmatpush2.msra.mxu0 0.0
      %3386 = vmatprep.subr.mxu0 0.0
      %3387 = vmatpush2.msra.mxu0 0.0
      %3388 = vmatprep.subr.mxu0 0.0
      %3389 = vmatpush2.msra.mxu0 0.0
      %3390 = vmatprep.subr.mxu0 0.0
      %3391 = vmatpush2.msra.mxu0 %v3282
      %3392 = vmatprep.subr.mxu0 0.0
      %3393 = vmatpush2.msra.mxu0 %v3281
      %3394 = vmatprep.mubr.f32.mxu0 %v3322
      %3395 = vmatmul.mubr.f32.gmra.mxu0 %v3302
      %v3396 = vpop.f32.mrf.mxu0
      %v3397 = vadd.f32 %v3288, %v3396
      %v3398 = vpop.f32.mrf.mxu0
      %3399 = vmatprep.mubr.f32.mxu0 %v3324
      %3400 = vmatmul.mubr.f32.gmra.mxu0 %v3307
      %v3401 = vpop.f32.mrf.mxu0
      %v3402 = vadd.f32 %v3288, %v3401
      %v3403 = vpop.f32.mrf.mxu0
      %3404 = vmatprep.mubr.f32.mxu0 %v3326
      %3405 = vmatmul.mubr.f32.gmra.mxu0 %v3311
      %v3406 = vpop.f32.mrf.mxu0
      %v3407 = vadd.f32 %v3288, %v3406
      %v3408 = vpop.f32.mrf.mxu0
      %3409 = vmatprep.mubr.f32.mxu0 %v3328
      %3410 = vmatmul.mubr.f32.gmra.mxu0 %v3315
      %v3411 = vpop.f32.mrf.mxu0
      %v3412 = vadd.f32 %v3288, %v3411
      %v3413 = vpop.f32.mrf.mxu0
      %3414 = vdwg.mxu0
      %vm3415 = vcmp.gt.f32.partialorder %v3397, 0.0
      %vm3416 = vcmp.gt.f32.partialorder %v3402, 0.0
      %vm3417 = vcmp.gt.f32.partialorder %v3407, 0.0
      %vm3418 = vcmp.gt.f32.partialorder %v3412, 0.0
      %v3419 = vmul.f32 %v3397, 0.3
      %v3420 = vmul.f32 %v3402, 0.3
      %v3421 = vmul.f32 %v3407, 0.3
      %v3422 = vmul.f32 %v3412, 0.3
      %v3423 = vsel %vm3415, %v3397, %v3419
      %v3424 = vsel %vm3416, %v3402, %v3420
      %v3425 = vsel %vm3417, %v3407, %v3421
      %v3426 = vsel %vm3418, %v3412, %v3422
      %3431 = vrot.lane.b32.xlu0 %v3423, 112
      %v3432 = vpop.permute.xlu0 %3431
      %3433 = vrot.lane.b32.xlu0 %v3424, 112
      %v3434 = vpop.permute.xlu0 %3433
      %3435 = vrot.lane.b32.xlu0 %v3425, 112
      %v3436 = vpop.permute.xlu0 %3435
      %3437 = vrot.lane.b32.xlu0 %v3426, 112
      %v3438 = vpop.permute.xlu0 %3437
      %vm3443 = vcmask 1048448
      %3444 = vst.msk [vmem:[%s467] sm:$0xff] %vm3443, %v3432
      %3445 = vst.msk [vmem:[%s467 + $0x8] sm:$0xff] %vm544, %v3432
      %3446 = vst.msk [vmem:[%s467 + $0x10] sm:$0xff] %vm3443, %v3434
      %3447 = vst.msk [vmem:[%s467 + $0x18] sm:$0xff] %vm544, %v3434
      %3448 = vst.msk [vmem:[%s467 + $0x20] sm:$0xff] %vm3443, %v3436
      %3449 = vst.msk [vmem:[%s467 + $0x28] sm:$0xff] %vm544, %v3436
      %3450 = vst.msk [vmem:[%s467 + $0x30] sm:$0xff] %vm3443, %v3438
      %3451 = vst.msk [vmem:[%s467 + $0x38] sm:$0xff] %vm544, %v3438
      %p3452 = scmp.lt.s32.totalorder %s25, 1
      %s3453 = scalar_select %p3452, %s25, 1
      %s3454 = smul.addr %s3453, 8
      %s3455 = smul.addr %s3454, 8
      %s3456 = scalar_lea.vmem %s14, %s3455
      // Predicated region
      $region77: #{rdlinet_forward.8} parent=75 // pred_check
        %p3457 = pneg %p342
      $region78: #{rdlinet_forward.8} parent=75 // pred_check_branch
        %3459 = sbr.rel (%p3457) target = $region80
      $region79: #{rdlinet_forward.8} parent=75 // pred_region
        _
      $region80: #{rdlinet_forward.8} parent=75 // pred_fallthru
        _
    $region76: #{rdlinet_forward.8} parent=5 // pred_fallthru
      _
    %p3460 = scmp.le.s32.totalorder 2, %s20
    // Predicated region
    $region81: #{rdlinet_forward.8} parent=5 // pred_check
      %p3461 = pneg %p3460
    $region82: #{rdlinet_forward.8} parent=5 // pred_check_branch
      %3463 = sbr.rel (%p3461) target = $region84
    $region83: #{rdlinet_forward.8} parent=5 // pred_region
      %s3464 = ssub.s32 %s20, 2
      // Predicated region
      $region85: #{rdlinet_forward.8} parent=83 // pred_check
        %p3465 = pneg %p348
      $region86: #{rdlinet_forward.8} parent=83 // pred_check_branch
        %3467 = sbr.rel (%p3465) target = $region88
      $region87: #{rdlinet_forward.8} parent=83 // pred_region
        %p3468 = scmp.lt.s32.totalorder %s26, 1
        %s3469 = scalar_select %p3468, %s26, 1
        %s3470 = smul.addr %s3469, 8
        %s3471 = smul.addr %s3470, 8
        %s3472 = scalar_lea.vmem %s14, %s3471
      $region88: #{rdlinet_forward.8} parent=83 // pred_fallthru
        _
    $region84: #{rdlinet_forward.8} parent=5 // pred_fallthru
      _
  $region6: #{rdlinet_forward.8} parent=0 // loop_footer
    %s24 = sadd.s32 1, %s20
  $region7: #{rdlinet_forward.8} parent=0 // loop_footer_branch
    %19 = sbr.rel target = $region3
  $region8: #{rdlinet_forward.8} parent=0 // loop_exit
    _

</llo_original>
